<compile_context>
chip_gen: v6e
topology: v6e:2x2x1
jax: 0.10.0
libtpu: 0.0.40
codegen_flags: <defaults>
</compile_context>

<pallas_src>
import functools

import jax
import jax.numpy as jnp
from jax.experimental import pallas as pl
from jax.experimental.pallas import tpu as pltpu


# ----------------------------------------------------------------------------
# Single fused kernel (Bt images per grid step)
# ----------------------------------------------------------------------------

def _net_kernel(x_ref, t1_ref, b1_ref, m2_ref, b2_ref,
                w3_ref, b3_ref, w4_ref, b4_ref, o_ref):
    """Fused Net forward for one batch tile.

    x_ref : (Bt, 32, 28)   bf16  input images, H padded 28->32 with zeros
    t1_ref: (28, 1248)     bf16  conv1 row-conv matrices, cols = kh*416 + w*16 + oc
    b1_ref: (1, 416)       f32   conv1 bias tiled over the 26 W positions
    m2_ref: (3, 416, 768)  bf16  conv2 banded matrices, cols = par*384 + pw*32 + oc2
    b2_ref: (1, 384)       f32   conv2 bias tiled over the 12 pooled W positions
    w3_ref: (4608, 64)     bf16  fc1 weights, rows in (ph, pw, oc) flatten order
    b3_ref: (1, 64)        f32
    w4_ref: (64, 10)       bf16
    b4_ref: (1, 10)        f32
    o_ref : (Bt, 10)       f32   log-probabilities
    """
    bt = x_ref.shape[0]
    n = bt * 32                                      # stacked M: rows = b*32 + h

    # --- conv1 (1->16, 3x3, valid): ONE MXU matmul over all stacked image rows.
    # Vertical taps (kh=1,2) become sublane rolls of the f32 result (row r -> r+k).
    x = x_ref[...].reshape(n, 28)                    # bf16
    v = jnp.dot(x, t1_ref[...], preferred_element_type=jnp.float32)    # (n, 1248)
    y1 = (v[:, 0:416]
          + pltpu.roll(v[:, 416:832], shift=n - 1, axis=0)
          + pltpu.roll(v[:, 832:1248], shift=n - 2, axis=0)
          + b1_ref[...])
    y1 = jnp.maximum(y1, 0.0).astype(jnp.bfloat16)   # (n, 416): cast once

    # --- conv2 (16->32, 3x3, valid): 3 matmuls; even/odd output columns share N.
    z0 = jnp.dot(y1, m2_ref[0], preferred_element_type=jnp.float32)    # (n, 768)
    z1 = jnp.dot(y1, m2_ref[1], preferred_element_type=jnp.float32)
    z2 = jnp.dot(y1, m2_ref[2], preferred_element_type=jnp.float32)
    z = (z0 + pltpu.roll(z1, shift=n - 1, axis=0)
            + pltpu.roll(z2, shift=n - 2, axis=0))

    # Width direction of the 2x2 pool is the even/odd-column max; per-channel
    # bias + ReLU commute with the max (monotone).
    zw = jnp.maximum(jnp.maximum(z[:, 0:384], z[:, 384:768]) + b2_ref[...], 0.0)
    # Height direction: neighbour-row max; valid pooled rows sit at r = b*32 + 2*ph.
    mh = jnp.maximum(zw, pltpu.roll(zw, shift=n - 1, axis=0))           # (n, 384)

    # --- flatten to (Bt, 4608) in (ph, pw, oc) order: per-image 32-row groups are
    # tile aligned, so this is 12 sublane extractions + a lane concatenation.
    mh3 = mh.reshape(bt, 32, 384)
    flat = jnp.concatenate([mh3[:, 2 * ph, :] for ph in range(12)],
                           axis=-1).astype(jnp.bfloat16)                # (Bt, 4608)

    # --- fc1 + ReLU + fc2 + log_softmax
    h = jnp.dot(flat, w3_ref[...], preferred_element_type=jnp.float32) + b3_ref[...]
    h = jnp.maximum(h, 0.0).astype(jnp.bfloat16)
    logits = jnp.dot(h, w4_ref[...], preferred_element_type=jnp.float32) + b4_ref[...]
    m = jnp.max(logits, axis=-1, keepdims=True)
    s = logits - m
    lse = jnp.log(jnp.sum(jnp.exp(s), axis=-1, keepdims=True))
    o_ref[...] = (s - lse).astype(o_ref.dtype)


def _net_pallas(x32, kp, bt):
    """x32: (B_pad, 32, 28) bf16 -> (B_pad, 10) f32 log-probabilities."""
    b_pad = x32.shape[0]
    return pl.pallas_call(
        _net_kernel,
        out_shape=jax.ShapeDtypeStruct((b_pad, 10), jnp.float32),
        grid=(b_pad // bt,),
        in_specs=[
            pl.BlockSpec((bt, 32, 28), lambda i: (i, 0, 0)),
            pl.BlockSpec((28, 1248), lambda i: (0, 0)),
            pl.BlockSpec((1, 416), lambda i: (0, 0)),
            pl.BlockSpec((3, 416, 768), lambda i: (0, 0, 0)),
            pl.BlockSpec((1, 384), lambda i: (0, 0)),
            pl.BlockSpec((4608, 64), lambda i: (0, 0)),
            pl.BlockSpec((1, 64), lambda i: (0, 0)),
            pl.BlockSpec((64, 10), lambda i: (0, 0)),
            pl.BlockSpec((1, 10), lambda i: (0, 0)),
        ],
        out_specs=pl.BlockSpec((bt, 10), lambda i: (i, 0)),
        compiler_params=pltpu.CompilerParams(dimension_semantics=("parallel",)),
    )(x32, kp["t1"], kp["b1"], kp["m2"], kp["b2"],
      kp["w3"], kp["b3"], kp["w4"], kp["b4"])


@functools.partial(jax.jit, static_argnames=("batch_tile",))
def net_forward(x_nchw, kp, batch_tile=8):
    """x_nchw: (B, 1, 28, 28) f32 -> (B, 10) f32 log-probabilities (eval mode).

    batch_tile=8 gives a stacked matmul M of 256 rows per grid step (fills the
    v6e/v7x 256-row MXU, two clean passes on v5e's 128-row MXU) and keeps the
    grid length B/8 >= 2 for v7x megacore whenever B >= 16.
    """
    B = x_nchw.shape[0]
    bt = batch_tile if B >= batch_tile else B
    b_pad = pl.cdiv(B, bt) * bt
    # C_in == 1, so NCHW -> "NHW" is a pure reshape; cast to bf16 in the wrapper
    # (halves input DMA) and pad H 28 -> 32 so per-image row groups are tile aligned.
    x = x_nchw.reshape(B, 28, 28).astype(jnp.bfloat16)
    x = jnp.pad(x, ((0, b_pad - B), (0, 4), (0, 0)))
    out = _net_pallas(x, kp, bt)
    return out[:B]


# ----------------------------------------------------------------------------
# Parameters: PyTorch-shaped init + one-time conversion to kernel layout
# ----------------------------------------------------------------------------

def init_params(key):
    """Deterministic synthetic init mirroring the PyTorch layer shapes."""
    ks = jax.random.split(key, 8)

    def u(k, shape, fan_in):
        bound = 1.0 / jnp.sqrt(jnp.float32(fan_in))
        return jax.random.uniform(k, shape, jnp.float32, -bound, bound)

    return {
        "conv1_w": u(ks[0], (16, 1, 3, 3), 9),
        "conv1_b": u(ks[1], (16,), 9),
        "conv2_w": u(ks[2], (32, 16, 3, 3), 144),
        "conv2_b": u(ks[3], (32,), 144),
        "fc1_w":   u(ks[4], (64, 4608), 4608),
        "fc1_b":   u(ks[5], (64,), 4608),
        "fc2_w":   u(ks[6], (10, 64), 64),
        "fc2_b":   u(ks[7], (10,), 64),
    }


def prepare_params(p):
    """One-time conversion of PyTorch-layout params into kernel-ready tensors."""
    f32, bf16 = jnp.float32, jnp.bfloat16

    # conv1 row-conv matrices: t1[j, kh*416 + w*16 + oc] = W1[oc,0,kh, j-w] (0<=j-w<3).
    w1 = jnp.transpose(p["conv1_w"], (2, 3, 1, 0)).reshape(3, 3, 16)   # [kh, kw, oc]
    j_idx = jnp.arange(28)[:, None]
    w_idx = jnp.arange(26)[None, :]
    off = j_idx - w_idx                                    # (28, 26)
    mask = (off >= 0) & (off <= 2)
    t1 = w1[:, jnp.clip(off, 0, 2), :]                     # (3, 28, 26, 16)
    t1 = jnp.where(mask[None, :, :, None], t1, 0.0)
    t1 = t1.reshape(3, 28, 416)
    t1 = jnp.transpose(t1, (1, 0, 2)).reshape(28, 3 * 416).astype(bf16)  # (28, 1248)
    b1 = jnp.tile(p["conv1_b"], 26).reshape(1, 416).astype(f32)

    # conv2 banded matrices, even/odd output columns packed along N:
    #   m2[kh][w*16+ic, par*384 + pw*32 + oc2] = W2[oc2, ic, kh, w - (2*pw + par)].
    w2 = jnp.transpose(p["conv2_w"], (2, 3, 1, 0))         # (3, 3, 16, 32) [kh,kw,ic,oc]
    wi = jnp.arange(26)[:, None]
    pwi = jnp.arange(12)[None, :]
    m2_parts = []
    for par in range(2):
        off2 = wi - (2 * pwi + par)                        # (26, 12)
        mask2 = (off2 >= 0) & (off2 <= 2)
        blk = w2[:, jnp.clip(off2, 0, 2), :, :]            # (3, 26, 12, 16, 32)
        blk = jnp.where(mask2[None, :, :, None, None], blk, 0.0)
        blk = jnp.transpose(blk, (0, 1, 3, 2, 4))          # (3, 26, 16, 12, 32)
        m2_parts.append(blk.reshape(3, 416, 384))
    m2 = jnp.concatenate(m2_parts, axis=-1).astype(bf16)   # (3, 416, 768)
    b2 = jnp.tile(p["conv2_b"], 12).reshape(1, 384).astype(f32)

    # fc1: PyTorch columns are NCHW-flatten (c*144 + ph*12 + pw); re-order rows to
    # the (ph*384 + pw*32 + c) order produced by the kernel's flatten.
    w3 = p["fc1_w"].reshape(64, 32, 12, 12)
    w3 = jnp.transpose(w3, (2, 3, 1, 0)).reshape(4608, 64).astype(bf16)
    b3 = p["fc1_b"].reshape(1, 64).astype(f32)
    w4 = jnp.transpose(p["fc2_w"], (1, 0)).astype(bf16)    # (64, 10)
    b4 = p["fc2_b"].reshape(1, 10).astype(f32)

    return {"t1": t1, "b1": b1, "m2": m2, "b2": b2,
            "w3": w3, "b3": b3, "w4": w4, "b4": b4}


# ----------------------------------------------------------------------------
# Pure-JAX f32 reference (mirrors the PyTorch module, eval mode)
# ----------------------------------------------------------------------------

def reference_forward(x_nchw, p):
    B = x_nchw.shape[0]
    x = jnp.transpose(x_nchw, (0, 2, 3, 1)).astype(jnp.float32)

    def conv_valid(x, w, b):
        OC, IC, KH, KW = w.shape
        H, W = x.shape[1], x.shape[2]
        OH, OW = H - KH + 1, W - KW + 1
        cols = [x[:, i:i + OH, j:j + OW, :] for i in range(KH) for j in range(KW)]
        pmat = jnp.concatenate(cols, axis=-1).reshape(B * OH * OW, KH * KW * IC)
        wmat = jnp.transpose(w, (2, 3, 1, 0)).reshape(KH * KW * IC, OC)
        return (pmat @ wmat + b).reshape(B, OH, OW, OC)

    y1 = jax.nn.relu(conv_valid(x, p["conv1_w"], p["conv1_b"]))
    y2 = jax.nn.relu(conv_valid(y1, p["conv2_w"], p["conv2_b"]))
    y3 = jnp.maximum(jnp.maximum(y2[:, 0::2, 0::2, :], y2[:, 0::2, 1::2, :]),
                     jnp.maximum(y2[:, 1::2, 0::2, :], y2[:, 1::2, 1::2, :]))
    flat = jnp.transpose(y3, (0, 3, 1, 2)).reshape(B, -1)        # PyTorch flatten order
    h = jax.nn.relu(flat @ p["fc1_w"].T + p["fc1_b"])
    logits = h @ p["fc2_w"].T + p["fc2_b"]
    return jax.nn.log_softmax(logits, axis=-1)


if __name__ == "__main__":
    key = jax.random.PRNGKey(0)
    k_x, k_p = jax.random.split(key)

    # fc1 expects 4608 = 32*12*12 features => conv input must be (B, 1, 28, 28).
    x = jax.random.normal(k_x, (2, 1, 28, 28), dtype=jnp.float32)
    params = init_params(k_p)
    kparams = prepare_params(params)

    out = jax.block_until_ready(net_forward(x, kparams))

    assert out.shape == (2, 10)
    assert bool(jnp.all(jnp.isfinite(out)))
    # log_softmax rows must exp-sum to ~1.
    assert bool(jnp.allclose(jnp.sum(jnp.exp(out), axis=1), 1.0, atol=1e-3))
    # Cross-check against the pure-JAX f32 reference (bf16 MXU inputs => loose tol).
    ref = reference_forward(x, params)
    err = float(jnp.max(jnp.abs(out - ref)))
    assert err < 0.1, err

    print("KERNEL_OK")
</pallas_src>

<mosaic_0001>
module attributes {stable_mosaic.version = 11 : i64} {
  func.func @_net_kernel(%arg0: i32, %arg1: memref<2x32x28xbf16, #tpu.memory_space<vmem>>, %arg2: memref<28x1248xbf16, #tpu.memory_space<vmem>>, %arg3: memref<1x416xf32, #tpu.memory_space<vmem>>, %arg4: memref<3x416x768xbf16, #tpu.memory_space<vmem>>, %arg5: memref<1x384xf32, #tpu.memory_space<vmem>>, %arg6: memref<4608x64xbf16, #tpu.memory_space<vmem>>, %arg7: memref<1x64xf32, #tpu.memory_space<vmem>>, %arg8: memref<64x10xbf16, #tpu.memory_space<vmem>>, %arg9: memref<1x10xf32, #tpu.memory_space<vmem>>, %arg10: memref<2x10xf32, #tpu.memory_space<vmem>>) attributes {dimension_semantics = [#tpu.dimension_semantics<parallel>], iteration_bounds = array<i64: 1>, scalar_prefetch = 0 : i64, scratch_operands = 0 : i64, tpu.core_type = #tpu.core_type<tc>, window_params = [{transform_indices = @transform_0, window_bounds = array<i64: 2, 32, 28>}, {pipeline_mode = #tpu.pipeline_mode<synchronous>, transform_indices = @transform_1, window_bounds = array<i64: 28, 1248>}, {pipeline_mode = #tpu.pipeline_mode<synchronous>, transform_indices = @transform_2, window_bounds = array<i64: 1, 416>}, {pipeline_mode = #tpu.pipeline_mode<synchronous>, transform_indices = @transform_3, window_bounds = array<i64: 3, 416, 768>}, {pipeline_mode = #tpu.pipeline_mode<synchronous>, transform_indices = @transform_4, window_bounds = array<i64: 1, 384>}, {pipeline_mode = #tpu.pipeline_mode<synchronous>, transform_indices = @transform_5, window_bounds = array<i64: 4608, 64>}, {pipeline_mode = #tpu.pipeline_mode<synchronous>, transform_indices = @transform_6, window_bounds = array<i64: 1, 64>}, {pipeline_mode = #tpu.pipeline_mode<synchronous>, transform_indices = @transform_7, window_bounds = array<i64: 64, 10>}, {pipeline_mode = #tpu.pipeline_mode<synchronous>, transform_indices = @transform_8, window_bounds = array<i64: 1, 10>}, {transform_indices = @transform_9, window_bounds = array<i64: 2, 10>}]} {
    %c0 = arith.constant 0 : index
    %c0_0 = arith.constant 0 : index
    %c0_1 = arith.constant 0 : index
    %0 = vector.load %arg1[%c0, %c0_0, %c0_1] : memref<2x32x28xbf16, #tpu.memory_space<vmem>>, vector<2x32x28xbf16>
    %1 = vector.shape_cast %0 : vector<2x32x28xbf16> to vector<64x28xbf16>
    %c0_2 = arith.constant 0 : index
    %c0_3 = arith.constant 0 : index
    %2 = vector.load %arg2[%c0_2, %c0_3] : memref<28x1248xbf16, #tpu.memory_space<vmem>>, vector<28x1248xbf16>
    %cst = arith.constant dense<0.000000e+00> : vector<64x1248xf32>
    %3 = tpu.matmul %1, %2, %cst {dimension_numbers = #tpu.dot_dimension_numbers<[1], [0], [0], [1], [0, 0, 1, 1], [], []>} : vector<64x28xbf16>, vector<28x1248xbf16>, vector<64x1248xf32> -> vector<64x1248xf32>
    %4 = vector.extract_strided_slice %3 {offsets = [0, 0], sizes = [64, 416], strides = [1, 1]} : vector<64x1248xf32> to vector<64x416xf32>
    %5 = vector.extract_strided_slice %3 {offsets = [0, 416], sizes = [64, 416], strides = [1, 1]} : vector<64x1248xf32> to vector<64x416xf32>
    %c63_i32 = arith.constant 63 : i32
    %6 = tpu.dynamic_rotate %5 by %c63_i32 dim 0 : vector<64x416xf32>, i32 -> vector<64x416xf32>
    %7 = arith.addf %4, %6 : vector<64x416xf32>
    %8 = vector.extract_strided_slice %3 {offsets = [0, 832], sizes = [64, 416], strides = [1, 1]} : vector<64x1248xf32> to vector<64x416xf32>
    %c62_i32 = arith.constant 62 : i32
    %9 = tpu.dynamic_rotate %8 by %c62_i32 dim 0 : vector<64x416xf32>, i32 -> vector<64x416xf32>
    %10 = arith.addf %7, %9 : vector<64x416xf32>
    %c0_4 = arith.constant 0 : index
    %c0_5 = arith.constant 0 : index
    %11 = vector.load %arg3[%c0_4, %c0_5] : memref<1x416xf32, #tpu.memory_space<vmem>>, vector<1x416xf32>
    %12 = vector.broadcast %11 : vector<1x416xf32> to vector<64x416xf32>
    %13 = arith.addf %10, %12 : vector<64x416xf32>
    %cst_6 = arith.constant 0.000000e+00 : f32
    %14 = vector.broadcast %cst_6 : f32 to vector<64x416xf32>
    %15 = arith.maximumf %13, %14 : vector<64x416xf32>
    %16 = arith.truncf %15 : vector<64x416xf32> to vector<64x416xbf16>
    %c0_7 = arith.constant 0 : index
    %c0_8 = arith.constant 0 : index
    %c0_9 = arith.constant 0 : index
    %17 = vector.load %arg4[%c0_7, %c0_8, %c0_9] : memref<3x416x768xbf16, #tpu.memory_space<vmem>>, vector<1x416x768xbf16>
    %18 = vector.shape_cast %17 : vector<1x416x768xbf16> to vector<416x768xbf16>
    %cst_10 = arith.constant dense<0.000000e+00> : vector<64x768xf32>
    %19 = tpu.matmul %16, %18, %cst_10 {dimension_numbers = #tpu.dot_dimension_numbers<[1], [0], [0], [1], [0, 0, 1, 1], [], []>} : vector<64x416xbf16>, vector<416x768xbf16>, vector<64x768xf32> -> vector<64x768xf32>
    %c1 = arith.constant 1 : index
    %c0_11 = arith.constant 0 : index
    %c0_12 = arith.constant 0 : index
    %20 = vector.load %arg4[%c1, %c0_11, %c0_12] : memref<3x416x768xbf16, #tpu.memory_space<vmem>>, vector<1x416x768xbf16>
    %21 = vector.shape_cast %20 : vector<1x416x768xbf16> to vector<416x768xbf16>
    %cst_13 = arith.constant dense<0.000000e+00> : vector<64x768xf32>
    %22 = tpu.matmul %16, %21, %cst_13 {dimension_numbers = #tpu.dot_dimension_numbers<[1], [0], [0], [1], [0, 0, 1, 1], [], []>} : vector<64x416xbf16>, vector<416x768xbf16>, vector<64x768xf32> -> vector<64x768xf32>
    %c2 = arith.constant 2 : index
    %c0_14 = arith.constant 0 : index
    %c0_15 = arith.constant 0 : index
    %23 = vector.load %arg4[%c2, %c0_14, %c0_15] : memref<3x416x768xbf16, #tpu.memory_space<vmem>>, vector<1x416x768xbf16>
    %24 = vector.shape_cast %23 : vector<1x416x768xbf16> to vector<416x768xbf16>
    %cst_16 = arith.constant dense<0.000000e+00> : vector<64x768xf32>
    %25 = tpu.matmul %16, %24, %cst_16 {dimension_numbers = #tpu.dot_dimension_numbers<[1], [0], [0], [1], [0, 0, 1, 1], [], []>} : vector<64x416xbf16>, vector<416x768xbf16>, vector<64x768xf32> -> vector<64x768xf32>
    %c63_i32_17 = arith.constant 63 : i32
    %26 = tpu.dynamic_rotate %22 by %c63_i32_17 dim 0 : vector<64x768xf32>, i32 -> vector<64x768xf32>
    %27 = arith.addf %19, %26 : vector<64x768xf32>
    %c62_i32_18 = arith.constant 62 : i32
    %28 = tpu.dynamic_rotate %25 by %c62_i32_18 dim 0 : vector<64x768xf32>, i32 -> vector<64x768xf32>
    %29 = arith.addf %27, %28 : vector<64x768xf32>
    %30 = vector.extract_strided_slice %29 {offsets = [0, 0], sizes = [64, 384], strides = [1, 1]} : vector<64x768xf32> to vector<64x384xf32>
    %31 = vector.extract_strided_slice %29 {offsets = [0, 384], sizes = [64, 384], strides = [1, 1]} : vector<64x768xf32> to vector<64x384xf32>
    %32 = arith.maximumf %30, %31 : vector<64x384xf32>
    %c0_19 = arith.constant 0 : index
    %c0_20 = arith.constant 0 : index
    %33 = vector.load %arg5[%c0_19, %c0_20] : memref<1x384xf32, #tpu.memory_space<vmem>>, vector<1x384xf32>
    %34 = vector.broadcast %33 : vector<1x384xf32> to vector<64x384xf32>
    %35 = arith.addf %32, %34 : vector<64x384xf32>
    %cst_21 = arith.constant 0.000000e+00 : f32
    %36 = vector.broadcast %cst_21 : f32 to vector<64x384xf32>
    %37 = arith.maximumf %35, %36 : vector<64x384xf32>
    %c63_i32_22 = arith.constant 63 : i32
    %38 = tpu.dynamic_rotate %37 by %c63_i32_22 dim 0 : vector<64x384xf32>, i32 -> vector<64x384xf32>
    %39 = arith.maximumf %37, %38 : vector<64x384xf32>
    %40 = vector.shape_cast %39 : vector<64x384xf32> to vector<2x32x384xf32>
    %41 = vector.extract_strided_slice %40 {offsets = [0, 0, 0], sizes = [2, 1, 384], strides = [1, 1, 1]} : vector<2x32x384xf32> to vector<2x1x384xf32>
    %42 = vector.shape_cast %41 : vector<2x1x384xf32> to vector<2x384xf32>
    %43 = vector.extract_strided_slice %40 {offsets = [0, 2, 0], sizes = [2, 1, 384], strides = [1, 1, 1]} : vector<2x32x384xf32> to vector<2x1x384xf32>
    %44 = vector.shape_cast %43 : vector<2x1x384xf32> to vector<2x384xf32>
    %45 = vector.extract_strided_slice %40 {offsets = [0, 4, 0], sizes = [2, 1, 384], strides = [1, 1, 1]} : vector<2x32x384xf32> to vector<2x1x384xf32>
    %46 = vector.shape_cast %45 : vector<2x1x384xf32> to vector<2x384xf32>
    %47 = vector.extract_strided_slice %40 {offsets = [0, 6, 0], sizes = [2, 1, 384], strides = [1, 1, 1]} : vector<2x32x384xf32> to vector<2x1x384xf32>
    %48 = vector.shape_cast %47 : vector<2x1x384xf32> to vector<2x384xf32>
    %49 = vector.extract_strided_slice %40 {offsets = [0, 8, 0], sizes = [2, 1, 384], strides = [1, 1, 1]} : vector<2x32x384xf32> to vector<2x1x384xf32>
    %50 = vector.shape_cast %49 : vector<2x1x384xf32> to vector<2x384xf32>
    %51 = vector.extract_strided_slice %40 {offsets = [0, 10, 0], sizes = [2, 1, 384], strides = [1, 1, 1]} : vector<2x32x384xf32> to vector<2x1x384xf32>
    %52 = vector.shape_cast %51 : vector<2x1x384xf32> to vector<2x384xf32>
    %53 = vector.extract_strided_slice %40 {offsets = [0, 12, 0], sizes = [2, 1, 384], strides = [1, 1, 1]} : vector<2x32x384xf32> to vector<2x1x384xf32>
    %54 = vector.shape_cast %53 : vector<2x1x384xf32> to vector<2x384xf32>
    %55 = vector.extract_strided_slice %40 {offsets = [0, 14, 0], sizes = [2, 1, 384], strides = [1, 1, 1]} : vector<2x32x384xf32> to vector<2x1x384xf32>
    %56 = vector.shape_cast %55 : vector<2x1x384xf32> to vector<2x384xf32>
    %57 = vector.extract_strided_slice %40 {offsets = [0, 16, 0], sizes = [2, 1, 384], strides = [1, 1, 1]} : vector<2x32x384xf32> to vector<2x1x384xf32>
    %58 = vector.shape_cast %57 : vector<2x1x384xf32> to vector<2x384xf32>
    %59 = vector.extract_strided_slice %40 {offsets = [0, 18, 0], sizes = [2, 1, 384], strides = [1, 1, 1]} : vector<2x32x384xf32> to vector<2x1x384xf32>
    %60 = vector.shape_cast %59 : vector<2x1x384xf32> to vector<2x384xf32>
    %61 = vector.extract_strided_slice %40 {offsets = [0, 20, 0], sizes = [2, 1, 384], strides = [1, 1, 1]} : vector<2x32x384xf32> to vector<2x1x384xf32>
    %62 = vector.shape_cast %61 : vector<2x1x384xf32> to vector<2x384xf32>
    %63 = vector.extract_strided_slice %40 {offsets = [0, 22, 0], sizes = [2, 1, 384], strides = [1, 1, 1]} : vector<2x32x384xf32> to vector<2x1x384xf32>
    %64 = vector.shape_cast %63 : vector<2x1x384xf32> to vector<2x384xf32>
    %65 = tpu.concatenate %42, %44, %46, %48, %50, %52, %54, %56, %58, %60, %62, %64 in 1 : vector<2x384xf32>, vector<2x384xf32>, vector<2x384xf32>, vector<2x384xf32>, vector<2x384xf32>, vector<2x384xf32>, vector<2x384xf32>, vector<2x384xf32>, vector<2x384xf32>, vector<2x384xf32>, vector<2x384xf32>, vector<2x384xf32> -> vector<2x4608xf32>
    %66 = arith.truncf %65 : vector<2x4608xf32> to vector<2x4608xbf16>
    %c0_23 = arith.constant 0 : index
    %c0_24 = arith.constant 0 : index
    %67 = vector.load %arg6[%c0_23, %c0_24] : memref<4608x64xbf16, #tpu.memory_space<vmem>>, vector<4608x64xbf16>
    %cst_25 = arith.constant dense<0.000000e+00> : vector<2x64xf32>
    %68 = tpu.matmul %66, %67, %cst_25 {dimension_numbers = #tpu.dot_dimension_numbers<[1], [0], [0], [1], [0, 0, 1, 1], [], []>} : vector<2x4608xbf16>, vector<4608x64xbf16>, vector<2x64xf32> -> vector<2x64xf32>
    %c0_26 = arith.constant 0 : index
    %c0_27 = arith.constant 0 : index
    %69 = vector.load %arg7[%c0_26, %c0_27] : memref<1x64xf32, #tpu.memory_space<vmem>>, vector<1x64xf32>
    %70 = vector.broadcast %69 : vector<1x64xf32> to vector<2x64xf32>
    %71 = arith.addf %68, %70 : vector<2x64xf32>
    %cst_28 = arith.constant 0.000000e+00 : f32
    %72 = vector.broadcast %cst_28 : f32 to vector<2x64xf32>
    %73 = arith.maximumf %71, %72 : vector<2x64xf32>
    %74 = arith.truncf %73 : vector<2x64xf32> to vector<2x64xbf16>
    %c0_29 = arith.constant 0 : index
    %c0_30 = arith.constant 0 : index
    %75 = vector.load %arg8[%c0_29, %c0_30] : memref<64x10xbf16, #tpu.memory_space<vmem>>, vector<64x10xbf16>
    %cst_31 = arith.constant dense<0.000000e+00> : vector<2x10xf32>
    %76 = tpu.matmul %74, %75, %cst_31 {dimension_numbers = #tpu.dot_dimension_numbers<[1], [0], [0], [1], [0, 0, 1, 1], [], []>} : vector<2x64xbf16>, vector<64x10xbf16>, vector<2x10xf32> -> vector<2x10xf32>
    %c0_32 = arith.constant 0 : index
    %c0_33 = arith.constant 0 : index
    %77 = vector.load %arg9[%c0_32, %c0_33] : memref<1x10xf32, #tpu.memory_space<vmem>>, vector<1x10xf32>
    %78 = vector.broadcast %77 : vector<1x10xf32> to vector<2x10xf32>
    %79 = arith.addf %76, %78 : vector<2x10xf32>
    %cst_34 = arith.constant dense<0xFF800000> : vector<2xf32>
    %80 = vector.multi_reduction <maximumf>, %79, %cst_34 [1] : vector<2x10xf32> to vector<2xf32>
    %81 = vector.shape_cast %80 : vector<2xf32> to vector<2x1xf32>
    %82 = vector.broadcast %81 : vector<2x1xf32> to vector<2x10xf32>
    %83 = arith.subf %79, %82 : vector<2x10xf32>
    %84 = math.exp %83 : vector<2x10xf32>
    %cst_35 = arith.constant dense<0.000000e+00> : vector<2xf32>
    %85 = vector.multi_reduction <add>, %84, %cst_35 [1] : vector<2x10xf32> to vector<2xf32>
    %86 = vector.shape_cast %85 : vector<2xf32> to vector<2x1xf32>
    %87 = math.log %86 : vector<2x1xf32>
    %88 = vector.broadcast %87 : vector<2x1xf32> to vector<2x10xf32>
    %89 = arith.subf %83, %88 : vector<2x10xf32>
    %c0_36 = arith.constant 0 : index
    %c0_37 = arith.constant 0 : index
    %90 = vector.load %arg10[%c0_36, %c0_37] : memref<2x10xf32, #tpu.memory_space<vmem>>, vector<2x10xf32>
    tpu.vector_store %arg10[%c0_36, %c0_37], %89 {strides = array<i32>} : memref<2x10xf32, #tpu.memory_space<vmem>>, vector<2x10xf32>,
    return
  }
  func.func @transform_0(%arg0: i32) -> (i32, i32, i32) {
    %c0_i32 = arith.constant 0 : i32
    %c0_i32_0 = arith.constant 0 : i32
    %c0_i32_1 = arith.constant 0 : i32
    return %arg0, %c0_i32, %c0_i32_0 : i32, i32, i32
  }
  func.func @transform_1(%arg0: i32) -> (i32, i32) {
    %c0_i32 = arith.constant 0 : i32
    %c0_i32_0 = arith.constant 0 : i32
    %c0_i32_1 = arith.constant 0 : i32
    return %c0_i32, %c0_i32_0 : i32, i32
  }
  func.func @transform_2(%arg0: i32) -> (i32, i32) {
    %c0_i32 = arith.constant 0 : i32
    %c0_i32_0 = arith.constant 0 : i32
    %c0_i32_1 = arith.constant 0 : i32
    return %c0_i32, %c0_i32_0 : i32, i32
  }
  func.func @transform_3(%arg0: i32) -> (i32, i32, i32) {
    %c0_i32 = arith.constant 0 : i32
    %c0_i32_0 = arith.constant 0 : i32
    %c0_i32_1 = arith.constant 0 : i32
    %c0_i32_2 = arith.constant 0 : i32
    return %c0_i32, %c0_i32_0, %c0_i32_1 : i32, i32, i32
  }
  func.func @transform_4(%arg0: i32) -> (i32, i32) {
    %c0_i32 = arith.constant 0 : i32
    %c0_i32_0 = arith.constant 0 : i32
    %c0_i32_1 = arith.constant 0 : i32
    return %c0_i32, %c0_i32_0 : i32, i32
  }
  func.func @transform_5(%arg0: i32) -> (i32, i32) {
    %c0_i32 = arith.constant 0 : i32
    %c0_i32_0 = arith.constant 0 : i32
    %c0_i32_1 = arith.constant 0 : i32
    return %c0_i32, %c0_i32_0 : i32, i32
  }
  func.func @transform_6(%arg0: i32) -> (i32, i32) {
    %c0_i32 = arith.constant 0 : i32
    %c0_i32_0 = arith.constant 0 : i32
    %c0_i32_1 = arith.constant 0 : i32
    return %c0_i32, %c0_i32_0 : i32, i32
  }
  func.func @transform_7(%arg0: i32) -> (i32, i32) {
    %c0_i32 = arith.constant 0 : i32
    %c0_i32_0 = arith.constant 0 : i32
    %c0_i32_1 = arith.constant 0 : i32
    return %c0_i32, %c0_i32_0 : i32, i32
  }
  func.func @transform_8(%arg0: i32) -> (i32, i32) {
    %c0_i32 = arith.constant 0 : i32
    %c0_i32_0 = arith.constant 0 : i32
    %c0_i32_1 = arith.constant 0 : i32
    return %c0_i32, %c0_i32_0 : i32, i32
  }
  func.func @transform_9(%arg0: i32) -> (i32, i32) {
    %c0_i32 = arith.constant 0 : i32
    %c0_i32_0 = arith.constant 0 : i32
    return %arg0, %c0_i32 : i32, i32
  }
}

</mosaic_0001>

<llo_original>
// kernel: net_forward.1
$region0: #{net_forward.1}
  #allocation0 [shape = 'u32[]', space=smem, size = 0x4, offset = 0x4, fixed_abs, tag = 'smem constant byte address 0x4 - core index']
  #allocation1 [shape = 'u32[144,128]{1,0:T(1,128)}', space=vmem, size = 0x12000, scoped, tag = 'internal scratch']
  %s0 = inlined_call_operand.vmem [shape: bf16[2,32,28], index: 0, kind: input, shape index: {}]
  %s1 = inlined_call_operand.vmem [shape: bf16[28,1248], index: 1, kind: input, shape index: {}]
  %s2 = inlined_call_operand.hbm [shape: f32[1,416], index: 2, kind: input, shape index: {}]
  %s3 = inlined_call_operand.hbm [shape: bf16[3,416,768], index: 3, kind: input, shape index: {}]
  %s4 = inlined_call_operand.hbm [shape: f32[1,384], index: 4, kind: input, shape index: {}]
  %s5 = inlined_call_operand.vmem [shape: bf16[4608,64], index: 5, kind: input, shape index: {}]
  %s6 = inlined_call_operand.hbm [shape: f32[1,64], index: 6, kind: input, shape index: {}]
  %s7 = inlined_call_operand.vmem [shape: bf16[64,10], index: 7, kind: input, shape index: {}]
  %s8 = inlined_call_operand.hbm [shape: f32[1,10], index: 8, kind: input, shape index: {}]
  %s9 = inlined_call_operand.hbm [shape: f32[2,10], index: 9, kind: output, shape index: {}]
  %s10 = sld [smem:[#allocation0]]
  $region66: #{net_forward.1} parent=0
    _
  %s12 = ssub.s32 1, %s10
  %s13 = scalar_select 0, %s12, %s10
  $region1: #{net_forward.1} parent=0
    #allocation2 [shape = 'u8[2048]{0}', space=vmem, size = 0x800, scoped, tag = 'input window, operand 2, single buffered']
    #allocation3 [shape = 's32[1]{0}', space=sflag, size = 0x4, scoped, tag = 'scoped memory for net_forward.1']
    #allocation4 [shape = 's32[1]{0}', space=sflag, size = 0x4, scoped, tag = 'scoped memory for net_forward.1']
    #allocation5 [shape = 'u8[1916928]{0}', space=vmem, size = 0x1d4000, scoped, tag = 'input window, operand 3, single buffered']
    #allocation6 [shape = 's32[1]{0}', space=sflag, size = 0x4, scoped, tag = 'scoped memory for net_forward.1']
    #allocation7 [shape = 'u8[1536]{0}', space=vmem, size = 0x800, scoped, tag = 'input window, operand 4, single buffered']
    #allocation8 [shape = 'u8[512]{0}', space=vmem, size = 0x400, scoped, tag = 'input window, operand 6, single buffered']
    #allocation9 [shape = 's32[1]{0}', space=sflag, size = 0x4, scoped, tag = 'scoped memory for net_forward.1']
    #allocation10 [shape = 'u8[512]{0}', space=vmem, size = 0x400, scoped, tag = 'input window, operand 8, single buffered']
    #allocation11 [shape = 'u8[1024]{0}', space=vmem, size = 0x400, scoped, tag = 'output window, operand 0, single buffered']
    %14 = vsyncpa [#allocation3], 0
    %15 = vsyncpa [#allocation6], 0
    %16 = vsyncpa [#allocation9], 0
    %17 = vsyncpa [#allocation4], 0
    // Predicated region
    $region2: #{net_forward.1} parent=1 // pred_check
      _
    $region3: #{net_forward.1} parent=1 // pred_check_branch
      %19 = sbr.rel (0) target = $region5
    $region4: #{net_forward.1} parent=1 // pred_region
      _
    $region5: #{net_forward.1} parent=1 // pred_fallthru
      _
    // Predicated region
    $region6: #{net_forward.1} parent=1 // pred_check
      _
    $region7: #{net_forward.1} parent=1 // pred_check_branch
      %21 = sbr.rel (0) target = $region9
    $region8: #{net_forward.1} parent=1 // pred_region
      _
    $region9: #{net_forward.1} parent=1 // pred_fallthru
      _
    // Predicated region
    $region10: #{net_forward.1} parent=1 // pred_check
      _
    $region11: #{net_forward.1} parent=1 // pred_check_branch
      %23 = sbr.rel (0) target = $region13
    $region12: #{net_forward.1} parent=1 // pred_region
      %s25 = ssub.s32 64, 64
      %26 = vsyncadd [#allocation3], %s25
      %s28 = sshll.u32 [#allocation2], 4
      %s29 = int_to_ptr.vmem [resolvable:$true] %s28
      %31 = dma.hbm_to_vmem [thread:$0]  %s2, 64, %s29, [#allocation3]
    $region13: #{net_forward.1} parent=1 // pred_fallthru
      _
    // Predicated region
    $region14: #{net_forward.1} parent=1 // pred_check
      _
    $region15: #{net_forward.1} parent=1 // pred_check_branch
      %33 = sbr.rel (0) target = $region17
    $region16: #{net_forward.1} parent=1 // pred_region
      %s35 = ssub.s32 59904, 59904
      %36 = vsyncadd [#allocation6], %s35
      %s37 = sshll.u32 [#allocation5], 4
      %s38 = int_to_ptr.vmem [resolvable:$true] %s37
      %43 = dma.hbm_to_vmem [thread:$0]  %s3, 59904, %s38, [#allocation6], 384, 384, 24
    $region17: #{net_forward.1} parent=1 // pred_fallthru
      _
    // Predicated region
    $region18: #{net_forward.1} parent=1 // pred_check
      _
    $region19: #{net_forward.1} parent=1 // pred_check_branch
      %45 = sbr.rel (0) target = $region21
    $region20: #{net_forward.1} parent=1 // pred_region
      %s47 = ssub.s32 48, 48
      %48 = vsyncadd [#allocation6], %s47
      %s50 = sshll.u32 [#allocation7], 4
      %s51 = int_to_ptr.vmem [resolvable:$true] %s50
      %53 = dma.hbm_to_vmem [thread:$0]  %s4, 48, %s51, [#allocation6]
    $region21: #{net_forward.1} parent=1 // pred_fallthru
      _
    // Predicated region
    $region22: #{net_forward.1} parent=1 // pred_check
      _
    $region23: #{net_forward.1} parent=1 // pred_check_branch
      %55 = sbr.rel (0) target = $region25
    $region24: #{net_forward.1} parent=1 // pred_region
      _
    $region25: #{net_forward.1} parent=1 // pred_fallthru
      _
    // Predicated region
    $region26: #{net_forward.1} parent=1 // pred_check
      _
    $region27: #{net_forward.1} parent=1 // pred_check_branch
      %57 = sbr.rel (0) target = $region29
    $region28: #{net_forward.1} parent=1 // pred_region
      %s59 = ssub.s32 16, 16
      %60 = vsyncadd [#allocation9], %s59
      %s62 = sshll.u32 [#allocation8], 4
      %s63 = int_to_ptr.vmem [resolvable:$true] %s62
      %65 = dma.hbm_to_vmem [thread:$0]  %s6, 16, %s63, [#allocation9]
    $region29: #{net_forward.1} parent=1 // pred_fallthru
      _
    // Predicated region
    $region30: #{net_forward.1} parent=1 // pred_check
      _
    $region31: #{net_forward.1} parent=1 // pred_check_branch
      %67 = sbr.rel (0) target = $region33
    $region32: #{net_forward.1} parent=1 // pred_region
      _
    $region33: #{net_forward.1} parent=1 // pred_fallthru
      _
    // Predicated region
    $region34: #{net_forward.1} parent=1 // pred_check
      _
    $region35: #{net_forward.1} parent=1 // pred_check_branch
      %69 = sbr.rel (0) target = $region37
    $region36: #{net_forward.1} parent=1 // pred_region
      %s71 = ssub.s32 16, 16
      %72 = vsyncadd [#allocation9], %s71
      %s74 = sshll.u32 [#allocation10], 4
      %s75 = int_to_ptr.vmem [resolvable:$true] %s74
      %77 = dma.hbm_to_vmem [thread:$0]  %s8, 16, %s75, [#allocation9]
    $region37: #{net_forward.1} parent=1 // pred_fallthru
      _
    // Predicated region
    $region38: #{net_forward.1} parent=1 // pred_check
      _
    $region39: #{net_forward.1} parent=1 // pred_check_branch
      %79 = sbr.rel (0) target = $region41
    $region40: #{net_forward.1} parent=1 // pred_region
      %80 = dma.done [#allocation3], 64
    $region41: #{net_forward.1} parent=1 // pred_fallthru
      _
    // Predicated region
    $region42: #{net_forward.1} parent=1 // pred_check
      _
    $region43: #{net_forward.1} parent=1 // pred_check_branch
      %82 = sbr.rel (0) target = $region45
    $region44: #{net_forward.1} parent=1 // pred_region
      %83 = dma.done [#allocation6], 59904
    $region45: #{net_forward.1} parent=1 // pred_fallthru
      _
    // Predicated region
    $region46: #{net_forward.1} parent=1 // pred_check
      _
    $region47: #{net_forward.1} parent=1 // pred_check_branch
      %85 = sbr.rel (0) target = $region49
    $region48: #{net_forward.1} parent=1 // pred_region
      %86 = dma.done [#allocation6], 48
    $region49: #{net_forward.1} parent=1 // pred_fallthru
      _
    // Predicated region
    $region50: #{net_forward.1} parent=1 // pred_check
      _
    $region51: #{net_forward.1} parent=1 // pred_check_branch
      %88 = sbr.rel (0) target = $region53
    $region52: #{net_forward.1} parent=1 // pred_region
      %89 = dma.done [#allocation9], 16
    $region53: #{net_forward.1} parent=1 // pred_fallthru
      _
    // Predicated region
    $region54: #{net_forward.1} parent=1 // pred_check
      _
    $region55: #{net_forward.1} parent=1 // pred_check_branch
      %91 = sbr.rel (0) target = $region57
    $region56: #{net_forward.1} parent=1 // pred_region
      %92 = dma.done [#allocation9], 16
    $region57: #{net_forward.1} parent=1 // pred_fallthru
      _
    %v94 = vld [vmem:[%s0] sm:$0xf]
    %v95 = vld [vmem:[%s0 + $0x4] sm:$0xf]
    %v96 = vld [vmem:[%s0 + $0x8] sm:$0xf]
    %v97 = vld [vmem:[%s0 + $0xc] sm:$0xf]
    %v98 = vld [vmem:[%s0 + $0x10] sm:$0xf]
    %v99 = vld [vmem:[%s0 + $0x14] sm:$0xf]
    %v100 = vld [vmem:[%s0 + $0x18] sm:$0xf]
    %v101 = vld [vmem:[%s0 + $0x1c] sm:$0xf]
    %v102 = vld [vmem:[%s1] sm:$0xff]
    %v103 = vld [vmem:[%s1 + $0x8] sm:$0xff]
    %v104 = vld [vmem:[%s1 + $0x10] sm:$0xff]
    %v105 = vld [vmem:[%s1 + $0x18] sm:$0xff]
    %v106 = vld [vmem:[%s1 + $0x20] sm:$0xff]
    %v107 = vld [vmem:[%s1 + $0x28] sm:$0xff]
    %v108 = vld [vmem:[%s1 + $0x30] sm:$0xff]
    %v109 = vld [vmem:[%s1 + $0x38] sm:$0xff]
    %v110 = vld [vmem:[%s1 + $0x40] sm:$0xff]
    %v111 = vld [vmem:[%s1 + $0x48] sm:$0xff]
    %v112 = vld [vmem:[%s1 + $0x50] sm:$0xff]
    %v113 = vld [vmem:[%s1 + $0x58] sm:$0xff]
    %v114 = vld [vmem:[%s1 + $0x60] sm:$0xff]
    %v115 = vld [vmem:[%s1 + $0x68] sm:$0xff]
    %v116 = vld [vmem:[%s1 + $0x70] sm:$0xff]
    %v117 = vld [vmem:[%s1 + $0x78] sm:$0x33]
    %v118 = vld [vmem:[%s1 + $0x80] sm:$0x33]
    %v119 = vld [vmem:[%s1 + $0x88] sm:$0x33]
    %v120 = vld [vmem:[%s1 + $0x90] sm:$0x33]
    %v121 = vld [vmem:[%s1 + $0x98] sm:$0x33]
    %v130 = vunpack.c.l.b16 %v94
    %v131 = vunpack.c.l.b16 %v95
    %v132 = vunpack.c.l.b16 %v96
    %v133 = vunpack.c.l.b16 %v97
    %v134 = vunpack.c.l.b16 %v98
    %v135 = vunpack.c.l.b16 %v99
    %v136 = vunpack.c.l.b16 %v100
    %v137 = vunpack.c.l.b16 %v101
    %v138 = vpack.c.b16 %v131, %v130
    %v139 = vpack.c.b16 %v133, %v132
    %v140 = vpack.c.b16 %v135, %v134
    %v141 = vpack.c.b16 %v137, %v136
    %v162 = vunpack.c.l.b16 %v102
    %v163 = vunpack.c.h.b16 %v102
    %v164 = vunpack.c.l.b16 %v103
    %v165 = vunpack.c.h.b16 %v103
    %v166 = vunpack.c.l.b16 %v104
    %v167 = vunpack.c.h.b16 %v104
    %v168 = vunpack.c.l.b16 %v105
    %v169 = vunpack.c.h.b16 %v105
    %v170 = vunpack.c.l.b16 %v106
    %v171 = vunpack.c.h.b16 %v106
    %v172 = vunpack.c.l.b16 %v107
    %v173 = vunpack.c.h.b16 %v107
    %v174 = vunpack.c.l.b16 %v108
    %v175 = vunpack.c.h.b16 %v108
    %v176 = vunpack.c.l.b16 %v109
    %v177 = vunpack.c.h.b16 %v109
    %v178 = vunpack.c.l.b16 %v110
    %v179 = vunpack.c.h.b16 %v110
    %v180 = vunpack.c.l.b16 %v111
    %v181 = vunpack.c.h.b16 %v111
    %v182 = vunpack.c.l.b16 %v112
    %v183 = vunpack.c.h.b16 %v112
    %v184 = vunpack.c.l.b16 %v113
    %v185 = vunpack.c.h.b16 %v113
    %v186 = vunpack.c.l.b16 %v114
    %v187 = vunpack.c.h.b16 %v114
    %v188 = vunpack.c.l.b16 %v115
    %v189 = vunpack.c.h.b16 %v115
    %v190 = vunpack.c.l.b16 %v116
    %v191 = vunpack.c.h.b16 %v116
    %v192 = vunpack.c.l.b16 %v117
    %v193 = vunpack.c.h.b16 %v117
    %v194 = vunpack.c.l.b16 %v118
    %v195 = vunpack.c.h.b16 %v118
    %v196 = vunpack.c.l.b16 %v119
    %v197 = vunpack.c.h.b16 %v119
    %v198 = vunpack.c.l.b16 %v120
    %v199 = vunpack.c.h.b16 %v120
    %v200 = vunpack.c.l.b16 %v121
    %v201 = vunpack.c.h.b16 %v121
    %v202 = vpack.c.b16 %v172, %v162
    %v203 = vpack.c.b16 %v173, %v163
    %v204 = vpack.c.b16 %v174, %v164
    %v205 = vpack.c.b16 %v175, %v165
    %v206 = vpack.c.b16 %v176, %v166
    %v207 = vpack.c.b16 %v177, %v167
    %v208 = vpack.c.b16 %v178, %v168
    %v209 = vpack.c.b16 %v179, %v169
    %v210 = vpack.c.b16 %v180, %v170
    %v211 = vpack.c.b16 %v181, %v171
    %v212 = vpack.c.b16 %v192, %v182
    %v213 = vpack.c.b16 %v193, %v183
    %v214 = vpack.c.b16 %v194, %v184
    %v215 = vpack.c.b16 %v195, %v185
    %v216 = vpack.c.b16 %v196, %v186
    %v217 = vpack.c.b16 %v197, %v187
    %v218 = vpack.c.b16 %v198, %v188
    %v219 = vpack.c.b16 %v199, %v189
    %v220 = vpack.c.b16 %v200, %v190
    %v221 = vpack.c.b16 %v201, %v191
    %vm232 = vcmask 228352
    %v234 = vsel %vm232, %v138, 0
    %v237 = vsel %vm232, %v139, 0
    %v240 = vsel %vm232, %v140, 0
    %v243 = vsel %vm232, %v141, 0
    %vm245 = vcmask 1045504
    %v247 = vsel %vm245, %v212, 0
    %v250 = vsel %vm245, %v213, 0
    %v253 = vsel %vm245, %v214, 0
    %v256 = vsel %vm245, %v215, 0
    %v259 = vsel %vm245, %v216, 0
    %v262 = vsel %vm245, %v217, 0
    %v265 = vsel %vm245, %v218, 0
    %v268 = vsel %vm245, %v219, 0
    %v271 = vsel %vm245, %v220, 0
    %v274 = vsel %vm245, %v221, 0
    %276 = vmatprep.subr.bf16.mxu0 0
    %277 = vmatpush1.bf16.msra.mxu0 0
    %278 = vmatprep.subr.bf16.mxu0 0
    %279 = vmatpush1.bf16.msra.mxu0 0
    %280 = vmatprep.subr.bf16.mxu0 0
    %281 = vmatpush1.bf16.msra.mxu0 0
    %282 = vmatprep.subr.bf16.mxu0 0
    %283 = vmatpush1.bf16.msra.mxu0 0
    %284 = vmatprep.subr.bf16.mxu0 0
    %285 = vmatpush1.bf16.msra.mxu0 0
    %286 = vmatprep.subr.bf16.mxu0 0
    %287 = vmatpush1.bf16.msra.mxu0 0
    %288 = vmatprep.subr.bf16.mxu0 %v250
    %289 = vmatpush1.bf16.msra.mxu0 %v247
    %290 = vmatprep.subr.bf16.mxu0 %v203
    %291 = vmatpush1.bf16.msra.mxu0 %v202
    %292 = vmatprep.subr.bf16.mxu0 0
    %293 = vmatpush2.bf16.msra.mxu0 0
    %294 = vmatprep.subr.bf16.mxu0 0
    %295 = vmatpush2.bf16.msra.mxu0 0
    %296 = vmatprep.subr.bf16.mxu0 0
    %297 = vmatpush2.bf16.msra.mxu0 0
    %298 = vmatprep.subr.bf16.mxu0 0
    %299 = vmatpush2.bf16.msra.mxu0 0
    %300 = vmatprep.subr.bf16.mxu0 0
    %301 = vmatpush2.bf16.msra.mxu0 0
    %302 = vmatprep.subr.bf16.mxu0 0
    %303 = vmatpush2.bf16.msra.mxu0 0
    %304 = vmatprep.subr.bf16.mxu0 0
    %305 = vmatpush2.bf16.msra.mxu0 0
    %306 = vmatprep.subr.bf16.mxu0 0
    %307 = vmatpush2.bf16.msra.mxu0 0
    %308 = vmatprep.mubr.bf16.mxu0 0
    %309 = vmatmul.mubr.bf16.gmra.mxu0 %v234
    %v310 = vpop.f32.mrf.mxu0
    %v311 = vadd.f32 0.0, %v310
    %v312 = vpop.f32.mrf.mxu0
    %v313 = vadd.f32 0.0, %v312
    %v314 = vpop.f32.mrf.mxu0
    %v315 = vadd.f32 0.0, %v314
    %v316 = vpop.f32.mrf.mxu0
    %v317 = vadd.f32 0.0, %v316
    %318 = vmatprep.mubr.bf16.mxu0 0
    %319 = vmatmul.mubr.bf16.gmra.mxu0 %v237
    %v320 = vpop.f32.mrf.mxu0
    %v321 = vadd.f32 0.0, %v320
    %v322 = vpop.f32.mrf.mxu0
    %v323 = vadd.f32 0.0, %v322
    %v324 = vpop.f32.mrf.mxu0
    %v325 = vadd.f32 0.0, %v324
    %v326 = vpop.f32.mrf.mxu0
    %v327 = vadd.f32 0.0, %v326
    %328 = vmatprep.mubr.bf16.mxu0 0
    %329 = vmatmul.mubr.bf16.gmra.mxu0 %v240
    %v330 = vpop.f32.mrf.mxu0
    %v331 = vadd.f32 0.0, %v330
    %v332 = vpop.f32.mrf.mxu0
    %v333 = vadd.f32 0.0, %v332
    %v334 = vpop.f32.mrf.mxu0
    %v335 = vadd.f32 0.0, %v334
    %v336 = vpop.f32.mrf.mxu0
    %v337 = vadd.f32 0.0, %v336
    %338 = vmatprep.mubr.bf16.mxu0 0
    %339 = vmatmul.mubr.bf16.gmra.mxu0 %v243
    %v340 = vpop.f32.mrf.mxu0
    %v341 = vadd.f32 0.0, %v340
    %v342 = vpop.f32.mrf.mxu0
    %v343 = vadd.f32 0.0, %v342
    %v344 = vpop.f32.mrf.mxu0
    %v345 = vadd.f32 0.0, %v344
    %v346 = vpop.f32.mrf.mxu0
    %v347 = vadd.f32 0.0, %v346
    %348 = vdwg.mxu0
    %349 = vmatprep.subr.bf16.mxu0 0
    %350 = vmatpush1.bf16.msra.mxu0 0
    %351 = vmatprep.subr.bf16.mxu0 0
    %352 = vmatpush1.bf16.msra.mxu0 0
    %353 = vmatprep.subr.bf16.mxu0 0
    %354 = vmatpush1.bf16.msra.mxu0 0
    %355 = vmatprep.subr.bf16.mxu0 0
    %356 = vmatpush1.bf16.msra.mxu0 0
    %357 = vmatprep.subr.bf16.mxu0 0
    %358 = vmatpush1.bf16.msra.mxu0 0
    %359 = vmatprep.subr.bf16.mxu0 0
    %360 = vmatpush1.bf16.msra.mxu0 0
    %361 = vmatprep.subr.bf16.mxu0 %v256
    %362 = vmatpush1.bf16.msra.mxu0 %v253
    %363 = vmatprep.subr.bf16.mxu0 %v205
    %364 = vmatpush1.bf16.msra.mxu0 %v204
    %365 = vmatprep.subr.bf16.mxu0 0
    %366 = vmatpush2.bf16.msra.mxu0 0
    %367 = vmatprep.subr.bf16.mxu0 0
    %368 = vmatpush2.bf16.msra.mxu0 0
    %369 = vmatprep.subr.bf16.mxu0 0
    %370 = vmatpush2.bf16.msra.mxu0 0
    %371 = vmatprep.subr.bf16.mxu0 0
    %372 = vmatpush2.bf16.msra.mxu0 0
    %373 = vmatprep.subr.bf16.mxu0 0
    %374 = vmatpush2.bf16.msra.mxu0 0
    %375 = vmatprep.subr.bf16.mxu0 0
    %376 = vmatpush2.bf16.msra.mxu0 0
    %377 = vmatprep.subr.bf16.mxu0 0
    %378 = vmatpush2.bf16.msra.mxu0 0
    %379 = vmatprep.subr.bf16.mxu0 0
    %380 = vmatpush2.bf16.msra.mxu0 0
    %381 = vmatprep.mubr.bf16.mxu0 0
    %382 = vmatmul.mubr.bf16.gmra.mxu0 %v234
    %v383 = vpop.f32.mrf.mxu0
    %v384 = vadd.f32 0.0, %v383
    %v385 = vpop.f32.mrf.mxu0
    %v386 = vadd.f32 0.0, %v385
    %v387 = vpop.f32.mrf.mxu0
    %v388 = vadd.f32 0.0, %v387
    %v389 = vpop.f32.mrf.mxu0
    %v390 = vadd.f32 0.0, %v389
    %391 = vmatprep.mubr.bf16.mxu0 0
    %392 = vmatmul.mubr.bf16.gmra.mxu0 %v237
    %v393 = vpop.f32.mrf.mxu0
    %v394 = vadd.f32 0.0, %v393
    %v395 = vpop.f32.mrf.mxu0
    %v396 = vadd.f32 0.0, %v395
    %v397 = vpop.f32.mrf.mxu0
    %v398 = vadd.f32 0.0, %v397
    %v399 = vpop.f32.mrf.mxu0
    %v400 = vadd.f32 0.0, %v399
    %401 = vmatprep.mubr.bf16.mxu0 0
    %402 = vmatmul.mubr.bf16.gmra.mxu0 %v240
    %v403 = vpop.f32.mrf.mxu0
    %v404 = vadd.f32 0.0, %v403
    %v405 = vpop.f32.mrf.mxu0
    %v406 = vadd.f32 0.0, %v405
    %v407 = vpop.f32.mrf.mxu0
    %v408 = vadd.f32 0.0, %v407
    %v409 = vpop.f32.mrf.mxu0
    %v410 = vadd.f32 0.0, %v409
    %411 = vmatprep.mubr.bf16.mxu0 0
    %412 = vmatmul.mubr.bf16.gmra.mxu0 %v243
    %v413 = vpop.f32.mrf.mxu0
    %v414 = vadd.f32 0.0, %v413
    %v415 = vpop.f32.mrf.mxu0
    %v416 = vadd.f32 0.0, %v415
    %v417 = vpop.f32.mrf.mxu0
    %v418 = vadd.f32 0.0, %v417
    %v419 = vpop.f32.mrf.mxu0
    %v420 = vadd.f32 0.0, %v419
    %421 = vdwg.mxu0
    %422 = vmatprep.subr.bf16.mxu0 0
    %423 = vmatpush1.bf16.msra.mxu0 0
    %424 = vmatprep.subr.bf16.mxu0 0
    %425 = vmatpush1.bf16.msra.mxu0 0
    %426 = vmatprep.subr.bf16.mxu0 0
    %427 = vmatpush1.bf16.msra.mxu0 0
    %428 = vmatprep.subr.bf16.mxu0 0
    %429 = vmatpush1.bf16.msra.mxu0 0
    %430 = vmatprep.subr.bf16.mxu0 0
    %431 = vmatpush1.bf16.msra.mxu0 0
    %432 = vmatprep.subr.bf16.mxu0 0
    %433 = vmatpush1.bf16.msra.mxu0 0
    %434 = vmatprep.subr.bf16.mxu0 %v262
    %435 = vmatpush1.bf16.msra.mxu0 %v259
    %436 = vmatprep.subr.bf16.mxu0 %v207
    %437 = vmatpush1.bf16.msra.mxu0 %v206
    %438 = vmatprep.subr.bf16.mxu0 0
    %439 = vmatpush2.bf16.msra.mxu0 0
    %440 = vmatprep.subr.bf16.mxu0 0
    %441 = vmatpush2.bf16.msra.mxu0 0
    %442 = vmatprep.subr.bf16.mxu0 0
    %443 = vmatpush2.bf16.msra.mxu0 0
    %444 = vmatprep.subr.bf16.mxu0 0
    %445 = vmatpush2.bf16.msra.mxu0 0
    %446 = vmatprep.subr.bf16.mxu0 0
    %447 = vmatpush2.bf16.msra.mxu0 0
    %448 = vmatprep.subr.bf16.mxu0 0
    %449 = vmatpush2.bf16.msra.mxu0 0
    %450 = vmatprep.subr.bf16.mxu0 0
    %451 = vmatpush2.bf16.msra.mxu0 0
    %452 = vmatprep.subr.bf16.mxu0 0
    %453 = vmatpush2.bf16.msra.mxu0 0
    %454 = vmatprep.mubr.bf16.mxu0 0
    %455 = vmatmul.mubr.bf16.gmra.mxu0 %v234
    %v456 = vpop.f32.mrf.mxu0
    %v457 = vadd.f32 0.0, %v456
    %v458 = vpop.f32.mrf.mxu0
    %v459 = vadd.f32 0.0, %v458
    %v460 = vpop.f32.mrf.mxu0
    %v461 = vadd.f32 0.0, %v460
    %v462 = vpop.f32.mrf.mxu0
    %v463 = vadd.f32 0.0, %v462
    %464 = vmatprep.mubr.bf16.mxu0 0
    %465 = vmatmul.mubr.bf16.gmra.mxu0 %v237
    %v466 = vpop.f32.mrf.mxu0
    %v467 = vadd.f32 0.0, %v466
    %v468 = vpop.f32.mrf.mxu0
    %v469 = vadd.f32 0.0, %v468
    %v470 = vpop.f32.mrf.mxu0
    %v471 = vadd.f32 0.0, %v470
    %v472 = vpop.f32.mrf.mxu0
    %v473 = vadd.f32 0.0, %v472
    %474 = vmatprep.mubr.bf16.mxu0 0
    %475 = vmatmul.mubr.bf16.gmra.mxu0 %v240
    %v476 = vpop.f32.mrf.mxu0
    %v477 = vadd.f32 0.0, %v476
    %v478 = vpop.f32.mrf.mxu0
    %v479 = vadd.f32 0.0, %v478
    %v480 = vpop.f32.mrf.mxu0
    %v481 = vadd.f32 0.0, %v480
    %v482 = vpop.f32.mrf.mxu0
    %v483 = vadd.f32 0.0, %v482
    %484 = vmatprep.mubr.bf16.mxu0 0
    %485 = vmatmul.mubr.bf16.gmra.mxu0 %v243
    %v486 = vpop.f32.mrf.mxu0
    %v487 = vadd.f32 0.0, %v486
    %v488 = vpop.f32.mrf.mxu0
    %v489 = vadd.f32 0.0, %v488
    %v490 = vpop.f32.mrf.mxu0
    %v491 = vadd.f32 0.0, %v490
    %v492 = vpop.f32.mrf.mxu0
    %v493 = vadd.f32 0.0, %v492
    %494 = vdwg.mxu0
    %495 = vmatprep.subr.bf16.mxu0 0
    %496 = vmatpush1.bf16.msra.mxu0 0
    %497 = vmatprep.subr.bf16.mxu0 0
    %498 = vmatpush1.bf16.msra.mxu0 0
    %499 = vmatprep.subr.bf16.mxu0 0
    %500 = vmatpush1.bf16.msra.mxu0 0
    %501 = vmatprep.subr.bf16.mxu0 0
    %502 = vmatpush1.bf16.msra.mxu0 0
    %503 = vmatprep.subr.bf16.mxu0 0
    %504 = vmatpush1.bf16.msra.mxu0 0
    %505 = vmatprep.subr.bf16.mxu0 0
    %506 = vmatpush1.bf16.msra.mxu0 0
    %507 = vmatprep.subr.bf16.mxu0 %v268
    %508 = vmatpush1.bf16.msra.mxu0 %v265
    %509 = vmatprep.subr.bf16.mxu0 %v209
    %510 = vmatpush1.bf16.msra.mxu0 %v208
    %511 = vmatprep.subr.bf16.mxu0 0
    %512 = vmatpush2.bf16.msra.mxu0 0
    %513 = vmatprep.subr.bf16.mxu0 0
    %514 = vmatpush2.bf16.msra.mxu0 0
    %515 = vmatprep.subr.bf16.mxu0 0
    %516 = vmatpush2.bf16.msra.mxu0 0
    %517 = vmatprep.subr.bf16.mxu0 0
    %518 = vmatpush2.bf16.msra.mxu0 0
    %519 = vmatprep.subr.bf16.mxu0 0
    %520 = vmatpush2.bf16.msra.mxu0 0
    %521 = vmatprep.subr.bf16.mxu0 0
    %522 = vmatpush2.bf16.msra.mxu0 0
    %523 = vmatprep.subr.bf16.mxu0 0
    %524 = vmatpush2.bf16.msra.mxu0 0
    %525 = vmatprep.subr.bf16.mxu0 0
    %526 = vmatpush2.bf16.msra.mxu0 0
    %527 = vmatprep.mubr.bf16.mxu0 0
    %528 = vmatmul.mubr.bf16.gmra.mxu0 %v234
    %v529 = vpop.f32.mrf.mxu0
    %v530 = vadd.f32 0.0, %v529
    %v531 = vpop.f32.mrf.mxu0
    %v532 = vadd.f32 0.0, %v531
    %v533 = vpop.f32.mrf.mxu0
    %v534 = vadd.f32 0.0, %v533
    %v535 = vpop.f32.mrf.mxu0
    %v536 = vadd.f32 0.0, %v535
    %537 = vmatprep.mubr.bf16.mxu0 0
    %538 = vmatmul.mubr.bf16.gmra.mxu0 %v237
    %v539 = vpop.f32.mrf.mxu0
    %v540 = vadd.f32 0.0, %v539
    %v541 = vpop.f32.mrf.mxu0
    %v542 = vadd.f32 0.0, %v541
    %v543 = vpop.f32.mrf.mxu0
    %v544 = vadd.f32 0.0, %v543
    %v545 = vpop.f32.mrf.mxu0
    %v546 = vadd.f32 0.0, %v545
    %547 = vmatprep.mubr.bf16.mxu0 0
    %548 = vmatmul.mubr.bf16.gmra.mxu0 %v240
    %v549 = vpop.f32.mrf.mxu0
    %v550 = vadd.f32 0.0, %v549
    %v551 = vpop.f32.mrf.mxu0
    %v552 = vadd.f32 0.0, %v551
    %v553 = vpop.f32.mrf.mxu0
    %v554 = vadd.f32 0.0, %v553
    %v555 = vpop.f32.mrf.mxu0
    %v556 = vadd.f32 0.0, %v555
    %557 = vmatprep.mubr.bf16.mxu0 0
    %558 = vmatmul.mubr.bf16.gmra.mxu0 %v243
    %v559 = vpop.f32.mrf.mxu0
    %v560 = vadd.f32 0.0, %v559
    %v561 = vpop.f32.mrf.mxu0
    %v562 = vadd.f32 0.0, %v561
    %v563 = vpop.f32.mrf.mxu0
    %v564 = vadd.f32 0.0, %v563
    %v565 = vpop.f32.mrf.mxu0
    %v566 = vadd.f32 0.0, %v565
    %567 = vdwg.mxu0
    %568 = vmatprep.subr.bf16.mxu0 0
    %569 = vmatpush1.bf16.msra.mxu0 0
    %570 = vmatprep.subr.bf16.mxu0 0
    %571 = vmatpush1.bf16.msra.mxu0 0
    %572 = vmatprep.subr.bf16.mxu0 0
    %573 = vmatpush1.bf16.msra.mxu0 0
    %574 = vmatprep.subr.bf16.mxu0 0
    %575 = vmatpush1.bf16.msra.mxu0 0
    %576 = vmatprep.subr.bf16.mxu0 0
    %577 = vmatpush1.bf16.msra.mxu0 0
    %578 = vmatprep.subr.bf16.mxu0 0
    %579 = vmatpush1.bf16.msra.mxu0 0
    %580 = vmatprep.subr.bf16.mxu0 %v274
    %581 = vmatpush1.bf16.msra.mxu0 %v271
    %582 = vmatprep.subr.bf16.mxu0 %v211
    %583 = vmatpush1.bf16.msra.mxu0 %v210
    %584 = vmatprep.subr.bf16.mxu0 0
    %585 = vmatpush2.bf16.msra.mxu0 0
    %586 = vmatprep.subr.bf16.mxu0 0
    %587 = vmatpush2.bf16.msra.mxu0 0
    %588 = vmatprep.subr.bf16.mxu0 0
    %589 = vmatpush2.bf16.msra.mxu0 0
    %590 = vmatprep.subr.bf16.mxu0 0
    %591 = vmatpush2.bf16.msra.mxu0 0
    %592 = vmatprep.subr.bf16.mxu0 0
    %593 = vmatpush2.bf16.msra.mxu0 0
    %594 = vmatprep.subr.bf16.mxu0 0
    %595 = vmatpush2.bf16.msra.mxu0 0
    %596 = vmatprep.subr.bf16.mxu0 0
    %597 = vmatpush2.bf16.msra.mxu0 0
    %598 = vmatprep.subr.bf16.mxu0 0
    %599 = vmatpush2.bf16.msra.mxu0 0
    %600 = vmatprep.mubr.bf16.mxu0 0
    %601 = vmatmul.mubr.bf16.gmra.mxu0 %v234
    %v602 = vpop.f32.mrf.mxu0
    %v603 = vadd.f32 0.0, %v602
    %v604 = vpop.f32.mrf.mxu0
    %v605 = vadd.f32 0.0, %v604
    %v606 = vpop.f32.mrf.mxu0
    %v607 = vadd.f32 0.0, %v606
    %v608 = vpop.f32.mrf.mxu0
    %v609 = vadd.f32 0.0, %v608
    %610 = vmatprep.mubr.bf16.mxu0 0
    %611 = vmatmul.mubr.bf16.gmra.mxu0 %v237
    %v612 = vpop.f32.mrf.mxu0
    %v613 = vadd.f32 0.0, %v612
    %v614 = vpop.f32.mrf.mxu0
    %v615 = vadd.f32 0.0, %v614
    %v616 = vpop.f32.mrf.mxu0
    %v617 = vadd.f32 0.0, %v616
    %v618 = vpop.f32.mrf.mxu0
    %v619 = vadd.f32 0.0, %v618
    %620 = vmatprep.mubr.bf16.mxu0 0
    %621 = vmatmul.mubr.bf16.gmra.mxu0 %v240
    %v622 = vpop.f32.mrf.mxu0
    %v623 = vadd.f32 0.0, %v622
    %v624 = vpop.f32.mrf.mxu0
    %v625 = vadd.f32 0.0, %v624
    %v626 = vpop.f32.mrf.mxu0
    %v627 = vadd.f32 0.0, %v626
    %v628 = vpop.f32.mrf.mxu0
    %v629 = vadd.f32 0.0, %v628
    %630 = vmatprep.mubr.bf16.mxu0 0
    %631 = vmatmul.mubr.bf16.gmra.mxu0 %v243
    %v632 = vpop.f32.mrf.mxu0
    %v633 = vadd.f32 0.0, %v632
    %v634 = vpop.f32.mrf.mxu0
    %v635 = vadd.f32 0.0, %v634
    %v636 = vpop.f32.mrf.mxu0
    %v637 = vadd.f32 0.0, %v636
    %v638 = vpop.f32.mrf.mxu0
    %v639 = vadd.f32 0.0, %v638
    %640 = vdwg.mxu0
    %673 = vrot.lane.b32.xlu0 %v386, 96
    %v674 = vpop.permute.xlu0 %673
    %675 = vrot.lane.b32.xlu0 %v457, 96
    %v676 = vpop.permute.xlu0 %675
    %677 = vrot.lane.b32.xlu0 %v459, 96
    %v678 = vpop.permute.xlu0 %677
    %679 = vrot.lane.b32.xlu0 %v530, 96
    %v680 = vpop.permute.xlu0 %679
    %681 = vrot.lane.b32.xlu0 %v390, 96
    %v682 = vpop.permute.xlu0 %681
    %683 = vrot.lane.b32.xlu0 %v461, 96
    %v684 = vpop.permute.xlu0 %683
    %685 = vrot.lane.b32.xlu0 %v463, 96
    %v686 = vpop.permute.xlu0 %685
    %687 = vrot.lane.b32.xlu0 %v534, 96
    %v688 = vpop.permute.xlu0 %687
    %689 = vrot.lane.b32.xlu0 %v396, 96
    %v690 = vpop.permute.xlu0 %689
    %691 = vrot.lane.b32.xlu0 %v467, 96
    %v692 = vpop.permute.xlu0 %691
    %693 = vrot.lane.b32.xlu0 %v469, 96
    %v694 = vpop.permute.xlu0 %693
    %695 = vrot.lane.b32.xlu0 %v540, 96
    %v696 = vpop.permute.xlu0 %695
    %697 = vrot.lane.b32.xlu0 %v400, 96
    %v698 = vpop.permute.xlu0 %697
    %699 = vrot.lane.b32.xlu0 %v471, 96
    %v700 = vpop.permute.xlu0 %699
    %701 = vrot.lane.b32.xlu0 %v473, 96
    %v702 = vpop.permute.xlu0 %701
    %703 = vrot.lane.b32.xlu0 %v544, 96
    %v704 = vpop.permute.xlu0 %703
    %705 = vrot.lane.b32.xlu0 %v406, 96
    %v706 = vpop.permute.xlu0 %705
    %707 = vrot.lane.b32.xlu0 %v477, 96
    %v708 = vpop.permute.xlu0 %707
    %709 = vrot.lane.b32.xlu0 %v479, 96
    %v710 = vpop.permute.xlu0 %709
    %711 = vrot.lane.b32.xlu0 %v550, 96
    %v712 = vpop.permute.xlu0 %711
    %713 = vrot.lane.b32.xlu0 %v410, 96
    %v714 = vpop.permute.xlu0 %713
    %715 = vrot.lane.b32.xlu0 %v481, 96
    %v716 = vpop.permute.xlu0 %715
    %717 = vrot.lane.b32.xlu0 %v483, 96
    %v718 = vpop.permute.xlu0 %717
    %719 = vrot.lane.b32.xlu0 %v554, 96
    %v720 = vpop.permute.xlu0 %719
    %721 = vrot.lane.b32.xlu0 %v416, 96
    %v722 = vpop.permute.xlu0 %721
    %723 = vrot.lane.b32.xlu0 %v487, 96
    %v724 = vpop.permute.xlu0 %723
    %725 = vrot.lane.b32.xlu0 %v489, 96
    %v726 = vpop.permute.xlu0 %725
    %727 = vrot.lane.b32.xlu0 %v560, 96
    %v728 = vpop.permute.xlu0 %727
    %729 = vrot.lane.b32.xlu0 %v420, 96
    %v730 = vpop.permute.xlu0 %729
    %731 = vrot.lane.b32.xlu0 %v491, 96
    %v732 = vpop.permute.xlu0 %731
    %733 = vrot.lane.b32.xlu0 %v493, 96
    %v734 = vpop.permute.xlu0 %733
    %735 = vrot.lane.b32.xlu0 %v564, 96
    %v736 = vpop.permute.xlu0 %735
    %vm737 = vcmask 785408
    %v738 = vsel %vm737, %v674, %v676
    %v739 = vsel %vm737, %v676, %v678
    %v740 = vsel %vm737, %v678, %v680
    %v741 = vsel %vm737, %v682, %v684
    %v742 = vsel %vm737, %v684, %v686
    %v743 = vsel %vm737, %v686, %v688
    %v744 = vsel %vm737, %v690, %v692
    %v745 = vsel %vm737, %v692, %v694
    %v746 = vsel %vm737, %v694, %v696
    %v747 = vsel %vm737, %v698, %v700
    %v748 = vsel %vm737, %v700, %v702
    %v749 = vsel %vm737, %v702, %v704
    %v750 = vsel %vm737, %v706, %v708
    %v751 = vsel %vm737, %v708, %v710
    %v752 = vsel %vm737, %v710, %v712
    %v753 = vsel %vm737, %v714, %v716
    %v754 = vsel %vm737, %v716, %v718
    %v755 = vsel %vm737, %v718, %v720
    %v756 = vsel %vm737, %v722, %v724
    %v757 = vsel %vm737, %v724, %v726
    %v758 = vsel %vm737, %v726, %v728
    %v759 = vsel %vm737, %v730, %v732
    %v760 = vsel %vm737, %v732, %v734
    %v761 = vsel %vm737, %v734, %v736
    %v794 = vrot.slane %v738, 1
    %v795 = vrot.slane %v739, 1
    %v796 = vrot.slane %v740, 1
    %v797 = vrot.slane %v680, 1
    %v798 = vrot.slane %v741, 1
    %v799 = vrot.slane %v742, 1
    %v800 = vrot.slane %v743, 1
    %v801 = vrot.slane %v688, 1
    %v802 = vrot.slane %v744, 1
    %v803 = vrot.slane %v745, 1
    %v804 = vrot.slane %v746, 1
    %v805 = vrot.slane %v696, 1
    %v806 = vrot.slane %v747, 1
    %v807 = vrot.slane %v748, 1
    %v808 = vrot.slane %v749, 1
    %v809 = vrot.slane %v704, 1
    %v810 = vrot.slane %v750, 1
    %v811 = vrot.slane %v751, 1
    %v812 = vrot.slane %v752, 1
    %v813 = vrot.slane %v712, 1
    %v814 = vrot.slane %v753, 1
    %v815 = vrot.slane %v754, 1
    %v816 = vrot.slane %v755, 1
    %v817 = vrot.slane %v720, 1
    %v818 = vrot.slane %v756, 1
    %v819 = vrot.slane %v757, 1
    %v820 = vrot.slane %v758, 1
    %v821 = vrot.slane %v728, 1
    %v822 = vrot.slane %v759, 1
    %v823 = vrot.slane %v760, 1
    %v824 = vrot.slane %v761, 1
    %v825 = vrot.slane %v736, 1
    %v826 = vlaneseq
    %v827 = vshrl.u32 %v826, 7
    %vm828 = vcmp.lt.s32.totalorder %v827, 7
    %v829 = vsel %vm828, %v818, %v822
    %v830 = vsel %vm828, %v819, %v823
    %v831 = vsel %vm828, %v820, %v824
    %v832 = vsel %vm828, %v821, %v825
    %v833 = vsel %vm828, %v814, %v818
    %v834 = vsel %vm828, %v815, %v819
    %v835 = vsel %vm828, %v816, %v820
    %v836 = vsel %vm828, %v817, %v821
    %v837 = vsel %vm828, %v810, %v814
    %v838 = vsel %vm828, %v811, %v815
    %v839 = vsel %vm828, %v812, %v816
    %v840 = vsel %vm828, %v813, %v817
    %v841 = vsel %vm828, %v806, %v810
    %v842 = vsel %vm828, %v807, %v811
    %v843 = vsel %vm828, %v808, %v812
    %v844 = vsel %vm828, %v809, %v813
    %v845 = vsel %vm828, %v802, %v806
    %v846 = vsel %vm828, %v803, %v807
    %v847 = vsel %vm828, %v804, %v808
    %v848 = vsel %vm828, %v805, %v809
    %v849 = vsel %vm828, %v798, %v802
    %v850 = vsel %vm828, %v799, %v803
    %v851 = vsel %vm828, %v800, %v804
    %v852 = vsel %vm828, %v801, %v805
    %v853 = vsel %vm828, %v794, %v798
    %v854 = vsel %vm828, %v795, %v799
    %v855 = vsel %vm828, %v796, %v800
    %v856 = vsel %vm828, %v797, %v801
    %v857 = vsel %vm828, %v822, %v794
    %v858 = vsel %vm828, %v823, %v795
    %v859 = vsel %vm828, %v824, %v796
    %v860 = vsel %vm828, %v825, %v797
    %v861 = vadd.f32 %v311, %v853
    %v862 = vadd.f32 %v313, %v854
    %v863 = vadd.f32 %v384, %v855
    %v864 = vadd.f32 %v386, %v856
    %v865 = vadd.f32 %v315, %v849
    %v866 = vadd.f32 %v317, %v850
    %v867 = vadd.f32 %v388, %v851
    %v868 = vadd.f32 %v390, %v852
    %v869 = vadd.f32 %v321, %v845
    %v870 = vadd.f32 %v323, %v846
    %v871 = vadd.f32 %v394, %v847
    %v872 = vadd.f32 %v396, %v848
    %v873 = vadd.f32 %v325, %v841
    %v874 = vadd.f32 %v327, %v842
    %v875 = vadd.f32 %v398, %v843
    %v876 = vadd.f32 %v400, %v844
    %v877 = vadd.f32 %v331, %v837
    %v878 = vadd.f32 %v333, %v838
    %v879 = vadd.f32 %v404, %v839
    %v880 = vadd.f32 %v406, %v840
    %v881 = vadd.f32 %v335, %v833
    %v882 = vadd.f32 %v337, %v834
    %v883 = vadd.f32 %v408, %v835
    %v884 = vadd.f32 %v410, %v836
    %v885 = vadd.f32 %v341, %v829
    %v886 = vadd.f32 %v343, %v830
    %v887 = vadd.f32 %v414, %v831
    %v888 = vadd.f32 %v416, %v832
    %v889 = vadd.f32 %v345, %v857
    %v890 = vadd.f32 %v347, %v858
    %v891 = vadd.f32 %v418, %v859
    %v892 = vadd.f32 %v420, %v860
    %917 = vrot.lane.b32.xlu0 %v530, 64
    %v918 = vpop.permute.xlu0 %917
    %919 = vrot.lane.b32.xlu0 %v532, 64
    %v920 = vpop.permute.xlu0 %919
    %921 = vrot.lane.b32.xlu0 %v603, 64
    %v922 = vpop.permute.xlu0 %921
    %923 = vrot.lane.b32.xlu0 %v605, 64
    %v924 = vpop.permute.xlu0 %923
    %925 = vrot.lane.b32.xlu0 %v534, 64
    %v926 = vpop.permute.xlu0 %925
    %927 = vrot.lane.b32.xlu0 %v536, 64
    %v928 = vpop.permute.xlu0 %927
    %929 = vrot.lane.b32.xlu0 %v607, 64
    %v930 = vpop.permute.xlu0 %929
    %931 = vrot.lane.b32.xlu0 %v609, 64
    %v932 = vpop.permute.xlu0 %931
    %933 = vrot.lane.b32.xlu0 %v540, 64
    %v934 = vpop.permute.xlu0 %933
    %935 = vrot.lane.b32.xlu0 %v542, 64
    %v936 = vpop.permute.xlu0 %935
    %937 = vrot.lane.b32.xlu0 %v613, 64
    %v938 = vpop.permute.xlu0 %937
    %939 = vrot.lane.b32.xlu0 %v615, 64
    %v940 = vpop.permute.xlu0 %939
    %941 = vrot.lane.b32.xlu0 %v544, 64
    %v942 = vpop.permute.xlu0 %941
    %943 = vrot.lane.b32.xlu0 %v546, 64
    %v944 = vpop.permute.xlu0 %943
    %945 = vrot.lane.b32.xlu0 %v617, 64
    %v946 = vpop.permute.xlu0 %945
    %947 = vrot.lane.b32.xlu0 %v619, 64
    %v948 = vpop.permute.xlu0 %947
    %949 = vrot.lane.b32.xlu0 %v550, 64
    %v950 = vpop.permute.xlu0 %949
    %951 = vrot.lane.b32.xlu0 %v552, 64
    %v952 = vpop.permute.xlu0 %951
    %953 = vrot.lane.b32.xlu0 %v623, 64
    %v954 = vpop.permute.xlu0 %953
    %955 = vrot.lane.b32.xlu0 %v625, 64
    %v956 = vpop.permute.xlu0 %955
    %957 = vrot.lane.b32.xlu0 %v554, 64
    %v958 = vpop.permute.xlu0 %957
    %959 = vrot.lane.b32.xlu0 %v556, 64
    %v960 = vpop.permute.xlu0 %959
    %961 = vrot.lane.b32.xlu0 %v627, 64
    %v962 = vpop.permute.xlu0 %961
    %963 = vrot.lane.b32.xlu0 %v629, 64
    %v964 = vpop.permute.xlu0 %963
    %965 = vrot.lane.b32.xlu0 %v560, 64
    %v966 = vpop.permute.xlu0 %965
    %967 = vrot.lane.b32.xlu0 %v562, 64
    %v968 = vpop.permute.xlu0 %967
    %969 = vrot.lane.b32.xlu0 %v633, 64
    %v970 = vpop.permute.xlu0 %969
    %971 = vrot.lane.b32.xlu0 %v635, 64
    %v972 = vpop.permute.xlu0 %971
    %973 = vrot.lane.b32.xlu0 %v564, 64
    %v974 = vpop.permute.xlu0 %973
    %975 = vrot.lane.b32.xlu0 %v566, 64
    %v976 = vpop.permute.xlu0 %975
    %977 = vrot.lane.b32.xlu0 %v637, 64
    %v978 = vpop.permute.xlu0 %977
    %979 = vrot.lane.b32.xlu0 %v639, 64
    %v980 = vpop.permute.xlu0 %979
    %vm981 = vcmask 523264
    %v982 = vsel %vm981, %v918, %v920
    %v983 = vsel %vm981, %v920, %v922
    %v984 = vsel %vm981, %v922, %v924
    %v985 = vsel %vm981, %v926, %v928
    %v986 = vsel %vm981, %v928, %v930
    %v987 = vsel %vm981, %v930, %v932
    %v988 = vsel %vm981, %v934, %v936
    %v989 = vsel %vm981, %v936, %v938
    %v990 = vsel %vm981, %v938, %v940
    %v991 = vsel %vm981, %v942, %v944
    %v992 = vsel %vm981, %v944, %v946
    %v993 = vsel %vm981, %v946, %v948
    %v994 = vsel %vm981, %v950, %v952
    %v995 = vsel %vm981, %v952, %v954
    %v996 = vsel %vm981, %v954, %v956
    %v997 = vsel %vm981, %v958, %v960
    %v998 = vsel %vm981, %v960, %v962
    %v999 = vsel %vm981, %v962, %v964
    %v1000 = vsel %vm981, %v966, %v968
    %v1001 = vsel %vm981, %v968, %v970
    %v1002 = vsel %vm981, %v970, %v972
    %v1003 = vsel %vm981, %v974, %v976
    %v1004 = vsel %vm981, %v976, %v978
    %v1005 = vsel %vm981, %v978, %v980
    %v1038 = vrot.slane %v982, 2
    %v1039 = vrot.slane %v983, 2
    %v1040 = vrot.slane %v984, 2
    %v1041 = vrot.slane %v924, 2
    %v1042 = vrot.slane %v985, 2
    %v1043 = vrot.slane %v986, 2
    %v1044 = vrot.slane %v987, 2
    %v1045 = vrot.slane %v932, 2
    %v1046 = vrot.slane %v988, 2
    %v1047 = vrot.slane %v989, 2
    %v1048 = vrot.slane %v990, 2
    %v1049 = vrot.slane %v940, 2
    %v1050 = vrot.slane %v991, 2
    %v1051 = vrot.slane %v992, 2
    %v1052 = vrot.slane %v993, 2
    %v1053 = vrot.slane %v948, 2
    %v1054 = vrot.slane %v994, 2
    %v1055 = vrot.slane %v995, 2
    %v1056 = vrot.slane %v996, 2
    %v1057 = vrot.slane %v956, 2
    %v1058 = vrot.slane %v997, 2
    %v1059 = vrot.slane %v998, 2
    %v1060 = vrot.slane %v999, 2
    %v1061 = vrot.slane %v964, 2
    %v1062 = vrot.slane %v1000, 2
    %v1063 = vrot.slane %v1001, 2
    %v1064 = vrot.slane %v1002, 2
    %v1065 = vrot.slane %v972, 2
    %v1066 = vrot.slane %v1003, 2
    %v1067 = vrot.slane %v1004, 2
    %v1068 = vrot.slane %v1005, 2
    %v1069 = vrot.slane %v980, 2
    %vm1070 = vcmp.lt.s32.totalorder %v827, 6
    %v1071 = vsel %vm1070, %v1062, %v1066
    %v1072 = vsel %vm1070, %v1063, %v1067
    %v1073 = vsel %vm1070, %v1064, %v1068
    %v1074 = vsel %vm1070, %v1065, %v1069
    %v1075 = vsel %vm1070, %v1058, %v1062
    %v1076 = vsel %vm1070, %v1059, %v1063
    %v1077 = vsel %vm1070, %v1060, %v1064
    %v1078 = vsel %vm1070, %v1061, %v1065
    %v1079 = vsel %vm1070, %v1054, %v1058
    %v1080 = vsel %vm1070, %v1055, %v1059
    %v1081 = vsel %vm1070, %v1056, %v1060
    %v1082 = vsel %vm1070, %v1057, %v1061
    %v1083 = vsel %vm1070, %v1050, %v1054
    %v1084 = vsel %vm1070, %v1051, %v1055
    %v1085 = vsel %vm1070, %v1052, %v1056
    %v1086 = vsel %vm1070, %v1053, %v1057
    %v1087 = vsel %vm1070, %v1046, %v1050
    %v1088 = vsel %vm1070, %v1047, %v1051
    %v1089 = vsel %vm1070, %v1048, %v1052
    %v1090 = vsel %vm1070, %v1049, %v1053
    %v1091 = vsel %vm1070, %v1042, %v1046
    %v1092 = vsel %vm1070, %v1043, %v1047
    %v1093 = vsel %vm1070, %v1044, %v1048
    %v1094 = vsel %vm1070, %v1045, %v1049
    %v1095 = vsel %vm1070, %v1038, %v1042
    %v1096 = vsel %vm1070, %v1039, %v1043
    %v1097 = vsel %vm1070, %v1040, %v1044
    %v1098 = vsel %vm1070, %v1041, %v1045
    %v1099 = vsel %vm1070, %v1066, %v1038
    %v1100 = vsel %vm1070, %v1067, %v1039
    %v1101 = vsel %vm1070, %v1068, %v1040
    %v1102 = vsel %vm1070, %v1069, %v1041
    %v1103 = vadd.f32 %v861, %v1095
    %v1104 = vadd.f32 %v862, %v1096
    %v1105 = vadd.f32 %v863, %v1097
    %v1106 = vadd.f32 %v864, %v1098
    %v1107 = vadd.f32 %v865, %v1091
    %v1108 = vadd.f32 %v866, %v1092
    %v1109 = vadd.f32 %v867, %v1093
    %v1110 = vadd.f32 %v868, %v1094
    %v1111 = vadd.f32 %v869, %v1087
    %v1112 = vadd.f32 %v870, %v1088
    %v1113 = vadd.f32 %v871, %v1089
    %v1114 = vadd.f32 %v872, %v1090
    %v1115 = vadd.f32 %v873, %v1083
    %v1116 = vadd.f32 %v874, %v1084
    %v1117 = vadd.f32 %v875, %v1085
    %v1118 = vadd.f32 %v876, %v1086
    %v1119 = vadd.f32 %v877, %v1079
    %v1120 = vadd.f32 %v878, %v1080
    %v1121 = vadd.f32 %v879, %v1081
    %v1122 = vadd.f32 %v880, %v1082
    %v1123 = vadd.f32 %v881, %v1075
    %v1124 = vadd.f32 %v882, %v1076
    %v1125 = vadd.f32 %v883, %v1077
    %v1126 = vadd.f32 %v884, %v1078
    %v1127 = vadd.f32 %v885, %v1071
    %v1128 = vadd.f32 %v886, %v1072
    %v1129 = vadd.f32 %v887, %v1073
    %v1130 = vadd.f32 %v888, %v1074
    %v1131 = vadd.f32 %v889, %v1099
    %v1132 = vadd.f32 %v890, %v1100
    %v1133 = vadd.f32 %v891, %v1101
    %v1134 = vadd.f32 %v892, %v1102
    %v1135 = vld [vmem:[#allocation2] sm:$0xf]
    %v1137 = vlaneseq
    %v1138 = vshrl.u32 %v1137, 7
    %v1139 = vsub.s32 0, %v1138
    %v1140 = vrot.slane %v1135, %v1139
    %v1141 = vlaneseq
    %v1142 = vshrl.u32 %v1141, 7
    %v1143 = vsub.s32 1, %v1142
    %v1144 = vrot.slane %v1135, %v1143
    %v1145 = vlaneseq
    %v1146 = vshrl.u32 %v1145, 7
    %v1147 = vsub.s32 2, %v1146
    %v1148 = vrot.slane %v1135, %v1147
    %v1149 = vlaneseq
    %v1150 = vshrl.u32 %v1149, 7
    %v1151 = vsub.s32 3, %v1150
    %v1152 = vrot.slane %v1135, %v1151
    %v1157 = vadd.f32 %v1103, %v1140
    %v1158 = vadd.f32 %v1104, %v1144
    %v1159 = vadd.f32 %v1105, %v1148
    %v1160 = vadd.f32 %v1106, %v1152
    %v1161 = vadd.f32 %v1107, %v1140
    %v1162 = vadd.f32 %v1108, %v1144
    %v1163 = vadd.f32 %v1109, %v1148
    %v1164 = vadd.f32 %v1110, %v1152
    %v1165 = vadd.f32 %v1111, %v1140
    %v1166 = vadd.f32 %v1112, %v1144
    %v1167 = vadd.f32 %v1113, %v1148
    %v1168 = vadd.f32 %v1114, %v1152
    %v1169 = vadd.f32 %v1115, %v1140
    %v1170 = vadd.f32 %v1116, %v1144
    %v1171 = vadd.f32 %v1117, %v1148
    %v1172 = vadd.f32 %v1118, %v1152
    %v1173 = vadd.f32 %v1119, %v1140
    %v1174 = vadd.f32 %v1120, %v1144
    %v1175 = vadd.f32 %v1121, %v1148
    %v1176 = vadd.f32 %v1122, %v1152
    %v1177 = vadd.f32 %v1123, %v1140
    %v1178 = vadd.f32 %v1124, %v1144
    %v1179 = vadd.f32 %v1125, %v1148
    %v1180 = vadd.f32 %v1126, %v1152
    %v1181 = vadd.f32 %v1127, %v1140
    %v1182 = vadd.f32 %v1128, %v1144
    %v1183 = vadd.f32 %v1129, %v1148
    %v1184 = vadd.f32 %v1130, %v1152
    %v1185 = vadd.f32 %v1131, %v1140
    %v1186 = vadd.f32 %v1132, %v1144
    %v1187 = vadd.f32 %v1133, %v1148
    %v1188 = vadd.f32 %v1134, %v1152
    %v1189 = vmax.f32 %v1157, 0.0
    %v1190 = vmax.f32 %v1158, 0.0
    %v1191 = vmax.f32 %v1159, 0.0
    %v1192 = vmax.f32 %v1160, 0.0
    %v1193 = vmax.f32 %v1161, 0.0
    %v1194 = vmax.f32 %v1162, 0.0
    %v1195 = vmax.f32 %v1163, 0.0
    %v1196 = vmax.f32 %v1164, 0.0
    %v1197 = vmax.f32 %v1165, 0.0
    %v1198 = vmax.f32 %v1166, 0.0
    %v1199 = vmax.f32 %v1167, 0.0
    %v1200 = vmax.f32 %v1168, 0.0
    %v1201 = vmax.f32 %v1169, 0.0
    %v1202 = vmax.f32 %v1170, 0.0
    %v1203 = vmax.f32 %v1171, 0.0
    %v1204 = vmax.f32 %v1172, 0.0
    %v1205 = vmax.f32 %v1173, 0.0
    %v1206 = vmax.f32 %v1174, 0.0
    %v1207 = vmax.f32 %v1175, 0.0
    %v1208 = vmax.f32 %v1176, 0.0
    %v1209 = vmax.f32 %v1177, 0.0
    %v1210 = vmax.f32 %v1178, 0.0
    %v1211 = vmax.f32 %v1179, 0.0
    %v1212 = vmax.f32 %v1180, 0.0
    %v1213 = vmax.f32 %v1181, 0.0
    %v1214 = vmax.f32 %v1182, 0.0
    %v1215 = vmax.f32 %v1183, 0.0
    %v1216 = vmax.f32 %v1184, 0.0
    %v1217 = vmax.f32 %v1185, 0.0
    %v1218 = vmax.f32 %v1186, 0.0
    %v1219 = vmax.f32 %v1187, 0.0
    %v1220 = vmax.f32 %v1188, 0.0
    %v1221 = vpack.c.bf16 %v1193, %v1189
    %v1222 = vpack.c.bf16 %v1194, %v1190
    %v1223 = vpack.c.bf16 %v1195, %v1191
    %v1224 = vpack.c.bf16 %v1196, %v1192
    %v1225 = vpack.c.bf16 %v1201, %v1197
    %v1226 = vpack.c.bf16 %v1202, %v1198
    %v1227 = vpack.c.bf16 %v1203, %v1199
    %v1228 = vpack.c.bf16 %v1204, %v1200
    %v1229 = vpack.c.bf16 %v1209, %v1205
    %v1230 = vpack.c.bf16 %v1210, %v1206
    %v1231 = vpack.c.bf16 %v1211, %v1207
    %v1232 = vpack.c.bf16 %v1212, %v1208
    %v1233 = vpack.c.bf16 %v1217, %v1213
    %v1234 = vpack.c.bf16 %v1218, %v1214
    %v1235 = vpack.c.bf16 %v1219, %v1215
    %v1236 = vpack.c.bf16 %v1220, %v1216
    %v1237 = vld [vmem:[#allocation5] sm:$0xff]
    %v1238 = vld [vmem:[#allocation5 + $0x8] sm:$0xff]
    %v1239 = vld [vmem:[#allocation5 + $0x10] sm:$0xff]
    %v1240 = vld [vmem:[#allocation5 + $0x18] sm:$0xff]
    %v1241 = vld [vmem:[#allocation5 + $0x20] sm:$0xff]
    %v1242 = vld [vmem:[#allocation5 + $0x28] sm:$0xff]
    %v1243 = vld [vmem:[#allocation5 + $0x30] sm:$0xff]
    %v1244 = vld [vmem:[#allocation5 + $0x38] sm:$0xff]
    %v1245 = vld [vmem:[#allocation5 + $0x40] sm:$0xff]
    %v1246 = vld [vmem:[#allocation5 + $0x48] sm:$0xff]
    %v1247 = vld [vmem:[#allocation5 + $0x50] sm:$0xff]
    %v1248 = vld [vmem:[#allocation5 + $0x58] sm:$0xff]
    %v1249 = vld [vmem:[#allocation5 + $0x60] sm:$0xff]
    %v1250 = vld [vmem:[#allocation5 + $0x68] sm:$0xff]
    %v1251 = vld [vmem:[#allocation5 + $0x70] sm:$0xff]
    %v1252 = vld [vmem:[#allocation5 + $0x78] sm:$0xff]
    %v1253 = vld [vmem:[#allocation5 + $0x80] sm:$0xff]
    %v1254 = vld [vmem:[#allocation5 + $0x88] sm:$0xff]
    %v1255 = vld [vmem:[#allocation5 + $0x90] sm:$0xff]
    %v1256 = vld [vmem:[#allocation5 + $0x98] sm:$0xff]
    %v1257 = vld [vmem:[#allocation5 + $0xa0] sm:$0xff]
    %v1258 = vld [vmem:[#allocation5 + $0xa8] sm:$0xff]
    %v1259 = vld [vmem:[#allocation5 + $0xb0] sm:$0xff]
    %v1260 = vld [vmem:[#allocation5 + $0xb8] sm:$0xff]
    %v1261 = vld [vmem:[#allocation5 + $0xc0] sm:$0xff]
    %v1262 = vld [vmem:[#allocation5 + $0xc8] sm:$0xff]
    %v1263 = vld [vmem:[#allocation5 + $0xd0] sm:$0xff]
    %v1264 = vld [vmem:[#allocation5 + $0xd8] sm:$0xff]
    %v1265 = vld [vmem:[#allocation5 + $0xe0] sm:$0xff]
    %v1266 = vld [vmem:[#allocation5 + $0xe8] sm:$0xff]
    %v1267 = vld [vmem:[#allocation5 + $0xf0] sm:$0xff]
    %v1268 = vld [vmem:[#allocation5 + $0xf8] sm:$0xff]
    %v1269 = vld [vmem:[#allocation5 + $0x100] sm:$0xff]
    %v1270 = vld [vmem:[#allocation5 + $0x108] sm:$0xff]
    %v1271 = vld [vmem:[#allocation5 + $0x110] sm:$0xff]
    %v1272 = vld [vmem:[#allocation5 + $0x118] sm:$0xff]
    %v1273 = vld [vmem:[#allocation5 + $0x120] sm:$0xff]
    %v1274 = vld [vmem:[#allocation5 + $0x128] sm:$0xff]
    %v1275 = vld [vmem:[#allocation5 + $0x130] sm:$0xff]
    %v1276 = vld [vmem:[#allocation5 + $0x138] sm:$0xff]
    %v1277 = vld [vmem:[#allocation5 + $0x140] sm:$0xff]
    %v1278 = vld [vmem:[#allocation5 + $0x148] sm:$0xff]
    %v1279 = vld [vmem:[#allocation5 + $0x150] sm:$0xff]
    %v1280 = vld [vmem:[#allocation5 + $0x158] sm:$0xff]
    %v1281 = vld [vmem:[#allocation5 + $0x160] sm:$0xff]
    %v1282 = vld [vmem:[#allocation5 + $0x168] sm:$0xff]
    %v1283 = vld [vmem:[#allocation5 + $0x170] sm:$0xff]
    %v1284 = vld [vmem:[#allocation5 + $0x178] sm:$0xff]
    %v1285 = vld [vmem:[#allocation5 + $0x180] sm:$0xff]
    %v1286 = vld [vmem:[#allocation5 + $0x188] sm:$0xff]
    %v1287 = vld [vmem:[#allocation5 + $0x190] sm:$0xff]
    %v1288 = vld [vmem:[#allocation5 + $0x198] sm:$0xff]
    %v1289 = vld [vmem:[#allocation5 + $0x1a0] sm:$0xff]
    %v1290 = vld [vmem:[#allocation5 + $0x1a8] sm:$0xff]
    %v1291 = vld [vmem:[#allocation5 + $0x1b0] sm:$0xff]
    %v1292 = vld [vmem:[#allocation5 + $0x1b8] sm:$0xff]
    %v1293 = vld [vmem:[#allocation5 + $0x1c0] sm:$0xff]
    %v1294 = vld [vmem:[#allocation5 + $0x1c8] sm:$0xff]
    %v1295 = vld [vmem:[#allocation5 + $0x1d0] sm:$0xff]
    %v1296 = vld [vmem:[#allocation5 + $0x1d8] sm:$0xff]
    %v1297 = vld [vmem:[#allocation5 + $0x1e0] sm:$0xff]
    %v1298 = vld [vmem:[#allocation5 + $0x1e8] sm:$0xff]
    %v1299 = vld [vmem:[#allocation5 + $0x1f0] sm:$0xff]
    %v1300 = vld [vmem:[#allocation5 + $0x1f8] sm:$0xff]
    %v1301 = vld [vmem:[#allocation5 + $0x200] sm:$0xff]
    %v1302 = vld [vmem:[#allocation5 + $0x208] sm:$0xff]
    %v1303 = vld [vmem:[#allocation5 + $0x210] sm:$0xff]
    %v1304 = vld [vmem:[#allocation5 + $0x218] sm:$0xff]
    %v1305 = vld [vmem:[#allocation5 + $0x220] sm:$0xff]
    %v1306 = vld [vmem:[#allocation5 + $0x228] sm:$0xff]
    %v1307 = vld [vmem:[#allocation5 + $0x230] sm:$0xff]
    %v1308 = vld [vmem:[#allocation5 + $0x238] sm:$0xff]
    %v1309 = vld [vmem:[#allocation5 + $0x240] sm:$0xff]
    %v1310 = vld [vmem:[#allocation5 + $0x248] sm:$0xff]
    %v1311 = vld [vmem:[#allocation5 + $0x250] sm:$0xff]
    %v1312 = vld [vmem:[#allocation5 + $0x258] sm:$0xff]
    %v1313 = vld [vmem:[#allocation5 + $0x260] sm:$0xff]
    %v1314 = vld [vmem:[#allocation5 + $0x268] sm:$0xff]
    %v1315 = vld [vmem:[#allocation5 + $0x270] sm:$0xff]
    %v1316 = vld [vmem:[#allocation5 + $0x278] sm:$0xff]
    %v1317 = vld [vmem:[#allocation5 + $0x280] sm:$0xff]
    %v1318 = vld [vmem:[#allocation5 + $0x288] sm:$0xff]
    %v1319 = vld [vmem:[#allocation5 + $0x290] sm:$0xff]
    %v1320 = vld [vmem:[#allocation5 + $0x298] sm:$0xff]
    %v1321 = vld [vmem:[#allocation5 + $0x2a0] sm:$0xff]
    %v1322 = vld [vmem:[#allocation5 + $0x2a8] sm:$0xff]
    %v1323 = vld [vmem:[#allocation5 + $0x2b0] sm:$0xff]
    %v1324 = vld [vmem:[#allocation5 + $0x2b8] sm:$0xff]
    %v1325 = vld [vmem:[#allocation5 + $0x2c0] sm:$0xff]
    %v1326 = vld [vmem:[#allocation5 + $0x2c8] sm:$0xff]
    %v1327 = vld [vmem:[#allocation5 + $0x2d0] sm:$0xff]
    %v1328 = vld [vmem:[#allocation5 + $0x2d8] sm:$0xff]
    %v1329 = vld [vmem:[#allocation5 + $0x2e0] sm:$0xff]
    %v1330 = vld [vmem:[#allocation5 + $0x2e8] sm:$0xff]
    %v1331 = vld [vmem:[#allocation5 + $0x2f0] sm:$0xff]
    %v1332 = vld [vmem:[#allocation5 + $0x2f8] sm:$0xff]
    %v1333 = vld [vmem:[#allocation5 + $0x300] sm:$0xff]
    %v1334 = vld [vmem:[#allocation5 + $0x308] sm:$0xff]
    %v1335 = vld [vmem:[#allocation5 + $0x310] sm:$0xff]
    %v1336 = vld [vmem:[#allocation5 + $0x318] sm:$0xff]
    %v1337 = vld [vmem:[#allocation5 + $0x320] sm:$0xff]
    %v1338 = vld [vmem:[#allocation5 + $0x328] sm:$0xff]
    %v1339 = vld [vmem:[#allocation5 + $0x330] sm:$0xff]
    %v1340 = vld [vmem:[#allocation5 + $0x338] sm:$0xff]
    %v1341 = vld [vmem:[#allocation5 + $0x340] sm:$0xff]
    %v1342 = vld [vmem:[#allocation5 + $0x348] sm:$0xff]
    %v1343 = vld [vmem:[#allocation5 + $0x350] sm:$0xff]
    %v1344 = vld [vmem:[#allocation5 + $0x358] sm:$0xff]
    %v1345 = vld [vmem:[#allocation5 + $0x360] sm:$0xff]
    %v1346 = vld [vmem:[#allocation5 + $0x368] sm:$0xff]
    %v1347 = vld [vmem:[#allocation5 + $0x370] sm:$0xff]
    %v1348 = vld [vmem:[#allocation5 + $0x378] sm:$0xff]
    %v1349 = vld [vmem:[#allocation5 + $0x380] sm:$0xff]
    %v1350 = vld [vmem:[#allocation5 + $0x388] sm:$0xff]
    %v1351 = vld [vmem:[#allocation5 + $0x390] sm:$0xff]
    %v1352 = vld [vmem:[#allocation5 + $0x398] sm:$0xff]
    %v1353 = vld [vmem:[#allocation5 + $0x3a0] sm:$0xff]
    %v1354 = vld [vmem:[#allocation5 + $0x3a8] sm:$0xff]
    %v1355 = vld [vmem:[#allocation5 + $0x3b0] sm:$0xff]
    %v1356 = vld [vmem:[#allocation5 + $0x3b8] sm:$0xff]
    %v1357 = vld [vmem:[#allocation5 + $0x3c0] sm:$0xff]
    %v1358 = vld [vmem:[#allocation5 + $0x3c8] sm:$0xff]
    %v1359 = vld [vmem:[#allocation5 + $0x3d0] sm:$0xff]
    %v1360 = vld [vmem:[#allocation5 + $0x3d8] sm:$0xff]
    %v1361 = vld [vmem:[#allocation5 + $0x3e0] sm:$0xff]
    %v1362 = vld [vmem:[#allocation5 + $0x3e8] sm:$0xff]
    %v1363 = vld [vmem:[#allocation5 + $0x3f0] sm:$0xff]
    %v1364 = vld [vmem:[#allocation5 + $0x3f8] sm:$0xff]
    %v1365 = vld [vmem:[#allocation5 + $0x400] sm:$0xff]
    %v1366 = vld [vmem:[#allocation5 + $0x408] sm:$0xff]
    %v1367 = vld [vmem:[#allocation5 + $0x410] sm:$0xff]
    %v1368 = vld [vmem:[#allocation5 + $0x418] sm:$0xff]
    %v1369 = vld [vmem:[#allocation5 + $0x420] sm:$0xff]
    %v1370 = vld [vmem:[#allocation5 + $0x428] sm:$0xff]
    %v1371 = vld [vmem:[#allocation5 + $0x430] sm:$0xff]
    %v1372 = vld [vmem:[#allocation5 + $0x438] sm:$0xff]
    %v1373 = vld [vmem:[#allocation5 + $0x440] sm:$0xff]
    %v1374 = vld [vmem:[#allocation5 + $0x448] sm:$0xff]
    %v1375 = vld [vmem:[#allocation5 + $0x450] sm:$0xff]
    %v1376 = vld [vmem:[#allocation5 + $0x458] sm:$0xff]
    %v1377 = vld [vmem:[#allocation5 + $0x460] sm:$0xff]
    %v1378 = vld [vmem:[#allocation5 + $0x468] sm:$0xff]
    %v1379 = vld [vmem:[#allocation5 + $0x470] sm:$0xff]
    %v1380 = vld [vmem:[#allocation5 + $0x478] sm:$0xff]
    %v1381 = vld [vmem:[#allocation5 + $0x480] sm:$0xff]
    %v1382 = vld [vmem:[#allocation5 + $0x488] sm:$0xff]
    %v1383 = vld [vmem:[#allocation5 + $0x490] sm:$0xff]
    %v1384 = vld [vmem:[#allocation5 + $0x498] sm:$0xff]
    %v1385 = vld [vmem:[#allocation5 + $0x4a0] sm:$0xff]
    %v1386 = vld [vmem:[#allocation5 + $0x4a8] sm:$0xff]
    %v1387 = vld [vmem:[#allocation5 + $0x4b0] sm:$0xff]
    %v1388 = vld [vmem:[#allocation5 + $0x4b8] sm:$0xff]
    %v1389 = vld [vmem:[#allocation5 + $0x4c0] sm:$0xff]
    %v1390 = vld [vmem:[#allocation5 + $0x4c8] sm:$0xff]
    %v1391 = vld [vmem:[#allocation5 + $0x4d0] sm:$0xff]
    %v1392 = vld [vmem:[#allocation5 + $0x4d8] sm:$0xff]
    %s1393 = scalar_lea.vmem [#allocation5], 1248
    %v1394 = vld [vmem:[%s1393] sm:$0xff]
    %v1395 = vld [vmem:[%s1393 + $0x8] sm:$0xff]
    %v1396 = vld [vmem:[%s1393 + $0x10] sm:$0xff]
    %v1397 = vld [vmem:[%s1393 + $0x18] sm:$0xff]
    %v1398 = vld [vmem:[%s1393 + $0x20] sm:$0xff]
    %v1399 = vld [vmem:[%s1393 + $0x28] sm:$0xff]
    %v1400 = vld [vmem:[%s1393 + $0x30] sm:$0xff]
    %v1401 = vld [vmem:[%s1393 + $0x38] sm:$0xff]
    %v1402 = vld [vmem:[%s1393 + $0x40] sm:$0xff]
    %v1403 = vld [vmem:[%s1393 + $0x48] sm:$0xff]
    %v1404 = vld [vmem:[%s1393 + $0x50] sm:$0xff]
    %v1405 = vld [vmem:[%s1393 + $0x58] sm:$0xff]
    %v1406 = vld [vmem:[%s1393 + $0x60] sm:$0xff]
    %v1407 = vld [vmem:[%s1393 + $0x68] sm:$0xff]
    %v1408 = vld [vmem:[%s1393 + $0x70] sm:$0xff]
    %v1409 = vld [vmem:[%s1393 + $0x78] sm:$0xff]
    %v1410 = vld [vmem:[%s1393 + $0x80] sm:$0xff]
    %v1411 = vld [vmem:[%s1393 + $0x88] sm:$0xff]
    %v1412 = vld [vmem:[%s1393 + $0x90] sm:$0xff]
    %v1413 = vld [vmem:[%s1393 + $0x98] sm:$0xff]
    %v1414 = vld [vmem:[%s1393 + $0xa0] sm:$0xff]
    %v1415 = vld [vmem:[%s1393 + $0xa8] sm:$0xff]
    %v1416 = vld [vmem:[%s1393 + $0xb0] sm:$0xff]
    %v1417 = vld [vmem:[%s1393 + $0xb8] sm:$0xff]
    %v1418 = vld [vmem:[%s1393 + $0xc0] sm:$0xff]
    %v1419 = vld [vmem:[%s1393 + $0xc8] sm:$0xff]
    %v1420 = vld [vmem:[%s1393 + $0xd0] sm:$0xff]
    %v1421 = vld [vmem:[%s1393 + $0xd8] sm:$0xff]
    %v1422 = vld [vmem:[%s1393 + $0xe0] sm:$0xff]
    %v1423 = vld [vmem:[%s1393 + $0xe8] sm:$0xff]
    %v1424 = vld [vmem:[%s1393 + $0xf0] sm:$0xff]
    %v1425 = vld [vmem:[%s1393 + $0xf8] sm:$0xff]
    %v1426 = vld [vmem:[%s1393 + $0x100] sm:$0xff]
    %v1427 = vld [vmem:[%s1393 + $0x108] sm:$0xff]
    %v1428 = vld [vmem:[%s1393 + $0x110] sm:$0xff]
    %v1429 = vld [vmem:[%s1393 + $0x118] sm:$0xff]
    %v1430 = vld [vmem:[%s1393 + $0x120] sm:$0xff]
    %v1431 = vld [vmem:[%s1393 + $0x128] sm:$0xff]
    %v1432 = vld [vmem:[%s1393 + $0x130] sm:$0xff]
    %v1433 = vld [vmem:[%s1393 + $0x138] sm:$0xff]
    %v1434 = vld [vmem:[%s1393 + $0x140] sm:$0xff]
    %v1435 = vld [vmem:[%s1393 + $0x148] sm:$0xff]
    %v1436 = vld [vmem:[%s1393 + $0x150] sm:$0xff]
    %v1437 = vld [vmem:[%s1393 + $0x158] sm:$0xff]
    %v1438 = vld [vmem:[%s1393 + $0x160] sm:$0xff]
    %v1439 = vld [vmem:[%s1393 + $0x168] sm:$0xff]
    %v1440 = vld [vmem:[%s1393 + $0x170] sm:$0xff]
    %v1441 = vld [vmem:[%s1393 + $0x178] sm:$0xff]
    %v1442 = vld [vmem:[%s1393 + $0x180] sm:$0xff]
    %v1443 = vld [vmem:[%s1393 + $0x188] sm:$0xff]
    %v1444 = vld [vmem:[%s1393 + $0x190] sm:$0xff]
    %v1445 = vld [vmem:[%s1393 + $0x198] sm:$0xff]
    %v1446 = vld [vmem:[%s1393 + $0x1a0] sm:$0xff]
    %v1447 = vld [vmem:[%s1393 + $0x1a8] sm:$0xff]
    %v1448 = vld [vmem:[%s1393 + $0x1b0] sm:$0xff]
    %v1449 = vld [vmem:[%s1393 + $0x1b8] sm:$0xff]
    %v1450 = vld [vmem:[%s1393 + $0x1c0] sm:$0xff]
    %v1451 = vld [vmem:[%s1393 + $0x1c8] sm:$0xff]
    %v1452 = vld [vmem:[%s1393 + $0x1d0] sm:$0xff]
    %v1453 = vld [vmem:[%s1393 + $0x1d8] sm:$0xff]
    %v1454 = vld [vmem:[%s1393 + $0x1e0] sm:$0xff]
    %v1455 = vld [vmem:[%s1393 + $0x1e8] sm:$0xff]
    %v1456 = vld [vmem:[%s1393 + $0x1f0] sm:$0xff]
    %v1457 = vld [vmem:[%s1393 + $0x1f8] sm:$0xff]
    %v1458 = vld [vmem:[%s1393 + $0x200] sm:$0xff]
    %v1459 = vld [vmem:[%s1393 + $0x208] sm:$0xff]
    %v1460 = vld [vmem:[%s1393 + $0x210] sm:$0xff]
    %v1461 = vld [vmem:[%s1393 + $0x218] sm:$0xff]
    %v1462 = vld [vmem:[%s1393 + $0x220] sm:$0xff]
    %v1463 = vld [vmem:[%s1393 + $0x228] sm:$0xff]
    %v1464 = vld [vmem:[%s1393 + $0x230] sm:$0xff]
    %v1465 = vld [vmem:[%s1393 + $0x238] sm:$0xff]
    %v1466 = vld [vmem:[%s1393 + $0x240] sm:$0xff]
    %v1467 = vld [vmem:[%s1393 + $0x248] sm:$0xff]
    %v1468 = vld [vmem:[%s1393 + $0x250] sm:$0xff]
    %v1469 = vld [vmem:[%s1393 + $0x258] sm:$0xff]
    %v1470 = vld [vmem:[%s1393 + $0x260] sm:$0xff]
    %v1471 = vld [vmem:[%s1393 + $0x268] sm:$0xff]
    %v1472 = vld [vmem:[%s1393 + $0x270] sm:$0xff]
    %v1473 = vld [vmem:[%s1393 + $0x278] sm:$0xff]
    %v1474 = vld [vmem:[%s1393 + $0x280] sm:$0xff]
    %v1475 = vld [vmem:[%s1393 + $0x288] sm:$0xff]
    %v1476 = vld [vmem:[%s1393 + $0x290] sm:$0xff]
    %v1477 = vld [vmem:[%s1393 + $0x298] sm:$0xff]
    %v1478 = vld [vmem:[%s1393 + $0x2a0] sm:$0xff]
    %v1479 = vld [vmem:[%s1393 + $0x2a8] sm:$0xff]
    %v1480 = vld [vmem:[%s1393 + $0x2b0] sm:$0xff]
    %v1481 = vld [vmem:[%s1393 + $0x2b8] sm:$0xff]
    %v1482 = vld [vmem:[%s1393 + $0x2c0] sm:$0xff]
    %v1483 = vld [vmem:[%s1393 + $0x2c8] sm:$0xff]
    %v1484 = vld [vmem:[%s1393 + $0x2d0] sm:$0xff]
    %v1485 = vld [vmem:[%s1393 + $0x2d8] sm:$0xff]
    %v1486 = vld [vmem:[%s1393 + $0x2e0] sm:$0xff]
    %v1487 = vld [vmem:[%s1393 + $0x2e8] sm:$0xff]
    %v1488 = vld [vmem:[%s1393 + $0x2f0] sm:$0xff]
    %v1489 = vld [vmem:[%s1393 + $0x2f8] sm:$0xff]
    %v1490 = vld [vmem:[%s1393 + $0x300] sm:$0xff]
    %v1491 = vld [vmem:[%s1393 + $0x308] sm:$0xff]
    %v1492 = vld [vmem:[%s1393 + $0x310] sm:$0xff]
    %v1493 = vld [vmem:[%s1393 + $0x318] sm:$0xff]
    %v1494 = vld [vmem:[%s1393 + $0x320] sm:$0xff]
    %v1495 = vld [vmem:[%s1393 + $0x328] sm:$0xff]
    %v1496 = vld [vmem:[%s1393 + $0x330] sm:$0xff]
    %v1497 = vld [vmem:[%s1393 + $0x338] sm:$0xff]
    %v1498 = vld [vmem:[%s1393 + $0x340] sm:$0xff]
    %v1499 = vld [vmem:[%s1393 + $0x348] sm:$0xff]
    %v1500 = vld [vmem:[%s1393 + $0x350] sm:$0xff]
    %v1501 = vld [vmem:[%s1393 + $0x358] sm:$0xff]
    %v1502 = vld [vmem:[%s1393 + $0x360] sm:$0xff]
    %v1503 = vld [vmem:[%s1393 + $0x368] sm:$0xff]
    %v1504 = vld [vmem:[%s1393 + $0x370] sm:$0xff]
    %v1505 = vld [vmem:[%s1393 + $0x378] sm:$0xff]
    %v1506 = vld [vmem:[%s1393 + $0x380] sm:$0xff]
    %v1507 = vld [vmem:[%s1393 + $0x388] sm:$0xff]
    %v1508 = vld [vmem:[%s1393 + $0x390] sm:$0xff]
    %v1509 = vld [vmem:[%s1393 + $0x398] sm:$0xff]
    %v1510 = vld [vmem:[%s1393 + $0x3a0] sm:$0xff]
    %v1511 = vld [vmem:[%s1393 + $0x3a8] sm:$0xff]
    %v1512 = vld [vmem:[%s1393 + $0x3b0] sm:$0xff]
    %v1513 = vld [vmem:[%s1393 + $0x3b8] sm:$0xff]
    %v1514 = vld [vmem:[%s1393 + $0x3c0] sm:$0xff]
    %v1515 = vld [vmem:[%s1393 + $0x3c8] sm:$0xff]
    %v1516 = vld [vmem:[%s1393 + $0x3d0] sm:$0xff]
    %v1517 = vld [vmem:[%s1393 + $0x3d8] sm:$0xff]
    %v1518 = vld [vmem:[%s1393 + $0x3e0] sm:$0xff]
    %v1519 = vld [vmem:[%s1393 + $0x3e8] sm:$0xff]
    %v1520 = vld [vmem:[%s1393 + $0x3f0] sm:$0xff]
    %v1521 = vld [vmem:[%s1393 + $0x3f8] sm:$0xff]
    %v1522 = vld [vmem:[%s1393 + $0x400] sm:$0xff]
    %v1523 = vld [vmem:[%s1393 + $0x408] sm:$0xff]
    %v1524 = vld [vmem:[%s1393 + $0x410] sm:$0xff]
    %v1525 = vld [vmem:[%s1393 + $0x418] sm:$0xff]
    %v1526 = vld [vmem:[%s1393 + $0x420] sm:$0xff]
    %v1527 = vld [vmem:[%s1393 + $0x428] sm:$0xff]
    %v1528 = vld [vmem:[%s1393 + $0x430] sm:$0xff]
    %v1529 = vld [vmem:[%s1393 + $0x438] sm:$0xff]
    %v1530 = vld [vmem:[%s1393 + $0x440] sm:$0xff]
    %v1531 = vld [vmem:[%s1393 + $0x448] sm:$0xff]
    %v1532 = vld [vmem:[%s1393 + $0x450] sm:$0xff]
    %v1533 = vld [vmem:[%s1393 + $0x458] sm:$0xff]
    %v1534 = vld [vmem:[%s1393 + $0x460] sm:$0xff]
    %v1535 = vld [vmem:[%s1393 + $0x468] sm:$0xff]
    %v1536 = vld [vmem:[%s1393 + $0x470] sm:$0xff]
    %v1537 = vld [vmem:[%s1393 + $0x478] sm:$0xff]
    %v1538 = vld [vmem:[%s1393 + $0x480] sm:$0xff]
    %v1539 = vld [vmem:[%s1393 + $0x488] sm:$0xff]
    %v1540 = vld [vmem:[%s1393 + $0x490] sm:$0xff]
    %v1541 = vld [vmem:[%s1393 + $0x498] sm:$0xff]
    %v1542 = vld [vmem:[%s1393 + $0x4a0] sm:$0xff]
    %v1543 = vld [vmem:[%s1393 + $0x4a8] sm:$0xff]
    %v1544 = vld [vmem:[%s1393 + $0x4b0] sm:$0xff]
    %v1545 = vld [vmem:[%s1393 + $0x4b8] sm:$0xff]
    %v1546 = vld [vmem:[%s1393 + $0x4c0] sm:$0xff]
    %v1547 = vld [vmem:[%s1393 + $0x4c8] sm:$0xff]
    %v1548 = vld [vmem:[%s1393 + $0x4d0] sm:$0xff]
    %v1549 = vld [vmem:[%s1393 + $0x4d8] sm:$0xff]
    %v1706 = vunpack.c.l.b16 %v1394
    %v1707 = vunpack.c.h.b16 %v1394
    %v1708 = vunpack.c.l.b16 %v1395
    %v1709 = vunpack.c.h.b16 %v1395
    %v1710 = vunpack.c.l.b16 %v1396
    %v1711 = vunpack.c.h.b16 %v1396
    %v1712 = vunpack.c.l.b16 %v1397
    %v1713 = vunpack.c.h.b16 %v1397
    %v1714 = vunpack.c.l.b16 %v1398
    %v1715 = vunpack.c.h.b16 %v1398
    %v1716 = vunpack.c.l.b16 %v1399
    %v1717 = vunpack.c.h.b16 %v1399
    %v1718 = vunpack.c.l.b16 %v1400
    %v1719 = vunpack.c.h.b16 %v1400
    %v1720 = vunpack.c.l.b16 %v1401
    %v1721 = vunpack.c.h.b16 %v1401
    %v1722 = vunpack.c.l.b16 %v1402
    %v1723 = vunpack.c.h.b16 %v1402
    %v1724 = vunpack.c.l.b16 %v1403
    %v1725 = vunpack.c.h.b16 %v1403
    %v1726 = vunpack.c.l.b16 %v1404
    %v1727 = vunpack.c.h.b16 %v1404
    %v1728 = vunpack.c.l.b16 %v1405
    %v1729 = vunpack.c.h.b16 %v1405
    %v1730 = vunpack.c.l.b16 %v1406
    %v1731 = vunpack.c.h.b16 %v1406
    %v1732 = vunpack.c.l.b16 %v1407
    %v1733 = vunpack.c.h.b16 %v1407
    %v1734 = vunpack.c.l.b16 %v1408
    %v1735 = vunpack.c.h.b16 %v1408
    %v1736 = vunpack.c.l.b16 %v1409
    %v1737 = vunpack.c.h.b16 %v1409
    %v1738 = vunpack.c.l.b16 %v1410
    %v1739 = vunpack.c.h.b16 %v1410
    %v1740 = vunpack.c.l.b16 %v1411
    %v1741 = vunpack.c.h.b16 %v1411
    %v1742 = vunpack.c.l.b16 %v1412
    %v1743 = vunpack.c.h.b16 %v1412
    %v1744 = vunpack.c.l.b16 %v1413
    %v1745 = vunpack.c.h.b16 %v1413
    %v1746 = vunpack.c.l.b16 %v1414
    %v1747 = vunpack.c.h.b16 %v1414
    %v1748 = vunpack.c.l.b16 %v1415
    %v1749 = vunpack.c.h.b16 %v1415
    %v1750 = vunpack.c.l.b16 %v1416
    %v1751 = vunpack.c.h.b16 %v1416
    %v1752 = vunpack.c.l.b16 %v1417
    %v1753 = vunpack.c.h.b16 %v1417
    %v1754 = vunpack.c.l.b16 %v1418
    %v1755 = vunpack.c.h.b16 %v1418
    %v1756 = vunpack.c.l.b16 %v1419
    %v1757 = vunpack.c.h.b16 %v1419
    %v1758 = vunpack.c.l.b16 %v1420
    %v1759 = vunpack.c.h.b16 %v1420
    %v1760 = vunpack.c.l.b16 %v1421
    %v1761 = vunpack.c.h.b16 %v1421
    %v1762 = vunpack.c.l.b16 %v1422
    %v1763 = vunpack.c.h.b16 %v1422
    %v1764 = vunpack.c.l.b16 %v1423
    %v1765 = vunpack.c.h.b16 %v1423
    %v1766 = vunpack.c.l.b16 %v1424
    %v1767 = vunpack.c.h.b16 %v1424
    %v1768 = vunpack.c.l.b16 %v1425
    %v1769 = vunpack.c.h.b16 %v1425
    %v1770 = vunpack.c.l.b16 %v1426
    %v1771 = vunpack.c.h.b16 %v1426
    %v1772 = vunpack.c.l.b16 %v1427
    %v1773 = vunpack.c.h.b16 %v1427
    %v1774 = vunpack.c.l.b16 %v1428
    %v1775 = vunpack.c.h.b16 %v1428
    %v1776 = vunpack.c.l.b16 %v1429
    %v1777 = vunpack.c.h.b16 %v1429
    %v1778 = vunpack.c.l.b16 %v1430
    %v1779 = vunpack.c.h.b16 %v1430
    %v1780 = vunpack.c.l.b16 %v1431
    %v1781 = vunpack.c.h.b16 %v1431
    %v1782 = vunpack.c.l.b16 %v1432
    %v1783 = vunpack.c.h.b16 %v1432
    %v1784 = vunpack.c.l.b16 %v1433
    %v1785 = vunpack.c.h.b16 %v1433
    %v1786 = vunpack.c.l.b16 %v1434
    %v1787 = vunpack.c.h.b16 %v1434
    %v1788 = vunpack.c.l.b16 %v1435
    %v1789 = vunpack.c.h.b16 %v1435
    %v1790 = vunpack.c.l.b16 %v1436
    %v1791 = vunpack.c.h.b16 %v1436
    %v1792 = vunpack.c.l.b16 %v1437
    %v1793 = vunpack.c.h.b16 %v1437
    %v1794 = vunpack.c.l.b16 %v1438
    %v1795 = vunpack.c.h.b16 %v1438
    %v1796 = vunpack.c.l.b16 %v1439
    %v1797 = vunpack.c.h.b16 %v1439
    %v1798 = vunpack.c.l.b16 %v1440
    %v1799 = vunpack.c.h.b16 %v1440
    %v1800 = vunpack.c.l.b16 %v1441
    %v1801 = vunpack.c.h.b16 %v1441
    %v1802 = vunpack.c.l.b16 %v1442
    %v1803 = vunpack.c.h.b16 %v1442
    %v1804 = vunpack.c.l.b16 %v1443
    %v1805 = vunpack.c.h.b16 %v1443
    %v1806 = vunpack.c.l.b16 %v1444
    %v1807 = vunpack.c.h.b16 %v1444
    %v1808 = vunpack.c.l.b16 %v1445
    %v1809 = vunpack.c.h.b16 %v1445
    %v1810 = vunpack.c.l.b16 %v1446
    %v1811 = vunpack.c.h.b16 %v1446
    %v1812 = vunpack.c.l.b16 %v1447
    %v1813 = vunpack.c.h.b16 %v1447
    %v1814 = vunpack.c.l.b16 %v1448
    %v1815 = vunpack.c.h.b16 %v1448
    %v1816 = vunpack.c.l.b16 %v1449
    %v1817 = vunpack.c.h.b16 %v1449
    %v1818 = vunpack.c.l.b16 %v1450
    %v1819 = vunpack.c.h.b16 %v1450
    %v1820 = vunpack.c.l.b16 %v1451
    %v1821 = vunpack.c.h.b16 %v1451
    %v1822 = vunpack.c.l.b16 %v1452
    %v1823 = vunpack.c.h.b16 %v1452
    %v1824 = vunpack.c.l.b16 %v1453
    %v1825 = vunpack.c.h.b16 %v1453
    %v1826 = vunpack.c.l.b16 %v1454
    %v1827 = vunpack.c.h.b16 %v1454
    %v1828 = vunpack.c.l.b16 %v1455
    %v1829 = vunpack.c.h.b16 %v1455
    %v1830 = vunpack.c.l.b16 %v1456
    %v1831 = vunpack.c.h.b16 %v1456
    %v1832 = vunpack.c.l.b16 %v1457
    %v1833 = vunpack.c.h.b16 %v1457
    %v1834 = vunpack.c.l.b16 %v1458
    %v1835 = vunpack.c.h.b16 %v1458
    %v1836 = vunpack.c.l.b16 %v1459
    %v1837 = vunpack.c.h.b16 %v1459
    %v1838 = vunpack.c.l.b16 %v1460
    %v1839 = vunpack.c.h.b16 %v1460
    %v1840 = vunpack.c.l.b16 %v1461
    %v1841 = vunpack.c.h.b16 %v1461
    %v1842 = vunpack.c.l.b16 %v1462
    %v1843 = vunpack.c.h.b16 %v1462
    %v1844 = vunpack.c.l.b16 %v1463
    %v1845 = vunpack.c.h.b16 %v1463
    %v1846 = vunpack.c.l.b16 %v1464
    %v1847 = vunpack.c.h.b16 %v1464
    %v1848 = vunpack.c.l.b16 %v1465
    %v1849 = vunpack.c.h.b16 %v1465
    %v1850 = vunpack.c.l.b16 %v1466
    %v1851 = vunpack.c.h.b16 %v1466
    %v1852 = vunpack.c.l.b16 %v1467
    %v1853 = vunpack.c.h.b16 %v1467
    %v1854 = vunpack.c.l.b16 %v1468
    %v1855 = vunpack.c.h.b16 %v1468
    %v1856 = vunpack.c.l.b16 %v1469
    %v1857 = vunpack.c.h.b16 %v1469
    %v1858 = vunpack.c.l.b16 %v1470
    %v1859 = vunpack.c.h.b16 %v1470
    %v1860 = vunpack.c.l.b16 %v1471
    %v1861 = vunpack.c.h.b16 %v1471
    %v1862 = vunpack.c.l.b16 %v1472
    %v1863 = vunpack.c.h.b16 %v1472
    %v1864 = vunpack.c.l.b16 %v1473
    %v1865 = vunpack.c.h.b16 %v1473
    %v1866 = vunpack.c.l.b16 %v1474
    %v1867 = vunpack.c.h.b16 %v1474
    %v1868 = vunpack.c.l.b16 %v1475
    %v1869 = vunpack.c.h.b16 %v1475
    %v1870 = vunpack.c.l.b16 %v1476
    %v1871 = vunpack.c.h.b16 %v1476
    %v1872 = vunpack.c.l.b16 %v1477
    %v1873 = vunpack.c.h.b16 %v1477
    %v1874 = vunpack.c.l.b16 %v1478
    %v1875 = vunpack.c.h.b16 %v1478
    %v1876 = vunpack.c.l.b16 %v1479
    %v1877 = vunpack.c.h.b16 %v1479
    %v1878 = vunpack.c.l.b16 %v1480
    %v1879 = vunpack.c.h.b16 %v1480
    %v1880 = vunpack.c.l.b16 %v1481
    %v1881 = vunpack.c.h.b16 %v1481
    %v1882 = vunpack.c.l.b16 %v1482
    %v1883 = vunpack.c.h.b16 %v1482
    %v1884 = vunpack.c.l.b16 %v1483
    %v1885 = vunpack.c.h.b16 %v1483
    %v1886 = vunpack.c.l.b16 %v1484
    %v1887 = vunpack.c.h.b16 %v1484
    %v1888 = vunpack.c.l.b16 %v1485
    %v1889 = vunpack.c.h.b16 %v1485
    %v1890 = vunpack.c.l.b16 %v1486
    %v1891 = vunpack.c.h.b16 %v1486
    %v1892 = vunpack.c.l.b16 %v1487
    %v1893 = vunpack.c.h.b16 %v1487
    %v1894 = vunpack.c.l.b16 %v1488
    %v1895 = vunpack.c.h.b16 %v1488
    %v1896 = vunpack.c.l.b16 %v1489
    %v1897 = vunpack.c.h.b16 %v1489
    %v1898 = vunpack.c.l.b16 %v1490
    %v1899 = vunpack.c.h.b16 %v1490
    %v1900 = vunpack.c.l.b16 %v1491
    %v1901 = vunpack.c.h.b16 %v1491
    %v1902 = vunpack.c.l.b16 %v1492
    %v1903 = vunpack.c.h.b16 %v1492
    %v1904 = vunpack.c.l.b16 %v1493
    %v1905 = vunpack.c.h.b16 %v1493
    %v1906 = vunpack.c.l.b16 %v1494
    %v1907 = vunpack.c.h.b16 %v1494
    %v1908 = vunpack.c.l.b16 %v1495
    %v1909 = vunpack.c.h.b16 %v1495
    %v1910 = vunpack.c.l.b16 %v1496
    %v1911 = vunpack.c.h.b16 %v1496
    %v1912 = vunpack.c.l.b16 %v1497
    %v1913 = vunpack.c.h.b16 %v1497
    %v1914 = vunpack.c.l.b16 %v1498
    %v1915 = vunpack.c.h.b16 %v1498
    %v1916 = vunpack.c.l.b16 %v1499
    %v1917 = vunpack.c.h.b16 %v1499
    %v1918 = vunpack.c.l.b16 %v1500
    %v1919 = vunpack.c.h.b16 %v1500
    %v1920 = vunpack.c.l.b16 %v1501
    %v1921 = vunpack.c.h.b16 %v1501
    %v1922 = vunpack.c.l.b16 %v1502
    %v1923 = vunpack.c.h.b16 %v1502
    %v1924 = vunpack.c.l.b16 %v1503
    %v1925 = vunpack.c.h.b16 %v1503
    %v1926 = vunpack.c.l.b16 %v1504
    %v1927 = vunpack.c.h.b16 %v1504
    %v1928 = vunpack.c.l.b16 %v1505
    %v1929 = vunpack.c.h.b16 %v1505
    %v1930 = vunpack.c.l.b16 %v1506
    %v1931 = vunpack.c.h.b16 %v1506
    %v1932 = vunpack.c.l.b16 %v1507
    %v1933 = vunpack.c.h.b16 %v1507
    %v1934 = vunpack.c.l.b16 %v1508
    %v1935 = vunpack.c.h.b16 %v1508
    %v1936 = vunpack.c.l.b16 %v1509
    %v1937 = vunpack.c.h.b16 %v1509
    %v1938 = vunpack.c.l.b16 %v1510
    %v1939 = vunpack.c.h.b16 %v1510
    %v1940 = vunpack.c.l.b16 %v1511
    %v1941 = vunpack.c.h.b16 %v1511
    %v1942 = vunpack.c.l.b16 %v1512
    %v1943 = vunpack.c.h.b16 %v1512
    %v1944 = vunpack.c.l.b16 %v1513
    %v1945 = vunpack.c.h.b16 %v1513
    %v1946 = vunpack.c.l.b16 %v1514
    %v1947 = vunpack.c.h.b16 %v1514
    %v1948 = vunpack.c.l.b16 %v1515
    %v1949 = vunpack.c.h.b16 %v1515
    %v1950 = vunpack.c.l.b16 %v1516
    %v1951 = vunpack.c.h.b16 %v1516
    %v1952 = vunpack.c.l.b16 %v1517
    %v1953 = vunpack.c.h.b16 %v1517
    %v1954 = vunpack.c.l.b16 %v1518
    %v1955 = vunpack.c.h.b16 %v1518
    %v1956 = vunpack.c.l.b16 %v1519
    %v1957 = vunpack.c.h.b16 %v1519
    %v1958 = vunpack.c.l.b16 %v1520
    %v1959 = vunpack.c.h.b16 %v1520
    %v1960 = vunpack.c.l.b16 %v1521
    %v1961 = vunpack.c.h.b16 %v1521
    %v1962 = vunpack.c.l.b16 %v1522
    %v1963 = vunpack.c.h.b16 %v1522
    %v1964 = vunpack.c.l.b16 %v1523
    %v1965 = vunpack.c.h.b16 %v1523
    %v1966 = vunpack.c.l.b16 %v1524
    %v1967 = vunpack.c.h.b16 %v1524
    %v1968 = vunpack.c.l.b16 %v1525
    %v1969 = vunpack.c.h.b16 %v1525
    %v1970 = vunpack.c.l.b16 %v1526
    %v1971 = vunpack.c.h.b16 %v1526
    %v1972 = vunpack.c.l.b16 %v1527
    %v1973 = vunpack.c.h.b16 %v1527
    %v1974 = vunpack.c.l.b16 %v1528
    %v1975 = vunpack.c.h.b16 %v1528
    %v1976 = vunpack.c.l.b16 %v1529
    %v1977 = vunpack.c.h.b16 %v1529
    %v1978 = vunpack.c.l.b16 %v1530
    %v1979 = vunpack.c.h.b16 %v1530
    %v1980 = vunpack.c.l.b16 %v1531
    %v1981 = vunpack.c.h.b16 %v1531
    %v1982 = vunpack.c.l.b16 %v1532
    %v1983 = vunpack.c.h.b16 %v1532
    %v1984 = vunpack.c.l.b16 %v1533
    %v1985 = vunpack.c.h.b16 %v1533
    %v1986 = vunpack.c.l.b16 %v1534
    %v1987 = vunpack.c.h.b16 %v1534
    %v1988 = vunpack.c.l.b16 %v1535
    %v1989 = vunpack.c.h.b16 %v1535
    %v1990 = vunpack.c.l.b16 %v1536
    %v1991 = vunpack.c.h.b16 %v1536
    %v1992 = vunpack.c.l.b16 %v1537
    %v1993 = vunpack.c.h.b16 %v1537
    %v1994 = vunpack.c.l.b16 %v1538
    %v1995 = vunpack.c.h.b16 %v1538
    %v1996 = vunpack.c.l.b16 %v1539
    %v1997 = vunpack.c.h.b16 %v1539
    %v1998 = vunpack.c.l.b16 %v1540
    %v1999 = vunpack.c.h.b16 %v1540
    %v2000 = vunpack.c.l.b16 %v1541
    %v2001 = vunpack.c.h.b16 %v1541
    %v2002 = vunpack.c.l.b16 %v1542
    %v2003 = vunpack.c.h.b16 %v1542
    %v2004 = vunpack.c.l.b16 %v1543
    %v2005 = vunpack.c.h.b16 %v1543
    %v2006 = vunpack.c.l.b16 %v1544
    %v2007 = vunpack.c.h.b16 %v1544
    %v2008 = vunpack.c.l.b16 %v1545
    %v2009 = vunpack.c.h.b16 %v1545
    %v2010 = vunpack.c.l.b16 %v1546
    %v2011 = vunpack.c.h.b16 %v1546
    %v2012 = vunpack.c.l.b16 %v1547
    %v2013 = vunpack.c.h.b16 %v1547
    %v2014 = vunpack.c.l.b16 %v1548
    %v2015 = vunpack.c.h.b16 %v1548
    %v2016 = vunpack.c.l.b16 %v1549
    %v2017 = vunpack.c.h.b16 %v1549
    %v2018 = vpack.c.b16 %v1712, %v1706
    %v2019 = vpack.c.b16 %v1713, %v1707
    %v2020 = vpack.c.b16 %v1714, %v1708
    %v2021 = vpack.c.b16 %v1715, %v1709
    %v2022 = vpack.c.b16 %v1716, %v1710
    %v2023 = vpack.c.b16 %v1717, %v1711
    %v2024 = vpack.c.b16 %v1724, %v1718
    %v2025 = vpack.c.b16 %v1725, %v1719
    %v2026 = vpack.c.b16 %v1726, %v1720
    %v2027 = vpack.c.b16 %v1727, %v1721
    %v2028 = vpack.c.b16 %v1728, %v1722
    %v2029 = vpack.c.b16 %v1729, %v1723
    %v2030 = vpack.c.b16 %v1736, %v1730
    %v2031 = vpack.c.b16 %v1737, %v1731
    %v2032 = vpack.c.b16 %v1738, %v1732
    %v2033 = vpack.c.b16 %v1739, %v1733
    %v2034 = vpack.c.b16 %v1740, %v1734
    %v2035 = vpack.c.b16 %v1741, %v1735
    %v2036 = vpack.c.b16 %v1748, %v1742
    %v2037 = vpack.c.b16 %v1749, %v1743
    %v2038 = vpack.c.b16 %v1750, %v1744
    %v2039 = vpack.c.b16 %v1751, %v1745
    %v2040 = vpack.c.b16 %v1752, %v1746
    %v2041 = vpack.c.b16 %v1753, %v1747
    %v2042 = vpack.c.b16 %v1760, %v1754
    %v2043 = vpack.c.b16 %v1761, %v1755
    %v2044 = vpack.c.b16 %v1762, %v1756
    %v2045 = vpack.c.b16 %v1763, %v1757
    %v2046 = vpack.c.b16 %v1764, %v1758
    %v2047 = vpack.c.b16 %v1765, %v1759
    %v2048 = vpack.c.b16 %v1772, %v1766
    %v2049 = vpack.c.b16 %v1773, %v1767
    %v2050 = vpack.c.b16 %v1774, %v1768
    %v2051 = vpack.c.b16 %v1775, %v1769
    %v2052 = vpack.c.b16 %v1776, %v1770
    %v2053 = vpack.c.b16 %v1777, %v1771
    %v2054 = vpack.c.b16 %v1784, %v1778
    %v2055 = vpack.c.b16 %v1785, %v1779
    %v2056 = vpack.c.b16 %v1786, %v1780
    %v2057 = vpack.c.b16 %v1787, %v1781
    %v2058 = vpack.c.b16 %v1788, %v1782
    %v2059 = vpack.c.b16 %v1789, %v1783
    %v2060 = vpack.c.b16 %v1796, %v1790
    %v2061 = vpack.c.b16 %v1797, %v1791
    %v2062 = vpack.c.b16 %v1798, %v1792
    %v2063 = vpack.c.b16 %v1799, %v1793
    %v2064 = vpack.c.b16 %v1800, %v1794
    %v2065 = vpack.c.b16 %v1801, %v1795
    %v2066 = vpack.c.b16 %v1808, %v1802
    %v2067 = vpack.c.b16 %v1809, %v1803
    %v2068 = vpack.c.b16 %v1810, %v1804
    %v2069 = vpack.c.b16 %v1811, %v1805
    %v2070 = vpack.c.b16 %v1812, %v1806
    %v2071 = vpack.c.b16 %v1813, %v1807
    %v2072 = vpack.c.b16 %v1820, %v1814
    %v2073 = vpack.c.b16 %v1821, %v1815
    %v2074 = vpack.c.b16 %v1822, %v1816
    %v2075 = vpack.c.b16 %v1823, %v1817
    %v2076 = vpack.c.b16 %v1824, %v1818
    %v2077 = vpack.c.b16 %v1825, %v1819
    %v2078 = vpack.c.b16 %v1832, %v1826
    %v2079 = vpack.c.b16 %v1833, %v1827
    %v2080 = vpack.c.b16 %v1834, %v1828
    %v2081 = vpack.c.b16 %v1835, %v1829
    %v2082 = vpack.c.b16 %v1836, %v1830
    %v2083 = vpack.c.b16 %v1837, %v1831
    %v2084 = vpack.c.b16 %v1844, %v1838
    %v2085 = vpack.c.b16 %v1845, %v1839
    %v2086 = vpack.c.b16 %v1846, %v1840
    %v2087 = vpack.c.b16 %v1847, %v1841
    %v2088 = vpack.c.b16 %v1848, %v1842
    %v2089 = vpack.c.b16 %v1849, %v1843
    %v2090 = vpack.c.b16 %v1856, %v1850
    %v2091 = vpack.c.b16 %v1857, %v1851
    %v2092 = vpack.c.b16 %v1858, %v1852
    %v2093 = vpack.c.b16 %v1859, %v1853
    %v2094 = vpack.c.b16 %v1860, %v1854
    %v2095 = vpack.c.b16 %v1861, %v1855
    %v2096 = vpack.c.b16 %v1868, %v1862
    %v2097 = vpack.c.b16 %v1869, %v1863
    %v2098 = vpack.c.b16 %v1870, %v1864
    %v2099 = vpack.c.b16 %v1871, %v1865
    %v2100 = vpack.c.b16 %v1872, %v1866
    %v2101 = vpack.c.b16 %v1873, %v1867
    %v2102 = vpack.c.b16 %v1880, %v1874
    %v2103 = vpack.c.b16 %v1881, %v1875
    %v2104 = vpack.c.b16 %v1882, %v1876
    %v2105 = vpack.c.b16 %v1883, %v1877
    %v2106 = vpack.c.b16 %v1884, %v1878
    %v2107 = vpack.c.b16 %v1885, %v1879
    %v2108 = vpack.c.b16 %v1892, %v1886
    %v2109 = vpack.c.b16 %v1893, %v1887
    %v2110 = vpack.c.b16 %v1894, %v1888
    %v2111 = vpack.c.b16 %v1895, %v1889
    %v2112 = vpack.c.b16 %v1896, %v1890
    %v2113 = vpack.c.b16 %v1897, %v1891
    %v2114 = vpack.c.b16 %v1904, %v1898
    %v2115 = vpack.c.b16 %v1905, %v1899
    %v2116 = vpack.c.b16 %v1906, %v1900
    %v2117 = vpack.c.b16 %v1907, %v1901
    %v2118 = vpack.c.b16 %v1908, %v1902
    %v2119 = vpack.c.b16 %v1909, %v1903
    %v2120 = vpack.c.b16 %v1916, %v1910
    %v2121 = vpack.c.b16 %v1917, %v1911
    %v2122 = vpack.c.b16 %v1918, %v1912
    %v2123 = vpack.c.b16 %v1919, %v1913
    %v2124 = vpack.c.b16 %v1920, %v1914
    %v2125 = vpack.c.b16 %v1921, %v1915
    %v2126 = vpack.c.b16 %v1928, %v1922
    %v2127 = vpack.c.b16 %v1929, %v1923
    %v2128 = vpack.c.b16 %v1930, %v1924
    %v2129 = vpack.c.b16 %v1931, %v1925
    %v2130 = vpack.c.b16 %v1932, %v1926
    %v2131 = vpack.c.b16 %v1933, %v1927
    %v2132 = vpack.c.b16 %v1940, %v1934
    %v2133 = vpack.c.b16 %v1941, %v1935
    %v2134 = vpack.c.b16 %v1942, %v1936
    %v2135 = vpack.c.b16 %v1943, %v1937
    %v2136 = vpack.c.b16 %v1944, %v1938
    %v2137 = vpack.c.b16 %v1945, %v1939
    %v2138 = vpack.c.b16 %v1952, %v1946
    %v2139 = vpack.c.b16 %v1953, %v1947
    %v2140 = vpack.c.b16 %v1954, %v1948
    %v2141 = vpack.c.b16 %v1955, %v1949
    %v2142 = vpack.c.b16 %v1956, %v1950
    %v2143 = vpack.c.b16 %v1957, %v1951
    %v2144 = vpack.c.b16 %v1964, %v1958
    %v2145 = vpack.c.b16 %v1965, %v1959
    %v2146 = vpack.c.b16 %v1966, %v1960
    %v2147 = vpack.c.b16 %v1967, %v1961
    %v2148 = vpack.c.b16 %v1968, %v1962
    %v2149 = vpack.c.b16 %v1969, %v1963
    %v2150 = vpack.c.b16 %v1976, %v1970
    %v2151 = vpack.c.b16 %v1977, %v1971
    %v2152 = vpack.c.b16 %v1978, %v1972
    %v2153 = vpack.c.b16 %v1979, %v1973
    %v2154 = vpack.c.b16 %v1980, %v1974
    %v2155 = vpack.c.b16 %v1981, %v1975
    %v2156 = vpack.c.b16 %v1988, %v1982
    %v2157 = vpack.c.b16 %v1989, %v1983
    %v2158 = vpack.c.b16 %v1990, %v1984
    %v2159 = vpack.c.b16 %v1991, %v1985
    %v2160 = vpack.c.b16 %v1992, %v1986
    %v2161 = vpack.c.b16 %v1993, %v1987
    %v2162 = vpack.c.b16 %v2000, %v1994
    %v2163 = vpack.c.b16 %v2001, %v1995
    %v2164 = vpack.c.b16 %v2002, %v1996
    %v2165 = vpack.c.b16 %v2003, %v1997
    %v2166 = vpack.c.b16 %v2004, %v1998
    %v2167 = vpack.c.b16 %v2005, %v1999
    %v2168 = vpack.c.b16 %v2012, %v2006
    %v2169 = vpack.c.b16 %v2013, %v2007
    %v2170 = vpack.c.b16 %v2014, %v2008
    %v2171 = vpack.c.b16 %v2015, %v2009
    %v2172 = vpack.c.b16 %v2016, %v2010
    %v2173 = vpack.c.b16 %v2017, %v2011
    %vm2330 = vcmask 261120
    %v2332 = vsel %vm2330, %v1224, 0
    %v2335 = vsel %vm2330, %v1228, 0
    %v2338 = vsel %vm2330, %v1232, 0
    %v2341 = vsel %vm2330, %v1236, 0
    %2343 = vmatprep.subr.bf16.mxu0 %v2061
    %2344 = vmatpush1.bf16.msra.mxu0 %v2060
    %2345 = vmatprep.subr.bf16.mxu0 %v2055
    %2346 = vmatpush1.bf16.msra.mxu0 %v2054
    %2347 = vmatprep.subr.bf16.mxu0 %v2049
    %2348 = vmatpush1.bf16.msra.mxu0 %v2048
    %2349 = vmatprep.subr.bf16.mxu0 %v2043
    %2350 = vmatpush1.bf16.msra.mxu0 %v2042
    %2351 = vmatprep.subr.bf16.mxu0 %v2037
    %2352 = vmatpush1.bf16.msra.mxu0 %v2036
    %2353 = vmatprep.subr.bf16.mxu0 %v2031
    %2354 = vmatpush1.bf16.msra.mxu0 %v2030
    %2355 = vmatprep.subr.bf16.mxu0 %v2025
    %2356 = vmatpush1.bf16.msra.mxu0 %v2024
    %2357 = vmatprep.subr.bf16.mxu0 %v2019
    %2358 = vmatpush1.bf16.msra.mxu0 %v2018
    %2359 = vmatprep.subr.bf16.mxu0 %v2109
    %2360 = vmatpush2.bf16.msra.mxu0 %v2108
    %2361 = vmatprep.subr.bf16.mxu0 %v2103
    %2362 = vmatpush2.bf16.msra.mxu0 %v2102
    %2363 = vmatprep.subr.bf16.mxu0 %v2097
    %2364 = vmatpush2.bf16.msra.mxu0 %v2096
    %2365 = vmatprep.subr.bf16.mxu0 %v2091
    %2366 = vmatpush2.bf16.msra.mxu0 %v2090
    %2367 = vmatprep.subr.bf16.mxu0 %v2085
    %2368 = vmatpush2.bf16.msra.mxu0 %v2084
    %2369 = vmatprep.subr.bf16.mxu0 %v2079
    %2370 = vmatpush2.bf16.msra.mxu0 %v2078
    %2371 = vmatprep.subr.bf16.mxu0 %v2073
    %2372 = vmatpush2.bf16.msra.mxu0 %v2072
    %2373 = vmatprep.subr.bf16.mxu0 %v2067
    %2374 = vmatpush2.bf16.msra.mxu0 %v2066
    %2375 = vmatprep.mubr.bf16.mxu0 %v1222
    %2376 = vmatmul.mubr.bf16.gmra.mxu0 %v1221
    %v2377 = vpop.f32.mrf.mxu0
    %v2378 = vadd.f32 0.0, %v2377
    %v2379 = vpop.f32.mrf.mxu0
    %v2380 = vadd.f32 0.0, %v2379
    %v2381 = vpop.f32.mrf.mxu0
    %v2382 = vadd.f32 0.0, %v2381
    %v2383 = vpop.f32.mrf.mxu0
    %v2384 = vadd.f32 0.0, %v2383
    %2385 = vmatprep.mubr.bf16.mxu0 %v1226
    %2386 = vmatmul.mubr.bf16.gmra.mxu0 %v1225
    %v2387 = vpop.f32.mrf.mxu0
    %v2388 = vadd.f32 0.0, %v2387
    %v2389 = vpop.f32.mrf.mxu0
    %v2390 = vadd.f32 0.0, %v2389
    %v2391 = vpop.f32.mrf.mxu0
    %v2392 = vadd.f32 0.0, %v2391
    %v2393 = vpop.f32.mrf.mxu0
    %v2394 = vadd.f32 0.0, %v2393
    %2395 = vmatprep.mubr.bf16.mxu0 %v1230
    %2396 = vmatmul.mubr.bf16.gmra.mxu0 %v1229
    %v2397 = vpop.f32.mrf.mxu0
    %v2398 = vadd.f32 0.0, %v2397
    %v2399 = vpop.f32.mrf.mxu0
    %v2400 = vadd.f32 0.0, %v2399
    %v2401 = vpop.f32.mrf.mxu0
    %v2402 = vadd.f32 0.0, %v2401
    %v2403 = vpop.f32.mrf.mxu0
    %v2404 = vadd.f32 0.0, %v2403
    %2405 = vmatprep.mubr.bf16.mxu0 %v1234
    %2406 = vmatmul.mubr.bf16.gmra.mxu0 %v1233
    %v2407 = vpop.f32.mrf.mxu0
    %v2408 = vadd.f32 0.0, %v2407
    %v2409 = vpop.f32.mrf.mxu0
    %v2410 = vadd.f32 0.0, %v2409
    %v2411 = vpop.f32.mrf.mxu0
    %v2412 = vadd.f32 0.0, %v2411
    %v2413 = vpop.f32.mrf.mxu0
    %v2414 = vadd.f32 0.0, %v2413
    %2415 = vdwg.mxu0
    %2416 = vmatprep.subr.bf16.mxu0 %v2157
    %2417 = vmatpush1.bf16.msra.mxu0 %v2156
    %2418 = vmatprep.subr.bf16.mxu0 %v2151
    %2419 = vmatpush1.bf16.msra.mxu0 %v2150
    %2420 = vmatprep.subr.bf16.mxu0 %v2145
    %2421 = vmatpush1.bf16.msra.mxu0 %v2144
    %2422 = vmatprep.subr.bf16.mxu0 %v2139
    %2423 = vmatpush1.bf16.msra.mxu0 %v2138
    %2424 = vmatprep.subr.bf16.mxu0 %v2133
    %2425 = vmatpush1.bf16.msra.mxu0 %v2132
    %2426 = vmatprep.subr.bf16.mxu0 %v2127
    %2427 = vmatpush1.bf16.msra.mxu0 %v2126
    %2428 = vmatprep.subr.bf16.mxu0 %v2121
    %2429 = vmatpush1.bf16.msra.mxu0 %v2120
    %2430 = vmatprep.subr.bf16.mxu0 %v2115
    %2431 = vmatpush1.bf16.msra.mxu0 %v2114
    %2432 = vmatprep.subr.bf16.mxu0 0
    %2433 = vmatpush2.bf16.msra.mxu0 0
    %2434 = vmatprep.subr.bf16.mxu0 0
    %2435 = vmatpush2.bf16.msra.mxu0 0
    %2436 = vmatprep.subr.bf16.mxu0 0
    %2437 = vmatpush2.bf16.msra.mxu0 0
    %2438 = vmatprep.subr.bf16.mxu0 0
    %2439 = vmatpush2.bf16.msra.mxu0 0
    %2440 = vmatprep.subr.bf16.mxu0 0
    %2441 = vmatpush2.bf16.msra.mxu0 0
    %2442 = vmatprep.subr.bf16.mxu0 0
    %2443 = vmatpush2.bf16.msra.mxu0 0
    %2444 = vmatprep.subr.bf16.mxu0 %v2169
    %2445 = vmatpush2.bf16.msra.mxu0 %v2168
    %2446 = vmatprep.subr.bf16.mxu0 %v2163
    %2447 = vmatpush2.bf16.msra.mxu0 %v2162
    %2448 = vmatprep.mubr.bf16.mxu0 %v2332
    %2449 = vmatmul.mubr.bf16.gmra.mxu0 %v1223
    %v2450 = vpop.f32.mrf.mxu0
    %v2451 = vadd.f32 %v2378, %v2450
    %v2452 = vpop.f32.mrf.mxu0
    %v2453 = vadd.f32 %v2380, %v2452
    %v2454 = vpop.f32.mrf.mxu0
    %v2455 = vadd.f32 %v2382, %v2454
    %v2456 = vpop.f32.mrf.mxu0
    %v2457 = vadd.f32 %v2384, %v2456
    %2458 = vmatprep.mubr.bf16.mxu0 %v2335
    %2459 = vmatmul.mubr.bf16.gmra.mxu0 %v1227
    %v2460 = vpop.f32.mrf.mxu0
    %v2461 = vadd.f32 %v2388, %v2460
    %v2462 = vpop.f32.mrf.mxu0
    %v2463 = vadd.f32 %v2390, %v2462
    %v2464 = vpop.f32.mrf.mxu0
    %v2465 = vadd.f32 %v2392, %v2464
    %v2466 = vpop.f32.mrf.mxu0
    %v2467 = vadd.f32 %v2394, %v2466
    %2468 = vmatprep.mubr.bf16.mxu0 %v2338
    %2469 = vmatmul.mubr.bf16.gmra.mxu0 %v1231
    %v2470 = vpop.f32.mrf.mxu0
    %v2471 = vadd.f32 %v2398, %v2470
    %v2472 = vpop.f32.mrf.mxu0
    %v2473 = vadd.f32 %v2400, %v2472
    %v2474 = vpop.f32.mrf.mxu0
    %v2475 = vadd.f32 %v2402, %v2474
    %v2476 = vpop.f32.mrf.mxu0
    %v2477 = vadd.f32 %v2404, %v2476
    %2478 = vmatprep.mubr.bf16.mxu0 %v2341
    %2479 = vmatmul.mubr.bf16.gmra.mxu0 %v1235
    %v2480 = vpop.f32.mrf.mxu0
    %v2481 = vadd.f32 %v2408, %v2480
    %v2482 = vpop.f32.mrf.mxu0
    %v2483 = vadd.f32 %v2410, %v2482
    %v2484 = vpop.f32.mrf.mxu0
    %v2485 = vadd.f32 %v2412, %v2484
    %v2486 = vpop.f32.mrf.mxu0
    %v2487 = vadd.f32 %v2414, %v2486
    %2488 = vdwg.mxu0
    %2489 = vmatprep.subr.bf16.mxu0 %v2063
    %2490 = vmatpush1.bf16.msra.mxu0 %v2062
    %2491 = vmatprep.subr.bf16.mxu0 %v2057
    %2492 = vmatpush1.bf16.msra.mxu0 %v2056
    %2493 = vmatprep.subr.bf16.mxu0 %v2051
    %2494 = vmatpush1.bf16.msra.mxu0 %v2050
    %2495 = vmatprep.subr.bf16.mxu0 %v2045
    %2496 = vmatpush1.bf16.msra.mxu0 %v2044
    %2497 = vmatprep.subr.bf16.mxu0 %v2039
    %2498 = vmatpush1.bf16.msra.mxu0 %v2038
    %2499 = vmatprep.subr.bf16.mxu0 %v2033
    %2500 = vmatpush1.bf16.msra.mxu0 %v2032
    %2501 = vmatprep.subr.bf16.mxu0 %v2027
    %2502 = vmatpush1.bf16.msra.mxu0 %v2026
    %2503 = vmatprep.subr.bf16.mxu0 %v2021
    %2504 = vmatpush1.bf16.msra.mxu0 %v2020
    %2505 = vmatprep.subr.bf16.mxu0 %v2111
    %2506 = vmatpush2.bf16.msra.mxu0 %v2110
    %2507 = vmatprep.subr.bf16.mxu0 %v2105
    %2508 = vmatpush2.bf16.msra.mxu0 %v2104
    %2509 = vmatprep.subr.bf16.mxu0 %v2099
    %2510 = vmatpush2.bf16.msra.mxu0 %v2098
    %2511 = vmatprep.subr.bf16.mxu0 %v2093
    %2512 = vmatpush2.bf16.msra.mxu0 %v2092
    %2513 = vmatprep.subr.bf16.mxu0 %v2087
    %2514 = vmatpush2.bf16.msra.mxu0 %v2086
    %2515 = vmatprep.subr.bf16.mxu0 %v2081
    %2516 = vmatpush2.bf16.msra.mxu0 %v2080
    %2517 = vmatprep.subr.bf16.mxu0 %v2075
    %2518 = vmatpush2.bf16.msra.mxu0 %v2074
    %2519 = vmatprep.subr.bf16.mxu0 %v2069
    %2520 = vmatpush2.bf16.msra.mxu0 %v2068
    %2521 = vmatprep.mubr.bf16.mxu0 %v1222
    %2522 = vmatmul.mubr.bf16.gmra.mxu0 %v1221
    %v2523 = vpop.f32.mrf.mxu0
    %v2524 = vadd.f32 0.0, %v2523
    %v2525 = vpop.f32.mrf.mxu0
    %v2526 = vadd.f32 0.0, %v2525
    %v2527 = vpop.f32.mrf.mxu0
    %v2528 = vadd.f32 0.0, %v2527
    %v2529 = vpop.f32.mrf.mxu0
    %v2530 = vadd.f32 0.0, %v2529
    %2531 = vmatprep.mubr.bf16.mxu0 %v1226
    %2532 = vmatmul.mubr.bf16.gmra.mxu0 %v1225
    %v2533 = vpop.f32.mrf.mxu0
    %v2534 = vadd.f32 0.0, %v2533
    %v2535 = vpop.f32.mrf.mxu0
    %v2536 = vadd.f32 0.0, %v2535
    %v2537 = vpop.f32.mrf.mxu0
    %v2538 = vadd.f32 0.0, %v2537
    %v2539 = vpop.f32.mrf.mxu0
    %v2540 = vadd.f32 0.0, %v2539
    %2541 = vmatprep.mubr.bf16.mxu0 %v1230
    %2542 = vmatmul.mubr.bf16.gmra.mxu0 %v1229
    %v2543 = vpop.f32.mrf.mxu0
    %v2544 = vadd.f32 0.0, %v2543
    %v2545 = vpop.f32.mrf.mxu0
    %v2546 = vadd.f32 0.0, %v2545
    %v2547 = vpop.f32.mrf.mxu0
    %v2548 = vadd.f32 0.0, %v2547
    %v2549 = vpop.f32.mrf.mxu0
    %v2550 = vadd.f32 0.0, %v2549
    %2551 = vmatprep.mubr.bf16.mxu0 %v1234
    %2552 = vmatmul.mubr.bf16.gmra.mxu0 %v1233
    %v2553 = vpop.f32.mrf.mxu0
    %v2554 = vadd.f32 0.0, %v2553
    %v2555 = vpop.f32.mrf.mxu0
    %v2556 = vadd.f32 0.0, %v2555
    %v2557 = vpop.f32.mrf.mxu0
    %v2558 = vadd.f32 0.0, %v2557
    %v2559 = vpop.f32.mrf.mxu0
    %v2560 = vadd.f32 0.0, %v2559
    %2561 = vdwg.mxu0
    %2562 = vmatprep.subr.bf16.mxu0 %v2159
    %2563 = vmatpush1.bf16.msra.mxu0 %v2158
    %2564 = vmatprep.subr.bf16.mxu0 %v2153
    %2565 = vmatpush1.bf16.msra.mxu0 %v2152
    %2566 = vmatprep.subr.bf16.mxu0 %v2147
    %2567 = vmatpush1.bf16.msra.mxu0 %v2146
    %2568 = vmatprep.subr.bf16.mxu0 %v2141
    %2569 = vmatpush1.bf16.msra.mxu0 %v2140
    %2570 = vmatprep.subr.bf16.mxu0 %v2135
    %2571 = vmatpush1.bf16.msra.mxu0 %v2134
    %2572 = vmatprep.subr.bf16.mxu0 %v2129
    %2573 = vmatpush1.bf16.msra.mxu0 %v2128
    %2574 = vmatprep.subr.bf16.mxu0 %v2123
    %2575 = vmatpush1.bf16.msra.mxu0 %v2122
    %2576 = vmatprep.subr.bf16.mxu0 %v2117
    %2577 = vmatpush1.bf16.msra.mxu0 %v2116
    %2578 = vmatprep.subr.bf16.mxu0 0
    %2579 = vmatpush2.bf16.msra.mxu0 0
    %2580 = vmatprep.subr.bf16.mxu0 0
    %2581 = vmatpush2.bf16.msra.mxu0 0
    %2582 = vmatprep.subr.bf16.mxu0 0
    %2583 = vmatpush2.bf16.msra.mxu0 0
    %2584 = vmatprep.subr.bf16.mxu0 0
    %2585 = vmatpush2.bf16.msra.mxu0 0
    %2586 = vmatprep.subr.bf16.mxu0 0
    %2587 = vmatpush2.bf16.msra.mxu0 0
    %2588 = vmatprep.subr.bf16.mxu0 0
    %2589 = vmatpush2.bf16.msra.mxu0 0
    %2590 = vmatprep.subr.bf16.mxu0 %v2171
    %2591 = vmatpush2.bf16.msra.mxu0 %v2170
    %2592 = vmatprep.subr.bf16.mxu0 %v2165
    %2593 = vmatpush2.bf16.msra.mxu0 %v2164
    %2594 = vmatprep.mubr.bf16.mxu0 %v2332
    %2595 = vmatmul.mubr.bf16.gmra.mxu0 %v1223
    %v2596 = vpop.f32.mrf.mxu0
    %v2597 = vadd.f32 %v2524, %v2596
    %v2598 = vpop.f32.mrf.mxu0
    %v2599 = vadd.f32 %v2526, %v2598
    %v2600 = vpop.f32.mrf.mxu0
    %v2601 = vadd.f32 %v2528, %v2600
    %v2602 = vpop.f32.mrf.mxu0
    %v2603 = vadd.f32 %v2530, %v2602
    %2604 = vmatprep.mubr.bf16.mxu0 %v2335
    %2605 = vmatmul.mubr.bf16.gmra.mxu0 %v1227
    %v2606 = vpop.f32.mrf.mxu0
    %v2607 = vadd.f32 %v2534, %v2606
    %v2608 = vpop.f32.mrf.mxu0
    %v2609 = vadd.f32 %v2536, %v2608
    %v2610 = vpop.f32.mrf.mxu0
    %v2611 = vadd.f32 %v2538, %v2610
    %v2612 = vpop.f32.mrf.mxu0
    %v2613 = vadd.f32 %v2540, %v2612
    %2614 = vmatprep.mubr.bf16.mxu0 %v2338
    %2615 = vmatmul.mubr.bf16.gmra.mxu0 %v1231
    %v2616 = vpop.f32.mrf.mxu0
    %v2617 = vadd.f32 %v2544, %v2616
    %v2618 = vpop.f32.mrf.mxu0
    %v2619 = vadd.f32 %v2546, %v2618
    %v2620 = vpop.f32.mrf.mxu0
    %v2621 = vadd.f32 %v2548, %v2620
    %v2622 = vpop.f32.mrf.mxu0
    %v2623 = vadd.f32 %v2550, %v2622
    %2624 = vmatprep.mubr.bf16.mxu0 %v2341
    %2625 = vmatmul.mubr.bf16.gmra.mxu0 %v1235
    %v2626 = vpop.f32.mrf.mxu0
    %v2627 = vadd.f32 %v2554, %v2626
    %v2628 = vpop.f32.mrf.mxu0
    %v2629 = vadd.f32 %v2556, %v2628
    %v2630 = vpop.f32.mrf.mxu0
    %v2631 = vadd.f32 %v2558, %v2630
    %v2632 = vpop.f32.mrf.mxu0
    %v2633 = vadd.f32 %v2560, %v2632
    %2634 = vdwg.mxu0
    %2635 = vmatprep.subr.bf16.mxu0 %v2065
    %2636 = vmatpush1.bf16.msra.mxu0 %v2064
    %2637 = vmatprep.subr.bf16.mxu0 %v2059
    %2638 = vmatpush1.bf16.msra.mxu0 %v2058
    %2639 = vmatprep.subr.bf16.mxu0 %v2053
    %2640 = vmatpush1.bf16.msra.mxu0 %v2052
    %2641 = vmatprep.subr.bf16.mxu0 %v2047
    %2642 = vmatpush1.bf16.msra.mxu0 %v2046
    %2643 = vmatprep.subr.bf16.mxu0 %v2041
    %2644 = vmatpush1.bf16.msra.mxu0 %v2040
    %2645 = vmatprep.subr.bf16.mxu0 %v2035
    %2646 = vmatpush1.bf16.msra.mxu0 %v2034
    %2647 = vmatprep.subr.bf16.mxu0 %v2029
    %2648 = vmatpush1.bf16.msra.mxu0 %v2028
    %2649 = vmatprep.subr.bf16.mxu0 %v2023
    %2650 = vmatpush1.bf16.msra.mxu0 %v2022
    %2651 = vmatprep.subr.bf16.mxu0 %v2113
    %2652 = vmatpush2.bf16.msra.mxu0 %v2112
    %2653 = vmatprep.subr.bf16.mxu0 %v2107
    %2654 = vmatpush2.bf16.msra.mxu0 %v2106
    %2655 = vmatprep.subr.bf16.mxu0 %v2101
    %2656 = vmatpush2.bf16.msra.mxu0 %v2100
    %2657 = vmatprep.subr.bf16.mxu0 %v2095
    %2658 = vmatpush2.bf16.msra.mxu0 %v2094
    %2659 = vmatprep.subr.bf16.mxu0 %v2089
    %2660 = vmatpush2.bf16.msra.mxu0 %v2088
    %2661 = vmatprep.subr.bf16.mxu0 %v2083
    %2662 = vmatpush2.bf16.msra.mxu0 %v2082
    %2663 = vmatprep.subr.bf16.mxu0 %v2077
    %2664 = vmatpush2.bf16.msra.mxu0 %v2076
    %2665 = vmatprep.subr.bf16.mxu0 %v2071
    %2666 = vmatpush2.bf16.msra.mxu0 %v2070
    %2667 = vmatprep.mubr.bf16.mxu0 %v1222
    %2668 = vmatmul.mubr.bf16.gmra.mxu0 %v1221
    %v2669 = vpop.f32.mrf.mxu0
    %v2670 = vadd.f32 0.0, %v2669
    %v2671 = vpop.f32.mrf.mxu0
    %v2672 = vadd.f32 0.0, %v2671
    %v2673 = vpop.f32.mrf.mxu0
    %v2674 = vadd.f32 0.0, %v2673
    %v2675 = vpop.f32.mrf.mxu0
    %v2676 = vadd.f32 0.0, %v2675
    %2677 = vmatprep.mubr.bf16.mxu0 %v1226
    %2678 = vmatmul.mubr.bf16.gmra.mxu0 %v1225
    %v2679 = vpop.f32.mrf.mxu0
    %v2680 = vadd.f32 0.0, %v2679
    %v2681 = vpop.f32.mrf.mxu0
    %v2682 = vadd.f32 0.0, %v2681
    %v2683 = vpop.f32.mrf.mxu0
    %v2684 = vadd.f32 0.0, %v2683
    %v2685 = vpop.f32.mrf.mxu0
    %v2686 = vadd.f32 0.0, %v2685
    %2687 = vmatprep.mubr.bf16.mxu0 %v1230
    %2688 = vmatmul.mubr.bf16.gmra.mxu0 %v1229
    %v2689 = vpop.f32.mrf.mxu0
    %v2690 = vadd.f32 0.0, %v2689
    %v2691 = vpop.f32.mrf.mxu0
    %v2692 = vadd.f32 0.0, %v2691
    %v2693 = vpop.f32.mrf.mxu0
    %v2694 = vadd.f32 0.0, %v2693
    %v2695 = vpop.f32.mrf.mxu0
    %v2696 = vadd.f32 0.0, %v2695
    %2697 = vmatprep.mubr.bf16.mxu0 %v1234
    %2698 = vmatmul.mubr.bf16.gmra.mxu0 %v1233
    %v2699 = vpop.f32.mrf.mxu0
    %v2700 = vadd.f32 0.0, %v2699
    %v2701 = vpop.f32.mrf.mxu0
    %v2702 = vadd.f32 0.0, %v2701
    %v2703 = vpop.f32.mrf.mxu0
    %v2704 = vadd.f32 0.0, %v2703
    %v2705 = vpop.f32.mrf.mxu0
    %v2706 = vadd.f32 0.0, %v2705
    %2707 = vdwg.mxu0
    %2708 = vmatprep.subr.bf16.mxu0 %v2161
    %2709 = vmatpush1.bf16.msra.mxu0 %v2160
    %2710 = vmatprep.subr.bf16.mxu0 %v2155
    %2711 = vmatpush1.bf16.msra.mxu0 %v2154
    %2712 = vmatprep.subr.bf16.mxu0 %v2149
    %2713 = vmatpush1.bf16.msra.mxu0 %v2148
    %2714 = vmatprep.subr.bf16.mxu0 %v2143
    %2715 = vmatpush1.bf16.msra.mxu0 %v2142
    %2716 = vmatprep.subr.bf16.mxu0 %v2137
    %2717 = vmatpush1.bf16.msra.mxu0 %v2136
    %2718 = vmatprep.subr.bf16.mxu0 %v2131
    %2719 = vmatpush1.bf16.msra.mxu0 %v2130
    %2720 = vmatprep.subr.bf16.mxu0 %v2125
    %2721 = vmatpush1.bf16.msra.mxu0 %v2124
    %2722 = vmatprep.subr.bf16.mxu0 %v2119
    %2723 = vmatpush1.bf16.msra.mxu0 %v2118
    %2724 = vmatprep.subr.bf16.mxu0 0
    %2725 = vmatpush2.bf16.msra.mxu0 0
    %2726 = vmatprep.subr.bf16.mxu0 0
    %2727 = vmatpush2.bf16.msra.mxu0 0
    %2728 = vmatprep.subr.bf16.mxu0 0
    %2729 = vmatpush2.bf16.msra.mxu0 0
    %2730 = vmatprep.subr.bf16.mxu0 0
    %2731 = vmatpush2.bf16.msra.mxu0 0
    %2732 = vmatprep.subr.bf16.mxu0 0
    %2733 = vmatpush2.bf16.msra.mxu0 0
    %2734 = vmatprep.subr.bf16.mxu0 0
    %2735 = vmatpush2.bf16.msra.mxu0 0
    %2736 = vmatprep.subr.bf16.mxu0 %v2173
    %2737 = vmatpush2.bf16.msra.mxu0 %v2172
    %2738 = vmatprep.subr.bf16.mxu0 %v2167
    %2739 = vmatpush2.bf16.msra.mxu0 %v2166
    %2740 = vmatprep.mubr.bf16.mxu0 %v2332
    %2741 = vmatmul.mubr.bf16.gmra.mxu0 %v1223
    %v2742 = vpop.f32.mrf.mxu0
    %v2743 = vadd.f32 %v2670, %v2742
    %v2744 = vpop.f32.mrf.mxu0
    %v2745 = vadd.f32 %v2672, %v2744
    %v2746 = vpop.f32.mrf.mxu0
    %v2747 = vadd.f32 %v2674, %v2746
    %v2748 = vpop.f32.mrf.mxu0
    %v2749 = vadd.f32 %v2676, %v2748
    %2750 = vmatprep.mubr.bf16.mxu0 %v2335
    %2751 = vmatmul.mubr.bf16.gmra.mxu0 %v1227
    %v2752 = vpop.f32.mrf.mxu0
    %v2753 = vadd.f32 %v2680, %v2752
    %v2754 = vpop.f32.mrf.mxu0
    %v2755 = vadd.f32 %v2682, %v2754
    %v2756 = vpop.f32.mrf.mxu0
    %v2757 = vadd.f32 %v2684, %v2756
    %v2758 = vpop.f32.mrf.mxu0
    %v2759 = vadd.f32 %v2686, %v2758
    %2760 = vmatprep.mubr.bf16.mxu0 %v2338
    %2761 = vmatmul.mubr.bf16.gmra.mxu0 %v1231
    %v2762 = vpop.f32.mrf.mxu0
    %v2763 = vadd.f32 %v2690, %v2762
    %v2764 = vpop.f32.mrf.mxu0
    %v2765 = vadd.f32 %v2692, %v2764
    %v2766 = vpop.f32.mrf.mxu0
    %v2767 = vadd.f32 %v2694, %v2766
    %v2768 = vpop.f32.mrf.mxu0
    %v2769 = vadd.f32 %v2696, %v2768
    %2770 = vmatprep.mubr.bf16.mxu0 %v2341
    %2771 = vmatmul.mubr.bf16.gmra.mxu0 %v1235
    %v2772 = vpop.f32.mrf.mxu0
    %v2773 = vadd.f32 %v2700, %v2772
    %v2774 = vpop.f32.mrf.mxu0
    %v2775 = vadd.f32 %v2702, %v2774
    %v2776 = vpop.f32.mrf.mxu0
    %v2777 = vadd.f32 %v2704, %v2776
    %v2778 = vpop.f32.mrf.mxu0
    %v2779 = vadd.f32 %v2706, %v2778
    %2780 = vdwg.mxu0
    %s2781 = scalar_lea.vmem [#allocation5], 2496
    %v2782 = vld [vmem:[%s2781] sm:$0xff]
    %v2783 = vld [vmem:[%s2781 + $0x8] sm:$0xff]
    %v2784 = vld [vmem:[%s2781 + $0x10] sm:$0xff]
    %v2785 = vld [vmem:[%s2781 + $0x18] sm:$0xff]
    %v2786 = vld [vmem:[%s2781 + $0x20] sm:$0xff]
    %v2787 = vld [vmem:[%s2781 + $0x28] sm:$0xff]
    %v2788 = vld [vmem:[%s2781 + $0x30] sm:$0xff]
    %v2789 = vld [vmem:[%s2781 + $0x38] sm:$0xff]
    %v2790 = vld [vmem:[%s2781 + $0x40] sm:$0xff]
    %v2791 = vld [vmem:[%s2781 + $0x48] sm:$0xff]
    %v2792 = vld [vmem:[%s2781 + $0x50] sm:$0xff]
    %v2793 = vld [vmem:[%s2781 + $0x58] sm:$0xff]
    %v2794 = vld [vmem:[%s2781 + $0x60] sm:$0xff]
    %v2795 = vld [vmem:[%s2781 + $0x68] sm:$0xff]
    %v2796 = vld [vmem:[%s2781 + $0x70] sm:$0xff]
    %v2797 = vld [vmem:[%s2781 + $0x78] sm:$0xff]
    %v2798 = vld [vmem:[%s2781 + $0x80] sm:$0xff]
    %v2799 = vld [vmem:[%s2781 + $0x88] sm:$0xff]
    %v2800 = vld [vmem:[%s2781 + $0x90] sm:$0xff]
    %v2801 = vld [vmem:[%s2781 + $0x98] sm:$0xff]
    %v2802 = vld [vmem:[%s2781 + $0xa0] sm:$0xff]
    %v2803 = vld [vmem:[%s2781 + $0xa8] sm:$0xff]
    %v2804 = vld [vmem:[%s2781 + $0xb0] sm:$0xff]
    %v2805 = vld [vmem:[%s2781 + $0xb8] sm:$0xff]
    %v2806 = vld [vmem:[%s2781 + $0xc0] sm:$0xff]
    %v2807 = vld [vmem:[%s2781 + $0xc8] sm:$0xff]
    %v2808 = vld [vmem:[%s2781 + $0xd0] sm:$0xff]
    %v2809 = vld [vmem:[%s2781 + $0xd8] sm:$0xff]
    %v2810 = vld [vmem:[%s2781 + $0xe0] sm:$0xff]
    %v2811 = vld [vmem:[%s2781 + $0xe8] sm:$0xff]
    %v2812 = vld [vmem:[%s2781 + $0xf0] sm:$0xff]
    %v2813 = vld [vmem:[%s2781 + $0xf8] sm:$0xff]
    %v2814 = vld [vmem:[%s2781 + $0x100] sm:$0xff]
    %v2815 = vld [vmem:[%s2781 + $0x108] sm:$0xff]
    %v2816 = vld [vmem:[%s2781 + $0x110] sm:$0xff]
    %v2817 = vld [vmem:[%s2781 + $0x118] sm:$0xff]
    %v2818 = vld [vmem:[%s2781 + $0x120] sm:$0xff]
    %v2819 = vld [vmem:[%s2781 + $0x128] sm:$0xff]
    %v2820 = vld [vmem:[%s2781 + $0x130] sm:$0xff]
    %v2821 = vld [vmem:[%s2781 + $0x138] sm:$0xff]
    %v2822 = vld [vmem:[%s2781 + $0x140] sm:$0xff]
    %v2823 = vld [vmem:[%s2781 + $0x148] sm:$0xff]
    %v2824 = vld [vmem:[%s2781 + $0x150] sm:$0xff]
    %v2825 = vld [vmem:[%s2781 + $0x158] sm:$0xff]
    %v2826 = vld [vmem:[%s2781 + $0x160] sm:$0xff]
    %v2827 = vld [vmem:[%s2781 + $0x168] sm:$0xff]
    %v2828 = vld [vmem:[%s2781 + $0x170] sm:$0xff]
    %v2829 = vld [vmem:[%s2781 + $0x178] sm:$0xff]
    %v2830 = vld [vmem:[%s2781 + $0x180] sm:$0xff]
    %v2831 = vld [vmem:[%s2781 + $0x188] sm:$0xff]
    %v2832 = vld [vmem:[%s2781 + $0x190] sm:$0xff]
    %v2833 = vld [vmem:[%s2781 + $0x198] sm:$0xff]
    %v2834 = vld [vmem:[%s2781 + $0x1a0] sm:$0xff]
    %v2835 = vld [vmem:[%s2781 + $0x1a8] sm:$0xff]
    %v2836 = vld [vmem:[%s2781 + $0x1b0] sm:$0xff]
    %v2837 = vld [vmem:[%s2781 + $0x1b8] sm:$0xff]
    %v2838 = vld [vmem:[%s2781 + $0x1c0] sm:$0xff]
    %v2839 = vld [vmem:[%s2781 + $0x1c8] sm:$0xff]
    %v2840 = vld [vmem:[%s2781 + $0x1d0] sm:$0xff]
    %v2841 = vld [vmem:[%s2781 + $0x1d8] sm:$0xff]
    %v2842 = vld [vmem:[%s2781 + $0x1e0] sm:$0xff]
    %v2843 = vld [vmem:[%s2781 + $0x1e8] sm:$0xff]
    %v2844 = vld [vmem:[%s2781 + $0x1f0] sm:$0xff]
    %v2845 = vld [vmem:[%s2781 + $0x1f8] sm:$0xff]
    %v2846 = vld [vmem:[%s2781 + $0x200] sm:$0xff]
    %v2847 = vld [vmem:[%s2781 + $0x208] sm:$0xff]
    %v2848 = vld [vmem:[%s2781 + $0x210] sm:$0xff]
    %v2849 = vld [vmem:[%s2781 + $0x218] sm:$0xff]
    %v2850 = vld [vmem:[%s2781 + $0x220] sm:$0xff]
    %v2851 = vld [vmem:[%s2781 + $0x228] sm:$0xff]
    %v2852 = vld [vmem:[%s2781 + $0x230] sm:$0xff]
    %v2853 = vld [vmem:[%s2781 + $0x238] sm:$0xff]
    %v2854 = vld [vmem:[%s2781 + $0x240] sm:$0xff]
    %v2855 = vld [vmem:[%s2781 + $0x248] sm:$0xff]
    %v2856 = vld [vmem:[%s2781 + $0x250] sm:$0xff]
    %v2857 = vld [vmem:[%s2781 + $0x258] sm:$0xff]
    %v2858 = vld [vmem:[%s2781 + $0x260] sm:$0xff]
    %v2859 = vld [vmem:[%s2781 + $0x268] sm:$0xff]
    %v2860 = vld [vmem:[%s2781 + $0x270] sm:$0xff]
    %v2861 = vld [vmem:[%s2781 + $0x278] sm:$0xff]
    %v2862 = vld [vmem:[%s2781 + $0x280] sm:$0xff]
    %v2863 = vld [vmem:[%s2781 + $0x288] sm:$0xff]
    %v2864 = vld [vmem:[%s2781 + $0x290] sm:$0xff]
    %v2865 = vld [vmem:[%s2781 + $0x298] sm:$0xff]
    %v2866 = vld [vmem:[%s2781 + $0x2a0] sm:$0xff]
    %v2867 = vld [vmem:[%s2781 + $0x2a8] sm:$0xff]
    %v2868 = vld [vmem:[%s2781 + $0x2b0] sm:$0xff]
    %v2869 = vld [vmem:[%s2781 + $0x2b8] sm:$0xff]
    %v2870 = vld [vmem:[%s2781 + $0x2c0] sm:$0xff]
    %v2871 = vld [vmem:[%s2781 + $0x2c8] sm:$0xff]
    %v2872 = vld [vmem:[%s2781 + $0x2d0] sm:$0xff]
    %v2873 = vld [vmem:[%s2781 + $0x2d8] sm:$0xff]
    %v2874 = vld [vmem:[%s2781 + $0x2e0] sm:$0xff]
    %v2875 = vld [vmem:[%s2781 + $0x2e8] sm:$0xff]
    %v2876 = vld [vmem:[%s2781 + $0x2f0] sm:$0xff]
    %v2877 = vld [vmem:[%s2781 + $0x2f8] sm:$0xff]
    %v2878 = vld [vmem:[%s2781 + $0x300] sm:$0xff]
    %v2879 = vld [vmem:[%s2781 + $0x308] sm:$0xff]
    %v2880 = vld [vmem:[%s2781 + $0x310] sm:$0xff]
    %v2881 = vld [vmem:[%s2781 + $0x318] sm:$0xff]
    %v2882 = vld [vmem:[%s2781 + $0x320] sm:$0xff]
    %v2883 = vld [vmem:[%s2781 + $0x328] sm:$0xff]
    %v2884 = vld [vmem:[%s2781 + $0x330] sm:$0xff]
    %v2885 = vld [vmem:[%s2781 + $0x338] sm:$0xff]
    %v2886 = vld [vmem:[%s2781 + $0x340] sm:$0xff]
    %v2887 = vld [vmem:[%s2781 + $0x348] sm:$0xff]
    %v2888 = vld [vmem:[%s2781 + $0x350] sm:$0xff]
    %v2889 = vld [vmem:[%s2781 + $0x358] sm:$0xff]
    %v2890 = vld [vmem:[%s2781 + $0x360] sm:$0xff]
    %v2891 = vld [vmem:[%s2781 + $0x368] sm:$0xff]
    %v2892 = vld [vmem:[%s2781 + $0x370] sm:$0xff]
    %v2893 = vld [vmem:[%s2781 + $0x378] sm:$0xff]
    %v2894 = vld [vmem:[%s2781 + $0x380] sm:$0xff]
    %v2895 = vld [vmem:[%s2781 + $0x388] sm:$0xff]
    %v2896 = vld [vmem:[%s2781 + $0x390] sm:$0xff]
    %v2897 = vld [vmem:[%s2781 + $0x398] sm:$0xff]
    %v2898 = vld [vmem:[%s2781 + $0x3a0] sm:$0xff]
    %v2899 = vld [vmem:[%s2781 + $0x3a8] sm:$0xff]
    %v2900 = vld [vmem:[%s2781 + $0x3b0] sm:$0xff]
    %v2901 = vld [vmem:[%s2781 + $0x3b8] sm:$0xff]
    %v2902 = vld [vmem:[%s2781 + $0x3c0] sm:$0xff]
    %v2903 = vld [vmem:[%s2781 + $0x3c8] sm:$0xff]
    %v2904 = vld [vmem:[%s2781 + $0x3d0] sm:$0xff]
    %v2905 = vld [vmem:[%s2781 + $0x3d8] sm:$0xff]
    %v2906 = vld [vmem:[%s2781 + $0x3e0] sm:$0xff]
    %v2907 = vld [vmem:[%s2781 + $0x3e8] sm:$0xff]
    %v2908 = vld [vmem:[%s2781 + $0x3f0] sm:$0xff]
    %v2909 = vld [vmem:[%s2781 + $0x3f8] sm:$0xff]
    %v2910 = vld [vmem:[%s2781 + $0x400] sm:$0xff]
    %v2911 = vld [vmem:[%s2781 + $0x408] sm:$0xff]
    %v2912 = vld [vmem:[%s2781 + $0x410] sm:$0xff]
    %v2913 = vld [vmem:[%s2781 + $0x418] sm:$0xff]
    %v2914 = vld [vmem:[%s2781 + $0x420] sm:$0xff]
    %v2915 = vld [vmem:[%s2781 + $0x428] sm:$0xff]
    %v2916 = vld [vmem:[%s2781 + $0x430] sm:$0xff]
    %v2917 = vld [vmem:[%s2781 + $0x438] sm:$0xff]
    %v2918 = vld [vmem:[%s2781 + $0x440] sm:$0xff]
    %v2919 = vld [vmem:[%s2781 + $0x448] sm:$0xff]
    %v2920 = vld [vmem:[%s2781 + $0x450] sm:$0xff]
    %v2921 = vld [vmem:[%s2781 + $0x458] sm:$0xff]
    %v2922 = vld [vmem:[%s2781 + $0x460] sm:$0xff]
    %v2923 = vld [vmem:[%s2781 + $0x468] sm:$0xff]
    %v2924 = vld [vmem:[%s2781 + $0x470] sm:$0xff]
    %v2925 = vld [vmem:[%s2781 + $0x478] sm:$0xff]
    %v2926 = vld [vmem:[%s2781 + $0x480] sm:$0xff]
    %v2927 = vld [vmem:[%s2781 + $0x488] sm:$0xff]
    %v2928 = vld [vmem:[%s2781 + $0x490] sm:$0xff]
    %v2929 = vld [vmem:[%s2781 + $0x498] sm:$0xff]
    %v2930 = vld [vmem:[%s2781 + $0x4a0] sm:$0xff]
    %v2931 = vld [vmem:[%s2781 + $0x4a8] sm:$0xff]
    %v2932 = vld [vmem:[%s2781 + $0x4b0] sm:$0xff]
    %v2933 = vld [vmem:[%s2781 + $0x4b8] sm:$0xff]
    %v2934 = vld [vmem:[%s2781 + $0x4c0] sm:$0xff]
    %v2935 = vld [vmem:[%s2781 + $0x4c8] sm:$0xff]
    %v2936 = vld [vmem:[%s2781 + $0x4d0] sm:$0xff]
    %v2937 = vld [vmem:[%s2781 + $0x4d8] sm:$0xff]
    %v3094 = vunpack.c.l.b16 %v2782
    %v3095 = vunpack.c.h.b16 %v2782
    %v3096 = vunpack.c.l.b16 %v2783
    %v3097 = vunpack.c.h.b16 %v2783
    %v3098 = vunpack.c.l.b16 %v2784
    %v3099 = vunpack.c.h.b16 %v2784
    %v3100 = vunpack.c.l.b16 %v2785
    %v3101 = vunpack.c.h.b16 %v2785
    %v3102 = vunpack.c.l.b16 %v2786
    %v3103 = vunpack.c.h.b16 %v2786
    %v3104 = vunpack.c.l.b16 %v2787
    %v3105 = vunpack.c.h.b16 %v2787
    %v3106 = vunpack.c.l.b16 %v2788
    %v3107 = vunpack.c.h.b16 %v2788
    %v3108 = vunpack.c.l.b16 %v2789
    %v3109 = vunpack.c.h.b16 %v2789
    %v3110 = vunpack.c.l.b16 %v2790
    %v3111 = vunpack.c.h.b16 %v2790
    %v3112 = vunpack.c.l.b16 %v2791
    %v3113 = vunpack.c.h.b16 %v2791
    %v3114 = vunpack.c.l.b16 %v2792
    %v3115 = vunpack.c.h.b16 %v2792
    %v3116 = vunpack.c.l.b16 %v2793
    %v3117 = vunpack.c.h.b16 %v2793
    %v3118 = vunpack.c.l.b16 %v2794
    %v3119 = vunpack.c.h.b16 %v2794
    %v3120 = vunpack.c.l.b16 %v2795
    %v3121 = vunpack.c.h.b16 %v2795
    %v3122 = vunpack.c.l.b16 %v2796
    %v3123 = vunpack.c.h.b16 %v2796
    %v3124 = vunpack.c.l.b16 %v2797
    %v3125 = vunpack.c.h.b16 %v2797
    %v3126 = vunpack.c.l.b16 %v2798
    %v3127 = vunpack.c.h.b16 %v2798
    %v3128 = vunpack.c.l.b16 %v2799
    %v3129 = vunpack.c.h.b16 %v2799
    %v3130 = vunpack.c.l.b16 %v2800
    %v3131 = vunpack.c.h.b16 %v2800
    %v3132 = vunpack.c.l.b16 %v2801
    %v3133 = vunpack.c.h.b16 %v2801
    %v3134 = vunpack.c.l.b16 %v2802
    %v3135 = vunpack.c.h.b16 %v2802
    %v3136 = vunpack.c.l.b16 %v2803
    %v3137 = vunpack.c.h.b16 %v2803
    %v3138 = vunpack.c.l.b16 %v2804
    %v3139 = vunpack.c.h.b16 %v2804
    %v3140 = vunpack.c.l.b16 %v2805
    %v3141 = vunpack.c.h.b16 %v2805
    %v3142 = vunpack.c.l.b16 %v2806
    %v3143 = vunpack.c.h.b16 %v2806
    %v3144 = vunpack.c.l.b16 %v2807
    %v3145 = vunpack.c.h.b16 %v2807
    %v3146 = vunpack.c.l.b16 %v2808
    %v3147 = vunpack.c.h.b16 %v2808
    %v3148 = vunpack.c.l.b16 %v2809
    %v3149 = vunpack.c.h.b16 %v2809
    %v3150 = vunpack.c.l.b16 %v2810
    %v3151 = vunpack.c.h.b16 %v2810
    %v3152 = vunpack.c.l.b16 %v2811
    %v3153 = vunpack.c.h.b16 %v2811
    %v3154 = vunpack.c.l.b16 %v2812
    %v3155 = vunpack.c.h.b16 %v2812
    %v3156 = vunpack.c.l.b16 %v2813
    %v3157 = vunpack.c.h.b16 %v2813
    %v3158 = vunpack.c.l.b16 %v2814
    %v3159 = vunpack.c.h.b16 %v2814
    %v3160 = vunpack.c.l.b16 %v2815
    %v3161 = vunpack.c.h.b16 %v2815
    %v3162 = vunpack.c.l.b16 %v2816
    %v3163 = vunpack.c.h.b16 %v2816
    %v3164 = vunpack.c.l.b16 %v2817
    %v3165 = vunpack.c.h.b16 %v2817
    %v3166 = vunpack.c.l.b16 %v2818
    %v3167 = vunpack.c.h.b16 %v2818
    %v3168 = vunpack.c.l.b16 %v2819
    %v3169 = vunpack.c.h.b16 %v2819
    %v3170 = vunpack.c.l.b16 %v2820
    %v3171 = vunpack.c.h.b16 %v2820
    %v3172 = vunpack.c.l.b16 %v2821
    %v3173 = vunpack.c.h.b16 %v2821
    %v3174 = vunpack.c.l.b16 %v2822
    %v3175 = vunpack.c.h.b16 %v2822
    %v3176 = vunpack.c.l.b16 %v2823
    %v3177 = vunpack.c.h.b16 %v2823
    %v3178 = vunpack.c.l.b16 %v2824
    %v3179 = vunpack.c.h.b16 %v2824
    %v3180 = vunpack.c.l.b16 %v2825
    %v3181 = vunpack.c.h.b16 %v2825
    %v3182 = vunpack.c.l.b16 %v2826
    %v3183 = vunpack.c.h.b16 %v2826
    %v3184 = vunpack.c.l.b16 %v2827
    %v3185 = vunpack.c.h.b16 %v2827
    %v3186 = vunpack.c.l.b16 %v2828
    %v3187 = vunpack.c.h.b16 %v2828
    %v3188 = vunpack.c.l.b16 %v2829
    %v3189 = vunpack.c.h.b16 %v2829
    %v3190 = vunpack.c.l.b16 %v2830
    %v3191 = vunpack.c.h.b16 %v2830
    %v3192 = vunpack.c.l.b16 %v2831
    %v3193 = vunpack.c.h.b16 %v2831
    %v3194 = vunpack.c.l.b16 %v2832
    %v3195 = vunpack.c.h.b16 %v2832
    %v3196 = vunpack.c.l.b16 %v2833
    %v3197 = vunpack.c.h.b16 %v2833
    %v3198 = vunpack.c.l.b16 %v2834
    %v3199 = vunpack.c.h.b16 %v2834
    %v3200 = vunpack.c.l.b16 %v2835
    %v3201 = vunpack.c.h.b16 %v2835
    %v3202 = vunpack.c.l.b16 %v2836
    %v3203 = vunpack.c.h.b16 %v2836
    %v3204 = vunpack.c.l.b16 %v2837
    %v3205 = vunpack.c.h.b16 %v2837
    %v3206 = vunpack.c.l.b16 %v2838
    %v3207 = vunpack.c.h.b16 %v2838
    %v3208 = vunpack.c.l.b16 %v2839
    %v3209 = vunpack.c.h.b16 %v2839
    %v3210 = vunpack.c.l.b16 %v2840
    %v3211 = vunpack.c.h.b16 %v2840
    %v3212 = vunpack.c.l.b16 %v2841
    %v3213 = vunpack.c.h.b16 %v2841
    %v3214 = vunpack.c.l.b16 %v2842
    %v3215 = vunpack.c.h.b16 %v2842
    %v3216 = vunpack.c.l.b16 %v2843
    %v3217 = vunpack.c.h.b16 %v2843
    %v3218 = vunpack.c.l.b16 %v2844
    %v3219 = vunpack.c.h.b16 %v2844
    %v3220 = vunpack.c.l.b16 %v2845
    %v3221 = vunpack.c.h.b16 %v2845
    %v3222 = vunpack.c.l.b16 %v2846
    %v3223 = vunpack.c.h.b16 %v2846
    %v3224 = vunpack.c.l.b16 %v2847
    %v3225 = vunpack.c.h.b16 %v2847
    %v3226 = vunpack.c.l.b16 %v2848
    %v3227 = vunpack.c.h.b16 %v2848
    %v3228 = vunpack.c.l.b16 %v2849
    %v3229 = vunpack.c.h.b16 %v2849
    %v3230 = vunpack.c.l.b16 %v2850
    %v3231 = vunpack.c.h.b16 %v2850
    %v3232 = vunpack.c.l.b16 %v2851
    %v3233 = vunpack.c.h.b16 %v2851
    %v3234 = vunpack.c.l.b16 %v2852
    %v3235 = vunpack.c.h.b16 %v2852
    %v3236 = vunpack.c.l.b16 %v2853
    %v3237 = vunpack.c.h.b16 %v2853
    %v3238 = vunpack.c.l.b16 %v2854
    %v3239 = vunpack.c.h.b16 %v2854
    %v3240 = vunpack.c.l.b16 %v2855
    %v3241 = vunpack.c.h.b16 %v2855
    %v3242 = vunpack.c.l.b16 %v2856
    %v3243 = vunpack.c.h.b16 %v2856
    %v3244 = vunpack.c.l.b16 %v2857
    %v3245 = vunpack.c.h.b16 %v2857
    %v3246 = vunpack.c.l.b16 %v2858
    %v3247 = vunpack.c.h.b16 %v2858
    %v3248 = vunpack.c.l.b16 %v2859
    %v3249 = vunpack.c.h.b16 %v2859
    %v3250 = vunpack.c.l.b16 %v2860
    %v3251 = vunpack.c.h.b16 %v2860
    %v3252 = vunpack.c.l.b16 %v2861
    %v3253 = vunpack.c.h.b16 %v2861
    %v3254 = vunpack.c.l.b16 %v2862
    %v3255 = vunpack.c.h.b16 %v2862
    %v3256 = vunpack.c.l.b16 %v2863
    %v3257 = vunpack.c.h.b16 %v2863
    %v3258 = vunpack.c.l.b16 %v2864
    %v3259 = vunpack.c.h.b16 %v2864
    %v3260 = vunpack.c.l.b16 %v2865
    %v3261 = vunpack.c.h.b16 %v2865
    %v3262 = vunpack.c.l.b16 %v2866
    %v3263 = vunpack.c.h.b16 %v2866
    %v3264 = vunpack.c.l.b16 %v2867
    %v3265 = vunpack.c.h.b16 %v2867
    %v3266 = vunpack.c.l.b16 %v2868
    %v3267 = vunpack.c.h.b16 %v2868
    %v3268 = vunpack.c.l.b16 %v2869
    %v3269 = vunpack.c.h.b16 %v2869
    %v3270 = vunpack.c.l.b16 %v2870
    %v3271 = vunpack.c.h.b16 %v2870
    %v3272 = vunpack.c.l.b16 %v2871
    %v3273 = vunpack.c.h.b16 %v2871
    %v3274 = vunpack.c.l.b16 %v2872
    %v3275 = vunpack.c.h.b16 %v2872
    %v3276 = vunpack.c.l.b16 %v2873
    %v3277 = vunpack.c.h.b16 %v2873
    %v3278 = vunpack.c.l.b16 %v2874
    %v3279 = vunpack.c.h.b16 %v2874
    %v3280 = vunpack.c.l.b16 %v2875
    %v3281 = vunpack.c.h.b16 %v2875
    %v3282 = vunpack.c.l.b16 %v2876
    %v3283 = vunpack.c.h.b16 %v2876
    %v3284 = vunpack.c.l.b16 %v2877
    %v3285 = vunpack.c.h.b16 %v2877
    %v3286 = vunpack.c.l.b16 %v2878
    %v3287 = vunpack.c.h.b16 %v2878
    %v3288 = vunpack.c.l.b16 %v2879
    %v3289 = vunpack.c.h.b16 %v2879
    %v3290 = vunpack.c.l.b16 %v2880
    %v3291 = vunpack.c.h.b16 %v2880
    %v3292 = vunpack.c.l.b16 %v2881
    %v3293 = vunpack.c.h.b16 %v2881
    %v3294 = vunpack.c.l.b16 %v2882
    %v3295 = vunpack.c.h.b16 %v2882
    %v3296 = vunpack.c.l.b16 %v2883
    %v3297 = vunpack.c.h.b16 %v2883
    %v3298 = vunpack.c.l.b16 %v2884
    %v3299 = vunpack.c.h.b16 %v2884
    %v3300 = vunpack.c.l.b16 %v2885
    %v3301 = vunpack.c.h.b16 %v2885
    %v3302 = vunpack.c.l.b16 %v2886
    %v3303 = vunpack.c.h.b16 %v2886
    %v3304 = vunpack.c.l.b16 %v2887
    %v3305 = vunpack.c.h.b16 %v2887
    %v3306 = vunpack.c.l.b16 %v2888
    %v3307 = vunpack.c.h.b16 %v2888
    %v3308 = vunpack.c.l.b16 %v2889
    %v3309 = vunpack.c.h.b16 %v2889
    %v3310 = vunpack.c.l.b16 %v2890
    %v3311 = vunpack.c.h.b16 %v2890
    %v3312 = vunpack.c.l.b16 %v2891
    %v3313 = vunpack.c.h.b16 %v2891
    %v3314 = vunpack.c.l.b16 %v2892
    %v3315 = vunpack.c.h.b16 %v2892
    %v3316 = vunpack.c.l.b16 %v2893
    %v3317 = vunpack.c.h.b16 %v2893
    %v3318 = vunpack.c.l.b16 %v2894
    %v3319 = vunpack.c.h.b16 %v2894
    %v3320 = vunpack.c.l.b16 %v2895
    %v3321 = vunpack.c.h.b16 %v2895
    %v3322 = vunpack.c.l.b16 %v2896
    %v3323 = vunpack.c.h.b16 %v2896
    %v3324 = vunpack.c.l.b16 %v2897
    %v3325 = vunpack.c.h.b16 %v2897
    %v3326 = vunpack.c.l.b16 %v2898
    %v3327 = vunpack.c.h.b16 %v2898
    %v3328 = vunpack.c.l.b16 %v2899
    %v3329 = vunpack.c.h.b16 %v2899
    %v3330 = vunpack.c.l.b16 %v2900
    %v3331 = vunpack.c.h.b16 %v2900
    %v3332 = vunpack.c.l.b16 %v2901
    %v3333 = vunpack.c.h.b16 %v2901
    %v3334 = vunpack.c.l.b16 %v2902
    %v3335 = vunpack.c.h.b16 %v2902
    %v3336 = vunpack.c.l.b16 %v2903
    %v3337 = vunpack.c.h.b16 %v2903
    %v3338 = vunpack.c.l.b16 %v2904
    %v3339 = vunpack.c.h.b16 %v2904
    %v3340 = vunpack.c.l.b16 %v2905
    %v3341 = vunpack.c.h.b16 %v2905
    %v3342 = vunpack.c.l.b16 %v2906
    %v3343 = vunpack.c.h.b16 %v2906
    %v3344 = vunpack.c.l.b16 %v2907
    %v3345 = vunpack.c.h.b16 %v2907
    %v3346 = vunpack.c.l.b16 %v2908
    %v3347 = vunpack.c.h.b16 %v2908
    %v3348 = vunpack.c.l.b16 %v2909
    %v3349 = vunpack.c.h.b16 %v2909
    %v3350 = vunpack.c.l.b16 %v2910
    %v3351 = vunpack.c.h.b16 %v2910
    %v3352 = vunpack.c.l.b16 %v2911
    %v3353 = vunpack.c.h.b16 %v2911
    %v3354 = vunpack.c.l.b16 %v2912
    %v3355 = vunpack.c.h.b16 %v2912
    %v3356 = vunpack.c.l.b16 %v2913
    %v3357 = vunpack.c.h.b16 %v2913
    %v3358 = vunpack.c.l.b16 %v2914
    %v3359 = vunpack.c.h.b16 %v2914
    %v3360 = vunpack.c.l.b16 %v2915
    %v3361 = vunpack.c.h.b16 %v2915
    %v3362 = vunpack.c.l.b16 %v2916
    %v3363 = vunpack.c.h.b16 %v2916
    %v3364 = vunpack.c.l.b16 %v2917
    %v3365 = vunpack.c.h.b16 %v2917
    %v3366 = vunpack.c.l.b16 %v2918
    %v3367 = vunpack.c.h.b16 %v2918
    %v3368 = vunpack.c.l.b16 %v2919
    %v3369 = vunpack.c.h.b16 %v2919
    %v3370 = vunpack.c.l.b16 %v2920
    %v3371 = vunpack.c.h.b16 %v2920
    %v3372 = vunpack.c.l.b16 %v2921
    %v3373 = vunpack.c.h.b16 %v2921
    %v3374 = vunpack.c.l.b16 %v2922
    %v3375 = vunpack.c.h.b16 %v2922
    %v3376 = vunpack.c.l.b16 %v2923
    %v3377 = vunpack.c.h.b16 %v2923
    %v3378 = vunpack.c.l.b16 %v2924
    %v3379 = vunpack.c.h.b16 %v2924
    %v3380 = vunpack.c.l.b16 %v2925
    %v3381 = vunpack.c.h.b16 %v2925
    %v3382 = vunpack.c.l.b16 %v2926
    %v3383 = vunpack.c.h.b16 %v2926
    %v3384 = vunpack.c.l.b16 %v2927
    %v3385 = vunpack.c.h.b16 %v2927
    %v3386 = vunpack.c.l.b16 %v2928
    %v3387 = vunpack.c.h.b16 %v2928
    %v3388 = vunpack.c.l.b16 %v2929
    %v3389 = vunpack.c.h.b16 %v2929
    %v3390 = vunpack.c.l.b16 %v2930
    %v3391 = vunpack.c.h.b16 %v2930
    %v3392 = vunpack.c.l.b16 %v2931
    %v3393 = vunpack.c.h.b16 %v2931
    %v3394 = vunpack.c.l.b16 %v2932
    %v3395 = vunpack.c.h.b16 %v2932
    %v3396 = vunpack.c.l.b16 %v2933
    %v3397 = vunpack.c.h.b16 %v2933
    %v3398 = vunpack.c.l.b16 %v2934
    %v3399 = vunpack.c.h.b16 %v2934
    %v3400 = vunpack.c.l.b16 %v2935
    %v3401 = vunpack.c.h.b16 %v2935
    %v3402 = vunpack.c.l.b16 %v2936
    %v3403 = vunpack.c.h.b16 %v2936
    %v3404 = vunpack.c.l.b16 %v2937
    %v3405 = vunpack.c.h.b16 %v2937
    %v3406 = vpack.c.b16 %v3100, %v3094
    %v3407 = vpack.c.b16 %v3101, %v3095
    %v3408 = vpack.c.b16 %v3102, %v3096
    %v3409 = vpack.c.b16 %v3103, %v3097
    %v3410 = vpack.c.b16 %v3104, %v3098
    %v3411 = vpack.c.b16 %v3105, %v3099
    %v3412 = vpack.c.b16 %v3112, %v3106
    %v3413 = vpack.c.b16 %v3113, %v3107
    %v3414 = vpack.c.b16 %v3114, %v3108
    %v3415 = vpack.c.b16 %v3115, %v3109
    %v3416 = vpack.c.b16 %v3116, %v3110
    %v3417 = vpack.c.b16 %v3117, %v3111
    %v3418 = vpack.c.b16 %v3124, %v3118
    %v3419 = vpack.c.b16 %v3125, %v3119
    %v3420 = vpack.c.b16 %v3126, %v3120
    %v3421 = vpack.c.b16 %v3127, %v3121
    %v3422 = vpack.c.b16 %v3128, %v3122
    %v3423 = vpack.c.b16 %v3129, %v3123
    %v3424 = vpack.c.b16 %v3136, %v3130
    %v3425 = vpack.c.b16 %v3137, %v3131
    %v3426 = vpack.c.b16 %v3138, %v3132
    %v3427 = vpack.c.b16 %v3139, %v3133
    %v3428 = vpack.c.b16 %v3140, %v3134
    %v3429 = vpack.c.b16 %v3141, %v3135
    %v3430 = vpack.c.b16 %v3148, %v3142
    %v3431 = vpack.c.b16 %v3149, %v3143
    %v3432 = vpack.c.b16 %v3150, %v3144
    %v3433 = vpack.c.b16 %v3151, %v3145
    %v3434 = vpack.c.b16 %v3152, %v3146
    %v3435 = vpack.c.b16 %v3153, %v3147
    %v3436 = vpack.c.b16 %v3160, %v3154
    %v3437 = vpack.c.b16 %v3161, %v3155
    %v3438 = vpack.c.b16 %v3162, %v3156
    %v3439 = vpack.c.b16 %v3163, %v3157
    %v3440 = vpack.c.b16 %v3164, %v3158
    %v3441 = vpack.c.b16 %v3165, %v3159
    %v3442 = vpack.c.b16 %v3172, %v3166
    %v3443 = vpack.c.b16 %v3173, %v3167
    %v3444 = vpack.c.b16 %v3174, %v3168
    %v3445 = vpack.c.b16 %v3175, %v3169
    %v3446 = vpack.c.b16 %v3176, %v3170
    %v3447 = vpack.c.b16 %v3177, %v3171
    %v3448 = vpack.c.b16 %v3184, %v3178
    %v3449 = vpack.c.b16 %v3185, %v3179
    %v3450 = vpack.c.b16 %v3186, %v3180
    %v3451 = vpack.c.b16 %v3187, %v3181
    %v3452 = vpack.c.b16 %v3188, %v3182
    %v3453 = vpack.c.b16 %v3189, %v3183
    %v3454 = vpack.c.b16 %v3196, %v3190
    %v3455 = vpack.c.b16 %v3197, %v3191
    %v3456 = vpack.c.b16 %v3198, %v3192
    %v3457 = vpack.c.b16 %v3199, %v3193
    %v3458 = vpack.c.b16 %v3200, %v3194
    %v3459 = vpack.c.b16 %v3201, %v3195
    %v3460 = vpack.c.b16 %v3208, %v3202
    %v3461 = vpack.c.b16 %v3209, %v3203
    %v3462 = vpack.c.b16 %v3210, %v3204
    %v3463 = vpack.c.b16 %v3211, %v3205
    %v3464 = vpack.c.b16 %v3212, %v3206
    %v3465 = vpack.c.b16 %v3213, %v3207
    %v3466 = vpack.c.b16 %v3220, %v3214
    %v3467 = vpack.c.b16 %v3221, %v3215
    %v3468 = vpack.c.b16 %v3222, %v3216
    %v3469 = vpack.c.b16 %v3223, %v3217
    %v3470 = vpack.c.b16 %v3224, %v3218
    %v3471 = vpack.c.b16 %v3225, %v3219
    %v3472 = vpack.c.b16 %v3232, %v3226
    %v3473 = vpack.c.b16 %v3233, %v3227
    %v3474 = vpack.c.b16 %v3234, %v3228
    %v3475 = vpack.c.b16 %v3235, %v3229
    %v3476 = vpack.c.b16 %v3236, %v3230
    %v3477 = vpack.c.b16 %v3237, %v3231
    %v3478 = vpack.c.b16 %v3244, %v3238
    %v3479 = vpack.c.b16 %v3245, %v3239
    %v3480 = vpack.c.b16 %v3246, %v3240
    %v3481 = vpack.c.b16 %v3247, %v3241
    %v3482 = vpack.c.b16 %v3248, %v3242
    %v3483 = vpack.c.b16 %v3249, %v3243
    %v3484 = vpack.c.b16 %v3256, %v3250
    %v3485 = vpack.c.b16 %v3257, %v3251
    %v3486 = vpack.c.b16 %v3258, %v3252
    %v3487 = vpack.c.b16 %v3259, %v3253
    %v3488 = vpack.c.b16 %v3260, %v3254
    %v3489 = vpack.c.b16 %v3261, %v3255
    %v3490 = vpack.c.b16 %v3268, %v3262
    %v3491 = vpack.c.b16 %v3269, %v3263
    %v3492 = vpack.c.b16 %v3270, %v3264
    %v3493 = vpack.c.b16 %v3271, %v3265
    %v3494 = vpack.c.b16 %v3272, %v3266
    %v3495 = vpack.c.b16 %v3273, %v3267
    %v3496 = vpack.c.b16 %v3280, %v3274
    %v3497 = vpack.c.b16 %v3281, %v3275
    %v3498 = vpack.c.b16 %v3282, %v3276
    %v3499 = vpack.c.b16 %v3283, %v3277
    %v3500 = vpack.c.b16 %v3284, %v3278
    %v3501 = vpack.c.b16 %v3285, %v3279
    %v3502 = vpack.c.b16 %v3292, %v3286
    %v3503 = vpack.c.b16 %v3293, %v3287
    %v3504 = vpack.c.b16 %v3294, %v3288
    %v3505 = vpack.c.b16 %v3295, %v3289
    %v3506 = vpack.c.b16 %v3296, %v3290
    %v3507 = vpack.c.b16 %v3297, %v3291
    %v3508 = vpack.c.b16 %v3304, %v3298
    %v3509 = vpack.c.b16 %v3305, %v3299
    %v3510 = vpack.c.b16 %v3306, %v3300
    %v3511 = vpack.c.b16 %v3307, %v3301
    %v3512 = vpack.c.b16 %v3308, %v3302
    %v3513 = vpack.c.b16 %v3309, %v3303
    %v3514 = vpack.c.b16 %v3316, %v3310
    %v3515 = vpack.c.b16 %v3317, %v3311
    %v3516 = vpack.c.b16 %v3318, %v3312
    %v3517 = vpack.c.b16 %v3319, %v3313
    %v3518 = vpack.c.b16 %v3320, %v3314
    %v3519 = vpack.c.b16 %v3321, %v3315
    %v3520 = vpack.c.b16 %v3328, %v3322
    %v3521 = vpack.c.b16 %v3329, %v3323
    %v3522 = vpack.c.b16 %v3330, %v3324
    %v3523 = vpack.c.b16 %v3331, %v3325
    %v3524 = vpack.c.b16 %v3332, %v3326
    %v3525 = vpack.c.b16 %v3333, %v3327
    %v3526 = vpack.c.b16 %v3340, %v3334
    %v3527 = vpack.c.b16 %v3341, %v3335
    %v3528 = vpack.c.b16 %v3342, %v3336
    %v3529 = vpack.c.b16 %v3343, %v3337
    %v3530 = vpack.c.b16 %v3344, %v3338
    %v3531 = vpack.c.b16 %v3345, %v3339
    %v3532 = vpack.c.b16 %v3352, %v3346
    %v3533 = vpack.c.b16 %v3353, %v3347
    %v3534 = vpack.c.b16 %v3354, %v3348
    %v3535 = vpack.c.b16 %v3355, %v3349
    %v3536 = vpack.c.b16 %v3356, %v3350
    %v3537 = vpack.c.b16 %v3357, %v3351
    %v3538 = vpack.c.b16 %v3364, %v3358
    %v3539 = vpack.c.b16 %v3365, %v3359
    %v3540 = vpack.c.b16 %v3366, %v3360
    %v3541 = vpack.c.b16 %v3367, %v3361
    %v3542 = vpack.c.b16 %v3368, %v3362
    %v3543 = vpack.c.b16 %v3369, %v3363
    %v3544 = vpack.c.b16 %v3376, %v3370
    %v3545 = vpack.c.b16 %v3377, %v3371
    %v3546 = vpack.c.b16 %v3378, %v3372
    %v3547 = vpack.c.b16 %v3379, %v3373
    %v3548 = vpack.c.b16 %v3380, %v3374
    %v3549 = vpack.c.b16 %v3381, %v3375
    %v3550 = vpack.c.b16 %v3388, %v3382
    %v3551 = vpack.c.b16 %v3389, %v3383
    %v3552 = vpack.c.b16 %v3390, %v3384
    %v3553 = vpack.c.b16 %v3391, %v3385
    %v3554 = vpack.c.b16 %v3392, %v3386
    %v3555 = vpack.c.b16 %v3393, %v3387
    %v3556 = vpack.c.b16 %v3400, %v3394
    %v3557 = vpack.c.b16 %v3401, %v3395
    %v3558 = vpack.c.b16 %v3402, %v3396
    %v3559 = vpack.c.b16 %v3403, %v3397
    %v3560 = vpack.c.b16 %v3404, %v3398
    %v3561 = vpack.c.b16 %v3405, %v3399
    %3718 = vmatprep.subr.bf16.mxu0 %v3449
    %3719 = vmatpush1.bf16.msra.mxu0 %v3448
    %3720 = vmatprep.subr.bf16.mxu0 %v3443
    %3721 = vmatpush1.bf16.msra.mxu0 %v3442
    %3722 = vmatprep.subr.bf16.mxu0 %v3437
    %3723 = vmatpush1.bf16.msra.mxu0 %v3436
    %3724 = vmatprep.subr.bf16.mxu0 %v3431
    %3725 = vmatpush1.bf16.msra.mxu0 %v3430
    %3726 = vmatprep.subr.bf16.mxu0 %v3425
    %3727 = vmatpush1.bf16.msra.mxu0 %v3424
    %3728 = vmatprep.subr.bf16.mxu0 %v3419
    %3729 = vmatpush1.bf16.msra.mxu0 %v3418
    %3730 = vmatprep.subr.bf16.mxu0 %v3413
    %3731 = vmatpush1.bf16.msra.mxu0 %v3412
    %3732 = vmatprep.subr.bf16.mxu0 %v3407
    %3733 = vmatpush1.bf16.msra.mxu0 %v3406
    %3734 = vmatprep.subr.bf16.mxu0 %v3497
    %3735 = vmatpush2.bf16.msra.mxu0 %v3496
    %3736 = vmatprep.subr.bf16.mxu0 %v3491
    %3737 = vmatpush2.bf16.msra.mxu0 %v3490
    %3738 = vmatprep.subr.bf16.mxu0 %v3485
    %3739 = vmatpush2.bf16.msra.mxu0 %v3484
    %3740 = vmatprep.subr.bf16.mxu0 %v3479
    %3741 = vmatpush2.bf16.msra.mxu0 %v3478
    %3742 = vmatprep.subr.bf16.mxu0 %v3473
    %3743 = vmatpush2.bf16.msra.mxu0 %v3472
    %3744 = vmatprep.subr.bf16.mxu0 %v3467
    %3745 = vmatpush2.bf16.msra.mxu0 %v3466
    %3746 = vmatprep.subr.bf16.mxu0 %v3461
    %3747 = vmatpush2.bf16.msra.mxu0 %v3460
    %3748 = vmatprep.subr.bf16.mxu0 %v3455
    %3749 = vmatpush2.bf16.msra.mxu0 %v3454
    %3750 = vmatprep.mubr.bf16.mxu0 %v1222
    %3751 = vmatmul.mubr.bf16.gmra.mxu0 %v1221
    %v3752 = vpop.f32.mrf.mxu0
    %v3753 = vadd.f32 0.0, %v3752
    %v3754 = vpop.f32.mrf.mxu0
    %v3755 = vadd.f32 0.0, %v3754
    %v3756 = vpop.f32.mrf.mxu0
    %v3757 = vadd.f32 0.0, %v3756
    %v3758 = vpop.f32.mrf.mxu0
    %v3759 = vadd.f32 0.0, %v3758
    %3760 = vmatprep.mubr.bf16.mxu0 %v1226
    %3761 = vmatmul.mubr.bf16.gmra.mxu0 %v1225
    %v3762 = vpop.f32.mrf.mxu0
    %v3763 = vadd.f32 0.0, %v3762
    %v3764 = vpop.f32.mrf.mxu0
    %v3765 = vadd.f32 0.0, %v3764
    %v3766 = vpop.f32.mrf.mxu0
    %v3767 = vadd.f32 0.0, %v3766
    %v3768 = vpop.f32.mrf.mxu0
    %v3769 = vadd.f32 0.0, %v3768
    %3770 = vmatprep.mubr.bf16.mxu0 %v1230
    %3771 = vmatmul.mubr.bf16.gmra.mxu0 %v1229
    %v3772 = vpop.f32.mrf.mxu0
    %v3773 = vadd.f32 0.0, %v3772
    %v3774 = vpop.f32.mrf.mxu0
    %v3775 = vadd.f32 0.0, %v3774
    %v3776 = vpop.f32.mrf.mxu0
    %v3777 = vadd.f32 0.0, %v3776
    %v3778 = vpop.f32.mrf.mxu0
    %v3779 = vadd.f32 0.0, %v3778
    %3780 = vmatprep.mubr.bf16.mxu0 %v1234
    %3781 = vmatmul.mubr.bf16.gmra.mxu0 %v1233
    %v3782 = vpop.f32.mrf.mxu0
    %v3783 = vadd.f32 0.0, %v3782
    %v3784 = vpop.f32.mrf.mxu0
    %v3785 = vadd.f32 0.0, %v3784
    %v3786 = vpop.f32.mrf.mxu0
    %v3787 = vadd.f32 0.0, %v3786
    %v3788 = vpop.f32.mrf.mxu0
    %v3789 = vadd.f32 0.0, %v3788
    %3790 = vdwg.mxu0
    %3791 = vmatprep.subr.bf16.mxu0 %v3545
    %3792 = vmatpush1.bf16.msra.mxu0 %v3544
    %3793 = vmatprep.subr.bf16.mxu0 %v3539
    %3794 = vmatpush1.bf16.msra.mxu0 %v3538
    %3795 = vmatprep.subr.bf16.mxu0 %v3533
    %3796 = vmatpush1.bf16.msra.mxu0 %v3532
    %3797 = vmatprep.subr.bf16.mxu0 %v3527
    %3798 = vmatpush1.bf16.msra.mxu0 %v3526
    %3799 = vmatprep.subr.bf16.mxu0 %v3521
    %3800 = vmatpush1.bf16.msra.mxu0 %v3520
    %3801 = vmatprep.subr.bf16.mxu0 %v3515
    %3802 = vmatpush1.bf16.msra.mxu0 %v3514
    %3803 = vmatprep.subr.bf16.mxu0 %v3509
    %3804 = vmatpush1.bf16.msra.mxu0 %v3508
    %3805 = vmatprep.subr.bf16.mxu0 %v3503
    %3806 = vmatpush1.bf16.msra.mxu0 %v3502
    %3807 = vmatprep.subr.bf16.mxu0 0
    %3808 = vmatpush2.bf16.msra.mxu0 0
    %3809 = vmatprep.subr.bf16.mxu0 0
    %3810 = vmatpush2.bf16.msra.mxu0 0
    %3811 = vmatprep.subr.bf16.mxu0 0
    %3812 = vmatpush2.bf16.msra.mxu0 0
    %3813 = vmatprep.subr.bf16.mxu0 0
    %3814 = vmatpush2.bf16.msra.mxu0 0
    %3815 = vmatprep.subr.bf16.mxu0 0
    %3816 = vmatpush2.bf16.msra.mxu0 0
    %3817 = vmatprep.subr.bf16.mxu0 0
    %3818 = vmatpush2.bf16.msra.mxu0 0
    %3819 = vmatprep.subr.bf16.mxu0 %v3557
    %3820 = vmatpush2.bf16.msra.mxu0 %v3556
    %3821 = vmatprep.subr.bf16.mxu0 %v3551
    %3822 = vmatpush2.bf16.msra.mxu0 %v3550
    %3823 = vmatprep.mubr.bf16.mxu0 %v2332
    %3824 = vmatmul.mubr.bf16.gmra.mxu0 %v1223
    %v3825 = vpop.f32.mrf.mxu0
    %v3826 = vadd.f32 %v3753, %v3825
    %v3827 = vpop.f32.mrf.mxu0
    %v3828 = vadd.f32 %v3755, %v3827
    %v3829 = vpop.f32.mrf.mxu0
    %v3830 = vadd.f32 %v3757, %v3829
    %v3831 = vpop.f32.mrf.mxu0
    %v3832 = vadd.f32 %v3759, %v3831
    %3833 = vmatprep.mubr.bf16.mxu0 %v2335
    %3834 = vmatmul.mubr.bf16.gmra.mxu0 %v1227
    %v3835 = vpop.f32.mrf.mxu0
    %v3836 = vadd.f32 %v3763, %v3835
    %v3837 = vpop.f32.mrf.mxu0
    %v3838 = vadd.f32 %v3765, %v3837
    %v3839 = vpop.f32.mrf.mxu0
    %v3840 = vadd.f32 %v3767, %v3839
    %v3841 = vpop.f32.mrf.mxu0
    %v3842 = vadd.f32 %v3769, %v3841
    %3843 = vmatprep.mubr.bf16.mxu0 %v2338
    %3844 = vmatmul.mubr.bf16.gmra.mxu0 %v1231
    %v3845 = vpop.f32.mrf.mxu0
    %v3846 = vadd.f32 %v3773, %v3845
    %v3847 = vpop.f32.mrf.mxu0
    %v3848 = vadd.f32 %v3775, %v3847
    %v3849 = vpop.f32.mrf.mxu0
    %v3850 = vadd.f32 %v3777, %v3849
    %v3851 = vpop.f32.mrf.mxu0
    %v3852 = vadd.f32 %v3779, %v3851
    %3853 = vmatprep.mubr.bf16.mxu0 %v2341
    %3854 = vmatmul.mubr.bf16.gmra.mxu0 %v1235
    %v3855 = vpop.f32.mrf.mxu0
    %v3856 = vadd.f32 %v3783, %v3855
    %v3857 = vpop.f32.mrf.mxu0
    %v3858 = vadd.f32 %v3785, %v3857
    %v3859 = vpop.f32.mrf.mxu0
    %v3860 = vadd.f32 %v3787, %v3859
    %v3861 = vpop.f32.mrf.mxu0
    %v3862 = vadd.f32 %v3789, %v3861
    %3863 = vdwg.mxu0
    %3864 = vmatprep.subr.bf16.mxu0 %v3451
    %3865 = vmatpush1.bf16.msra.mxu0 %v3450
    %3866 = vmatprep.subr.bf16.mxu0 %v3445
    %3867 = vmatpush1.bf16.msra.mxu0 %v3444
    %3868 = vmatprep.subr.bf16.mxu0 %v3439
    %3869 = vmatpush1.bf16.msra.mxu0 %v3438
    %3870 = vmatprep.subr.bf16.mxu0 %v3433
    %3871 = vmatpush1.bf16.msra.mxu0 %v3432
    %3872 = vmatprep.subr.bf16.mxu0 %v3427
    %3873 = vmatpush1.bf16.msra.mxu0 %v3426
    %3874 = vmatprep.subr.bf16.mxu0 %v3421
    %3875 = vmatpush1.bf16.msra.mxu0 %v3420
    %3876 = vmatprep.subr.bf16.mxu0 %v3415
    %3877 = vmatpush1.bf16.msra.mxu0 %v3414
    %3878 = vmatprep.subr.bf16.mxu0 %v3409
    %3879 = vmatpush1.bf16.msra.mxu0 %v3408
    %3880 = vmatprep.subr.bf16.mxu0 %v3499
    %3881 = vmatpush2.bf16.msra.mxu0 %v3498
    %3882 = vmatprep.subr.bf16.mxu0 %v3493
    %3883 = vmatpush2.bf16.msra.mxu0 %v3492
    %3884 = vmatprep.subr.bf16.mxu0 %v3487
    %3885 = vmatpush2.bf16.msra.mxu0 %v3486
    %3886 = vmatprep.subr.bf16.mxu0 %v3481
    %3887 = vmatpush2.bf16.msra.mxu0 %v3480
    %3888 = vmatprep.subr.bf16.mxu0 %v3475
    %3889 = vmatpush2.bf16.msra.mxu0 %v3474
    %3890 = vmatprep.subr.bf16.mxu0 %v3469
    %3891 = vmatpush2.bf16.msra.mxu0 %v3468
    %3892 = vmatprep.subr.bf16.mxu0 %v3463
    %3893 = vmatpush2.bf16.msra.mxu0 %v3462
    %3894 = vmatprep.subr.bf16.mxu0 %v3457
    %3895 = vmatpush2.bf16.msra.mxu0 %v3456
    %3896 = vmatprep.mubr.bf16.mxu0 %v1222
    %3897 = vmatmul.mubr.bf16.gmra.mxu0 %v1221
    %v3898 = vpop.f32.mrf.mxu0
    %v3899 = vadd.f32 0.0, %v3898
    %v3900 = vpop.f32.mrf.mxu0
    %v3901 = vadd.f32 0.0, %v3900
    %v3902 = vpop.f32.mrf.mxu0
    %v3903 = vadd.f32 0.0, %v3902
    %v3904 = vpop.f32.mrf.mxu0
    %v3905 = vadd.f32 0.0, %v3904
    %3906 = vmatprep.mubr.bf16.mxu0 %v1226
    %3907 = vmatmul.mubr.bf16.gmra.mxu0 %v1225
    %v3908 = vpop.f32.mrf.mxu0
    %v3909 = vadd.f32 0.0, %v3908
    %v3910 = vpop.f32.mrf.mxu0
    %v3911 = vadd.f32 0.0, %v3910
    %v3912 = vpop.f32.mrf.mxu0
    %v3913 = vadd.f32 0.0, %v3912
    %v3914 = vpop.f32.mrf.mxu0
    %v3915 = vadd.f32 0.0, %v3914
    %3916 = vmatprep.mubr.bf16.mxu0 %v1230
    %3917 = vmatmul.mubr.bf16.gmra.mxu0 %v1229
    %v3918 = vpop.f32.mrf.mxu0
    %v3919 = vadd.f32 0.0, %v3918
    %v3920 = vpop.f32.mrf.mxu0
    %v3921 = vadd.f32 0.0, %v3920
    %v3922 = vpop.f32.mrf.mxu0
    %v3923 = vadd.f32 0.0, %v3922
    %v3924 = vpop.f32.mrf.mxu0
    %v3925 = vadd.f32 0.0, %v3924
    %3926 = vmatprep.mubr.bf16.mxu0 %v1234
    %3927 = vmatmul.mubr.bf16.gmra.mxu0 %v1233
    %v3928 = vpop.f32.mrf.mxu0
    %v3929 = vadd.f32 0.0, %v3928
    %v3930 = vpop.f32.mrf.mxu0
    %v3931 = vadd.f32 0.0, %v3930
    %v3932 = vpop.f32.mrf.mxu0
    %v3933 = vadd.f32 0.0, %v3932
    %v3934 = vpop.f32.mrf.mxu0
    %v3935 = vadd.f32 0.0, %v3934
    %3936 = vdwg.mxu0
    %3937 = vmatprep.subr.bf16.mxu0 %v3547
    %3938 = vmatpush1.bf16.msra.mxu0 %v3546
    %3939 = vmatprep.subr.bf16.mxu0 %v3541
    %3940 = vmatpush1.bf16.msra.mxu0 %v3540
    %3941 = vmatprep.subr.bf16.mxu0 %v3535
    %3942 = vmatpush1.bf16.msra.mxu0 %v3534
    %3943 = vmatprep.subr.bf16.mxu0 %v3529
    %3944 = vmatpush1.bf16.msra.mxu0 %v3528
    %3945 = vmatprep.subr.bf16.mxu0 %v3523
    %3946 = vmatpush1.bf16.msra.mxu0 %v3522
    %3947 = vmatprep.subr.bf16.mxu0 %v3517
    %3948 = vmatpush1.bf16.msra.mxu0 %v3516
    %3949 = vmatprep.subr.bf16.mxu0 %v3511
    %3950 = vmatpush1.bf16.msra.mxu0 %v3510
    %3951 = vmatprep.subr.bf16.mxu0 %v3505
    %3952 = vmatpush1.bf16.msra.mxu0 %v3504
    %3953 = vmatprep.subr.bf16.mxu0 0
    %3954 = vmatpush2.bf16.msra.mxu0 0
    %3955 = vmatprep.subr.bf16.mxu0 0
    %3956 = vmatpush2.bf16.msra.mxu0 0
    %3957 = vmatprep.subr.bf16.mxu0 0
    %3958 = vmatpush2.bf16.msra.mxu0 0
    %3959 = vmatprep.subr.bf16.mxu0 0
    %3960 = vmatpush2.bf16.msra.mxu0 0
    %3961 = vmatprep.subr.bf16.mxu0 0
    %3962 = vmatpush2.bf16.msra.mxu0 0
    %3963 = vmatprep.subr.bf16.mxu0 0
    %3964 = vmatpush2.bf16.msra.mxu0 0
    %3965 = vmatprep.subr.bf16.mxu0 %v3559
    %3966 = vmatpush2.bf16.msra.mxu0 %v3558
    %3967 = vmatprep.subr.bf16.mxu0 %v3553
    %3968 = vmatpush2.bf16.msra.mxu0 %v3552
    %3969 = vmatprep.mubr.bf16.mxu0 %v2332
    %3970 = vmatmul.mubr.bf16.gmra.mxu0 %v1223
    %v3971 = vpop.f32.mrf.mxu0
    %v3972 = vadd.f32 %v3899, %v3971
    %v3973 = vpop.f32.mrf.mxu0
    %v3974 = vadd.f32 %v3901, %v3973
    %v3975 = vpop.f32.mrf.mxu0
    %v3976 = vadd.f32 %v3903, %v3975
    %v3977 = vpop.f32.mrf.mxu0
    %v3978 = vadd.f32 %v3905, %v3977
    %3979 = vmatprep.mubr.bf16.mxu0 %v2335
    %3980 = vmatmul.mubr.bf16.gmra.mxu0 %v1227
    %v3981 = vpop.f32.mrf.mxu0
    %v3982 = vadd.f32 %v3909, %v3981
    %v3983 = vpop.f32.mrf.mxu0
    %v3984 = vadd.f32 %v3911, %v3983
    %v3985 = vpop.f32.mrf.mxu0
    %v3986 = vadd.f32 %v3913, %v3985
    %v3987 = vpop.f32.mrf.mxu0
    %v3988 = vadd.f32 %v3915, %v3987
    %3989 = vmatprep.mubr.bf16.mxu0 %v2338
    %3990 = vmatmul.mubr.bf16.gmra.mxu0 %v1231
    %v3991 = vpop.f32.mrf.mxu0
    %v3992 = vadd.f32 %v3919, %v3991
    %v3993 = vpop.f32.mrf.mxu0
    %v3994 = vadd.f32 %v3921, %v3993
    %v3995 = vpop.f32.mrf.mxu0
    %v3996 = vadd.f32 %v3923, %v3995
    %v3997 = vpop.f32.mrf.mxu0
    %v3998 = vadd.f32 %v3925, %v3997
    %3999 = vmatprep.mubr.bf16.mxu0 %v2341
    %4000 = vmatmul.mubr.bf16.gmra.mxu0 %v1235
    %v4001 = vpop.f32.mrf.mxu0
    %v4002 = vadd.f32 %v3929, %v4001
    %v4003 = vpop.f32.mrf.mxu0
    %v4004 = vadd.f32 %v3931, %v4003
    %v4005 = vpop.f32.mrf.mxu0
    %v4006 = vadd.f32 %v3933, %v4005
    %v4007 = vpop.f32.mrf.mxu0
    %v4008 = vadd.f32 %v3935, %v4007
    %4009 = vdwg.mxu0
    %4010 = vmatprep.subr.bf16.mxu0 %v3453
    %4011 = vmatpush1.bf16.msra.mxu0 %v3452
    %4012 = vmatprep.subr.bf16.mxu0 %v3447
    %4013 = vmatpush1.bf16.msra.mxu0 %v3446
    %4014 = vmatprep.subr.bf16.mxu0 %v3441
    %4015 = vmatpush1.bf16.msra.mxu0 %v3440
    %4016 = vmatprep.subr.bf16.mxu0 %v3435
    %4017 = vmatpush1.bf16.msra.mxu0 %v3434
    %4018 = vmatprep.subr.bf16.mxu0 %v3429
    %4019 = vmatpush1.bf16.msra.mxu0 %v3428
    %4020 = vmatprep.subr.bf16.mxu0 %v3423
    %4021 = vmatpush1.bf16.msra.mxu0 %v3422
    %4022 = vmatprep.subr.bf16.mxu0 %v3417
    %4023 = vmatpush1.bf16.msra.mxu0 %v3416
    %4024 = vmatprep.subr.bf16.mxu0 %v3411
    %4025 = vmatpush1.bf16.msra.mxu0 %v3410
    %4026 = vmatprep.subr.bf16.mxu0 %v3501
    %4027 = vmatpush2.bf16.msra.mxu0 %v3500
    %4028 = vmatprep.subr.bf16.mxu0 %v3495
    %4029 = vmatpush2.bf16.msra.mxu0 %v3494
    %4030 = vmatprep.subr.bf16.mxu0 %v3489
    %4031 = vmatpush2.bf16.msra.mxu0 %v3488
    %4032 = vmatprep.subr.bf16.mxu0 %v3483
    %4033 = vmatpush2.bf16.msra.mxu0 %v3482
    %4034 = vmatprep.subr.bf16.mxu0 %v3477
    %4035 = vmatpush2.bf16.msra.mxu0 %v3476
    %4036 = vmatprep.subr.bf16.mxu0 %v3471
    %4037 = vmatpush2.bf16.msra.mxu0 %v3470
    %4038 = vmatprep.subr.bf16.mxu0 %v3465
    %4039 = vmatpush2.bf16.msra.mxu0 %v3464
    %4040 = vmatprep.subr.bf16.mxu0 %v3459
    %4041 = vmatpush2.bf16.msra.mxu0 %v3458
    %4042 = vmatprep.mubr.bf16.mxu0 %v1222
    %4043 = vmatmul.mubr.bf16.gmra.mxu0 %v1221
    %v4044 = vpop.f32.mrf.mxu0
    %v4045 = vadd.f32 0.0, %v4044
    %v4046 = vpop.f32.mrf.mxu0
    %v4047 = vadd.f32 0.0, %v4046
    %v4048 = vpop.f32.mrf.mxu0
    %v4049 = vadd.f32 0.0, %v4048
    %v4050 = vpop.f32.mrf.mxu0
    %v4051 = vadd.f32 0.0, %v4050
    %4052 = vmatprep.mubr.bf16.mxu0 %v1226
    %4053 = vmatmul.mubr.bf16.gmra.mxu0 %v1225
    %v4054 = vpop.f32.mrf.mxu0
    %v4055 = vadd.f32 0.0, %v4054
    %v4056 = vpop.f32.mrf.mxu0
    %v4057 = vadd.f32 0.0, %v4056
    %v4058 = vpop.f32.mrf.mxu0
    %v4059 = vadd.f32 0.0, %v4058
    %v4060 = vpop.f32.mrf.mxu0
    %v4061 = vadd.f32 0.0, %v4060
    %4062 = vmatprep.mubr.bf16.mxu0 %v1230
    %4063 = vmatmul.mubr.bf16.gmra.mxu0 %v1229
    %v4064 = vpop.f32.mrf.mxu0
    %v4065 = vadd.f32 0.0, %v4064
    %v4066 = vpop.f32.mrf.mxu0
    %v4067 = vadd.f32 0.0, %v4066
    %v4068 = vpop.f32.mrf.mxu0
    %v4069 = vadd.f32 0.0, %v4068
    %v4070 = vpop.f32.mrf.mxu0
    %v4071 = vadd.f32 0.0, %v4070
    %4072 = vmatprep.mubr.bf16.mxu0 %v1234
    %4073 = vmatmul.mubr.bf16.gmra.mxu0 %v1233
    %v4074 = vpop.f32.mrf.mxu0
    %v4075 = vadd.f32 0.0, %v4074
    %v4076 = vpop.f32.mrf.mxu0
    %v4077 = vadd.f32 0.0, %v4076
    %v4078 = vpop.f32.mrf.mxu0
    %v4079 = vadd.f32 0.0, %v4078
    %v4080 = vpop.f32.mrf.mxu0
    %v4081 = vadd.f32 0.0, %v4080
    %4082 = vdwg.mxu0
    %4083 = vmatprep.subr.bf16.mxu0 %v3549
    %4084 = vmatpush1.bf16.msra.mxu0 %v3548
    %4085 = vmatprep.subr.bf16.mxu0 %v3543
    %4086 = vmatpush1.bf16.msra.mxu0 %v3542
    %4087 = vmatprep.subr.bf16.mxu0 %v3537
    %4088 = vmatpush1.bf16.msra.mxu0 %v3536
    %4089 = vmatprep.subr.bf16.mxu0 %v3531
    %4090 = vmatpush1.bf16.msra.mxu0 %v3530
    %4091 = vmatprep.subr.bf16.mxu0 %v3525
    %4092 = vmatpush1.bf16.msra.mxu0 %v3524
    %4093 = vmatprep.subr.bf16.mxu0 %v3519
    %4094 = vmatpush1.bf16.msra.mxu0 %v3518
    %4095 = vmatprep.subr.bf16.mxu0 %v3513
    %4096 = vmatpush1.bf16.msra.mxu0 %v3512
    %4097 = vmatprep.subr.bf16.mxu0 %v3507
    %4098 = vmatpush1.bf16.msra.mxu0 %v3506
    %4099 = vmatprep.subr.bf16.mxu0 0
    %4100 = vmatpush2.bf16.msra.mxu0 0
    %4101 = vmatprep.subr.bf16.mxu0 0
    %4102 = vmatpush2.bf16.msra.mxu0 0
    %4103 = vmatprep.subr.bf16.mxu0 0
    %4104 = vmatpush2.bf16.msra.mxu0 0
    %4105 = vmatprep.subr.bf16.mxu0 0
    %4106 = vmatpush2.bf16.msra.mxu0 0
    %4107 = vmatprep.subr.bf16.mxu0 0
    %4108 = vmatpush2.bf16.msra.mxu0 0
    %4109 = vmatprep.subr.bf16.mxu0 0
    %4110 = vmatpush2.bf16.msra.mxu0 0
    %4111 = vmatprep.subr.bf16.mxu0 %v3561
    %4112 = vmatpush2.bf16.msra.mxu0 %v3560
    %4113 = vmatprep.subr.bf16.mxu0 %v3555
    %4114 = vmatpush2.bf16.msra.mxu0 %v3554
    %4115 = vmatprep.mubr.bf16.mxu0 %v2332
    %4116 = vmatmul.mubr.bf16.gmra.mxu0 %v1223
    %v4117 = vpop.f32.mrf.mxu0
    %v4118 = vadd.f32 %v4045, %v4117
    %v4119 = vpop.f32.mrf.mxu0
    %v4120 = vadd.f32 %v4047, %v4119
    %v4121 = vpop.f32.mrf.mxu0
    %v4122 = vadd.f32 %v4049, %v4121
    %v4123 = vpop.f32.mrf.mxu0
    %v4124 = vadd.f32 %v4051, %v4123
    %4125 = vmatprep.mubr.bf16.mxu0 %v2335
    %4126 = vmatmul.mubr.bf16.gmra.mxu0 %v1227
    %v4127 = vpop.f32.mrf.mxu0
    %v4128 = vadd.f32 %v4055, %v4127
    %v4129 = vpop.f32.mrf.mxu0
    %v4130 = vadd.f32 %v4057, %v4129
    %v4131 = vpop.f32.mrf.mxu0
    %v4132 = vadd.f32 %v4059, %v4131
    %v4133 = vpop.f32.mrf.mxu0
    %v4134 = vadd.f32 %v4061, %v4133
    %4135 = vmatprep.mubr.bf16.mxu0 %v2338
    %4136 = vmatmul.mubr.bf16.gmra.mxu0 %v1231
    %v4137 = vpop.f32.mrf.mxu0
    %v4138 = vadd.f32 %v4065, %v4137
    %v4139 = vpop.f32.mrf.mxu0
    %v4140 = vadd.f32 %v4067, %v4139
    %v4141 = vpop.f32.mrf.mxu0
    %v4142 = vadd.f32 %v4069, %v4141
    %v4143 = vpop.f32.mrf.mxu0
    %v4144 = vadd.f32 %v4071, %v4143
    %4145 = vmatprep.mubr.bf16.mxu0 %v2341
    %4146 = vmatmul.mubr.bf16.gmra.mxu0 %v1235
    %v4147 = vpop.f32.mrf.mxu0
    %v4148 = vadd.f32 %v4075, %v4147
    %v4149 = vpop.f32.mrf.mxu0
    %v4150 = vadd.f32 %v4077, %v4149
    %v4151 = vpop.f32.mrf.mxu0
    %v4152 = vadd.f32 %v4079, %v4151
    %v4153 = vpop.f32.mrf.mxu0
    %v4154 = vadd.f32 %v4081, %v4153
    %4155 = vdwg.mxu0
    %v4156 = vrot.slane %v2451, 1
    %v4157 = vrot.slane %v2453, 1
    %v4158 = vrot.slane %v2597, 1
    %v4159 = vrot.slane %v2599, 1
    %v4160 = vrot.slane %v2743, 1
    %v4161 = vrot.slane %v2745, 1
    %v4162 = vrot.slane %v2455, 1
    %v4163 = vrot.slane %v2457, 1
    %v4164 = vrot.slane %v2601, 1
    %v4165 = vrot.slane %v2603, 1
    %v4166 = vrot.slane %v2747, 1
    %v4167 = vrot.slane %v2749, 1
    %v4168 = vrot.slane %v2461, 1
    %v4169 = vrot.slane %v2463, 1
    %v4170 = vrot.slane %v2607, 1
    %v4171 = vrot.slane %v2609, 1
    %v4172 = vrot.slane %v2753, 1
    %v4173 = vrot.slane %v2755, 1
    %v4174 = vrot.slane %v2465, 1
    %v4175 = vrot.slane %v2467, 1
    %v4176 = vrot.slane %v2611, 1
    %v4177 = vrot.slane %v2613, 1
    %v4178 = vrot.slane %v2757, 1
    %v4179 = vrot.slane %v2759, 1
    %v4180 = vrot.slane %v2471, 1
    %v4181 = vrot.slane %v2473, 1
    %v4182 = vrot.slane %v2617, 1
    %v4183 = vrot.slane %v2619, 1
    %v4184 = vrot.slane %v2763, 1
    %v4185 = vrot.slane %v2765, 1
    %v4186 = vrot.slane %v2475, 1
    %v4187 = vrot.slane %v2477, 1
    %v4188 = vrot.slane %v2621, 1
    %v4189 = vrot.slane %v2623, 1
    %v4190 = vrot.slane %v2767, 1
    %v4191 = vrot.slane %v2769, 1
    %v4192 = vrot.slane %v2481, 1
    %v4193 = vrot.slane %v2483, 1
    %v4194 = vrot.slane %v2627, 1
    %v4195 = vrot.slane %v2629, 1
    %v4196 = vrot.slane %v2773, 1
    %v4197 = vrot.slane %v2775, 1
    %v4198 = vrot.slane %v2485, 1
    %v4199 = vrot.slane %v2487, 1
    %v4200 = vrot.slane %v2631, 1
    %v4201 = vrot.slane %v2633, 1
    %v4202 = vrot.slane %v2777, 1
    %v4203 = vrot.slane %v2779, 1
    %v4204 = vsel %vm828, %v4192, %v4198
    %v4205 = vsel %vm828, %v4193, %v4199
    %v4206 = vsel %vm828, %v4194, %v4200
    %v4207 = vsel %vm828, %v4195, %v4201
    %v4208 = vsel %vm828, %v4196, %v4202
    %v4209 = vsel %vm828, %v4197, %v4203
    %v4210 = vsel %vm828, %v4186, %v4192
    %v4211 = vsel %vm828, %v4187, %v4193
    %v4212 = vsel %vm828, %v4188, %v4194
    %v4213 = vsel %vm828, %v4189, %v4195
    %v4214 = vsel %vm828, %v4190, %v4196
    %v4215 = vsel %vm828, %v4191, %v4197
    %v4216 = vsel %vm828, %v4180, %v4186
    %v4217 = vsel %vm828, %v4181, %v4187
    %v4218 = vsel %vm828, %v4182, %v4188
    %v4219 = vsel %vm828, %v4183, %v4189
    %v4220 = vsel %vm828, %v4184, %v4190
    %v4221 = vsel %vm828, %v4185, %v4191
    %v4222 = vsel %vm828, %v4174, %v4180
    %v4223 = vsel %vm828, %v4175, %v4181
    %v4224 = vsel %vm828, %v4176, %v4182
    %v4225 = vsel %vm828, %v4177, %v4183
    %v4226 = vsel %vm828, %v4178, %v4184
    %v4227 = vsel %vm828, %v4179, %v4185
    %v4228 = vsel %vm828, %v4168, %v4174
    %v4229 = vsel %vm828, %v4169, %v4175
    %v4230 = vsel %vm828, %v4170, %v4176
    %v4231 = vsel %vm828, %v4171, %v4177
    %v4232 = vsel %vm828, %v4172, %v4178
    %v4233 = vsel %vm828, %v4173, %v4179
    %v4234 = vsel %vm828, %v4162, %v4168
    %v4235 = vsel %vm828, %v4163, %v4169
    %v4236 = vsel %vm828, %v4164, %v4170
    %v4237 = vsel %vm828, %v4165, %v4171
    %v4238 = vsel %vm828, %v4166, %v4172
    %v4239 = vsel %vm828, %v4167, %v4173
    %v4240 = vsel %vm828, %v4156, %v4162
    %v4241 = vsel %vm828, %v4157, %v4163
    %v4242 = vsel %vm828, %v4158, %v4164
    %v4243 = vsel %vm828, %v4159, %v4165
    %v4244 = vsel %vm828, %v4160, %v4166
    %v4245 = vsel %vm828, %v4161, %v4167
    %v4246 = vsel %vm828, %v4198, %v4156
    %v4247 = vsel %vm828, %v4199, %v4157
    %v4248 = vsel %vm828, %v4200, %v4158
    %v4249 = vsel %vm828, %v4201, %v4159
    %v4250 = vsel %vm828, %v4202, %v4160
    %v4251 = vsel %vm828, %v4203, %v4161
    %v4408 = vunpack.c.l.b16 %v1237
    %v4409 = vunpack.c.h.b16 %v1237
    %v4410 = vunpack.c.l.b16 %v1238
    %v4411 = vunpack.c.h.b16 %v1238
    %v4412 = vunpack.c.l.b16 %v1239
    %v4413 = vunpack.c.h.b16 %v1239
    %v4414 = vunpack.c.l.b16 %v1240
    %v4415 = vunpack.c.h.b16 %v1240
    %v4416 = vunpack.c.l.b16 %v1241
    %v4417 = vunpack.c.h.b16 %v1241
    %v4418 = vunpack.c.l.b16 %v1242
    %v4419 = vunpack.c.h.b16 %v1242
    %v4420 = vunpack.c.l.b16 %v1243
    %v4421 = vunpack.c.h.b16 %v1243
    %v4422 = vunpack.c.l.b16 %v1244
    %v4423 = vunpack.c.h.b16 %v1244
    %v4424 = vunpack.c.l.b16 %v1245
    %v4425 = vunpack.c.h.b16 %v1245
    %v4426 = vunpack.c.l.b16 %v1246
    %v4427 = vunpack.c.h.b16 %v1246
    %v4428 = vunpack.c.l.b16 %v1247
    %v4429 = vunpack.c.h.b16 %v1247
    %v4430 = vunpack.c.l.b16 %v1248
    %v4431 = vunpack.c.h.b16 %v1248
    %v4432 = vunpack.c.l.b16 %v1249
    %v4433 = vunpack.c.h.b16 %v1249
    %v4434 = vunpack.c.l.b16 %v1250
    %v4435 = vunpack.c.h.b16 %v1250
    %v4436 = vunpack.c.l.b16 %v1251
    %v4437 = vunpack.c.h.b16 %v1251
    %v4438 = vunpack.c.l.b16 %v1252
    %v4439 = vunpack.c.h.b16 %v1252
    %v4440 = vunpack.c.l.b16 %v1253
    %v4441 = vunpack.c.h.b16 %v1253
    %v4442 = vunpack.c.l.b16 %v1254
    %v4443 = vunpack.c.h.b16 %v1254
    %v4444 = vunpack.c.l.b16 %v1255
    %v4445 = vunpack.c.h.b16 %v1255
    %v4446 = vunpack.c.l.b16 %v1256
    %v4447 = vunpack.c.h.b16 %v1256
    %v4448 = vunpack.c.l.b16 %v1257
    %v4449 = vunpack.c.h.b16 %v1257
    %v4450 = vunpack.c.l.b16 %v1258
    %v4451 = vunpack.c.h.b16 %v1258
    %v4452 = vunpack.c.l.b16 %v1259
    %v4453 = vunpack.c.h.b16 %v1259
    %v4454 = vunpack.c.l.b16 %v1260
    %v4455 = vunpack.c.h.b16 %v1260
    %v4456 = vunpack.c.l.b16 %v1261
    %v4457 = vunpack.c.h.b16 %v1261
    %v4458 = vunpack.c.l.b16 %v1262
    %v4459 = vunpack.c.h.b16 %v1262
    %v4460 = vunpack.c.l.b16 %v1263
    %v4461 = vunpack.c.h.b16 %v1263
    %v4462 = vunpack.c.l.b16 %v1264
    %v4463 = vunpack.c.h.b16 %v1264
    %v4464 = vunpack.c.l.b16 %v1265
    %v4465 = vunpack.c.h.b16 %v1265
    %v4466 = vunpack.c.l.b16 %v1266
    %v4467 = vunpack.c.h.b16 %v1266
    %v4468 = vunpack.c.l.b16 %v1267
    %v4469 = vunpack.c.h.b16 %v1267
    %v4470 = vunpack.c.l.b16 %v1268
    %v4471 = vunpack.c.h.b16 %v1268
    %v4472 = vunpack.c.l.b16 %v1269
    %v4473 = vunpack.c.h.b16 %v1269
    %v4474 = vunpack.c.l.b16 %v1270
    %v4475 = vunpack.c.h.b16 %v1270
    %v4476 = vunpack.c.l.b16 %v1271
    %v4477 = vunpack.c.h.b16 %v1271
    %v4478 = vunpack.c.l.b16 %v1272
    %v4479 = vunpack.c.h.b16 %v1272
    %v4480 = vunpack.c.l.b16 %v1273
    %v4481 = vunpack.c.h.b16 %v1273
    %v4482 = vunpack.c.l.b16 %v1274
    %v4483 = vunpack.c.h.b16 %v1274
    %v4484 = vunpack.c.l.b16 %v1275
    %v4485 = vunpack.c.h.b16 %v1275
    %v4486 = vunpack.c.l.b16 %v1276
    %v4487 = vunpack.c.h.b16 %v1276
    %v4488 = vunpack.c.l.b16 %v1277
    %v4489 = vunpack.c.h.b16 %v1277
    %v4490 = vunpack.c.l.b16 %v1278
    %v4491 = vunpack.c.h.b16 %v1278
    %v4492 = vunpack.c.l.b16 %v1279
    %v4493 = vunpack.c.h.b16 %v1279
    %v4494 = vunpack.c.l.b16 %v1280
    %v4495 = vunpack.c.h.b16 %v1280
    %v4496 = vunpack.c.l.b16 %v1281
    %v4497 = vunpack.c.h.b16 %v1281
    %v4498 = vunpack.c.l.b16 %v1282
    %v4499 = vunpack.c.h.b16 %v1282
    %v4500 = vunpack.c.l.b16 %v1283
    %v4501 = vunpack.c.h.b16 %v1283
    %v4502 = vunpack.c.l.b16 %v1284
    %v4503 = vunpack.c.h.b16 %v1284
    %v4504 = vunpack.c.l.b16 %v1285
    %v4505 = vunpack.c.h.b16 %v1285
    %v4506 = vunpack.c.l.b16 %v1286
    %v4507 = vunpack.c.h.b16 %v1286
    %v4508 = vunpack.c.l.b16 %v1287
    %v4509 = vunpack.c.h.b16 %v1287
    %v4510 = vunpack.c.l.b16 %v1288
    %v4511 = vunpack.c.h.b16 %v1288
    %v4512 = vunpack.c.l.b16 %v1289
    %v4513 = vunpack.c.h.b16 %v1289
    %v4514 = vunpack.c.l.b16 %v1290
    %v4515 = vunpack.c.h.b16 %v1290
    %v4516 = vunpack.c.l.b16 %v1291
    %v4517 = vunpack.c.h.b16 %v1291
    %v4518 = vunpack.c.l.b16 %v1292
    %v4519 = vunpack.c.h.b16 %v1292
    %v4520 = vunpack.c.l.b16 %v1293
    %v4521 = vunpack.c.h.b16 %v1293
    %v4522 = vunpack.c.l.b16 %v1294
    %v4523 = vunpack.c.h.b16 %v1294
    %v4524 = vunpack.c.l.b16 %v1295
    %v4525 = vunpack.c.h.b16 %v1295
    %v4526 = vunpack.c.l.b16 %v1296
    %v4527 = vunpack.c.h.b16 %v1296
    %v4528 = vunpack.c.l.b16 %v1297
    %v4529 = vunpack.c.h.b16 %v1297
    %v4530 = vunpack.c.l.b16 %v1298
    %v4531 = vunpack.c.h.b16 %v1298
    %v4532 = vunpack.c.l.b16 %v1299
    %v4533 = vunpack.c.h.b16 %v1299
    %v4534 = vunpack.c.l.b16 %v1300
    %v4535 = vunpack.c.h.b16 %v1300
    %v4536 = vunpack.c.l.b16 %v1301
    %v4537 = vunpack.c.h.b16 %v1301
    %v4538 = vunpack.c.l.b16 %v1302
    %v4539 = vunpack.c.h.b16 %v1302
    %v4540 = vunpack.c.l.b16 %v1303
    %v4541 = vunpack.c.h.b16 %v1303
    %v4542 = vunpack.c.l.b16 %v1304
    %v4543 = vunpack.c.h.b16 %v1304
    %v4544 = vunpack.c.l.b16 %v1305
    %v4545 = vunpack.c.h.b16 %v1305
    %v4546 = vunpack.c.l.b16 %v1306
    %v4547 = vunpack.c.h.b16 %v1306
    %v4548 = vunpack.c.l.b16 %v1307
    %v4549 = vunpack.c.h.b16 %v1307
    %v4550 = vunpack.c.l.b16 %v1308
    %v4551 = vunpack.c.h.b16 %v1308
    %v4552 = vunpack.c.l.b16 %v1309
    %v4553 = vunpack.c.h.b16 %v1309
    %v4554 = vunpack.c.l.b16 %v1310
    %v4555 = vunpack.c.h.b16 %v1310
    %v4556 = vunpack.c.l.b16 %v1311
    %v4557 = vunpack.c.h.b16 %v1311
    %v4558 = vunpack.c.l.b16 %v1312
    %v4559 = vunpack.c.h.b16 %v1312
    %v4560 = vunpack.c.l.b16 %v1313
    %v4561 = vunpack.c.h.b16 %v1313
    %v4562 = vunpack.c.l.b16 %v1314
    %v4563 = vunpack.c.h.b16 %v1314
    %v4564 = vunpack.c.l.b16 %v1315
    %v4565 = vunpack.c.h.b16 %v1315
    %v4566 = vunpack.c.l.b16 %v1316
    %v4567 = vunpack.c.h.b16 %v1316
    %v4568 = vunpack.c.l.b16 %v1317
    %v4569 = vunpack.c.h.b16 %v1317
    %v4570 = vunpack.c.l.b16 %v1318
    %v4571 = vunpack.c.h.b16 %v1318
    %v4572 = vunpack.c.l.b16 %v1319
    %v4573 = vunpack.c.h.b16 %v1319
    %v4574 = vunpack.c.l.b16 %v1320
    %v4575 = vunpack.c.h.b16 %v1320
    %v4576 = vunpack.c.l.b16 %v1321
    %v4577 = vunpack.c.h.b16 %v1321
    %v4578 = vunpack.c.l.b16 %v1322
    %v4579 = vunpack.c.h.b16 %v1322
    %v4580 = vunpack.c.l.b16 %v1323
    %v4581 = vunpack.c.h.b16 %v1323
    %v4582 = vunpack.c.l.b16 %v1324
    %v4583 = vunpack.c.h.b16 %v1324
    %v4584 = vunpack.c.l.b16 %v1325
    %v4585 = vunpack.c.h.b16 %v1325
    %v4586 = vunpack.c.l.b16 %v1326
    %v4587 = vunpack.c.h.b16 %v1326
    %v4588 = vunpack.c.l.b16 %v1327
    %v4589 = vunpack.c.h.b16 %v1327
    %v4590 = vunpack.c.l.b16 %v1328
    %v4591 = vunpack.c.h.b16 %v1328
    %v4592 = vunpack.c.l.b16 %v1329
    %v4593 = vunpack.c.h.b16 %v1329
    %v4594 = vunpack.c.l.b16 %v1330
    %v4595 = vunpack.c.h.b16 %v1330
    %v4596 = vunpack.c.l.b16 %v1331
    %v4597 = vunpack.c.h.b16 %v1331
    %v4598 = vunpack.c.l.b16 %v1332
    %v4599 = vunpack.c.h.b16 %v1332
    %v4600 = vunpack.c.l.b16 %v1333
    %v4601 = vunpack.c.h.b16 %v1333
    %v4602 = vunpack.c.l.b16 %v1334
    %v4603 = vunpack.c.h.b16 %v1334
    %v4604 = vunpack.c.l.b16 %v1335
    %v4605 = vunpack.c.h.b16 %v1335
    %v4606 = vunpack.c.l.b16 %v1336
    %v4607 = vunpack.c.h.b16 %v1336
    %v4608 = vunpack.c.l.b16 %v1337
    %v4609 = vunpack.c.h.b16 %v1337
    %v4610 = vunpack.c.l.b16 %v1338
    %v4611 = vunpack.c.h.b16 %v1338
    %v4612 = vunpack.c.l.b16 %v1339
    %v4613 = vunpack.c.h.b16 %v1339
    %v4614 = vunpack.c.l.b16 %v1340
    %v4615 = vunpack.c.h.b16 %v1340
    %v4616 = vunpack.c.l.b16 %v1341
    %v4617 = vunpack.c.h.b16 %v1341
    %v4618 = vunpack.c.l.b16 %v1342
    %v4619 = vunpack.c.h.b16 %v1342
    %v4620 = vunpack.c.l.b16 %v1343
    %v4621 = vunpack.c.h.b16 %v1343
    %v4622 = vunpack.c.l.b16 %v1344
    %v4623 = vunpack.c.h.b16 %v1344
    %v4624 = vunpack.c.l.b16 %v1345
    %v4625 = vunpack.c.h.b16 %v1345
    %v4626 = vunpack.c.l.b16 %v1346
    %v4627 = vunpack.c.h.b16 %v1346
    %v4628 = vunpack.c.l.b16 %v1347
    %v4629 = vunpack.c.h.b16 %v1347
    %v4630 = vunpack.c.l.b16 %v1348
    %v4631 = vunpack.c.h.b16 %v1348
    %v4632 = vunpack.c.l.b16 %v1349
    %v4633 = vunpack.c.h.b16 %v1349
    %v4634 = vunpack.c.l.b16 %v1350
    %v4635 = vunpack.c.h.b16 %v1350
    %v4636 = vunpack.c.l.b16 %v1351
    %v4637 = vunpack.c.h.b16 %v1351
    %v4638 = vunpack.c.l.b16 %v1352
    %v4639 = vunpack.c.h.b16 %v1352
    %v4640 = vunpack.c.l.b16 %v1353
    %v4641 = vunpack.c.h.b16 %v1353
    %v4642 = vunpack.c.l.b16 %v1354
    %v4643 = vunpack.c.h.b16 %v1354
    %v4644 = vunpack.c.l.b16 %v1355
    %v4645 = vunpack.c.h.b16 %v1355
    %v4646 = vunpack.c.l.b16 %v1356
    %v4647 = vunpack.c.h.b16 %v1356
    %v4648 = vunpack.c.l.b16 %v1357
    %v4649 = vunpack.c.h.b16 %v1357
    %v4650 = vunpack.c.l.b16 %v1358
    %v4651 = vunpack.c.h.b16 %v1358
    %v4652 = vunpack.c.l.b16 %v1359
    %v4653 = vunpack.c.h.b16 %v1359
    %v4654 = vunpack.c.l.b16 %v1360
    %v4655 = vunpack.c.h.b16 %v1360
    %v4656 = vunpack.c.l.b16 %v1361
    %v4657 = vunpack.c.h.b16 %v1361
    %v4658 = vunpack.c.l.b16 %v1362
    %v4659 = vunpack.c.h.b16 %v1362
    %v4660 = vunpack.c.l.b16 %v1363
    %v4661 = vunpack.c.h.b16 %v1363
    %v4662 = vunpack.c.l.b16 %v1364
    %v4663 = vunpack.c.h.b16 %v1364
    %v4664 = vunpack.c.l.b16 %v1365
    %v4665 = vunpack.c.h.b16 %v1365
    %v4666 = vunpack.c.l.b16 %v1366
    %v4667 = vunpack.c.h.b16 %v1366
    %v4668 = vunpack.c.l.b16 %v1367
    %v4669 = vunpack.c.h.b16 %v1367
    %v4670 = vunpack.c.l.b16 %v1368
    %v4671 = vunpack.c.h.b16 %v1368
    %v4672 = vunpack.c.l.b16 %v1369
    %v4673 = vunpack.c.h.b16 %v1369
    %v4674 = vunpack.c.l.b16 %v1370
    %v4675 = vunpack.c.h.b16 %v1370
    %v4676 = vunpack.c.l.b16 %v1371
    %v4677 = vunpack.c.h.b16 %v1371
    %v4678 = vunpack.c.l.b16 %v1372
    %v4679 = vunpack.c.h.b16 %v1372
    %v4680 = vunpack.c.l.b16 %v1373
    %v4681 = vunpack.c.h.b16 %v1373
    %v4682 = vunpack.c.l.b16 %v1374
    %v4683 = vunpack.c.h.b16 %v1374
    %v4684 = vunpack.c.l.b16 %v1375
    %v4685 = vunpack.c.h.b16 %v1375
    %v4686 = vunpack.c.l.b16 %v1376
    %v4687 = vunpack.c.h.b16 %v1376
    %v4688 = vunpack.c.l.b16 %v1377
    %v4689 = vunpack.c.h.b16 %v1377
    %v4690 = vunpack.c.l.b16 %v1378
    %v4691 = vunpack.c.h.b16 %v1378
    %v4692 = vunpack.c.l.b16 %v1379
    %v4693 = vunpack.c.h.b16 %v1379
    %v4694 = vunpack.c.l.b16 %v1380
    %v4695 = vunpack.c.h.b16 %v1380
    %v4696 = vunpack.c.l.b16 %v1381
    %v4697 = vunpack.c.h.b16 %v1381
    %v4698 = vunpack.c.l.b16 %v1382
    %v4699 = vunpack.c.h.b16 %v1382
    %v4700 = vunpack.c.l.b16 %v1383
    %v4701 = vunpack.c.h.b16 %v1383
    %v4702 = vunpack.c.l.b16 %v1384
    %v4703 = vunpack.c.h.b16 %v1384
    %v4704 = vunpack.c.l.b16 %v1385
    %v4705 = vunpack.c.h.b16 %v1385
    %v4706 = vunpack.c.l.b16 %v1386
    %v4707 = vunpack.c.h.b16 %v1386
    %v4708 = vunpack.c.l.b16 %v1387
    %v4709 = vunpack.c.h.b16 %v1387
    %v4710 = vunpack.c.l.b16 %v1388
    %v4711 = vunpack.c.h.b16 %v1388
    %v4712 = vunpack.c.l.b16 %v1389
    %v4713 = vunpack.c.h.b16 %v1389
    %v4714 = vunpack.c.l.b16 %v1390
    %v4715 = vunpack.c.h.b16 %v1390
    %v4716 = vunpack.c.l.b16 %v1391
    %v4717 = vunpack.c.h.b16 %v1391
    %v4718 = vunpack.c.l.b16 %v1392
    %v4719 = vunpack.c.h.b16 %v1392
    %v4720 = vpack.c.b16 %v4414, %v4408
    %v4721 = vpack.c.b16 %v4415, %v4409
    %v4722 = vpack.c.b16 %v4416, %v4410
    %v4723 = vpack.c.b16 %v4417, %v4411
    %v4724 = vpack.c.b16 %v4418, %v4412
    %v4725 = vpack.c.b16 %v4419, %v4413
    %v4726 = vpack.c.b16 %v4426, %v4420
    %v4727 = vpack.c.b16 %v4427, %v4421
    %v4728 = vpack.c.b16 %v4428, %v4422
    %v4729 = vpack.c.b16 %v4429, %v4423
    %v4730 = vpack.c.b16 %v4430, %v4424
    %v4731 = vpack.c.b16 %v4431, %v4425
    %v4732 = vpack.c.b16 %v4438, %v4432
    %v4733 = vpack.c.b16 %v4439, %v4433
    %v4734 = vpack.c.b16 %v4440, %v4434
    %v4735 = vpack.c.b16 %v4441, %v4435
    %v4736 = vpack.c.b16 %v4442, %v4436
    %v4737 = vpack.c.b16 %v4443, %v4437
    %v4738 = vpack.c.b16 %v4450, %v4444
    %v4739 = vpack.c.b16 %v4451, %v4445
    %v4740 = vpack.c.b16 %v4452, %v4446
    %v4741 = vpack.c.b16 %v4453, %v4447
    %v4742 = vpack.c.b16 %v4454, %v4448
    %v4743 = vpack.c.b16 %v4455, %v4449
    %v4744 = vpack.c.b16 %v4462, %v4456
    %v4745 = vpack.c.b16 %v4463, %v4457
    %v4746 = vpack.c.b16 %v4464, %v4458
    %v4747 = vpack.c.b16 %v4465, %v4459
    %v4748 = vpack.c.b16 %v4466, %v4460
    %v4749 = vpack.c.b16 %v4467, %v4461
    %v4750 = vpack.c.b16 %v4474, %v4468
    %v4751 = vpack.c.b16 %v4475, %v4469
    %v4752 = vpack.c.b16 %v4476, %v4470
    %v4753 = vpack.c.b16 %v4477, %v4471
    %v4754 = vpack.c.b16 %v4478, %v4472
    %v4755 = vpack.c.b16 %v4479, %v4473
    %v4756 = vpack.c.b16 %v4486, %v4480
    %v4757 = vpack.c.b16 %v4487, %v4481
    %v4758 = vpack.c.b16 %v4488, %v4482
    %v4759 = vpack.c.b16 %v4489, %v4483
    %v4760 = vpack.c.b16 %v4490, %v4484
    %v4761 = vpack.c.b16 %v4491, %v4485
    %v4762 = vpack.c.b16 %v4498, %v4492
    %v4763 = vpack.c.b16 %v4499, %v4493
    %v4764 = vpack.c.b16 %v4500, %v4494
    %v4765 = vpack.c.b16 %v4501, %v4495
    %v4766 = vpack.c.b16 %v4502, %v4496
    %v4767 = vpack.c.b16 %v4503, %v4497
    %v4768 = vpack.c.b16 %v4510, %v4504
    %v4769 = vpack.c.b16 %v4511, %v4505
    %v4770 = vpack.c.b16 %v4512, %v4506
    %v4771 = vpack.c.b16 %v4513, %v4507
    %v4772 = vpack.c.b16 %v4514, %v4508
    %v4773 = vpack.c.b16 %v4515, %v4509
    %v4774 = vpack.c.b16 %v4522, %v4516
    %v4775 = vpack.c.b16 %v4523, %v4517
    %v4776 = vpack.c.b16 %v4524, %v4518
    %v4777 = vpack.c.b16 %v4525, %v4519
    %v4778 = vpack.c.b16 %v4526, %v4520
    %v4779 = vpack.c.b16 %v4527, %v4521
    %v4780 = vpack.c.b16 %v4534, %v4528
    %v4781 = vpack.c.b16 %v4535, %v4529
    %v4782 = vpack.c.b16 %v4536, %v4530
    %v4783 = vpack.c.b16 %v4537, %v4531
    %v4784 = vpack.c.b16 %v4538, %v4532
    %v4785 = vpack.c.b16 %v4539, %v4533
    %v4786 = vpack.c.b16 %v4546, %v4540
    %v4787 = vpack.c.b16 %v4547, %v4541
    %v4788 = vpack.c.b16 %v4548, %v4542
    %v4789 = vpack.c.b16 %v4549, %v4543
    %v4790 = vpack.c.b16 %v4550, %v4544
    %v4791 = vpack.c.b16 %v4551, %v4545
    %v4792 = vpack.c.b16 %v4558, %v4552
    %v4793 = vpack.c.b16 %v4559, %v4553
    %v4794 = vpack.c.b16 %v4560, %v4554
    %v4795 = vpack.c.b16 %v4561, %v4555
    %v4796 = vpack.c.b16 %v4562, %v4556
    %v4797 = vpack.c.b16 %v4563, %v4557
    %v4798 = vpack.c.b16 %v4570, %v4564
    %v4799 = vpack.c.b16 %v4571, %v4565
    %v4800 = vpack.c.b16 %v4572, %v4566
    %v4801 = vpack.c.b16 %v4573, %v4567
    %v4802 = vpack.c.b16 %v4574, %v4568
    %v4803 = vpack.c.b16 %v4575, %v4569
    %v4804 = vpack.c.b16 %v4582, %v4576
    %v4805 = vpack.c.b16 %v4583, %v4577
    %v4806 = vpack.c.b16 %v4584, %v4578
    %v4807 = vpack.c.b16 %v4585, %v4579
    %v4808 = vpack.c.b16 %v4586, %v4580
    %v4809 = vpack.c.b16 %v4587, %v4581
    %v4810 = vpack.c.b16 %v4594, %v4588
    %v4811 = vpack.c.b16 %v4595, %v4589
    %v4812 = vpack.c.b16 %v4596, %v4590
    %v4813 = vpack.c.b16 %v4597, %v4591
    %v4814 = vpack.c.b16 %v4598, %v4592
    %v4815 = vpack.c.b16 %v4599, %v4593
    %v4816 = vpack.c.b16 %v4606, %v4600
    %v4817 = vpack.c.b16 %v4607, %v4601
    %v4818 = vpack.c.b16 %v4608, %v4602
    %v4819 = vpack.c.b16 %v4609, %v4603
    %v4820 = vpack.c.b16 %v4610, %v4604
    %v4821 = vpack.c.b16 %v4611, %v4605
    %v4822 = vpack.c.b16 %v4618, %v4612
    %v4823 = vpack.c.b16 %v4619, %v4613
    %v4824 = vpack.c.b16 %v4620, %v4614
    %v4825 = vpack.c.b16 %v4621, %v4615
    %v4826 = vpack.c.b16 %v4622, %v4616
    %v4827 = vpack.c.b16 %v4623, %v4617
    %v4828 = vpack.c.b16 %v4630, %v4624
    %v4829 = vpack.c.b16 %v4631, %v4625
    %v4830 = vpack.c.b16 %v4632, %v4626
    %v4831 = vpack.c.b16 %v4633, %v4627
    %v4832 = vpack.c.b16 %v4634, %v4628
    %v4833 = vpack.c.b16 %v4635, %v4629
    %v4834 = vpack.c.b16 %v4642, %v4636
    %v4835 = vpack.c.b16 %v4643, %v4637
    %v4836 = vpack.c.b16 %v4644, %v4638
    %v4837 = vpack.c.b16 %v4645, %v4639
    %v4838 = vpack.c.b16 %v4646, %v4640
    %v4839 = vpack.c.b16 %v4647, %v4641
    %v4840 = vpack.c.b16 %v4654, %v4648
    %v4841 = vpack.c.b16 %v4655, %v4649
    %v4842 = vpack.c.b16 %v4656, %v4650
    %v4843 = vpack.c.b16 %v4657, %v4651
    %v4844 = vpack.c.b16 %v4658, %v4652
    %v4845 = vpack.c.b16 %v4659, %v4653
    %v4846 = vpack.c.b16 %v4666, %v4660
    %v4847 = vpack.c.b16 %v4667, %v4661
    %v4848 = vpack.c.b16 %v4668, %v4662
    %v4849 = vpack.c.b16 %v4669, %v4663
    %v4850 = vpack.c.b16 %v4670, %v4664
    %v4851 = vpack.c.b16 %v4671, %v4665
    %v4852 = vpack.c.b16 %v4678, %v4672
    %v4853 = vpack.c.b16 %v4679, %v4673
    %v4854 = vpack.c.b16 %v4680, %v4674
    %v4855 = vpack.c.b16 %v4681, %v4675
    %v4856 = vpack.c.b16 %v4682, %v4676
    %v4857 = vpack.c.b16 %v4683, %v4677
    %v4858 = vpack.c.b16 %v4690, %v4684
    %v4859 = vpack.c.b16 %v4691, %v4685
    %v4860 = vpack.c.b16 %v4692, %v4686
    %v4861 = vpack.c.b16 %v4693, %v4687
    %v4862 = vpack.c.b16 %v4694, %v4688
    %v4863 = vpack.c.b16 %v4695, %v4689
    %v4864 = vpack.c.b16 %v4702, %v4696
    %v4865 = vpack.c.b16 %v4703, %v4697
    %v4866 = vpack.c.b16 %v4704, %v4698
    %v4867 = vpack.c.b16 %v4705, %v4699
    %v4868 = vpack.c.b16 %v4706, %v4700
    %v4869 = vpack.c.b16 %v4707, %v4701
    %v4870 = vpack.c.b16 %v4714, %v4708
    %v4871 = vpack.c.b16 %v4715, %v4709
    %v4872 = vpack.c.b16 %v4716, %v4710
    %v4873 = vpack.c.b16 %v4717, %v4711
    %v4874 = vpack.c.b16 %v4718, %v4712
    %v4875 = vpack.c.b16 %v4719, %v4713
    %5032 = vmatprep.subr.bf16.mxu0 %v4763
    %5033 = vmatpush1.bf16.msra.mxu0 %v4762
    %5034 = vmatprep.subr.bf16.mxu0 %v4757
    %5035 = vmatpush1.bf16.msra.mxu0 %v4756
    %5036 = vmatprep.subr.bf16.mxu0 %v4751
    %5037 = vmatpush1.bf16.msra.mxu0 %v4750
    %5038 = vmatprep.subr.bf16.mxu0 %v4745
    %5039 = vmatpush1.bf16.msra.mxu0 %v4744
    %5040 = vmatprep.subr.bf16.mxu0 %v4739
    %5041 = vmatpush1.bf16.msra.mxu0 %v4738
    %5042 = vmatprep.subr.bf16.mxu0 %v4733
    %5043 = vmatpush1.bf16.msra.mxu0 %v4732
    %5044 = vmatprep.subr.bf16.mxu0 %v4727
    %5045 = vmatpush1.bf16.msra.mxu0 %v4726
    %5046 = vmatprep.subr.bf16.mxu0 %v4721
    %5047 = vmatpush1.bf16.msra.mxu0 %v4720
    %5048 = vmatprep.subr.bf16.mxu0 %v4811
    %5049 = vmatpush2.bf16.msra.mxu0 %v4810
    %5050 = vmatprep.subr.bf16.mxu0 %v4805
    %5051 = vmatpush2.bf16.msra.mxu0 %v4804
    %5052 = vmatprep.subr.bf16.mxu0 %v4799
    %5053 = vmatpush2.bf16.msra.mxu0 %v4798
    %5054 = vmatprep.subr.bf16.mxu0 %v4793
    %5055 = vmatpush2.bf16.msra.mxu0 %v4792
    %5056 = vmatprep.subr.bf16.mxu0 %v4787
    %5057 = vmatpush2.bf16.msra.mxu0 %v4786
    %5058 = vmatprep.subr.bf16.mxu0 %v4781
    %5059 = vmatpush2.bf16.msra.mxu0 %v4780
    %5060 = vmatprep.subr.bf16.mxu0 %v4775
    %5061 = vmatpush2.bf16.msra.mxu0 %v4774
    %5062 = vmatprep.subr.bf16.mxu0 %v4769
    %5063 = vmatpush2.bf16.msra.mxu0 %v4768
    %5064 = vmatprep.mubr.bf16.mxu0 %v1222
    %5065 = vmatmul.mubr.bf16.gmra.mxu0 %v1221
    %v5066 = vpop.f32.mrf.mxu0
    %v5067 = vadd.f32 %v4240, %v5066
    %v5068 = vpop.f32.mrf.mxu0
    %v5069 = vadd.f32 %v4241, %v5068
    %v5070 = vpop.f32.mrf.mxu0
    %v5071 = vadd.f32 %v4234, %v5070
    %v5072 = vpop.f32.mrf.mxu0
    %v5073 = vadd.f32 %v4235, %v5072
    %5074 = vmatprep.mubr.bf16.mxu0 %v1226
    %5075 = vmatmul.mubr.bf16.gmra.mxu0 %v1225
    %v5076 = vpop.f32.mrf.mxu0
    %v5077 = vadd.f32 %v4228, %v5076
    %v5078 = vpop.f32.mrf.mxu0
    %v5079 = vadd.f32 %v4229, %v5078
    %v5080 = vpop.f32.mrf.mxu0
    %v5081 = vadd.f32 %v4222, %v5080
    %v5082 = vpop.f32.mrf.mxu0
    %v5083 = vadd.f32 %v4223, %v5082
    %5084 = vmatprep.mubr.bf16.mxu0 %v1230
    %5085 = vmatmul.mubr.bf16.gmra.mxu0 %v1229
    %v5086 = vpop.f32.mrf.mxu0
    %v5087 = vadd.f32 %v4216, %v5086
    %v5088 = vpop.f32.mrf.mxu0
    %v5089 = vadd.f32 %v4217, %v5088
    %v5090 = vpop.f32.mrf.mxu0
    %v5091 = vadd.f32 %v4210, %v5090
    %v5092 = vpop.f32.mrf.mxu0
    %v5093 = vadd.f32 %v4211, %v5092
    %5094 = vmatprep.mubr.bf16.mxu0 %v1234
    %5095 = vmatmul.mubr.bf16.gmra.mxu0 %v1233
    %v5096 = vpop.f32.mrf.mxu0
    %v5097 = vadd.f32 %v4204, %v5096
    %v5098 = vpop.f32.mrf.mxu0
    %v5099 = vadd.f32 %v4205, %v5098
    %v5100 = vpop.f32.mrf.mxu0
    %v5101 = vadd.f32 %v4246, %v5100
    %v5102 = vpop.f32.mrf.mxu0
    %v5103 = vadd.f32 %v4247, %v5102
    %5104 = vdwg.mxu0
    %5105 = vmatprep.subr.bf16.mxu0 %v4859
    %5106 = vmatpush1.bf16.msra.mxu0 %v4858
    %5107 = vmatprep.subr.bf16.mxu0 %v4853
    %5108 = vmatpush1.bf16.msra.mxu0 %v4852
    %5109 = vmatprep.subr.bf16.mxu0 %v4847
    %5110 = vmatpush1.bf16.msra.mxu0 %v4846
    %5111 = vmatprep.subr.bf16.mxu0 %v4841
    %5112 = vmatpush1.bf16.msra.mxu0 %v4840
    %5113 = vmatprep.subr.bf16.mxu0 %v4835
    %5114 = vmatpush1.bf16.msra.mxu0 %v4834
    %5115 = vmatprep.subr.bf16.mxu0 %v4829
    %5116 = vmatpush1.bf16.msra.mxu0 %v4828
    %5117 = vmatprep.subr.bf16.mxu0 %v4823
    %5118 = vmatpush1.bf16.msra.mxu0 %v4822
    %5119 = vmatprep.subr.bf16.mxu0 %v4817
    %5120 = vmatpush1.bf16.msra.mxu0 %v4816
    %5121 = vmatprep.subr.bf16.mxu0 0
    %5122 = vmatpush2.bf16.msra.mxu0 0
    %5123 = vmatprep.subr.bf16.mxu0 0
    %5124 = vmatpush2.bf16.msra.mxu0 0
    %5125 = vmatprep.subr.bf16.mxu0 0
    %5126 = vmatpush2.bf16.msra.mxu0 0
    %5127 = vmatprep.subr.bf16.mxu0 0
    %5128 = vmatpush2.bf16.msra.mxu0 0
    %5129 = vmatprep.subr.bf16.mxu0 0
    %5130 = vmatpush2.bf16.msra.mxu0 0
    %5131 = vmatprep.subr.bf16.mxu0 0
    %5132 = vmatpush2.bf16.msra.mxu0 0
    %5133 = vmatprep.subr.bf16.mxu0 %v4871
    %5134 = vmatpush2.bf16.msra.mxu0 %v4870
    %5135 = vmatprep.subr.bf16.mxu0 %v4865
    %5136 = vmatpush2.bf16.msra.mxu0 %v4864
    %5137 = vmatprep.mubr.bf16.mxu0 %v2332
    %5138 = vmatmul.mubr.bf16.gmra.mxu0 %v1223
    %v5139 = vpop.f32.mrf.mxu0
    %v5140 = vadd.f32 %v5067, %v5139
    %v5141 = vpop.f32.mrf.mxu0
    %v5142 = vadd.f32 %v5069, %v5141
    %v5143 = vpop.f32.mrf.mxu0
    %v5144 = vadd.f32 %v5071, %v5143
    %v5145 = vpop.f32.mrf.mxu0
    %v5146 = vadd.f32 %v5073, %v5145
    %5147 = vmatprep.mubr.bf16.mxu0 %v2335
    %5148 = vmatmul.mubr.bf16.gmra.mxu0 %v1227
    %v5149 = vpop.f32.mrf.mxu0
    %v5150 = vadd.f32 %v5077, %v5149
    %v5151 = vpop.f32.mrf.mxu0
    %v5152 = vadd.f32 %v5079, %v5151
    %v5153 = vpop.f32.mrf.mxu0
    %v5154 = vadd.f32 %v5081, %v5153
    %v5155 = vpop.f32.mrf.mxu0
    %v5156 = vadd.f32 %v5083, %v5155
    %5157 = vmatprep.mubr.bf16.mxu0 %v2338
    %5158 = vmatmul.mubr.bf16.gmra.mxu0 %v1231
    %v5159 = vpop.f32.mrf.mxu0
    %v5160 = vadd.f32 %v5087, %v5159
    %v5161 = vpop.f32.mrf.mxu0
    %v5162 = vadd.f32 %v5089, %v5161
    %v5163 = vpop.f32.mrf.mxu0
    %v5164 = vadd.f32 %v5091, %v5163
    %v5165 = vpop.f32.mrf.mxu0
    %v5166 = vadd.f32 %v5093, %v5165
    %5167 = vmatprep.mubr.bf16.mxu0 %v2341
    %5168 = vmatmul.mubr.bf16.gmra.mxu0 %v1235
    %v5169 = vpop.f32.mrf.mxu0
    %v5170 = vadd.f32 %v5097, %v5169
    %v5171 = vpop.f32.mrf.mxu0
    %v5172 = vadd.f32 %v5099, %v5171
    %v5173 = vpop.f32.mrf.mxu0
    %v5174 = vadd.f32 %v5101, %v5173
    %v5175 = vpop.f32.mrf.mxu0
    %v5176 = vadd.f32 %v5103, %v5175
    %5177 = vdwg.mxu0
    %5178 = vmatprep.subr.bf16.mxu0 %v4765
    %5179 = vmatpush1.bf16.msra.mxu0 %v4764
    %5180 = vmatprep.subr.bf16.mxu0 %v4759
    %5181 = vmatpush1.bf16.msra.mxu0 %v4758
    %5182 = vmatprep.subr.bf16.mxu0 %v4753
    %5183 = vmatpush1.bf16.msra.mxu0 %v4752
    %5184 = vmatprep.subr.bf16.mxu0 %v4747
    %5185 = vmatpush1.bf16.msra.mxu0 %v4746
    %5186 = vmatprep.subr.bf16.mxu0 %v4741
    %5187 = vmatpush1.bf16.msra.mxu0 %v4740
    %5188 = vmatprep.subr.bf16.mxu0 %v4735
    %5189 = vmatpush1.bf16.msra.mxu0 %v4734
    %5190 = vmatprep.subr.bf16.mxu0 %v4729
    %5191 = vmatpush1.bf16.msra.mxu0 %v4728
    %5192 = vmatprep.subr.bf16.mxu0 %v4723
    %5193 = vmatpush1.bf16.msra.mxu0 %v4722
    %5194 = vmatprep.subr.bf16.mxu0 %v4813
    %5195 = vmatpush2.bf16.msra.mxu0 %v4812
    %5196 = vmatprep.subr.bf16.mxu0 %v4807
    %5197 = vmatpush2.bf16.msra.mxu0 %v4806
    %5198 = vmatprep.subr.bf16.mxu0 %v4801
    %5199 = vmatpush2.bf16.msra.mxu0 %v4800
    %5200 = vmatprep.subr.bf16.mxu0 %v4795
    %5201 = vmatpush2.bf16.msra.mxu0 %v4794
    %5202 = vmatprep.subr.bf16.mxu0 %v4789
    %5203 = vmatpush2.bf16.msra.mxu0 %v4788
    %5204 = vmatprep.subr.bf16.mxu0 %v4783
    %5205 = vmatpush2.bf16.msra.mxu0 %v4782
    %5206 = vmatprep.subr.bf16.mxu0 %v4777
    %5207 = vmatpush2.bf16.msra.mxu0 %v4776
    %5208 = vmatprep.subr.bf16.mxu0 %v4771
    %5209 = vmatpush2.bf16.msra.mxu0 %v4770
    %5210 = vmatprep.mubr.bf16.mxu0 %v1222
    %5211 = vmatmul.mubr.bf16.gmra.mxu0 %v1221
    %v5212 = vpop.f32.mrf.mxu0
    %v5213 = vadd.f32 %v4242, %v5212
    %v5214 = vpop.f32.mrf.mxu0
    %v5215 = vadd.f32 %v4243, %v5214
    %v5216 = vpop.f32.mrf.mxu0
    %v5217 = vadd.f32 %v4236, %v5216
    %v5218 = vpop.f32.mrf.mxu0
    %v5219 = vadd.f32 %v4237, %v5218
    %5220 = vmatprep.mubr.bf16.mxu0 %v1226
    %5221 = vmatmul.mubr.bf16.gmra.mxu0 %v1225
    %v5222 = vpop.f32.mrf.mxu0
    %v5223 = vadd.f32 %v4230, %v5222
    %v5224 = vpop.f32.mrf.mxu0
    %v5225 = vadd.f32 %v4231, %v5224
    %v5226 = vpop.f32.mrf.mxu0
    %v5227 = vadd.f32 %v4224, %v5226
    %v5228 = vpop.f32.mrf.mxu0
    %v5229 = vadd.f32 %v4225, %v5228
    %5230 = vmatprep.mubr.bf16.mxu0 %v1230
    %5231 = vmatmul.mubr.bf16.gmra.mxu0 %v1229
    %v5232 = vpop.f32.mrf.mxu0
    %v5233 = vadd.f32 %v4218, %v5232
    %v5234 = vpop.f32.mrf.mxu0
    %v5235 = vadd.f32 %v4219, %v5234
    %v5236 = vpop.f32.mrf.mxu0
    %v5237 = vadd.f32 %v4212, %v5236
    %v5238 = vpop.f32.mrf.mxu0
    %v5239 = vadd.f32 %v4213, %v5238
    %5240 = vmatprep.mubr.bf16.mxu0 %v1234
    %5241 = vmatmul.mubr.bf16.gmra.mxu0 %v1233
    %v5242 = vpop.f32.mrf.mxu0
    %v5243 = vadd.f32 %v4206, %v5242
    %v5244 = vpop.f32.mrf.mxu0
    %v5245 = vadd.f32 %v4207, %v5244
    %v5246 = vpop.f32.mrf.mxu0
    %v5247 = vadd.f32 %v4248, %v5246
    %v5248 = vpop.f32.mrf.mxu0
    %v5249 = vadd.f32 %v4249, %v5248
    %5250 = vdwg.mxu0
    %5251 = vmatprep.subr.bf16.mxu0 %v4861
    %5252 = vmatpush1.bf16.msra.mxu0 %v4860
    %5253 = vmatprep.subr.bf16.mxu0 %v4855
    %5254 = vmatpush1.bf16.msra.mxu0 %v4854
    %5255 = vmatprep.subr.bf16.mxu0 %v4849
    %5256 = vmatpush1.bf16.msra.mxu0 %v4848
    %5257 = vmatprep.subr.bf16.mxu0 %v4843
    %5258 = vmatpush1.bf16.msra.mxu0 %v4842
    %5259 = vmatprep.subr.bf16.mxu0 %v4837
    %5260 = vmatpush1.bf16.msra.mxu0 %v4836
    %5261 = vmatprep.subr.bf16.mxu0 %v4831
    %5262 = vmatpush1.bf16.msra.mxu0 %v4830
    %5263 = vmatprep.subr.bf16.mxu0 %v4825
    %5264 = vmatpush1.bf16.msra.mxu0 %v4824
    %5265 = vmatprep.subr.bf16.mxu0 %v4819
    %5266 = vmatpush1.bf16.msra.mxu0 %v4818
    %5267 = vmatprep.subr.bf16.mxu0 0
    %5268 = vmatpush2.bf16.msra.mxu0 0
    %5269 = vmatprep.subr.bf16.mxu0 0
    %5270 = vmatpush2.bf16.msra.mxu0 0
    %5271 = vmatprep.subr.bf16.mxu0 0
    %5272 = vmatpush2.bf16.msra.mxu0 0
    %5273 = vmatprep.subr.bf16.mxu0 0
    %5274 = vmatpush2.bf16.msra.mxu0 0
    %5275 = vmatprep.subr.bf16.mxu0 0
    %5276 = vmatpush2.bf16.msra.mxu0 0
    %5277 = vmatprep.subr.bf16.mxu0 0
    %5278 = vmatpush2.bf16.msra.mxu0 0
    %5279 = vmatprep.subr.bf16.mxu0 %v4873
    %5280 = vmatpush2.bf16.msra.mxu0 %v4872
    %5281 = vmatprep.subr.bf16.mxu0 %v4867
    %5282 = vmatpush2.bf16.msra.mxu0 %v4866
    %5283 = vmatprep.mubr.bf16.mxu0 %v2332
    %5284 = vmatmul.mubr.bf16.gmra.mxu0 %v1223
    %v5285 = vpop.f32.mrf.mxu0
    %v5286 = vadd.f32 %v5213, %v5285
    %v5287 = vpop.f32.mrf.mxu0
    %v5288 = vadd.f32 %v5215, %v5287
    %v5289 = vpop.f32.mrf.mxu0
    %v5290 = vadd.f32 %v5217, %v5289
    %v5291 = vpop.f32.mrf.mxu0
    %v5292 = vadd.f32 %v5219, %v5291
    %5293 = vmatprep.mubr.bf16.mxu0 %v2335
    %5294 = vmatmul.mubr.bf16.gmra.mxu0 %v1227
    %v5295 = vpop.f32.mrf.mxu0
    %v5296 = vadd.f32 %v5223, %v5295
    %v5297 = vpop.f32.mrf.mxu0
    %v5298 = vadd.f32 %v5225, %v5297
    %v5299 = vpop.f32.mrf.mxu0
    %v5300 = vadd.f32 %v5227, %v5299
    %v5301 = vpop.f32.mrf.mxu0
    %v5302 = vadd.f32 %v5229, %v5301
    %5303 = vmatprep.mubr.bf16.mxu0 %v2338
    %5304 = vmatmul.mubr.bf16.gmra.mxu0 %v1231
    %v5305 = vpop.f32.mrf.mxu0
    %v5306 = vadd.f32 %v5233, %v5305
    %v5307 = vpop.f32.mrf.mxu0
    %v5308 = vadd.f32 %v5235, %v5307
    %v5309 = vpop.f32.mrf.mxu0
    %v5310 = vadd.f32 %v5237, %v5309
    %v5311 = vpop.f32.mrf.mxu0
    %v5312 = vadd.f32 %v5239, %v5311
    %5313 = vmatprep.mubr.bf16.mxu0 %v2341
    %5314 = vmatmul.mubr.bf16.gmra.mxu0 %v1235
    %v5315 = vpop.f32.mrf.mxu0
    %v5316 = vadd.f32 %v5243, %v5315
    %v5317 = vpop.f32.mrf.mxu0
    %v5318 = vadd.f32 %v5245, %v5317
    %v5319 = vpop.f32.mrf.mxu0
    %v5320 = vadd.f32 %v5247, %v5319
    %v5321 = vpop.f32.mrf.mxu0
    %v5322 = vadd.f32 %v5249, %v5321
    %5323 = vdwg.mxu0
    %5324 = vmatprep.subr.bf16.mxu0 %v4767
    %5325 = vmatpush1.bf16.msra.mxu0 %v4766
    %5326 = vmatprep.subr.bf16.mxu0 %v4761
    %5327 = vmatpush1.bf16.msra.mxu0 %v4760
    %5328 = vmatprep.subr.bf16.mxu0 %v4755
    %5329 = vmatpush1.bf16.msra.mxu0 %v4754
    %5330 = vmatprep.subr.bf16.mxu0 %v4749
    %5331 = vmatpush1.bf16.msra.mxu0 %v4748
    %5332 = vmatprep.subr.bf16.mxu0 %v4743
    %5333 = vmatpush1.bf16.msra.mxu0 %v4742
    %5334 = vmatprep.subr.bf16.mxu0 %v4737
    %5335 = vmatpush1.bf16.msra.mxu0 %v4736
    %5336 = vmatprep.subr.bf16.mxu0 %v4731
    %5337 = vmatpush1.bf16.msra.mxu0 %v4730
    %5338 = vmatprep.subr.bf16.mxu0 %v4725
    %5339 = vmatpush1.bf16.msra.mxu0 %v4724
    %5340 = vmatprep.subr.bf16.mxu0 %v4815
    %5341 = vmatpush2.bf16.msra.mxu0 %v4814
    %5342 = vmatprep.subr.bf16.mxu0 %v4809
    %5343 = vmatpush2.bf16.msra.mxu0 %v4808
    %5344 = vmatprep.subr.bf16.mxu0 %v4803
    %5345 = vmatpush2.bf16.msra.mxu0 %v4802
    %5346 = vmatprep.subr.bf16.mxu0 %v4797
    %5347 = vmatpush2.bf16.msra.mxu0 %v4796
    %5348 = vmatprep.subr.bf16.mxu0 %v4791
    %5349 = vmatpush2.bf16.msra.mxu0 %v4790
    %5350 = vmatprep.subr.bf16.mxu0 %v4785
    %5351 = vmatpush2.bf16.msra.mxu0 %v4784
    %5352 = vmatprep.subr.bf16.mxu0 %v4779
    %5353 = vmatpush2.bf16.msra.mxu0 %v4778
    %5354 = vmatprep.subr.bf16.mxu0 %v4773
    %5355 = vmatpush2.bf16.msra.mxu0 %v4772
    %5356 = vmatprep.mubr.bf16.mxu0 %v1222
    %5357 = vmatmul.mubr.bf16.gmra.mxu0 %v1221
    %v5358 = vpop.f32.mrf.mxu0
    %v5359 = vadd.f32 %v4244, %v5358
    %v5360 = vpop.f32.mrf.mxu0
    %v5361 = vadd.f32 %v4245, %v5360
    %v5362 = vpop.f32.mrf.mxu0
    %v5363 = vadd.f32 %v4238, %v5362
    %v5364 = vpop.f32.mrf.mxu0
    %v5365 = vadd.f32 %v4239, %v5364
    %5366 = vmatprep.mubr.bf16.mxu0 %v1226
    %5367 = vmatmul.mubr.bf16.gmra.mxu0 %v1225
    %v5368 = vpop.f32.mrf.mxu0
    %v5369 = vadd.f32 %v4232, %v5368
    %v5370 = vpop.f32.mrf.mxu0
    %v5371 = vadd.f32 %v4233, %v5370
    %v5372 = vpop.f32.mrf.mxu0
    %v5373 = vadd.f32 %v4226, %v5372
    %v5374 = vpop.f32.mrf.mxu0
    %v5375 = vadd.f32 %v4227, %v5374
    %5376 = vmatprep.mubr.bf16.mxu0 %v1230
    %5377 = vmatmul.mubr.bf16.gmra.mxu0 %v1229
    %v5378 = vpop.f32.mrf.mxu0
    %v5379 = vadd.f32 %v4220, %v5378
    %v5380 = vpop.f32.mrf.mxu0
    %v5381 = vadd.f32 %v4221, %v5380
    %v5382 = vpop.f32.mrf.mxu0
    %v5383 = vadd.f32 %v4214, %v5382
    %v5384 = vpop.f32.mrf.mxu0
    %v5385 = vadd.f32 %v4215, %v5384
    %5386 = vmatprep.mubr.bf16.mxu0 %v1234
    %5387 = vmatmul.mubr.bf16.gmra.mxu0 %v1233
    %v5388 = vpop.f32.mrf.mxu0
    %v5389 = vadd.f32 %v4208, %v5388
    %v5390 = vpop.f32.mrf.mxu0
    %v5391 = vadd.f32 %v4209, %v5390
    %v5392 = vpop.f32.mrf.mxu0
    %v5393 = vadd.f32 %v4250, %v5392
    %v5394 = vpop.f32.mrf.mxu0
    %v5395 = vadd.f32 %v4251, %v5394
    %5396 = vdwg.mxu0
    %5397 = vmatprep.subr.bf16.mxu0 %v4863
    %5398 = vmatpush1.bf16.msra.mxu0 %v4862
    %5399 = vmatprep.subr.bf16.mxu0 %v4857
    %5400 = vmatpush1.bf16.msra.mxu0 %v4856
    %5401 = vmatprep.subr.bf16.mxu0 %v4851
    %5402 = vmatpush1.bf16.msra.mxu0 %v4850
    %5403 = vmatprep.subr.bf16.mxu0 %v4845
    %5404 = vmatpush1.bf16.msra.mxu0 %v4844
    %5405 = vmatprep.subr.bf16.mxu0 %v4839
    %5406 = vmatpush1.bf16.msra.mxu0 %v4838
    %5407 = vmatprep.subr.bf16.mxu0 %v4833
    %5408 = vmatpush1.bf16.msra.mxu0 %v4832
    %5409 = vmatprep.subr.bf16.mxu0 %v4827
    %5410 = vmatpush1.bf16.msra.mxu0 %v4826
    %5411 = vmatprep.subr.bf16.mxu0 %v4821
    %5412 = vmatpush1.bf16.msra.mxu0 %v4820
    %5413 = vmatprep.subr.bf16.mxu0 0
    %5414 = vmatpush2.bf16.msra.mxu0 0
    %5415 = vmatprep.subr.bf16.mxu0 0
    %5416 = vmatpush2.bf16.msra.mxu0 0
    %5417 = vmatprep.subr.bf16.mxu0 0
    %5418 = vmatpush2.bf16.msra.mxu0 0
    %5419 = vmatprep.subr.bf16.mxu0 0
    %5420 = vmatpush2.bf16.msra.mxu0 0
    %5421 = vmatprep.subr.bf16.mxu0 0
    %5422 = vmatpush2.bf16.msra.mxu0 0
    %5423 = vmatprep.subr.bf16.mxu0 0
    %5424 = vmatpush2.bf16.msra.mxu0 0
    %5425 = vmatprep.subr.bf16.mxu0 %v4875
    %5426 = vmatpush2.bf16.msra.mxu0 %v4874
    %5427 = vmatprep.subr.bf16.mxu0 %v4869
    %5428 = vmatpush2.bf16.msra.mxu0 %v4868
    %5429 = vmatprep.mubr.bf16.mxu0 %v2332
    %5430 = vmatmul.mubr.bf16.gmra.mxu0 %v1223
    %v5431 = vpop.f32.mrf.mxu0
    %v5432 = vadd.f32 %v5359, %v5431
    %v5433 = vpop.f32.mrf.mxu0
    %v5434 = vadd.f32 %v5361, %v5433
    %v5435 = vpop.f32.mrf.mxu0
    %v5436 = vadd.f32 %v5363, %v5435
    %v5437 = vpop.f32.mrf.mxu0
    %v5438 = vadd.f32 %v5365, %v5437
    %5439 = vmatprep.mubr.bf16.mxu0 %v2335
    %5440 = vmatmul.mubr.bf16.gmra.mxu0 %v1227
    %v5441 = vpop.f32.mrf.mxu0
    %v5442 = vadd.f32 %v5369, %v5441
    %v5443 = vpop.f32.mrf.mxu0
    %v5444 = vadd.f32 %v5371, %v5443
    %v5445 = vpop.f32.mrf.mxu0
    %v5446 = vadd.f32 %v5373, %v5445
    %v5447 = vpop.f32.mrf.mxu0
    %v5448 = vadd.f32 %v5375, %v5447
    %5449 = vmatprep.mubr.bf16.mxu0 %v2338
    %5450 = vmatmul.mubr.bf16.gmra.mxu0 %v1231
    %v5451 = vpop.f32.mrf.mxu0
    %v5452 = vadd.f32 %v5379, %v5451
    %v5453 = vpop.f32.mrf.mxu0
    %v5454 = vadd.f32 %v5381, %v5453
    %v5455 = vpop.f32.mrf.mxu0
    %v5456 = vadd.f32 %v5383, %v5455
    %v5457 = vpop.f32.mrf.mxu0
    %v5458 = vadd.f32 %v5385, %v5457
    %5459 = vmatprep.mubr.bf16.mxu0 %v2341
    %5460 = vmatmul.mubr.bf16.gmra.mxu0 %v1235
    %v5461 = vpop.f32.mrf.mxu0
    %v5462 = vadd.f32 %v5389, %v5461
    %v5463 = vpop.f32.mrf.mxu0
    %v5464 = vadd.f32 %v5391, %v5463
    %v5465 = vpop.f32.mrf.mxu0
    %v5466 = vadd.f32 %v5393, %v5465
    %v5467 = vpop.f32.mrf.mxu0
    %v5468 = vadd.f32 %v5395, %v5467
    %5469 = vdwg.mxu0
    %v5470 = vrot.slane %v3826, 2
    %v5471 = vrot.slane %v3828, 2
    %v5472 = vrot.slane %v3972, 2
    %v5473 = vrot.slane %v3974, 2
    %v5474 = vrot.slane %v4118, 2
    %v5475 = vrot.slane %v4120, 2
    %v5476 = vrot.slane %v3830, 2
    %v5477 = vrot.slane %v3832, 2
    %v5478 = vrot.slane %v3976, 2
    %v5479 = vrot.slane %v3978, 2
    %v5480 = vrot.slane %v4122, 2
    %v5481 = vrot.slane %v4124, 2
    %v5482 = vrot.slane %v3836, 2
    %v5483 = vrot.slane %v3838, 2
    %v5484 = vrot.slane %v3982, 2
    %v5485 = vrot.slane %v3984, 2
    %v5486 = vrot.slane %v4128, 2
    %v5487 = vrot.slane %v4130, 2
    %v5488 = vrot.slane %v3840, 2
    %v5489 = vrot.slane %v3842, 2
    %v5490 = vrot.slane %v3986, 2
    %v5491 = vrot.slane %v3988, 2
    %v5492 = vrot.slane %v4132, 2
    %v5493 = vrot.slane %v4134, 2
    %v5494 = vrot.slane %v3846, 2
    %v5495 = vrot.slane %v3848, 2
    %v5496 = vrot.slane %v3992, 2
    %v5497 = vrot.slane %v3994, 2
    %v5498 = vrot.slane %v4138, 2
    %v5499 = vrot.slane %v4140, 2
    %v5500 = vrot.slane %v3850, 2
    %v5501 = vrot.slane %v3852, 2
    %v5502 = vrot.slane %v3996, 2
    %v5503 = vrot.slane %v3998, 2
    %v5504 = vrot.slane %v4142, 2
    %v5505 = vrot.slane %v4144, 2
    %v5506 = vrot.slane %v3856, 2
    %v5507 = vrot.slane %v3858, 2
    %v5508 = vrot.slane %v4002, 2
    %v5509 = vrot.slane %v4004, 2
    %v5510 = vrot.slane %v4148, 2
    %v5511 = vrot.slane %v4150, 2
    %v5512 = vrot.slane %v3860, 2
    %v5513 = vrot.slane %v3862, 2
    %v5514 = vrot.slane %v4006, 2
    %v5515 = vrot.slane %v4008, 2
    %v5516 = vrot.slane %v4152, 2
    %v5517 = vrot.slane %v4154, 2
    %v5518 = vsel %vm1070, %v5506, %v5512
    %v5519 = vsel %vm1070, %v5507, %v5513
    %v5520 = vsel %vm1070, %v5508, %v5514
    %v5521 = vsel %vm1070, %v5509, %v5515
    %v5522 = vsel %vm1070, %v5510, %v5516
    %v5523 = vsel %vm1070, %v5511, %v5517
    %v5524 = vsel %vm1070, %v5500, %v5506
    %v5525 = vsel %vm1070, %v5501, %v5507
    %v5526 = vsel %vm1070, %v5502, %v5508
    %v5527 = vsel %vm1070, %v5503, %v5509
    %v5528 = vsel %vm1070, %v5504, %v5510
    %v5529 = vsel %vm1070, %v5505, %v5511
    %v5530 = vsel %vm1070, %v5494, %v5500
    %v5531 = vsel %vm1070, %v5495, %v5501
    %v5532 = vsel %vm1070, %v5496, %v5502
    %v5533 = vsel %vm1070, %v5497, %v5503
    %v5534 = vsel %vm1070, %v5498, %v5504
    %v5535 = vsel %vm1070, %v5499, %v5505
    %v5536 = vsel %vm1070, %v5488, %v5494
    %v5537 = vsel %vm1070, %v5489, %v5495
    %v5538 = vsel %vm1070, %v5490, %v5496
    %v5539 = vsel %vm1070, %v5491, %v5497
    %v5540 = vsel %vm1070, %v5492, %v5498
    %v5541 = vsel %vm1070, %v5493, %v5499
    %v5542 = vsel %vm1070, %v5482, %v5488
    %v5543 = vsel %vm1070, %v5483, %v5489
    %v5544 = vsel %vm1070, %v5484, %v5490
    %v5545 = vsel %vm1070, %v5485, %v5491
    %v5546 = vsel %vm1070, %v5486, %v5492
    %v5547 = vsel %vm1070, %v5487, %v5493
    %v5548 = vsel %vm1070, %v5476, %v5482
    %v5549 = vsel %vm1070, %v5477, %v5483
    %v5550 = vsel %vm1070, %v5478, %v5484
    %v5551 = vsel %vm1070, %v5479, %v5485
    %v5552 = vsel %vm1070, %v5480, %v5486
    %v5553 = vsel %vm1070, %v5481, %v5487
    %v5554 = vsel %vm1070, %v5470, %v5476
    %v5555 = vsel %vm1070, %v5471, %v5477
    %v5556 = vsel %vm1070, %v5472, %v5478
    %v5557 = vsel %vm1070, %v5473, %v5479
    %v5558 = vsel %vm1070, %v5474, %v5480
    %v5559 = vsel %vm1070, %v5475, %v5481
    %v5560 = vsel %vm1070, %v5512, %v5470
    %v5561 = vsel %vm1070, %v5513, %v5471
    %v5562 = vsel %vm1070, %v5514, %v5472
    %v5563 = vsel %vm1070, %v5515, %v5473
    %v5564 = vsel %vm1070, %v5516, %v5474
    %v5565 = vsel %vm1070, %v5517, %v5475
    %v5566 = vadd.f32 %v5140, %v5554
    %v5567 = vadd.f32 %v5142, %v5555
    %v5568 = vadd.f32 %v5286, %v5556
    %v5569 = vadd.f32 %v5288, %v5557
    %v5570 = vadd.f32 %v5432, %v5558
    %v5571 = vadd.f32 %v5434, %v5559
    %v5572 = vadd.f32 %v5144, %v5548
    %v5573 = vadd.f32 %v5146, %v5549
    %v5574 = vadd.f32 %v5290, %v5550
    %v5575 = vadd.f32 %v5292, %v5551
    %v5576 = vadd.f32 %v5436, %v5552
    %v5577 = vadd.f32 %v5438, %v5553
    %v5578 = vadd.f32 %v5150, %v5542
    %v5579 = vadd.f32 %v5152, %v5543
    %v5580 = vadd.f32 %v5296, %v5544
    %v5581 = vadd.f32 %v5298, %v5545
    %v5582 = vadd.f32 %v5442, %v5546
    %v5583 = vadd.f32 %v5444, %v5547
    %v5584 = vadd.f32 %v5154, %v5536
    %v5585 = vadd.f32 %v5156, %v5537
    %v5586 = vadd.f32 %v5300, %v5538
    %v5587 = vadd.f32 %v5302, %v5539
    %v5588 = vadd.f32 %v5446, %v5540
    %v5589 = vadd.f32 %v5448, %v5541
    %v5590 = vadd.f32 %v5160, %v5530
    %v5591 = vadd.f32 %v5162, %v5531
    %v5592 = vadd.f32 %v5306, %v5532
    %v5593 = vadd.f32 %v5308, %v5533
    %v5594 = vadd.f32 %v5452, %v5534
    %v5595 = vadd.f32 %v5454, %v5535
    %v5596 = vadd.f32 %v5164, %v5524
    %v5597 = vadd.f32 %v5166, %v5525
    %v5598 = vadd.f32 %v5310, %v5526
    %v5599 = vadd.f32 %v5312, %v5527
    %v5600 = vadd.f32 %v5456, %v5528
    %v5601 = vadd.f32 %v5458, %v5529
    %v5602 = vadd.f32 %v5170, %v5518
    %v5603 = vadd.f32 %v5172, %v5519
    %v5604 = vadd.f32 %v5316, %v5520
    %v5605 = vadd.f32 %v5318, %v5521
    %v5606 = vadd.f32 %v5462, %v5522
    %v5607 = vadd.f32 %v5464, %v5523
    %v5608 = vadd.f32 %v5174, %v5560
    %v5609 = vadd.f32 %v5176, %v5561
    %v5610 = vadd.f32 %v5320, %v5562
    %v5611 = vadd.f32 %v5322, %v5563
    %v5612 = vadd.f32 %v5466, %v5564
    %v5613 = vadd.f32 %v5468, %v5565
    %v5614 = vmax.f32 %v5566, %v5569
    %v5615 = vmax.f32 %v5567, %v5570
    %v5616 = vmax.f32 %v5568, %v5571
    %v5617 = vmax.f32 %v5572, %v5575
    %v5618 = vmax.f32 %v5573, %v5576
    %v5619 = vmax.f32 %v5574, %v5577
    %v5620 = vmax.f32 %v5578, %v5581
    %v5621 = vmax.f32 %v5579, %v5582
    %v5622 = vmax.f32 %v5580, %v5583
    %v5623 = vmax.f32 %v5584, %v5587
    %v5624 = vmax.f32 %v5585, %v5588
    %v5625 = vmax.f32 %v5586, %v5589
    %v5626 = vmax.f32 %v5590, %v5593
    %v5627 = vmax.f32 %v5591, %v5594
    %v5628 = vmax.f32 %v5592, %v5595
    %v5629 = vmax.f32 %v5596, %v5599
    %v5630 = vmax.f32 %v5597, %v5600
    %v5631 = vmax.f32 %v5598, %v5601
    %v5632 = vmax.f32 %v5602, %v5605
    %v5633 = vmax.f32 %v5603, %v5606
    %v5634 = vmax.f32 %v5604, %v5607
    %v5635 = vmax.f32 %v5608, %v5611
    %v5636 = vmax.f32 %v5609, %v5612
    %v5637 = vmax.f32 %v5610, %v5613
    %v5638 = vld [vmem:[#allocation7] sm:$0x7]
    %v5640 = vlaneseq
    %v5641 = vshrl.u32 %v5640, 7
    %v5642 = vsub.s32 0, %v5641
    %v5643 = vrot.slane %v5638, %v5642
    %v5644 = vlaneseq
    %v5645 = vshrl.u32 %v5644, 7
    %v5646 = vsub.s32 1, %v5645
    %v5647 = vrot.slane %v5638, %v5646
    %v5648 = vlaneseq
    %v5649 = vshrl.u32 %v5648, 7
    %v5650 = vsub.s32 2, %v5649
    %v5651 = vrot.slane %v5638, %v5650
    %v5655 = vadd.f32 %v5614, %v5643
    %v5656 = vadd.f32 %v5615, %v5647
    %v5657 = vadd.f32 %v5616, %v5651
    %v5658 = vadd.f32 %v5617, %v5643
    %v5659 = vadd.f32 %v5618, %v5647
    %v5660 = vadd.f32 %v5619, %v5651
    %v5661 = vadd.f32 %v5620, %v5643
    %v5662 = vadd.f32 %v5621, %v5647
    %v5663 = vadd.f32 %v5622, %v5651
    %v5664 = vadd.f32 %v5623, %v5643
    %v5665 = vadd.f32 %v5624, %v5647
    %v5666 = vadd.f32 %v5625, %v5651
    %v5667 = vadd.f32 %v5626, %v5643
    %v5668 = vadd.f32 %v5627, %v5647
    %v5669 = vadd.f32 %v5628, %v5651
    %v5670 = vadd.f32 %v5629, %v5643
    %v5671 = vadd.f32 %v5630, %v5647
    %v5672 = vadd.f32 %v5631, %v5651
    %v5673 = vadd.f32 %v5632, %v5643
    %v5674 = vadd.f32 %v5633, %v5647
    %v5675 = vadd.f32 %v5634, %v5651
    %v5676 = vadd.f32 %v5635, %v5643
    %v5677 = vadd.f32 %v5636, %v5647
    %v5678 = vadd.f32 %v5637, %v5651
    %v5679 = vmax.f32 %v5655, 0.0
    %v5680 = vmax.f32 %v5656, 0.0
    %v5681 = vmax.f32 %v5657, 0.0
    %v5682 = vmax.f32 %v5658, 0.0
    %v5683 = vmax.f32 %v5659, 0.0
    %v5684 = vmax.f32 %v5660, 0.0
    %v5685 = vmax.f32 %v5661, 0.0
    %v5686 = vmax.f32 %v5662, 0.0
    %v5687 = vmax.f32 %v5663, 0.0
    %v5688 = vmax.f32 %v5664, 0.0
    %v5689 = vmax.f32 %v5665, 0.0
    %v5690 = vmax.f32 %v5666, 0.0
    %v5691 = vmax.f32 %v5667, 0.0
    %v5692 = vmax.f32 %v5668, 0.0
    %v5693 = vmax.f32 %v5669, 0.0
    %v5694 = vmax.f32 %v5670, 0.0
    %v5695 = vmax.f32 %v5671, 0.0
    %v5696 = vmax.f32 %v5672, 0.0
    %v5697 = vmax.f32 %v5673, 0.0
    %v5698 = vmax.f32 %v5674, 0.0
    %v5699 = vmax.f32 %v5675, 0.0
    %v5700 = vmax.f32 %v5676, 0.0
    %v5701 = vmax.f32 %v5677, 0.0
    %v5702 = vmax.f32 %v5678, 0.0
    %v5703 = vrot.slane %v5679, 1
    %v5704 = vrot.slane %v5680, 1
    %v5705 = vrot.slane %v5681, 1
    %v5706 = vrot.slane %v5682, 1
    %v5707 = vrot.slane %v5683, 1
    %v5708 = vrot.slane %v5684, 1
    %v5709 = vrot.slane %v5685, 1
    %v5710 = vrot.slane %v5686, 1
    %v5711 = vrot.slane %v5687, 1
    %v5712 = vrot.slane %v5688, 1
    %v5713 = vrot.slane %v5689, 1
    %v5714 = vrot.slane %v5690, 1
    %v5715 = vrot.slane %v5691, 1
    %v5716 = vrot.slane %v5692, 1
    %v5717 = vrot.slane %v5693, 1
    %v5718 = vrot.slane %v5694, 1
    %v5719 = vrot.slane %v5695, 1
    %v5720 = vrot.slane %v5696, 1
    %v5721 = vrot.slane %v5697, 1
    %v5722 = vrot.slane %v5698, 1
    %v5723 = vrot.slane %v5699, 1
    %v5724 = vrot.slane %v5700, 1
    %v5725 = vrot.slane %v5701, 1
    %v5726 = vrot.slane %v5702, 1
    %v5727 = vsel %vm828, %v5721, %v5724
    %v5728 = vsel %vm828, %v5722, %v5725
    %v5729 = vsel %vm828, %v5723, %v5726
    %v5730 = vsel %vm828, %v5718, %v5721
    %v5731 = vsel %vm828, %v5719, %v5722
    %v5732 = vsel %vm828, %v5720, %v5723
    %v5733 = vsel %vm828, %v5715, %v5718
    %v5734 = vsel %vm828, %v5716, %v5719
    %v5735 = vsel %vm828, %v5717, %v5720
    %v5736 = vsel %vm828, %v5709, %v5712
    %v5737 = vsel %vm828, %v5710, %v5713
    %v5738 = vsel %vm828, %v5711, %v5714
    %v5739 = vsel %vm828, %v5706, %v5709
    %v5740 = vsel %vm828, %v5707, %v5710
    %v5741 = vsel %vm828, %v5708, %v5711
    %v5742 = vsel %vm828, %v5703, %v5706
    %v5743 = vsel %vm828, %v5704, %v5707
    %v5744 = vsel %vm828, %v5705, %v5708
    %v5745 = vmax.f32 %v5679, %v5742
    %v5746 = vmax.f32 %v5680, %v5743
    %v5747 = vmax.f32 %v5681, %v5744
    %v5748 = vmax.f32 %v5682, %v5739
    %v5749 = vmax.f32 %v5683, %v5740
    %v5750 = vmax.f32 %v5684, %v5741
    %v5751 = vmax.f32 %v5685, %v5736
    %v5752 = vmax.f32 %v5686, %v5737
    %v5753 = vmax.f32 %v5687, %v5738
    %v5754 = vmax.f32 %v5691, %v5733
    %v5755 = vmax.f32 %v5692, %v5734
    %v5756 = vmax.f32 %v5693, %v5735
    %v5757 = vmax.f32 %v5694, %v5730
    %v5758 = vmax.f32 %v5695, %v5731
    %v5759 = vmax.f32 %v5696, %v5732
    %v5760 = vmax.f32 %v5697, %v5727
    %v5761 = vmax.f32 %v5698, %v5728
    %v5762 = vmax.f32 %v5699, %v5729
    %v5769 = vrot.slane %v5754, 7
    %vm5770 = vcmask 1041409
    %v5771 = vsel %vm5770, %v5769, %v5745
    %v5772 = vrot.slane %v5755, 7
    %v5773 = vsel %vm5770, %v5772, %v5746
    %v5774 = vrot.slane %v5756, 7
    %v5775 = vsel %vm5770, %v5774, %v5747
    %v5779 = vrot.slane %v5745, 2
    %v5780 = vrot.slane %v5754, 1
    %v5781 = vsel %vm5770, %v5780, %v5779
    %v5782 = vrot.slane %v5746, 2
    %v5783 = vrot.slane %v5755, 1
    %v5784 = vsel %vm5770, %v5783, %v5782
    %v5785 = vrot.slane %v5747, 2
    %v5786 = vrot.slane %v5756, 1
    %v5787 = vsel %vm5770, %v5786, %v5785
    %v5791 = vrot.slane %v5745, 4
    %v5792 = vrot.slane %v5754, 3
    %v5793 = vsel %vm5770, %v5792, %v5791
    %v5794 = vrot.slane %v5746, 4
    %v5795 = vrot.slane %v5755, 3
    %v5796 = vsel %vm5770, %v5795, %v5794
    %v5797 = vrot.slane %v5747, 4
    %v5798 = vrot.slane %v5756, 3
    %v5799 = vsel %vm5770, %v5798, %v5797
    %v5803 = vrot.slane %v5745, 6
    %v5804 = vrot.slane %v5754, 5
    %v5805 = vsel %vm5770, %v5804, %v5803
    %v5806 = vrot.slane %v5746, 6
    %v5807 = vrot.slane %v5755, 5
    %v5808 = vsel %vm5770, %v5807, %v5806
    %v5809 = vrot.slane %v5747, 6
    %v5810 = vrot.slane %v5756, 5
    %v5811 = vsel %vm5770, %v5810, %v5809
    %v5821 = vrot.slane %v5757, 7
    %v5822 = vsel %vm5770, %v5821, %v5748
    %v5823 = vrot.slane %v5758, 7
    %v5824 = vsel %vm5770, %v5823, %v5749
    %v5825 = vrot.slane %v5759, 7
    %v5826 = vsel %vm5770, %v5825, %v5750
    %v5830 = vrot.slane %v5748, 2
    %v5831 = vrot.slane %v5757, 1
    %v5832 = vsel %vm5770, %v5831, %v5830
    %v5833 = vrot.slane %v5749, 2
    %v5834 = vrot.slane %v5758, 1
    %v5835 = vsel %vm5770, %v5834, %v5833
    %v5836 = vrot.slane %v5750, 2
    %v5837 = vrot.slane %v5759, 1
    %v5838 = vsel %vm5770, %v5837, %v5836
    %v5842 = vrot.slane %v5748, 4
    %v5843 = vrot.slane %v5757, 3
    %v5844 = vsel %vm5770, %v5843, %v5842
    %v5845 = vrot.slane %v5749, 4
    %v5846 = vrot.slane %v5758, 3
    %v5847 = vsel %vm5770, %v5846, %v5845
    %v5848 = vrot.slane %v5750, 4
    %v5849 = vrot.slane %v5759, 3
    %v5850 = vsel %vm5770, %v5849, %v5848
    %v5854 = vrot.slane %v5748, 6
    %v5855 = vrot.slane %v5757, 5
    %v5856 = vsel %vm5770, %v5855, %v5854
    %v5857 = vrot.slane %v5749, 6
    %v5858 = vrot.slane %v5758, 5
    %v5859 = vsel %vm5770, %v5858, %v5857
    %v5860 = vrot.slane %v5750, 6
    %v5861 = vrot.slane %v5759, 5
    %v5862 = vsel %vm5770, %v5861, %v5860
    %v5872 = vrot.slane %v5760, 7
    %v5873 = vsel %vm5770, %v5872, %v5751
    %v5874 = vrot.slane %v5761, 7
    %v5875 = vsel %vm5770, %v5874, %v5752
    %v5876 = vrot.slane %v5762, 7
    %v5877 = vsel %vm5770, %v5876, %v5753
    %v5881 = vrot.slane %v5751, 2
    %v5882 = vrot.slane %v5760, 1
    %v5883 = vsel %vm5770, %v5882, %v5881
    %v5884 = vrot.slane %v5752, 2
    %v5885 = vrot.slane %v5761, 1
    %v5886 = vsel %vm5770, %v5885, %v5884
    %v5887 = vrot.slane %v5753, 2
    %v5888 = vrot.slane %v5762, 1
    %v5889 = vsel %vm5770, %v5888, %v5887
    %v5893 = vrot.slane %v5751, 4
    %v5894 = vrot.slane %v5760, 3
    %v5895 = vsel %vm5770, %v5894, %v5893
    %v5896 = vrot.slane %v5752, 4
    %v5897 = vrot.slane %v5761, 3
    %v5898 = vsel %vm5770, %v5897, %v5896
    %v5899 = vrot.slane %v5753, 4
    %v5900 = vrot.slane %v5762, 3
    %v5901 = vsel %vm5770, %v5900, %v5899
    %v5905 = vrot.slane %v5751, 6
    %v5906 = vrot.slane %v5760, 5
    %v5907 = vsel %vm5770, %v5906, %v5905
    %v5908 = vrot.slane %v5752, 6
    %v5909 = vrot.slane %v5761, 5
    %v5910 = vsel %vm5770, %v5909, %v5908
    %v5911 = vrot.slane %v5753, 6
    %v5912 = vrot.slane %v5762, 5
    %v5913 = vsel %vm5770, %v5912, %v5911
    %v5917 = vpack.c.bf16 %v5771, %v5771
    %v5918 = vpack.c.bf16 %v5773, %v5773
    %v5919 = vpack.c.bf16 %v5775, %v5775
    %v5920 = vpack.c.bf16 %v5781, %v5781
    %v5921 = vpack.c.bf16 %v5784, %v5784
    %v5922 = vpack.c.bf16 %v5787, %v5787
    %v5923 = vpack.c.bf16 %v5793, %v5793
    %v5924 = vpack.c.bf16 %v5796, %v5796
    %v5925 = vpack.c.bf16 %v5799, %v5799
    %v5926 = vpack.c.bf16 %v5805, %v5805
    %v5927 = vpack.c.bf16 %v5808, %v5808
    %v5928 = vpack.c.bf16 %v5811, %v5811
    %v5929 = vpack.c.bf16 %v5822, %v5822
    %v5930 = vpack.c.bf16 %v5824, %v5824
    %v5931 = vpack.c.bf16 %v5826, %v5826
    %v5932 = vpack.c.bf16 %v5832, %v5832
    %v5933 = vpack.c.bf16 %v5835, %v5835
    %v5934 = vpack.c.bf16 %v5838, %v5838
    %v5935 = vpack.c.bf16 %v5844, %v5844
    %v5936 = vpack.c.bf16 %v5847, %v5847
    %v5937 = vpack.c.bf16 %v5850, %v5850
    %v5938 = vpack.c.bf16 %v5856, %v5856
    %v5939 = vpack.c.bf16 %v5859, %v5859
    %v5940 = vpack.c.bf16 %v5862, %v5862
    %v5941 = vpack.c.bf16 %v5873, %v5873
    %v5942 = vpack.c.bf16 %v5875, %v5875
    %v5943 = vpack.c.bf16 %v5877, %v5877
    %v5944 = vpack.c.bf16 %v5883, %v5883
    %v5945 = vpack.c.bf16 %v5886, %v5886
    %v5946 = vpack.c.bf16 %v5889, %v5889
    %v5947 = vpack.c.bf16 %v5895, %v5895
    %v5948 = vpack.c.bf16 %v5898, %v5898
    %v5949 = vpack.c.bf16 %v5901, %v5901
    %v5950 = vpack.c.bf16 %v5907, %v5907
    %v5951 = vpack.c.bf16 %v5910, %v5910
    %v5952 = vpack.c.bf16 %v5913, %v5913
    %v5953 = vld [vmem:[%s5] sm:$0xf]
    %v5954 = vld [vmem:[%s5 + $0x4] sm:$0xf]
    %v5955 = vld [vmem:[%s5 + $0x8] sm:$0xf]
    %v5956 = vld [vmem:[%s5 + $0xc] sm:$0xf]
    %v5957 = vld [vmem:[%s5 + $0x10] sm:$0xf]
    %v5958 = vld [vmem:[%s5 + $0x14] sm:$0xf]
    %v5959 = vld [vmem:[%s5 + $0x18] sm:$0xf]
    %v5960 = vld [vmem:[%s5 + $0x1c] sm:$0xf]
    %v5961 = vld [vmem:[%s5 + $0x20] sm:$0xf]
    %v5962 = vld [vmem:[%s5 + $0x24] sm:$0xf]
    %v5963 = vld [vmem:[%s5 + $0x28] sm:$0xf]
    %v5964 = vld [vmem:[%s5 + $0x2c] sm:$0xf]
    %v5965 = vld [vmem:[%s5 + $0x30] sm:$0xf]
    %v5966 = vld [vmem:[%s5 + $0x34] sm:$0xf]
    %v5967 = vld [vmem:[%s5 + $0x38] sm:$0xf]
    %v5968 = vld [vmem:[%s5 + $0x3c] sm:$0xf]
    %v5969 = vld [vmem:[%s5 + $0x40] sm:$0xf]
    %v5970 = vld [vmem:[%s5 + $0x44] sm:$0xf]
    %v5971 = vld [vmem:[%s5 + $0x48] sm:$0xf]
    %v5972 = vld [vmem:[%s5 + $0x4c] sm:$0xf]
    %v5973 = vld [vmem:[%s5 + $0x50] sm:$0xf]
    %v5974 = vld [vmem:[%s5 + $0x54] sm:$0xf]
    %v5975 = vld [vmem:[%s5 + $0x58] sm:$0xf]
    %v5976 = vld [vmem:[%s5 + $0x5c] sm:$0xf]
    %v5977 = vld [vmem:[%s5 + $0x60] sm:$0xf]
    %v5978 = vld [vmem:[%s5 + $0x64] sm:$0xf]
    %v5979 = vld [vmem:[%s5 + $0x68] sm:$0xf]
    %v5980 = vld [vmem:[%s5 + $0x6c] sm:$0xf]
    %v5981 = vld [vmem:[%s5 + $0x70] sm:$0xf]
    %v5982 = vld [vmem:[%s5 + $0x74] sm:$0xf]
    %v5983 = vld [vmem:[%s5 + $0x78] sm:$0xf]
    %v5984 = vld [vmem:[%s5 + $0x7c] sm:$0xf]
    %v5985 = vld [vmem:[%s5 + $0x80] sm:$0xf]
    %v5986 = vld [vmem:[%s5 + $0x84] sm:$0xf]
    %v5987 = vld [vmem:[%s5 + $0x88] sm:$0xf]
    %v5988 = vld [vmem:[%s5 + $0x8c] sm:$0xf]
    %v5989 = vld [vmem:[%s5 + $0x90] sm:$0xf]
    %v5990 = vld [vmem:[%s5 + $0x94] sm:$0xf]
    %v5991 = vld [vmem:[%s5 + $0x98] sm:$0xf]
    %v5992 = vld [vmem:[%s5 + $0x9c] sm:$0xf]
    %v5993 = vld [vmem:[%s5 + $0xa0] sm:$0xf]
    %v5994 = vld [vmem:[%s5 + $0xa4] sm:$0xf]
    %v5995 = vld [vmem:[%s5 + $0xa8] sm:$0xf]
    %v5996 = vld [vmem:[%s5 + $0xac] sm:$0xf]
    %v5997 = vld [vmem:[%s5 + $0xb0] sm:$0xf]
    %v5998 = vld [vmem:[%s5 + $0xb4] sm:$0xf]
    %v5999 = vld [vmem:[%s5 + $0xb8] sm:$0xf]
    %v6000 = vld [vmem:[%s5 + $0xbc] sm:$0xf]
    %v6001 = vld [vmem:[%s5 + $0xc0] sm:$0xf]
    %v6002 = vld [vmem:[%s5 + $0xc4] sm:$0xf]
    %v6003 = vld [vmem:[%s5 + $0xc8] sm:$0xf]
    %v6004 = vld [vmem:[%s5 + $0xcc] sm:$0xf]
    %v6005 = vld [vmem:[%s5 + $0xd0] sm:$0xf]
    %v6006 = vld [vmem:[%s5 + $0xd4] sm:$0xf]
    %v6007 = vld [vmem:[%s5 + $0xd8] sm:$0xf]
    %v6008 = vld [vmem:[%s5 + $0xdc] sm:$0xf]
    %v6009 = vld [vmem:[%s5 + $0xe0] sm:$0xf]
    %v6010 = vld [vmem:[%s5 + $0xe4] sm:$0xf]
    %v6011 = vld [vmem:[%s5 + $0xe8] sm:$0xf]
    %v6012 = vld [vmem:[%s5 + $0xec] sm:$0xf]
    %v6013 = vld [vmem:[%s5 + $0xf0] sm:$0xf]
    %v6014 = vld [vmem:[%s5 + $0xf4] sm:$0xf]
    %v6015 = vld [vmem:[%s5 + $0xf8] sm:$0xf]
    %v6016 = vld [vmem:[%s5 + $0xfc] sm:$0xf]
    %v6017 = vld [vmem:[%s5 + $0x100] sm:$0xf]
    %v6018 = vld [vmem:[%s5 + $0x104] sm:$0xf]
    %v6019 = vld [vmem:[%s5 + $0x108] sm:$0xf]
    %v6020 = vld [vmem:[%s5 + $0x10c] sm:$0xf]
    %v6021 = vld [vmem:[%s5 + $0x110] sm:$0xf]
    %v6022 = vld [vmem:[%s5 + $0x114] sm:$0xf]
    %v6023 = vld [vmem:[%s5 + $0x118] sm:$0xf]
    %v6024 = vld [vmem:[%s5 + $0x11c] sm:$0xf]
    %v6025 = vld [vmem:[%s5 + $0x120] sm:$0xf]
    %v6026 = vld [vmem:[%s5 + $0x124] sm:$0xf]
    %v6027 = vld [vmem:[%s5 + $0x128] sm:$0xf]
    %v6028 = vld [vmem:[%s5 + $0x12c] sm:$0xf]
    %v6029 = vld [vmem:[%s5 + $0x130] sm:$0xf]
    %v6030 = vld [vmem:[%s5 + $0x134] sm:$0xf]
    %v6031 = vld [vmem:[%s5 + $0x138] sm:$0xf]
    %v6032 = vld [vmem:[%s5 + $0x13c] sm:$0xf]
    %v6033 = vld [vmem:[%s5 + $0x140] sm:$0xf]
    %v6034 = vld [vmem:[%s5 + $0x144] sm:$0xf]
    %v6035 = vld [vmem:[%s5 + $0x148] sm:$0xf]
    %v6036 = vld [vmem:[%s5 + $0x14c] sm:$0xf]
    %v6037 = vld [vmem:[%s5 + $0x150] sm:$0xf]
    %v6038 = vld [vmem:[%s5 + $0x154] sm:$0xf]
    %v6039 = vld [vmem:[%s5 + $0x158] sm:$0xf]
    %v6040 = vld [vmem:[%s5 + $0x15c] sm:$0xf]
    %v6041 = vld [vmem:[%s5 + $0x160] sm:$0xf]
    %v6042 = vld [vmem:[%s5 + $0x164] sm:$0xf]
    %v6043 = vld [vmem:[%s5 + $0x168] sm:$0xf]
    %v6044 = vld [vmem:[%s5 + $0x16c] sm:$0xf]
    %v6045 = vld [vmem:[%s5 + $0x170] sm:$0xf]
    %v6046 = vld [vmem:[%s5 + $0x174] sm:$0xf]
    %v6047 = vld [vmem:[%s5 + $0x178] sm:$0xf]
    %v6048 = vld [vmem:[%s5 + $0x17c] sm:$0xf]
    %v6049 = vld [vmem:[%s5 + $0x180] sm:$0xf]
    %v6050 = vld [vmem:[%s5 + $0x184] sm:$0xf]
    %v6051 = vld [vmem:[%s5 + $0x188] sm:$0xf]
    %v6052 = vld [vmem:[%s5 + $0x18c] sm:$0xf]
    %v6053 = vld [vmem:[%s5 + $0x190] sm:$0xf]
    %v6054 = vld [vmem:[%s5 + $0x194] sm:$0xf]
    %v6055 = vld [vmem:[%s5 + $0x198] sm:$0xf]
    %v6056 = vld [vmem:[%s5 + $0x19c] sm:$0xf]
    %v6057 = vld [vmem:[%s5 + $0x1a0] sm:$0xf]
    %v6058 = vld [vmem:[%s5 + $0x1a4] sm:$0xf]
    %v6059 = vld [vmem:[%s5 + $0x1a8] sm:$0xf]
    %v6060 = vld [vmem:[%s5 + $0x1ac] sm:$0xf]
    %v6061 = vld [vmem:[%s5 + $0x1b0] sm:$0xf]
    %v6062 = vld [vmem:[%s5 + $0x1b4] sm:$0xf]
    %v6063 = vld [vmem:[%s5 + $0x1b8] sm:$0xf]
    %v6064 = vld [vmem:[%s5 + $0x1bc] sm:$0xf]
    %v6065 = vld [vmem:[%s5 + $0x1c0] sm:$0xf]
    %v6066 = vld [vmem:[%s5 + $0x1c4] sm:$0xf]
    %v6067 = vld [vmem:[%s5 + $0x1c8] sm:$0xf]
    %v6068 = vld [vmem:[%s5 + $0x1cc] sm:$0xf]
    %v6069 = vld [vmem:[%s5 + $0x1d0] sm:$0xf]
    %v6070 = vld [vmem:[%s5 + $0x1d4] sm:$0xf]
    %v6071 = vld [vmem:[%s5 + $0x1d8] sm:$0xf]
    %v6072 = vld [vmem:[%s5 + $0x1dc] sm:$0xf]
    %v6073 = vld [vmem:[%s5 + $0x1e0] sm:$0xf]
    %v6074 = vld [vmem:[%s5 + $0x1e4] sm:$0xf]
    %v6075 = vld [vmem:[%s5 + $0x1e8] sm:$0xf]
    %v6076 = vld [vmem:[%s5 + $0x1ec] sm:$0xf]
    %v6077 = vld [vmem:[%s5 + $0x1f0] sm:$0xf]
    %v6078 = vld [vmem:[%s5 + $0x1f4] sm:$0xf]
    %v6079 = vld [vmem:[%s5 + $0x1f8] sm:$0xf]
    %v6080 = vld [vmem:[%s5 + $0x1fc] sm:$0xf]
    %v6081 = vld [vmem:[%s5 + $0x200] sm:$0xf]
    %v6082 = vld [vmem:[%s5 + $0x204] sm:$0xf]
    %v6083 = vld [vmem:[%s5 + $0x208] sm:$0xf]
    %v6084 = vld [vmem:[%s5 + $0x20c] sm:$0xf]
    %v6085 = vld [vmem:[%s5 + $0x210] sm:$0xf]
    %v6086 = vld [vmem:[%s5 + $0x214] sm:$0xf]
    %v6087 = vld [vmem:[%s5 + $0x218] sm:$0xf]
    %v6088 = vld [vmem:[%s5 + $0x21c] sm:$0xf]
    %v6089 = vld [vmem:[%s5 + $0x220] sm:$0xf]
    %v6090 = vld [vmem:[%s5 + $0x224] sm:$0xf]
    %v6091 = vld [vmem:[%s5 + $0x228] sm:$0xf]
    %v6092 = vld [vmem:[%s5 + $0x22c] sm:$0xf]
    %v6093 = vld [vmem:[%s5 + $0x230] sm:$0xf]
    %v6094 = vld [vmem:[%s5 + $0x234] sm:$0xf]
    %v6095 = vld [vmem:[%s5 + $0x238] sm:$0xf]
    %v6096 = vld [vmem:[%s5 + $0x23c] sm:$0xf]
    %v6097 = vld [vmem:[%s5 + $0x240] sm:$0xf]
    %v6098 = vld [vmem:[%s5 + $0x244] sm:$0xf]
    %v6099 = vld [vmem:[%s5 + $0x248] sm:$0xf]
    %v6100 = vld [vmem:[%s5 + $0x24c] sm:$0xf]
    %v6101 = vld [vmem:[%s5 + $0x250] sm:$0xf]
    %v6102 = vld [vmem:[%s5 + $0x254] sm:$0xf]
    %v6103 = vld [vmem:[%s5 + $0x258] sm:$0xf]
    %v6104 = vld [vmem:[%s5 + $0x25c] sm:$0xf]
    %v6105 = vld [vmem:[%s5 + $0x260] sm:$0xf]
    %v6106 = vld [vmem:[%s5 + $0x264] sm:$0xf]
    %v6107 = vld [vmem:[%s5 + $0x268] sm:$0xf]
    %v6108 = vld [vmem:[%s5 + $0x26c] sm:$0xf]
    %v6109 = vld [vmem:[%s5 + $0x270] sm:$0xf]
    %v6110 = vld [vmem:[%s5 + $0x274] sm:$0xf]
    %v6111 = vld [vmem:[%s5 + $0x278] sm:$0xf]
    %v6112 = vld [vmem:[%s5 + $0x27c] sm:$0xf]
    %v6113 = vld [vmem:[%s5 + $0x280] sm:$0xf]
    %v6114 = vld [vmem:[%s5 + $0x284] sm:$0xf]
    %v6115 = vld [vmem:[%s5 + $0x288] sm:$0xf]
    %v6116 = vld [vmem:[%s5 + $0x28c] sm:$0xf]
    %v6117 = vld [vmem:[%s5 + $0x290] sm:$0xf]
    %v6118 = vld [vmem:[%s5 + $0x294] sm:$0xf]
    %v6119 = vld [vmem:[%s5 + $0x298] sm:$0xf]
    %v6120 = vld [vmem:[%s5 + $0x29c] sm:$0xf]
    %v6121 = vld [vmem:[%s5 + $0x2a0] sm:$0xf]
    %v6122 = vld [vmem:[%s5 + $0x2a4] sm:$0xf]
    %v6123 = vld [vmem:[%s5 + $0x2a8] sm:$0xf]
    %v6124 = vld [vmem:[%s5 + $0x2ac] sm:$0xf]
    %v6125 = vld [vmem:[%s5 + $0x2b0] sm:$0xf]
    %v6126 = vld [vmem:[%s5 + $0x2b4] sm:$0xf]
    %v6127 = vld [vmem:[%s5 + $0x2b8] sm:$0xf]
    %v6128 = vld [vmem:[%s5 + $0x2bc] sm:$0xf]
    %v6129 = vld [vmem:[%s5 + $0x2c0] sm:$0xf]
    %v6130 = vld [vmem:[%s5 + $0x2c4] sm:$0xf]
    %v6131 = vld [vmem:[%s5 + $0x2c8] sm:$0xf]
    %v6132 = vld [vmem:[%s5 + $0x2cc] sm:$0xf]
    %v6133 = vld [vmem:[%s5 + $0x2d0] sm:$0xf]
    %v6134 = vld [vmem:[%s5 + $0x2d4] sm:$0xf]
    %v6135 = vld [vmem:[%s5 + $0x2d8] sm:$0xf]
    %v6136 = vld [vmem:[%s5 + $0x2dc] sm:$0xf]
    %v6137 = vld [vmem:[%s5 + $0x2e0] sm:$0xf]
    %v6138 = vld [vmem:[%s5 + $0x2e4] sm:$0xf]
    %v6139 = vld [vmem:[%s5 + $0x2e8] sm:$0xf]
    %v6140 = vld [vmem:[%s5 + $0x2ec] sm:$0xf]
    %v6141 = vld [vmem:[%s5 + $0x2f0] sm:$0xf]
    %v6142 = vld [vmem:[%s5 + $0x2f4] sm:$0xf]
    %v6143 = vld [vmem:[%s5 + $0x2f8] sm:$0xf]
    %v6144 = vld [vmem:[%s5 + $0x2fc] sm:$0xf]
    %v6145 = vld [vmem:[%s5 + $0x300] sm:$0xf]
    %v6146 = vld [vmem:[%s5 + $0x304] sm:$0xf]
    %v6147 = vld [vmem:[%s5 + $0x308] sm:$0xf]
    %v6148 = vld [vmem:[%s5 + $0x30c] sm:$0xf]
    %v6149 = vld [vmem:[%s5 + $0x310] sm:$0xf]
    %v6150 = vld [vmem:[%s5 + $0x314] sm:$0xf]
    %v6151 = vld [vmem:[%s5 + $0x318] sm:$0xf]
    %v6152 = vld [vmem:[%s5 + $0x31c] sm:$0xf]
    %v6153 = vld [vmem:[%s5 + $0x320] sm:$0xf]
    %v6154 = vld [vmem:[%s5 + $0x324] sm:$0xf]
    %v6155 = vld [vmem:[%s5 + $0x328] sm:$0xf]
    %v6156 = vld [vmem:[%s5 + $0x32c] sm:$0xf]
    %v6157 = vld [vmem:[%s5 + $0x330] sm:$0xf]
    %v6158 = vld [vmem:[%s5 + $0x334] sm:$0xf]
    %v6159 = vld [vmem:[%s5 + $0x338] sm:$0xf]
    %v6160 = vld [vmem:[%s5 + $0x33c] sm:$0xf]
    %v6161 = vld [vmem:[%s5 + $0x340] sm:$0xf]
    %v6162 = vld [vmem:[%s5 + $0x344] sm:$0xf]
    %v6163 = vld [vmem:[%s5 + $0x348] sm:$0xf]
    %v6164 = vld [vmem:[%s5 + $0x34c] sm:$0xf]
    %v6165 = vld [vmem:[%s5 + $0x350] sm:$0xf]
    %v6166 = vld [vmem:[%s5 + $0x354] sm:$0xf]
    %v6167 = vld [vmem:[%s5 + $0x358] sm:$0xf]
    %v6168 = vld [vmem:[%s5 + $0x35c] sm:$0xf]
    %v6169 = vld [vmem:[%s5 + $0x360] sm:$0xf]
    %v6170 = vld [vmem:[%s5 + $0x364] sm:$0xf]
    %v6171 = vld [vmem:[%s5 + $0x368] sm:$0xf]
    %v6172 = vld [vmem:[%s5 + $0x36c] sm:$0xf]
    %v6173 = vld [vmem:[%s5 + $0x370] sm:$0xf]
    %v6174 = vld [vmem:[%s5 + $0x374] sm:$0xf]
    %v6175 = vld [vmem:[%s5 + $0x378] sm:$0xf]
    %v6176 = vld [vmem:[%s5 + $0x37c] sm:$0xf]
    %v6177 = vld [vmem:[%s5 + $0x380] sm:$0xf]
    %v6178 = vld [vmem:[%s5 + $0x384] sm:$0xf]
    %v6179 = vld [vmem:[%s5 + $0x388] sm:$0xf]
    %v6180 = vld [vmem:[%s5 + $0x38c] sm:$0xf]
    %v6181 = vld [vmem:[%s5 + $0x390] sm:$0xf]
    %v6182 = vld [vmem:[%s5 + $0x394] sm:$0xf]
    %v6183 = vld [vmem:[%s5 + $0x398] sm:$0xf]
    %v6184 = vld [vmem:[%s5 + $0x39c] sm:$0xf]
    %v6185 = vld [vmem:[%s5 + $0x3a0] sm:$0xf]
    %v6186 = vld [vmem:[%s5 + $0x3a4] sm:$0xf]
    %v6187 = vld [vmem:[%s5 + $0x3a8] sm:$0xf]
    %v6188 = vld [vmem:[%s5 + $0x3ac] sm:$0xf]
    %v6189 = vld [vmem:[%s5 + $0x3b0] sm:$0xf]
    %v6190 = vld [vmem:[%s5 + $0x3b4] sm:$0xf]
    %v6191 = vld [vmem:[%s5 + $0x3b8] sm:$0xf]
    %v6192 = vld [vmem:[%s5 + $0x3bc] sm:$0xf]
    %v6193 = vld [vmem:[%s5 + $0x3c0] sm:$0xf]
    %v6194 = vld [vmem:[%s5 + $0x3c4] sm:$0xf]
    %v6195 = vld [vmem:[%s5 + $0x3c8] sm:$0xf]
    %v6196 = vld [vmem:[%s5 + $0x3cc] sm:$0xf]
    %v6197 = vld [vmem:[%s5 + $0x3d0] sm:$0xf]
    %v6198 = vld [vmem:[%s5 + $0x3d4] sm:$0xf]
    %v6199 = vld [vmem:[%s5 + $0x3d8] sm:$0xf]
    %v6200 = vld [vmem:[%s5 + $0x3dc] sm:$0xf]
    %v6201 = vld [vmem:[%s5 + $0x3e0] sm:$0xf]
    %v6202 = vld [vmem:[%s5 + $0x3e4] sm:$0xf]
    %v6203 = vld [vmem:[%s5 + $0x3e8] sm:$0xf]
    %v6204 = vld [vmem:[%s5 + $0x3ec] sm:$0xf]
    %v6205 = vld [vmem:[%s5 + $0x3f0] sm:$0xf]
    %v6206 = vld [vmem:[%s5 + $0x3f4] sm:$0xf]
    %v6207 = vld [vmem:[%s5 + $0x3f8] sm:$0xf]
    %v6208 = vld [vmem:[%s5 + $0x3fc] sm:$0xf]
    %v6209 = vld [vmem:[%s5 + $0x400] sm:$0xf]
    %v6210 = vld [vmem:[%s5 + $0x404] sm:$0xf]
    %v6211 = vld [vmem:[%s5 + $0x408] sm:$0xf]
    %v6212 = vld [vmem:[%s5 + $0x40c] sm:$0xf]
    %v6213 = vld [vmem:[%s5 + $0x410] sm:$0xf]
    %v6214 = vld [vmem:[%s5 + $0x414] sm:$0xf]
    %v6215 = vld [vmem:[%s5 + $0x418] sm:$0xf]
    %v6216 = vld [vmem:[%s5 + $0x41c] sm:$0xf]
    %v6217 = vld [vmem:[%s5 + $0x420] sm:$0xf]
    %v6218 = vld [vmem:[%s5 + $0x424] sm:$0xf]
    %v6219 = vld [vmem:[%s5 + $0x428] sm:$0xf]
    %v6220 = vld [vmem:[%s5 + $0x42c] sm:$0xf]
    %v6221 = vld [vmem:[%s5 + $0x430] sm:$0xf]
    %v6222 = vld [vmem:[%s5 + $0x434] sm:$0xf]
    %v6223 = vld [vmem:[%s5 + $0x438] sm:$0xf]
    %v6224 = vld [vmem:[%s5 + $0x43c] sm:$0xf]
    %v6225 = vld [vmem:[%s5 + $0x440] sm:$0xf]
    %v6226 = vld [vmem:[%s5 + $0x444] sm:$0xf]
    %v6227 = vld [vmem:[%s5 + $0x448] sm:$0xf]
    %v6228 = vld [vmem:[%s5 + $0x44c] sm:$0xf]
    %v6229 = vld [vmem:[%s5 + $0x450] sm:$0xf]
    %v6230 = vld [vmem:[%s5 + $0x454] sm:$0xf]
    %v6231 = vld [vmem:[%s5 + $0x458] sm:$0xf]
    %v6232 = vld [vmem:[%s5 + $0x45c] sm:$0xf]
    %v6233 = vld [vmem:[%s5 + $0x460] sm:$0xf]
    %v6234 = vld [vmem:[%s5 + $0x464] sm:$0xf]
    %v6235 = vld [vmem:[%s5 + $0x468] sm:$0xf]
    %v6236 = vld [vmem:[%s5 + $0x46c] sm:$0xf]
    %v6237 = vld [vmem:[%s5 + $0x470] sm:$0xf]
    %v6238 = vld [vmem:[%s5 + $0x474] sm:$0xf]
    %v6239 = vld [vmem:[%s5 + $0x478] sm:$0xf]
    %v6240 = vld [vmem:[%s5 + $0x47c] sm:$0xf]
    %v6241 = vld [vmem:[%s5 + $0x480] sm:$0xf]
    %v6242 = vld [vmem:[%s5 + $0x484] sm:$0xf]
    %v6243 = vld [vmem:[%s5 + $0x488] sm:$0xf]
    %v6244 = vld [vmem:[%s5 + $0x48c] sm:$0xf]
    %v6245 = vld [vmem:[%s5 + $0x490] sm:$0xf]
    %v6246 = vld [vmem:[%s5 + $0x494] sm:$0xf]
    %v6247 = vld [vmem:[%s5 + $0x498] sm:$0xf]
    %v6248 = vld [vmem:[%s5 + $0x49c] sm:$0xf]
    %v6249 = vld [vmem:[%s5 + $0x4a0] sm:$0xf]
    %v6250 = vld [vmem:[%s5 + $0x4a4] sm:$0xf]
    %v6251 = vld [vmem:[%s5 + $0x4a8] sm:$0xf]
    %v6252 = vld [vmem:[%s5 + $0x4ac] sm:$0xf]
    %v6253 = vld [vmem:[%s5 + $0x4b0] sm:$0xf]
    %v6254 = vld [vmem:[%s5 + $0x4b4] sm:$0xf]
    %v6255 = vld [vmem:[%s5 + $0x4b8] sm:$0xf]
    %v6256 = vld [vmem:[%s5 + $0x4bc] sm:$0xf]
    %v6257 = vld [vmem:[%s5 + $0x4c0] sm:$0xf]
    %v6258 = vld [vmem:[%s5 + $0x4c4] sm:$0xf]
    %v6259 = vld [vmem:[%s5 + $0x4c8] sm:$0xf]
    %v6260 = vld [vmem:[%s5 + $0x4cc] sm:$0xf]
    %v6261 = vld [vmem:[%s5 + $0x4d0] sm:$0xf]
    %v6262 = vld [vmem:[%s5 + $0x4d4] sm:$0xf]
    %v6263 = vld [vmem:[%s5 + $0x4d8] sm:$0xf]
    %v6264 = vld [vmem:[%s5 + $0x4dc] sm:$0xf]
    %v6265 = vld [vmem:[%s5 + $0x4e0] sm:$0xf]
    %v6266 = vld [vmem:[%s5 + $0x4e4] sm:$0xf]
    %v6267 = vld [vmem:[%s5 + $0x4e8] sm:$0xf]
    %v6268 = vld [vmem:[%s5 + $0x4ec] sm:$0xf]
    %v6269 = vld [vmem:[%s5 + $0x4f0] sm:$0xf]
    %v6270 = vld [vmem:[%s5 + $0x4f4] sm:$0xf]
    %v6271 = vld [vmem:[%s5 + $0x4f8] sm:$0xf]
    %v6272 = vld [vmem:[%s5 + $0x4fc] sm:$0xf]
    %v6273 = vld [vmem:[%s5 + $0x500] sm:$0xf]
    %v6274 = vld [vmem:[%s5 + $0x504] sm:$0xf]
    %v6275 = vld [vmem:[%s5 + $0x508] sm:$0xf]
    %v6276 = vld [vmem:[%s5 + $0x50c] sm:$0xf]
    %v6277 = vld [vmem:[%s5 + $0x510] sm:$0xf]
    %v6278 = vld [vmem:[%s5 + $0x514] sm:$0xf]
    %v6279 = vld [vmem:[%s5 + $0x518] sm:$0xf]
    %v6280 = vld [vmem:[%s5 + $0x51c] sm:$0xf]
    %v6281 = vld [vmem:[%s5 + $0x520] sm:$0xf]
    %v6282 = vld [vmem:[%s5 + $0x524] sm:$0xf]
    %v6283 = vld [vmem:[%s5 + $0x528] sm:$0xf]
    %v6284 = vld [vmem:[%s5 + $0x52c] sm:$0xf]
    %v6285 = vld [vmem:[%s5 + $0x530] sm:$0xf]
    %v6286 = vld [vmem:[%s5 + $0x534] sm:$0xf]
    %v6287 = vld [vmem:[%s5 + $0x538] sm:$0xf]
    %v6288 = vld [vmem:[%s5 + $0x53c] sm:$0xf]
    %v6289 = vld [vmem:[%s5 + $0x540] sm:$0xf]
    %v6290 = vld [vmem:[%s5 + $0x544] sm:$0xf]
    %v6291 = vld [vmem:[%s5 + $0x548] sm:$0xf]
    %v6292 = vld [vmem:[%s5 + $0x54c] sm:$0xf]
    %v6293 = vld [vmem:[%s5 + $0x550] sm:$0xf]
    %v6294 = vld [vmem:[%s5 + $0x554] sm:$0xf]
    %v6295 = vld [vmem:[%s5 + $0x558] sm:$0xf]
    %v6296 = vld [vmem:[%s5 + $0x55c] sm:$0xf]
    %v6297 = vld [vmem:[%s5 + $0x560] sm:$0xf]
    %v6298 = vld [vmem:[%s5 + $0x564] sm:$0xf]
    %v6299 = vld [vmem:[%s5 + $0x568] sm:$0xf]
    %v6300 = vld [vmem:[%s5 + $0x56c] sm:$0xf]
    %v6301 = vld [vmem:[%s5 + $0x570] sm:$0xf]
    %v6302 = vld [vmem:[%s5 + $0x574] sm:$0xf]
    %v6303 = vld [vmem:[%s5 + $0x578] sm:$0xf]
    %v6304 = vld [vmem:[%s5 + $0x57c] sm:$0xf]
    %v6305 = vld [vmem:[%s5 + $0x580] sm:$0xf]
    %v6306 = vld [vmem:[%s5 + $0x584] sm:$0xf]
    %v6307 = vld [vmem:[%s5 + $0x588] sm:$0xf]
    %v6308 = vld [vmem:[%s5 + $0x58c] sm:$0xf]
    %v6309 = vld [vmem:[%s5 + $0x590] sm:$0xf]
    %v6310 = vld [vmem:[%s5 + $0x594] sm:$0xf]
    %v6311 = vld [vmem:[%s5 + $0x598] sm:$0xf]
    %v6312 = vld [vmem:[%s5 + $0x59c] sm:$0xf]
    %v6313 = vld [vmem:[%s5 + $0x5a0] sm:$0xf]
    %v6314 = vld [vmem:[%s5 + $0x5a4] sm:$0xf]
    %v6315 = vld [vmem:[%s5 + $0x5a8] sm:$0xf]
    %v6316 = vld [vmem:[%s5 + $0x5ac] sm:$0xf]
    %v6317 = vld [vmem:[%s5 + $0x5b0] sm:$0xf]
    %v6318 = vld [vmem:[%s5 + $0x5b4] sm:$0xf]
    %v6319 = vld [vmem:[%s5 + $0x5b8] sm:$0xf]
    %v6320 = vld [vmem:[%s5 + $0x5bc] sm:$0xf]
    %v6321 = vld [vmem:[%s5 + $0x5c0] sm:$0xf]
    %v6322 = vld [vmem:[%s5 + $0x5c4] sm:$0xf]
    %v6323 = vld [vmem:[%s5 + $0x5c8] sm:$0xf]
    %v6324 = vld [vmem:[%s5 + $0x5cc] sm:$0xf]
    %v6325 = vld [vmem:[%s5 + $0x5d0] sm:$0xf]
    %v6326 = vld [vmem:[%s5 + $0x5d4] sm:$0xf]
    %v6327 = vld [vmem:[%s5 + $0x5d8] sm:$0xf]
    %v6328 = vld [vmem:[%s5 + $0x5dc] sm:$0xf]
    %v6329 = vld [vmem:[%s5 + $0x5e0] sm:$0xf]
    %v6330 = vld [vmem:[%s5 + $0x5e4] sm:$0xf]
    %v6331 = vld [vmem:[%s5 + $0x5e8] sm:$0xf]
    %v6332 = vld [vmem:[%s5 + $0x5ec] sm:$0xf]
    %v6333 = vld [vmem:[%s5 + $0x5f0] sm:$0xf]
    %v6334 = vld [vmem:[%s5 + $0x5f4] sm:$0xf]
    %v6335 = vld [vmem:[%s5 + $0x5f8] sm:$0xf]
    %v6336 = vld [vmem:[%s5 + $0x5fc] sm:$0xf]
    %v6337 = vld [vmem:[%s5 + $0x600] sm:$0xf]
    %v6338 = vld [vmem:[%s5 + $0x604] sm:$0xf]
    %v6339 = vld [vmem:[%s5 + $0x608] sm:$0xf]
    %v6340 = vld [vmem:[%s5 + $0x60c] sm:$0xf]
    %v6341 = vld [vmem:[%s5 + $0x610] sm:$0xf]
    %v6342 = vld [vmem:[%s5 + $0x614] sm:$0xf]
    %v6343 = vld [vmem:[%s5 + $0x618] sm:$0xf]
    %v6344 = vld [vmem:[%s5 + $0x61c] sm:$0xf]
    %v6345 = vld [vmem:[%s5 + $0x620] sm:$0xf]
    %v6346 = vld [vmem:[%s5 + $0x624] sm:$0xf]
    %v6347 = vld [vmem:[%s5 + $0x628] sm:$0xf]
    %v6348 = vld [vmem:[%s5 + $0x62c] sm:$0xf]
    %v6349 = vld [vmem:[%s5 + $0x630] sm:$0xf]
    %v6350 = vld [vmem:[%s5 + $0x634] sm:$0xf]
    %v6351 = vld [vmem:[%s5 + $0x638] sm:$0xf]
    %v6352 = vld [vmem:[%s5 + $0x63c] sm:$0xf]
    %v6353 = vld [vmem:[%s5 + $0x640] sm:$0xf]
    %v6354 = vld [vmem:[%s5 + $0x644] sm:$0xf]
    %v6355 = vld [vmem:[%s5 + $0x648] sm:$0xf]
    %v6356 = vld [vmem:[%s5 + $0x64c] sm:$0xf]
    %v6357 = vld [vmem:[%s5 + $0x650] sm:$0xf]
    %v6358 = vld [vmem:[%s5 + $0x654] sm:$0xf]
    %v6359 = vld [vmem:[%s5 + $0x658] sm:$0xf]
    %v6360 = vld [vmem:[%s5 + $0x65c] sm:$0xf]
    %v6361 = vld [vmem:[%s5 + $0x660] sm:$0xf]
    %v6362 = vld [vmem:[%s5 + $0x664] sm:$0xf]
    %v6363 = vld [vmem:[%s5 + $0x668] sm:$0xf]
    %v6364 = vld [vmem:[%s5 + $0x66c] sm:$0xf]
    %v6365 = vld [vmem:[%s5 + $0x670] sm:$0xf]
    %v6366 = vld [vmem:[%s5 + $0x674] sm:$0xf]
    %v6367 = vld [vmem:[%s5 + $0x678] sm:$0xf]
    %v6368 = vld [vmem:[%s5 + $0x67c] sm:$0xf]
    %v6369 = vld [vmem:[%s5 + $0x680] sm:$0xf]
    %v6370 = vld [vmem:[%s5 + $0x684] sm:$0xf]
    %v6371 = vld [vmem:[%s5 + $0x688] sm:$0xf]
    %v6372 = vld [vmem:[%s5 + $0x68c] sm:$0xf]
    %v6373 = vld [vmem:[%s5 + $0x690] sm:$0xf]
    %v6374 = vld [vmem:[%s5 + $0x694] sm:$0xf]
    %v6375 = vld [vmem:[%s5 + $0x698] sm:$0xf]
    %v6376 = vld [vmem:[%s5 + $0x69c] sm:$0xf]
    %v6377 = vld [vmem:[%s5 + $0x6a0] sm:$0xf]
    %v6378 = vld [vmem:[%s5 + $0x6a4] sm:$0xf]
    %v6379 = vld [vmem:[%s5 + $0x6a8] sm:$0xf]
    %v6380 = vld [vmem:[%s5 + $0x6ac] sm:$0xf]
    %v6381 = vld [vmem:[%s5 + $0x6b0] sm:$0xf]
    %v6382 = vld [vmem:[%s5 + $0x6b4] sm:$0xf]
    %v6383 = vld [vmem:[%s5 + $0x6b8] sm:$0xf]
    %v6384 = vld [vmem:[%s5 + $0x6bc] sm:$0xf]
    %v6385 = vld [vmem:[%s5 + $0x6c0] sm:$0xf]
    %v6386 = vld [vmem:[%s5 + $0x6c4] sm:$0xf]
    %v6387 = vld [vmem:[%s5 + $0x6c8] sm:$0xf]
    %v6388 = vld [vmem:[%s5 + $0x6cc] sm:$0xf]
    %v6389 = vld [vmem:[%s5 + $0x6d0] sm:$0xf]
    %v6390 = vld [vmem:[%s5 + $0x6d4] sm:$0xf]
    %v6391 = vld [vmem:[%s5 + $0x6d8] sm:$0xf]
    %v6392 = vld [vmem:[%s5 + $0x6dc] sm:$0xf]
    %v6393 = vld [vmem:[%s5 + $0x6e0] sm:$0xf]
    %v6394 = vld [vmem:[%s5 + $0x6e4] sm:$0xf]
    %v6395 = vld [vmem:[%s5 + $0x6e8] sm:$0xf]
    %v6396 = vld [vmem:[%s5 + $0x6ec] sm:$0xf]
    %v6397 = vld [vmem:[%s5 + $0x6f0] sm:$0xf]
    %v6398 = vld [vmem:[%s5 + $0x6f4] sm:$0xf]
    %v6399 = vld [vmem:[%s5 + $0x6f8] sm:$0xf]
    %v6400 = vld [vmem:[%s5 + $0x6fc] sm:$0xf]
    %v6401 = vld [vmem:[%s5 + $0x700] sm:$0xf]
    %v6402 = vld [vmem:[%s5 + $0x704] sm:$0xf]
    %v6403 = vld [vmem:[%s5 + $0x708] sm:$0xf]
    %v6404 = vld [vmem:[%s5 + $0x70c] sm:$0xf]
    %v6405 = vld [vmem:[%s5 + $0x710] sm:$0xf]
    %v6406 = vld [vmem:[%s5 + $0x714] sm:$0xf]
    %v6407 = vld [vmem:[%s5 + $0x718] sm:$0xf]
    %v6408 = vld [vmem:[%s5 + $0x71c] sm:$0xf]
    %v6409 = vld [vmem:[%s5 + $0x720] sm:$0xf]
    %v6410 = vld [vmem:[%s5 + $0x724] sm:$0xf]
    %v6411 = vld [vmem:[%s5 + $0x728] sm:$0xf]
    %v6412 = vld [vmem:[%s5 + $0x72c] sm:$0xf]
    %v6413 = vld [vmem:[%s5 + $0x730] sm:$0xf]
    %v6414 = vld [vmem:[%s5 + $0x734] sm:$0xf]
    %v6415 = vld [vmem:[%s5 + $0x738] sm:$0xf]
    %v6416 = vld [vmem:[%s5 + $0x73c] sm:$0xf]
    %v6417 = vld [vmem:[%s5 + $0x740] sm:$0xf]
    %v6418 = vld [vmem:[%s5 + $0x744] sm:$0xf]
    %v6419 = vld [vmem:[%s5 + $0x748] sm:$0xf]
    %v6420 = vld [vmem:[%s5 + $0x74c] sm:$0xf]
    %v6421 = vld [vmem:[%s5 + $0x750] sm:$0xf]
    %v6422 = vld [vmem:[%s5 + $0x754] sm:$0xf]
    %v6423 = vld [vmem:[%s5 + $0x758] sm:$0xf]
    %v6424 = vld [vmem:[%s5 + $0x75c] sm:$0xf]
    %v6425 = vld [vmem:[%s5 + $0x760] sm:$0xf]
    %v6426 = vld [vmem:[%s5 + $0x764] sm:$0xf]
    %v6427 = vld [vmem:[%s5 + $0x768] sm:$0xf]
    %v6428 = vld [vmem:[%s5 + $0x76c] sm:$0xf]
    %v6429 = vld [vmem:[%s5 + $0x770] sm:$0xf]
    %v6430 = vld [vmem:[%s5 + $0x774] sm:$0xf]
    %v6431 = vld [vmem:[%s5 + $0x778] sm:$0xf]
    %v6432 = vld [vmem:[%s5 + $0x77c] sm:$0xf]
    %v6433 = vld [vmem:[%s5 + $0x780] sm:$0xf]
    %v6434 = vld [vmem:[%s5 + $0x784] sm:$0xf]
    %v6435 = vld [vmem:[%s5 + $0x788] sm:$0xf]
    %v6436 = vld [vmem:[%s5 + $0x78c] sm:$0xf]
    %v6437 = vld [vmem:[%s5 + $0x790] sm:$0xf]
    %v6438 = vld [vmem:[%s5 + $0x794] sm:$0xf]
    %v6439 = vld [vmem:[%s5 + $0x798] sm:$0xf]
    %v6440 = vld [vmem:[%s5 + $0x79c] sm:$0xf]
    %v6441 = vld [vmem:[%s5 + $0x7a0] sm:$0xf]
    %v6442 = vld [vmem:[%s5 + $0x7a4] sm:$0xf]
    %v6443 = vld [vmem:[%s5 + $0x7a8] sm:$0xf]
    %v6444 = vld [vmem:[%s5 + $0x7ac] sm:$0xf]
    %v6445 = vld [vmem:[%s5 + $0x7b0] sm:$0xf]
    %v6446 = vld [vmem:[%s5 + $0x7b4] sm:$0xf]
    %v6447 = vld [vmem:[%s5 + $0x7b8] sm:$0xf]
    %v6448 = vld [vmem:[%s5 + $0x7bc] sm:$0xf]
    %v6449 = vld [vmem:[%s5 + $0x7c0] sm:$0xf]
    %v6450 = vld [vmem:[%s5 + $0x7c4] sm:$0xf]
    %v6451 = vld [vmem:[%s5 + $0x7c8] sm:$0xf]
    %v6452 = vld [vmem:[%s5 + $0x7cc] sm:$0xf]
    %v6453 = vld [vmem:[%s5 + $0x7d0] sm:$0xf]
    %v6454 = vld [vmem:[%s5 + $0x7d4] sm:$0xf]
    %v6455 = vld [vmem:[%s5 + $0x7d8] sm:$0xf]
    %v6456 = vld [vmem:[%s5 + $0x7dc] sm:$0xf]
    %v6457 = vld [vmem:[%s5 + $0x7e0] sm:$0xf]
    %v6458 = vld [vmem:[%s5 + $0x7e4] sm:$0xf]
    %v6459 = vld [vmem:[%s5 + $0x7e8] sm:$0xf]
    %v6460 = vld [vmem:[%s5 + $0x7ec] sm:$0xf]
    %v6461 = vld [vmem:[%s5 + $0x7f0] sm:$0xf]
    %v6462 = vld [vmem:[%s5 + $0x7f4] sm:$0xf]
    %v6463 = vld [vmem:[%s5 + $0x7f8] sm:$0xf]
    %v6464 = vld [vmem:[%s5 + $0x7fc] sm:$0xf]
    %v6465 = vld [vmem:[%s5 + $0x800] sm:$0xf]
    %v6466 = vld [vmem:[%s5 + $0x804] sm:$0xf]
    %v6467 = vld [vmem:[%s5 + $0x808] sm:$0xf]
    %v6468 = vld [vmem:[%s5 + $0x80c] sm:$0xf]
    %v6469 = vld [vmem:[%s5 + $0x810] sm:$0xf]
    %v6470 = vld [vmem:[%s5 + $0x814] sm:$0xf]
    %v6471 = vld [vmem:[%s5 + $0x818] sm:$0xf]
    %v6472 = vld [vmem:[%s5 + $0x81c] sm:$0xf]
    %v6473 = vld [vmem:[%s5 + $0x820] sm:$0xf]
    %v6474 = vld [vmem:[%s5 + $0x824] sm:$0xf]
    %v6475 = vld [vmem:[%s5 + $0x828] sm:$0xf]
    %v6476 = vld [vmem:[%s5 + $0x82c] sm:$0xf]
    %v6477 = vld [vmem:[%s5 + $0x830] sm:$0xf]
    %v6478 = vld [vmem:[%s5 + $0x834] sm:$0xf]
    %v6479 = vld [vmem:[%s5 + $0x838] sm:$0xf]
    %v6480 = vld [vmem:[%s5 + $0x83c] sm:$0xf]
    %v6481 = vld [vmem:[%s5 + $0x840] sm:$0xf]
    %v6482 = vld [vmem:[%s5 + $0x844] sm:$0xf]
    %v6483 = vld [vmem:[%s5 + $0x848] sm:$0xf]
    %v6484 = vld [vmem:[%s5 + $0x84c] sm:$0xf]
    %v6485 = vld [vmem:[%s5 + $0x850] sm:$0xf]
    %v6486 = vld [vmem:[%s5 + $0x854] sm:$0xf]
    %v6487 = vld [vmem:[%s5 + $0x858] sm:$0xf]
    %v6488 = vld [vmem:[%s5 + $0x85c] sm:$0xf]
    %v6489 = vld [vmem:[%s5 + $0x860] sm:$0xf]
    %v6490 = vld [vmem:[%s5 + $0x864] sm:$0xf]
    %v6491 = vld [vmem:[%s5 + $0x868] sm:$0xf]
    %v6492 = vld [vmem:[%s5 + $0x86c] sm:$0xf]
    %v6493 = vld [vmem:[%s5 + $0x870] sm:$0xf]
    %v6494 = vld [vmem:[%s5 + $0x874] sm:$0xf]
    %v6495 = vld [vmem:[%s5 + $0x878] sm:$0xf]
    %v6496 = vld [vmem:[%s5 + $0x87c] sm:$0xf]
    %v6497 = vld [vmem:[%s5 + $0x880] sm:$0xf]
    %v6498 = vld [vmem:[%s5 + $0x884] sm:$0xf]
    %v6499 = vld [vmem:[%s5 + $0x888] sm:$0xf]
    %v6500 = vld [vmem:[%s5 + $0x88c] sm:$0xf]
    %v6501 = vld [vmem:[%s5 + $0x890] sm:$0xf]
    %v6502 = vld [vmem:[%s5 + $0x894] sm:$0xf]
    %v6503 = vld [vmem:[%s5 + $0x898] sm:$0xf]
    %v6504 = vld [vmem:[%s5 + $0x89c] sm:$0xf]
    %v6505 = vld [vmem:[%s5 + $0x8a0] sm:$0xf]
    %v6506 = vld [vmem:[%s5 + $0x8a4] sm:$0xf]
    %v6507 = vld [vmem:[%s5 + $0x8a8] sm:$0xf]
    %v6508 = vld [vmem:[%s5 + $0x8ac] sm:$0xf]
    %v6509 = vld [vmem:[%s5 + $0x8b0] sm:$0xf]
    %v6510 = vld [vmem:[%s5 + $0x8b4] sm:$0xf]
    %v6511 = vld [vmem:[%s5 + $0x8b8] sm:$0xf]
    %v6512 = vld [vmem:[%s5 + $0x8bc] sm:$0xf]
    %v6513 = vld [vmem:[%s5 + $0x8c0] sm:$0xf]
    %v6514 = vld [vmem:[%s5 + $0x8c4] sm:$0xf]
    %v6515 = vld [vmem:[%s5 + $0x8c8] sm:$0xf]
    %v6516 = vld [vmem:[%s5 + $0x8cc] sm:$0xf]
    %v6517 = vld [vmem:[%s5 + $0x8d0] sm:$0xf]
    %v6518 = vld [vmem:[%s5 + $0x8d4] sm:$0xf]
    %v6519 = vld [vmem:[%s5 + $0x8d8] sm:$0xf]
    %v6520 = vld [vmem:[%s5 + $0x8dc] sm:$0xf]
    %v6521 = vld [vmem:[%s5 + $0x8e0] sm:$0xf]
    %v6522 = vld [vmem:[%s5 + $0x8e4] sm:$0xf]
    %v6523 = vld [vmem:[%s5 + $0x8e8] sm:$0xf]
    %v6524 = vld [vmem:[%s5 + $0x8ec] sm:$0xf]
    %v6525 = vld [vmem:[%s5 + $0x8f0] sm:$0xf]
    %v6526 = vld [vmem:[%s5 + $0x8f4] sm:$0xf]
    %v6527 = vld [vmem:[%s5 + $0x8f8] sm:$0xf]
    %v6528 = vld [vmem:[%s5 + $0x8fc] sm:$0xf]
    %v6529 = vld [vmem:[#allocation8] sm:$0x1]
    %v6531 = vlaneseq
    %v6532 = vshrl.u32 %v6531, 7
    %v6533 = vsub.s32 0, %v6532
    %v6534 = vrot.slane %v6529, %v6533
    %v7112 = vunpack.c.l.b16 %v5953
    %v7113 = vunpack.c.l.b16 %v5954
    %v7114 = vunpack.c.l.b16 %v5955
    %v7115 = vunpack.c.l.b16 %v5956
    %v7116 = vunpack.c.l.b16 %v5957
    %v7117 = vunpack.c.l.b16 %v5958
    %v7118 = vunpack.c.l.b16 %v5959
    %v7119 = vunpack.c.l.b16 %v5960
    %v7120 = vunpack.c.l.b16 %v5961
    %v7121 = vunpack.c.l.b16 %v5962
    %v7122 = vunpack.c.l.b16 %v5963
    %v7123 = vunpack.c.l.b16 %v5964
    %v7124 = vunpack.c.l.b16 %v5965
    %v7125 = vunpack.c.l.b16 %v5966
    %v7126 = vunpack.c.l.b16 %v5967
    %v7127 = vunpack.c.l.b16 %v5968
    %v7128 = vunpack.c.l.b16 %v5969
    %v7129 = vunpack.c.l.b16 %v5970
    %v7130 = vunpack.c.l.b16 %v5971
    %v7131 = vunpack.c.l.b16 %v5972
    %v7132 = vunpack.c.l.b16 %v5973
    %v7133 = vunpack.c.l.b16 %v5974
    %v7134 = vunpack.c.l.b16 %v5975
    %v7135 = vunpack.c.l.b16 %v5976
    %v7136 = vunpack.c.l.b16 %v5977
    %v7137 = vunpack.c.l.b16 %v5978
    %v7138 = vunpack.c.l.b16 %v5979
    %v7139 = vunpack.c.l.b16 %v5980
    %v7140 = vunpack.c.l.b16 %v5981
    %v7141 = vunpack.c.l.b16 %v5982
    %v7142 = vunpack.c.l.b16 %v5983
    %v7143 = vunpack.c.l.b16 %v5984
    %v7144 = vunpack.c.l.b16 %v5985
    %v7145 = vunpack.c.l.b16 %v5986
    %v7146 = vunpack.c.l.b16 %v5987
    %v7147 = vunpack.c.l.b16 %v5988
    %v7148 = vunpack.c.l.b16 %v5989
    %v7149 = vunpack.c.l.b16 %v5990
    %v7150 = vunpack.c.l.b16 %v5991
    %v7151 = vunpack.c.l.b16 %v5992
    %v7152 = vunpack.c.l.b16 %v5993
    %v7153 = vunpack.c.l.b16 %v5994
    %v7154 = vunpack.c.l.b16 %v5995
    %v7155 = vunpack.c.l.b16 %v5996
    %v7156 = vunpack.c.l.b16 %v5997
    %v7157 = vunpack.c.l.b16 %v5998
    %v7158 = vunpack.c.l.b16 %v5999
    %v7159 = vunpack.c.l.b16 %v6000
    %v7160 = vunpack.c.l.b16 %v6001
    %v7161 = vunpack.c.l.b16 %v6002
    %v7162 = vunpack.c.l.b16 %v6003
    %v7163 = vunpack.c.l.b16 %v6004
    %v7164 = vunpack.c.l.b16 %v6005
    %v7165 = vunpack.c.l.b16 %v6006
    %v7166 = vunpack.c.l.b16 %v6007
    %v7167 = vunpack.c.l.b16 %v6008
    %v7168 = vunpack.c.l.b16 %v6009
    %v7169 = vunpack.c.l.b16 %v6010
    %v7170 = vunpack.c.l.b16 %v6011
    %v7171 = vunpack.c.l.b16 %v6012
    %v7172 = vunpack.c.l.b16 %v6013
    %v7173 = vunpack.c.l.b16 %v6014
    %v7174 = vunpack.c.l.b16 %v6015
    %v7175 = vunpack.c.l.b16 %v6016
    %v7176 = vunpack.c.l.b16 %v6017
    %v7177 = vunpack.c.l.b16 %v6018
    %v7178 = vunpack.c.l.b16 %v6019
    %v7179 = vunpack.c.l.b16 %v6020
    %v7180 = vunpack.c.l.b16 %v6021
    %v7181 = vunpack.c.l.b16 %v6022
    %v7182 = vunpack.c.l.b16 %v6023
    %v7183 = vunpack.c.l.b16 %v6024
    %v7184 = vunpack.c.l.b16 %v6025
    %v7185 = vunpack.c.l.b16 %v6026
    %v7186 = vunpack.c.l.b16 %v6027
    %v7187 = vunpack.c.l.b16 %v6028
    %v7188 = vunpack.c.l.b16 %v6029
    %v7189 = vunpack.c.l.b16 %v6030
    %v7190 = vunpack.c.l.b16 %v6031
    %v7191 = vunpack.c.l.b16 %v6032
    %v7192 = vunpack.c.l.b16 %v6033
    %v7193 = vunpack.c.l.b16 %v6034
    %v7194 = vunpack.c.l.b16 %v6035
    %v7195 = vunpack.c.l.b16 %v6036
    %v7196 = vunpack.c.l.b16 %v6037
    %v7197 = vunpack.c.l.b16 %v6038
    %v7198 = vunpack.c.l.b16 %v6039
    %v7199 = vunpack.c.l.b16 %v6040
    %v7200 = vunpack.c.l.b16 %v6041
    %v7201 = vunpack.c.l.b16 %v6042
    %v7202 = vunpack.c.l.b16 %v6043
    %v7203 = vunpack.c.l.b16 %v6044
    %v7204 = vunpack.c.l.b16 %v6045
    %v7205 = vunpack.c.l.b16 %v6046
    %v7206 = vunpack.c.l.b16 %v6047
    %v7207 = vunpack.c.l.b16 %v6048
    %v7208 = vunpack.c.l.b16 %v6049
    %v7209 = vunpack.c.l.b16 %v6050
    %v7210 = vunpack.c.l.b16 %v6051
    %v7211 = vunpack.c.l.b16 %v6052
    %v7212 = vunpack.c.l.b16 %v6053
    %v7213 = vunpack.c.l.b16 %v6054
    %v7214 = vunpack.c.l.b16 %v6055
    %v7215 = vunpack.c.l.b16 %v6056
    %v7216 = vunpack.c.l.b16 %v6057
    %v7217 = vunpack.c.l.b16 %v6058
    %v7218 = vunpack.c.l.b16 %v6059
    %v7219 = vunpack.c.l.b16 %v6060
    %v7220 = vunpack.c.l.b16 %v6061
    %v7221 = vunpack.c.l.b16 %v6062
    %v7222 = vunpack.c.l.b16 %v6063
    %v7223 = vunpack.c.l.b16 %v6064
    %v7224 = vunpack.c.l.b16 %v6065
    %v7225 = vunpack.c.l.b16 %v6066
    %v7226 = vunpack.c.l.b16 %v6067
    %v7227 = vunpack.c.l.b16 %v6068
    %v7228 = vunpack.c.l.b16 %v6069
    %v7229 = vunpack.c.l.b16 %v6070
    %v7230 = vunpack.c.l.b16 %v6071
    %v7231 = vunpack.c.l.b16 %v6072
    %v7232 = vunpack.c.l.b16 %v6073
    %v7233 = vunpack.c.l.b16 %v6074
    %v7234 = vunpack.c.l.b16 %v6075
    %v7235 = vunpack.c.l.b16 %v6076
    %v7236 = vunpack.c.l.b16 %v6077
    %v7237 = vunpack.c.l.b16 %v6078
    %v7238 = vunpack.c.l.b16 %v6079
    %v7239 = vunpack.c.l.b16 %v6080
    %v7240 = vunpack.c.l.b16 %v6081
    %v7241 = vunpack.c.l.b16 %v6082
    %v7242 = vunpack.c.l.b16 %v6083
    %v7243 = vunpack.c.l.b16 %v6084
    %v7244 = vunpack.c.l.b16 %v6085
    %v7245 = vunpack.c.l.b16 %v6086
    %v7246 = vunpack.c.l.b16 %v6087
    %v7247 = vunpack.c.l.b16 %v6088
    %v7248 = vunpack.c.l.b16 %v6089
    %v7249 = vunpack.c.l.b16 %v6090
    %v7250 = vunpack.c.l.b16 %v6091
    %v7251 = vunpack.c.l.b16 %v6092
    %v7252 = vunpack.c.l.b16 %v6093
    %v7253 = vunpack.c.l.b16 %v6094
    %v7254 = vunpack.c.l.b16 %v6095
    %v7255 = vunpack.c.l.b16 %v6096
    %v7256 = vunpack.c.l.b16 %v6097
    %v7257 = vunpack.c.l.b16 %v6098
    %v7258 = vunpack.c.l.b16 %v6099
    %v7259 = vunpack.c.l.b16 %v6100
    %v7260 = vunpack.c.l.b16 %v6101
    %v7261 = vunpack.c.l.b16 %v6102
    %v7262 = vunpack.c.l.b16 %v6103
    %v7263 = vunpack.c.l.b16 %v6104
    %v7264 = vunpack.c.l.b16 %v6105
    %v7265 = vunpack.c.l.b16 %v6106
    %v7266 = vunpack.c.l.b16 %v6107
    %v7267 = vunpack.c.l.b16 %v6108
    %v7268 = vunpack.c.l.b16 %v6109
    %v7269 = vunpack.c.l.b16 %v6110
    %v7270 = vunpack.c.l.b16 %v6111
    %v7271 = vunpack.c.l.b16 %v6112
    %v7272 = vunpack.c.l.b16 %v6113
    %v7273 = vunpack.c.l.b16 %v6114
    %v7274 = vunpack.c.l.b16 %v6115
    %v7275 = vunpack.c.l.b16 %v6116
    %v7276 = vunpack.c.l.b16 %v6117
    %v7277 = vunpack.c.l.b16 %v6118
    %v7278 = vunpack.c.l.b16 %v6119
    %v7279 = vunpack.c.l.b16 %v6120
    %v7280 = vunpack.c.l.b16 %v6121
    %v7281 = vunpack.c.l.b16 %v6122
    %v7282 = vunpack.c.l.b16 %v6123
    %v7283 = vunpack.c.l.b16 %v6124
    %v7284 = vunpack.c.l.b16 %v6125
    %v7285 = vunpack.c.l.b16 %v6126
    %v7286 = vunpack.c.l.b16 %v6127
    %v7287 = vunpack.c.l.b16 %v6128
    %v7288 = vunpack.c.l.b16 %v6129
    %v7289 = vunpack.c.l.b16 %v6130
    %v7290 = vunpack.c.l.b16 %v6131
    %v7291 = vunpack.c.l.b16 %v6132
    %v7292 = vunpack.c.l.b16 %v6133
    %v7293 = vunpack.c.l.b16 %v6134
    %v7294 = vunpack.c.l.b16 %v6135
    %v7295 = vunpack.c.l.b16 %v6136
    %v7296 = vunpack.c.l.b16 %v6137
    %v7297 = vunpack.c.l.b16 %v6138
    %v7298 = vunpack.c.l.b16 %v6139
    %v7299 = vunpack.c.l.b16 %v6140
    %v7300 = vunpack.c.l.b16 %v6141
    %v7301 = vunpack.c.l.b16 %v6142
    %v7302 = vunpack.c.l.b16 %v6143
    %v7303 = vunpack.c.l.b16 %v6144
    %v7304 = vunpack.c.l.b16 %v6145
    %v7305 = vunpack.c.l.b16 %v6146
    %v7306 = vunpack.c.l.b16 %v6147
    %v7307 = vunpack.c.l.b16 %v6148
    %v7308 = vunpack.c.l.b16 %v6149
    %v7309 = vunpack.c.l.b16 %v6150
    %v7310 = vunpack.c.l.b16 %v6151
    %v7311 = vunpack.c.l.b16 %v6152
    %v7312 = vunpack.c.l.b16 %v6153
    %v7313 = vunpack.c.l.b16 %v6154
    %v7314 = vunpack.c.l.b16 %v6155
    %v7315 = vunpack.c.l.b16 %v6156
    %v7316 = vunpack.c.l.b16 %v6157
    %v7317 = vunpack.c.l.b16 %v6158
    %v7318 = vunpack.c.l.b16 %v6159
    %v7319 = vunpack.c.l.b16 %v6160
    %v7320 = vunpack.c.l.b16 %v6161
    %v7321 = vunpack.c.l.b16 %v6162
    %v7322 = vunpack.c.l.b16 %v6163
    %v7323 = vunpack.c.l.b16 %v6164
    %v7324 = vunpack.c.l.b16 %v6165
    %v7325 = vunpack.c.l.b16 %v6166
    %v7326 = vunpack.c.l.b16 %v6167
    %v7327 = vunpack.c.l.b16 %v6168
    %v7328 = vunpack.c.l.b16 %v6169
    %v7329 = vunpack.c.l.b16 %v6170
    %v7330 = vunpack.c.l.b16 %v6171
    %v7331 = vunpack.c.l.b16 %v6172
    %v7332 = vunpack.c.l.b16 %v6173
    %v7333 = vunpack.c.l.b16 %v6174
    %v7334 = vunpack.c.l.b16 %v6175
    %v7335 = vunpack.c.l.b16 %v6176
    %v7336 = vunpack.c.l.b16 %v6177
    %v7337 = vunpack.c.l.b16 %v6178
    %v7338 = vunpack.c.l.b16 %v6179
    %v7339 = vunpack.c.l.b16 %v6180
    %v7340 = vunpack.c.l.b16 %v6181
    %v7341 = vunpack.c.l.b16 %v6182
    %v7342 = vunpack.c.l.b16 %v6183
    %v7343 = vunpack.c.l.b16 %v6184
    %v7344 = vunpack.c.l.b16 %v6185
    %v7345 = vunpack.c.l.b16 %v6186
    %v7346 = vunpack.c.l.b16 %v6187
    %v7347 = vunpack.c.l.b16 %v6188
    %v7348 = vunpack.c.l.b16 %v6189
    %v7349 = vunpack.c.l.b16 %v6190
    %v7350 = vunpack.c.l.b16 %v6191
    %v7351 = vunpack.c.l.b16 %v6192
    %v7352 = vunpack.c.l.b16 %v6193
    %v7353 = vunpack.c.l.b16 %v6194
    %v7354 = vunpack.c.l.b16 %v6195
    %v7355 = vunpack.c.l.b16 %v6196
    %v7356 = vunpack.c.l.b16 %v6197
    %v7357 = vunpack.c.l.b16 %v6198
    %v7358 = vunpack.c.l.b16 %v6199
    %v7359 = vunpack.c.l.b16 %v6200
    %v7360 = vunpack.c.l.b16 %v6201
    %v7361 = vunpack.c.l.b16 %v6202
    %v7362 = vunpack.c.l.b16 %v6203
    %v7363 = vunpack.c.l.b16 %v6204
    %v7364 = vunpack.c.l.b16 %v6205
    %v7365 = vunpack.c.l.b16 %v6206
    %v7366 = vunpack.c.l.b16 %v6207
    %v7367 = vunpack.c.l.b16 %v6208
    %v7368 = vunpack.c.l.b16 %v6209
    %v7369 = vunpack.c.l.b16 %v6210
    %v7370 = vunpack.c.l.b16 %v6211
    %v7371 = vunpack.c.l.b16 %v6212
    %v7372 = vunpack.c.l.b16 %v6213
    %v7373 = vunpack.c.l.b16 %v6214
    %v7374 = vunpack.c.l.b16 %v6215
    %v7375 = vunpack.c.l.b16 %v6216
    %v7376 = vunpack.c.l.b16 %v6217
    %v7377 = vunpack.c.l.b16 %v6218
    %v7378 = vunpack.c.l.b16 %v6219
    %v7379 = vunpack.c.l.b16 %v6220
    %v7380 = vunpack.c.l.b16 %v6221
    %v7381 = vunpack.c.l.b16 %v6222
    %v7382 = vunpack.c.l.b16 %v6223
    %v7383 = vunpack.c.l.b16 %v6224
    %v7384 = vunpack.c.l.b16 %v6225
    %v7385 = vunpack.c.l.b16 %v6226
    %v7386 = vunpack.c.l.b16 %v6227
    %v7387 = vunpack.c.l.b16 %v6228
    %v7388 = vunpack.c.l.b16 %v6229
    %v7389 = vunpack.c.l.b16 %v6230
    %v7390 = vunpack.c.l.b16 %v6231
    %v7391 = vunpack.c.l.b16 %v6232
    %v7392 = vunpack.c.l.b16 %v6233
    %v7393 = vunpack.c.l.b16 %v6234
    %v7394 = vunpack.c.l.b16 %v6235
    %v7395 = vunpack.c.l.b16 %v6236
    %v7396 = vunpack.c.l.b16 %v6237
    %v7397 = vunpack.c.l.b16 %v6238
    %v7398 = vunpack.c.l.b16 %v6239
    %v7399 = vunpack.c.l.b16 %v6240
    %v7400 = vunpack.c.l.b16 %v6241
    %v7401 = vunpack.c.l.b16 %v6242
    %v7402 = vunpack.c.l.b16 %v6243
    %v7403 = vunpack.c.l.b16 %v6244
    %v7404 = vunpack.c.l.b16 %v6245
    %v7405 = vunpack.c.l.b16 %v6246
    %v7406 = vunpack.c.l.b16 %v6247
    %v7407 = vunpack.c.l.b16 %v6248
    %v7408 = vunpack.c.l.b16 %v6249
    %v7409 = vunpack.c.l.b16 %v6250
    %v7410 = vunpack.c.l.b16 %v6251
    %v7411 = vunpack.c.l.b16 %v6252
    %v7412 = vunpack.c.l.b16 %v6253
    %v7413 = vunpack.c.l.b16 %v6254
    %v7414 = vunpack.c.l.b16 %v6255
    %v7415 = vunpack.c.l.b16 %v6256
    %v7416 = vunpack.c.l.b16 %v6257
    %v7417 = vunpack.c.l.b16 %v6258
    %v7418 = vunpack.c.l.b16 %v6259
    %v7419 = vunpack.c.l.b16 %v6260
    %v7420 = vunpack.c.l.b16 %v6261
    %v7421 = vunpack.c.l.b16 %v6262
    %v7422 = vunpack.c.l.b16 %v6263
    %v7423 = vunpack.c.l.b16 %v6264
    %v7424 = vunpack.c.l.b16 %v6265
    %v7425 = vunpack.c.l.b16 %v6266
    %v7426 = vunpack.c.l.b16 %v6267
    %v7427 = vunpack.c.l.b16 %v6268
    %v7428 = vunpack.c.l.b16 %v6269
    %v7429 = vunpack.c.l.b16 %v6270
    %v7430 = vunpack.c.l.b16 %v6271
    %v7431 = vunpack.c.l.b16 %v6272
    %v7432 = vunpack.c.l.b16 %v6273
    %v7433 = vunpack.c.l.b16 %v6274
    %v7434 = vunpack.c.l.b16 %v6275
    %v7435 = vunpack.c.l.b16 %v6276
    %v7436 = vunpack.c.l.b16 %v6277
    %v7437 = vunpack.c.l.b16 %v6278
    %v7438 = vunpack.c.l.b16 %v6279
    %v7439 = vunpack.c.l.b16 %v6280
    %v7440 = vunpack.c.l.b16 %v6281
    %v7441 = vunpack.c.l.b16 %v6282
    %v7442 = vunpack.c.l.b16 %v6283
    %v7443 = vunpack.c.l.b16 %v6284
    %v7444 = vunpack.c.l.b16 %v6285
    %v7445 = vunpack.c.l.b16 %v6286
    %v7446 = vunpack.c.l.b16 %v6287
    %v7447 = vunpack.c.l.b16 %v6288
    %v7448 = vunpack.c.l.b16 %v6289
    %v7449 = vunpack.c.l.b16 %v6290
    %v7450 = vunpack.c.l.b16 %v6291
    %v7451 = vunpack.c.l.b16 %v6292
    %v7452 = vunpack.c.l.b16 %v6293
    %v7453 = vunpack.c.l.b16 %v6294
    %v7454 = vunpack.c.l.b16 %v6295
    %v7455 = vunpack.c.l.b16 %v6296
    %v7456 = vunpack.c.l.b16 %v6297
    %v7457 = vunpack.c.l.b16 %v6298
    %v7458 = vunpack.c.l.b16 %v6299
    %v7459 = vunpack.c.l.b16 %v6300
    %v7460 = vunpack.c.l.b16 %v6301
    %v7461 = vunpack.c.l.b16 %v6302
    %v7462 = vunpack.c.l.b16 %v6303
    %v7463 = vunpack.c.l.b16 %v6304
    %v7464 = vunpack.c.l.b16 %v6305
    %v7465 = vunpack.c.l.b16 %v6306
    %v7466 = vunpack.c.l.b16 %v6307
    %v7467 = vunpack.c.l.b16 %v6308
    %v7468 = vunpack.c.l.b16 %v6309
    %v7469 = vunpack.c.l.b16 %v6310
    %v7470 = vunpack.c.l.b16 %v6311
    %v7471 = vunpack.c.l.b16 %v6312
    %v7472 = vunpack.c.l.b16 %v6313
    %v7473 = vunpack.c.l.b16 %v6314
    %v7474 = vunpack.c.l.b16 %v6315
    %v7475 = vunpack.c.l.b16 %v6316
    %v7476 = vunpack.c.l.b16 %v6317
    %v7477 = vunpack.c.l.b16 %v6318
    %v7478 = vunpack.c.l.b16 %v6319
    %v7479 = vunpack.c.l.b16 %v6320
    %v7480 = vunpack.c.l.b16 %v6321
    %v7481 = vunpack.c.l.b16 %v6322
    %v7482 = vunpack.c.l.b16 %v6323
    %v7483 = vunpack.c.l.b16 %v6324
    %v7484 = vunpack.c.l.b16 %v6325
    %v7485 = vunpack.c.l.b16 %v6326
    %v7486 = vunpack.c.l.b16 %v6327
    %v7487 = vunpack.c.l.b16 %v6328
    %v7488 = vunpack.c.l.b16 %v6329
    %v7489 = vunpack.c.l.b16 %v6330
    %v7490 = vunpack.c.l.b16 %v6331
    %v7491 = vunpack.c.l.b16 %v6332
    %v7492 = vunpack.c.l.b16 %v6333
    %v7493 = vunpack.c.l.b16 %v6334
    %v7494 = vunpack.c.l.b16 %v6335
    %v7495 = vunpack.c.l.b16 %v6336
    %v7496 = vunpack.c.l.b16 %v6337
    %v7497 = vunpack.c.l.b16 %v6338
    %v7498 = vunpack.c.l.b16 %v6339
    %v7499 = vunpack.c.l.b16 %v6340
    %v7500 = vunpack.c.l.b16 %v6341
    %v7501 = vunpack.c.l.b16 %v6342
    %v7502 = vunpack.c.l.b16 %v6343
    %v7503 = vunpack.c.l.b16 %v6344
    %v7504 = vunpack.c.l.b16 %v6345
    %v7505 = vunpack.c.l.b16 %v6346
    %v7506 = vunpack.c.l.b16 %v6347
    %v7507 = vunpack.c.l.b16 %v6348
    %v7508 = vunpack.c.l.b16 %v6349
    %v7509 = vunpack.c.l.b16 %v6350
    %v7510 = vunpack.c.l.b16 %v6351
    %v7511 = vunpack.c.l.b16 %v6352
    %v7512 = vunpack.c.l.b16 %v6353
    %v7513 = vunpack.c.l.b16 %v6354
    %v7514 = vunpack.c.l.b16 %v6355
    %v7515 = vunpack.c.l.b16 %v6356
    %v7516 = vunpack.c.l.b16 %v6357
    %v7517 = vunpack.c.l.b16 %v6358
    %v7518 = vunpack.c.l.b16 %v6359
    %v7519 = vunpack.c.l.b16 %v6360
    %v7520 = vunpack.c.l.b16 %v6361
    %v7521 = vunpack.c.l.b16 %v6362
    %v7522 = vunpack.c.l.b16 %v6363
    %v7523 = vunpack.c.l.b16 %v6364
    %v7524 = vunpack.c.l.b16 %v6365
    %v7525 = vunpack.c.l.b16 %v6366
    %v7526 = vunpack.c.l.b16 %v6367
    %v7527 = vunpack.c.l.b16 %v6368
    %v7528 = vunpack.c.l.b16 %v6369
    %v7529 = vunpack.c.l.b16 %v6370
    %v7530 = vunpack.c.l.b16 %v6371
    %v7531 = vunpack.c.l.b16 %v6372
    %v7532 = vunpack.c.l.b16 %v6373
    %v7533 = vunpack.c.l.b16 %v6374
    %v7534 = vunpack.c.l.b16 %v6375
    %v7535 = vunpack.c.l.b16 %v6376
    %v7536 = vunpack.c.l.b16 %v6377
    %v7537 = vunpack.c.l.b16 %v6378
    %v7538 = vunpack.c.l.b16 %v6379
    %v7539 = vunpack.c.l.b16 %v6380
    %v7540 = vunpack.c.l.b16 %v6381
    %v7541 = vunpack.c.l.b16 %v6382
    %v7542 = vunpack.c.l.b16 %v6383
    %v7543 = vunpack.c.l.b16 %v6384
    %v7544 = vunpack.c.l.b16 %v6385
    %v7545 = vunpack.c.l.b16 %v6386
    %v7546 = vunpack.c.l.b16 %v6387
    %v7547 = vunpack.c.l.b16 %v6388
    %v7548 = vunpack.c.l.b16 %v6389
    %v7549 = vunpack.c.l.b16 %v6390
    %v7550 = vunpack.c.l.b16 %v6391
    %v7551 = vunpack.c.l.b16 %v6392
    %v7552 = vunpack.c.l.b16 %v6393
    %v7553 = vunpack.c.l.b16 %v6394
    %v7554 = vunpack.c.l.b16 %v6395
    %v7555 = vunpack.c.l.b16 %v6396
    %v7556 = vunpack.c.l.b16 %v6397
    %v7557 = vunpack.c.l.b16 %v6398
    %v7558 = vunpack.c.l.b16 %v6399
    %v7559 = vunpack.c.l.b16 %v6400
    %v7560 = vunpack.c.l.b16 %v6401
    %v7561 = vunpack.c.l.b16 %v6402
    %v7562 = vunpack.c.l.b16 %v6403
    %v7563 = vunpack.c.l.b16 %v6404
    %v7564 = vunpack.c.l.b16 %v6405
    %v7565 = vunpack.c.l.b16 %v6406
    %v7566 = vunpack.c.l.b16 %v6407
    %v7567 = vunpack.c.l.b16 %v6408
    %v7568 = vunpack.c.l.b16 %v6409
    %v7569 = vunpack.c.l.b16 %v6410
    %v7570 = vunpack.c.l.b16 %v6411
    %v7571 = vunpack.c.l.b16 %v6412
    %v7572 = vunpack.c.l.b16 %v6413
    %v7573 = vunpack.c.l.b16 %v6414
    %v7574 = vunpack.c.l.b16 %v6415
    %v7575 = vunpack.c.l.b16 %v6416
    %v7576 = vunpack.c.l.b16 %v6417
    %v7577 = vunpack.c.l.b16 %v6418
    %v7578 = vunpack.c.l.b16 %v6419
    %v7579 = vunpack.c.l.b16 %v6420
    %v7580 = vunpack.c.l.b16 %v6421
    %v7581 = vunpack.c.l.b16 %v6422
    %v7582 = vunpack.c.l.b16 %v6423
    %v7583 = vunpack.c.l.b16 %v6424
    %v7584 = vunpack.c.l.b16 %v6425
    %v7585 = vunpack.c.l.b16 %v6426
    %v7586 = vunpack.c.l.b16 %v6427
    %v7587 = vunpack.c.l.b16 %v6428
    %v7588 = vunpack.c.l.b16 %v6429
    %v7589 = vunpack.c.l.b16 %v6430
    %v7590 = vunpack.c.l.b16 %v6431
    %v7591 = vunpack.c.l.b16 %v6432
    %v7592 = vunpack.c.l.b16 %v6433
    %v7593 = vunpack.c.l.b16 %v6434
    %v7594 = vunpack.c.l.b16 %v6435
    %v7595 = vunpack.c.l.b16 %v6436
    %v7596 = vunpack.c.l.b16 %v6437
    %v7597 = vunpack.c.l.b16 %v6438
    %v7598 = vunpack.c.l.b16 %v6439
    %v7599 = vunpack.c.l.b16 %v6440
    %v7600 = vunpack.c.l.b16 %v6441
    %v7601 = vunpack.c.l.b16 %v6442
    %v7602 = vunpack.c.l.b16 %v6443
    %v7603 = vunpack.c.l.b16 %v6444
    %v7604 = vunpack.c.l.b16 %v6445
    %v7605 = vunpack.c.l.b16 %v6446
    %v7606 = vunpack.c.l.b16 %v6447
    %v7607 = vunpack.c.l.b16 %v6448
    %v7608 = vunpack.c.l.b16 %v6449
    %v7609 = vunpack.c.l.b16 %v6450
    %v7610 = vunpack.c.l.b16 %v6451
    %v7611 = vunpack.c.l.b16 %v6452
    %v7612 = vunpack.c.l.b16 %v6453
    %v7613 = vunpack.c.l.b16 %v6454
    %v7614 = vunpack.c.l.b16 %v6455
    %v7615 = vunpack.c.l.b16 %v6456
    %v7616 = vunpack.c.l.b16 %v6457
    %v7617 = vunpack.c.l.b16 %v6458
    %v7618 = vunpack.c.l.b16 %v6459
    %v7619 = vunpack.c.l.b16 %v6460
    %v7620 = vunpack.c.l.b16 %v6461
    %v7621 = vunpack.c.l.b16 %v6462
    %v7622 = vunpack.c.l.b16 %v6463
    %v7623 = vunpack.c.l.b16 %v6464
    %v7624 = vunpack.c.l.b16 %v6465
    %v7625 = vunpack.c.l.b16 %v6466
    %v7626 = vunpack.c.l.b16 %v6467
    %v7627 = vunpack.c.l.b16 %v6468
    %v7628 = vunpack.c.l.b16 %v6469
    %v7629 = vunpack.c.l.b16 %v6470
    %v7630 = vunpack.c.l.b16 %v6471
    %v7631 = vunpack.c.l.b16 %v6472
    %v7632 = vunpack.c.l.b16 %v6473
    %v7633 = vunpack.c.l.b16 %v6474
    %v7634 = vunpack.c.l.b16 %v6475
    %v7635 = vunpack.c.l.b16 %v6476
    %v7636 = vunpack.c.l.b16 %v6477
    %v7637 = vunpack.c.l.b16 %v6478
    %v7638 = vunpack.c.l.b16 %v6479
    %v7639 = vunpack.c.l.b16 %v6480
    %v7640 = vunpack.c.l.b16 %v6481
    %v7641 = vunpack.c.l.b16 %v6482
    %v7642 = vunpack.c.l.b16 %v6483
    %v7643 = vunpack.c.l.b16 %v6484
    %v7644 = vunpack.c.l.b16 %v6485
    %v7645 = vunpack.c.l.b16 %v6486
    %v7646 = vunpack.c.l.b16 %v6487
    %v7647 = vunpack.c.l.b16 %v6488
    %v7648 = vunpack.c.l.b16 %v6489
    %v7649 = vunpack.c.l.b16 %v6490
    %v7650 = vunpack.c.l.b16 %v6491
    %v7651 = vunpack.c.l.b16 %v6492
    %v7652 = vunpack.c.l.b16 %v6493
    %v7653 = vunpack.c.l.b16 %v6494
    %v7654 = vunpack.c.l.b16 %v6495
    %v7655 = vunpack.c.l.b16 %v6496
    %v7656 = vunpack.c.l.b16 %v6497
    %v7657 = vunpack.c.l.b16 %v6498
    %v7658 = vunpack.c.l.b16 %v6499
    %v7659 = vunpack.c.l.b16 %v6500
    %v7660 = vunpack.c.l.b16 %v6501
    %v7661 = vunpack.c.l.b16 %v6502
    %v7662 = vunpack.c.l.b16 %v6503
    %v7663 = vunpack.c.l.b16 %v6504
    %v7664 = vunpack.c.l.b16 %v6505
    %v7665 = vunpack.c.l.b16 %v6506
    %v7666 = vunpack.c.l.b16 %v6507
    %v7667 = vunpack.c.l.b16 %v6508
    %v7668 = vunpack.c.l.b16 %v6509
    %v7669 = vunpack.c.l.b16 %v6510
    %v7670 = vunpack.c.l.b16 %v6511
    %v7671 = vunpack.c.l.b16 %v6512
    %v7672 = vunpack.c.l.b16 %v6513
    %v7673 = vunpack.c.l.b16 %v6514
    %v7674 = vunpack.c.l.b16 %v6515
    %v7675 = vunpack.c.l.b16 %v6516
    %v7676 = vunpack.c.l.b16 %v6517
    %v7677 = vunpack.c.l.b16 %v6518
    %v7678 = vunpack.c.l.b16 %v6519
    %v7679 = vunpack.c.l.b16 %v6520
    %v7680 = vunpack.c.l.b16 %v6521
    %v7681 = vunpack.c.l.b16 %v6522
    %v7682 = vunpack.c.l.b16 %v6523
    %v7683 = vunpack.c.l.b16 %v6524
    %v7684 = vunpack.c.l.b16 %v6525
    %v7685 = vunpack.c.l.b16 %v6526
    %v7686 = vunpack.c.l.b16 %v6527
    %v7687 = vunpack.c.l.b16 %v6528
    %v7688 = vpack.c.b16 %v7113, %v7112
    %v7689 = vpack.c.b16 %v7115, %v7114
    %v7690 = vpack.c.b16 %v7117, %v7116
    %v7691 = vpack.c.b16 %v7119, %v7118
    %v7692 = vpack.c.b16 %v7121, %v7120
    %v7693 = vpack.c.b16 %v7123, %v7122
    %v7694 = vpack.c.b16 %v7125, %v7124
    %v7695 = vpack.c.b16 %v7127, %v7126
    %v7696 = vpack.c.b16 %v7129, %v7128
    %v7697 = vpack.c.b16 %v7131, %v7130
    %v7698 = vpack.c.b16 %v7133, %v7132
    %v7699 = vpack.c.b16 %v7135, %v7134
    %v7700 = vpack.c.b16 %v7137, %v7136
    %v7701 = vpack.c.b16 %v7139, %v7138
    %v7702 = vpack.c.b16 %v7141, %v7140
    %v7703 = vpack.c.b16 %v7143, %v7142
    %v7704 = vpack.c.b16 %v7145, %v7144
    %v7705 = vpack.c.b16 %v7147, %v7146
    %v7706 = vpack.c.b16 %v7149, %v7148
    %v7707 = vpack.c.b16 %v7151, %v7150
    %v7708 = vpack.c.b16 %v7153, %v7152
    %v7709 = vpack.c.b16 %v7155, %v7154
    %v7710 = vpack.c.b16 %v7157, %v7156
    %v7711 = vpack.c.b16 %v7159, %v7158
    %v7712 = vpack.c.b16 %v7161, %v7160
    %v7713 = vpack.c.b16 %v7163, %v7162
    %v7714 = vpack.c.b16 %v7165, %v7164
    %v7715 = vpack.c.b16 %v7167, %v7166
    %v7716 = vpack.c.b16 %v7169, %v7168
    %v7717 = vpack.c.b16 %v7171, %v7170
    %v7718 = vpack.c.b16 %v7173, %v7172
    %v7719 = vpack.c.b16 %v7175, %v7174
    %v7720 = vpack.c.b16 %v7177, %v7176
    %v7721 = vpack.c.b16 %v7179, %v7178
    %v7722 = vpack.c.b16 %v7181, %v7180
    %v7723 = vpack.c.b16 %v7183, %v7182
    %v7724 = vpack.c.b16 %v7185, %v7184
    %v7725 = vpack.c.b16 %v7187, %v7186
    %v7726 = vpack.c.b16 %v7189, %v7188
    %v7727 = vpack.c.b16 %v7191, %v7190
    %v7728 = vpack.c.b16 %v7193, %v7192
    %v7729 = vpack.c.b16 %v7195, %v7194
    %v7730 = vpack.c.b16 %v7197, %v7196
    %v7731 = vpack.c.b16 %v7199, %v7198
    %v7732 = vpack.c.b16 %v7201, %v7200
    %v7733 = vpack.c.b16 %v7203, %v7202
    %v7734 = vpack.c.b16 %v7205, %v7204
    %v7735 = vpack.c.b16 %v7207, %v7206
    %v7736 = vpack.c.b16 %v7209, %v7208
    %v7737 = vpack.c.b16 %v7211, %v7210
    %v7738 = vpack.c.b16 %v7213, %v7212
    %v7739 = vpack.c.b16 %v7215, %v7214
    %v7740 = vpack.c.b16 %v7217, %v7216
    %v7741 = vpack.c.b16 %v7219, %v7218
    %v7742 = vpack.c.b16 %v7221, %v7220
    %v7743 = vpack.c.b16 %v7223, %v7222
    %v7744 = vpack.c.b16 %v7225, %v7224
    %v7745 = vpack.c.b16 %v7227, %v7226
    %v7746 = vpack.c.b16 %v7229, %v7228
    %v7747 = vpack.c.b16 %v7231, %v7230
    %v7748 = vpack.c.b16 %v7233, %v7232
    %v7749 = vpack.c.b16 %v7235, %v7234
    %v7750 = vpack.c.b16 %v7237, %v7236
    %v7751 = vpack.c.b16 %v7239, %v7238
    %v7752 = vpack.c.b16 %v7241, %v7240
    %v7753 = vpack.c.b16 %v7243, %v7242
    %v7754 = vpack.c.b16 %v7245, %v7244
    %v7755 = vpack.c.b16 %v7247, %v7246
    %v7756 = vpack.c.b16 %v7249, %v7248
    %v7757 = vpack.c.b16 %v7251, %v7250
    %v7758 = vpack.c.b16 %v7253, %v7252
    %v7759 = vpack.c.b16 %v7255, %v7254
    %v7760 = vpack.c.b16 %v7257, %v7256
    %v7761 = vpack.c.b16 %v7259, %v7258
    %v7762 = vpack.c.b16 %v7261, %v7260
    %v7763 = vpack.c.b16 %v7263, %v7262
    %v7764 = vpack.c.b16 %v7265, %v7264
    %v7765 = vpack.c.b16 %v7267, %v7266
    %v7766 = vpack.c.b16 %v7269, %v7268
    %v7767 = vpack.c.b16 %v7271, %v7270
    %v7768 = vpack.c.b16 %v7273, %v7272
    %v7769 = vpack.c.b16 %v7275, %v7274
    %v7770 = vpack.c.b16 %v7277, %v7276
    %v7771 = vpack.c.b16 %v7279, %v7278
    %v7772 = vpack.c.b16 %v7281, %v7280
    %v7773 = vpack.c.b16 %v7283, %v7282
    %v7774 = vpack.c.b16 %v7285, %v7284
    %v7775 = vpack.c.b16 %v7287, %v7286
    %v7776 = vpack.c.b16 %v7289, %v7288
    %v7777 = vpack.c.b16 %v7291, %v7290
    %v7778 = vpack.c.b16 %v7293, %v7292
    %v7779 = vpack.c.b16 %v7295, %v7294
    %v7780 = vpack.c.b16 %v7297, %v7296
    %v7781 = vpack.c.b16 %v7299, %v7298
    %v7782 = vpack.c.b16 %v7301, %v7300
    %v7783 = vpack.c.b16 %v7303, %v7302
    %v7784 = vpack.c.b16 %v7305, %v7304
    %v7785 = vpack.c.b16 %v7307, %v7306
    %v7786 = vpack.c.b16 %v7309, %v7308
    %v7787 = vpack.c.b16 %v7311, %v7310
    %v7788 = vpack.c.b16 %v7313, %v7312
    %v7789 = vpack.c.b16 %v7315, %v7314
    %v7790 = vpack.c.b16 %v7317, %v7316
    %v7791 = vpack.c.b16 %v7319, %v7318
    %v7792 = vpack.c.b16 %v7321, %v7320
    %v7793 = vpack.c.b16 %v7323, %v7322
    %v7794 = vpack.c.b16 %v7325, %v7324
    %v7795 = vpack.c.b16 %v7327, %v7326
    %v7796 = vpack.c.b16 %v7329, %v7328
    %v7797 = vpack.c.b16 %v7331, %v7330
    %v7798 = vpack.c.b16 %v7333, %v7332
    %v7799 = vpack.c.b16 %v7335, %v7334
    %v7800 = vpack.c.b16 %v7337, %v7336
    %v7801 = vpack.c.b16 %v7339, %v7338
    %v7802 = vpack.c.b16 %v7341, %v7340
    %v7803 = vpack.c.b16 %v7343, %v7342
    %v7804 = vpack.c.b16 %v7345, %v7344
    %v7805 = vpack.c.b16 %v7347, %v7346
    %v7806 = vpack.c.b16 %v7349, %v7348
    %v7807 = vpack.c.b16 %v7351, %v7350
    %v7808 = vpack.c.b16 %v7353, %v7352
    %v7809 = vpack.c.b16 %v7355, %v7354
    %v7810 = vpack.c.b16 %v7357, %v7356
    %v7811 = vpack.c.b16 %v7359, %v7358
    %v7812 = vpack.c.b16 %v7361, %v7360
    %v7813 = vpack.c.b16 %v7363, %v7362
    %v7814 = vpack.c.b16 %v7365, %v7364
    %v7815 = vpack.c.b16 %v7367, %v7366
    %v7816 = vpack.c.b16 %v7369, %v7368
    %v7817 = vpack.c.b16 %v7371, %v7370
    %v7818 = vpack.c.b16 %v7373, %v7372
    %v7819 = vpack.c.b16 %v7375, %v7374
    %v7820 = vpack.c.b16 %v7377, %v7376
    %v7821 = vpack.c.b16 %v7379, %v7378
    %v7822 = vpack.c.b16 %v7381, %v7380
    %v7823 = vpack.c.b16 %v7383, %v7382
    %v7824 = vpack.c.b16 %v7385, %v7384
    %v7825 = vpack.c.b16 %v7387, %v7386
    %v7826 = vpack.c.b16 %v7389, %v7388
    %v7827 = vpack.c.b16 %v7391, %v7390
    %v7828 = vpack.c.b16 %v7393, %v7392
    %v7829 = vpack.c.b16 %v7395, %v7394
    %v7830 = vpack.c.b16 %v7397, %v7396
    %v7831 = vpack.c.b16 %v7399, %v7398
    %v7832 = vpack.c.b16 %v7401, %v7400
    %v7833 = vpack.c.b16 %v7403, %v7402
    %v7834 = vpack.c.b16 %v7405, %v7404
    %v7835 = vpack.c.b16 %v7407, %v7406
    %v7836 = vpack.c.b16 %v7409, %v7408
    %v7837 = vpack.c.b16 %v7411, %v7410
    %v7838 = vpack.c.b16 %v7413, %v7412
    %v7839 = vpack.c.b16 %v7415, %v7414
    %v7840 = vpack.c.b16 %v7417, %v7416
    %v7841 = vpack.c.b16 %v7419, %v7418
    %v7842 = vpack.c.b16 %v7421, %v7420
    %v7843 = vpack.c.b16 %v7423, %v7422
    %v7844 = vpack.c.b16 %v7425, %v7424
    %v7845 = vpack.c.b16 %v7427, %v7426
    %v7846 = vpack.c.b16 %v7429, %v7428
    %v7847 = vpack.c.b16 %v7431, %v7430
    %v7848 = vpack.c.b16 %v7433, %v7432
    %v7849 = vpack.c.b16 %v7435, %v7434
    %v7850 = vpack.c.b16 %v7437, %v7436
    %v7851 = vpack.c.b16 %v7439, %v7438
    %v7852 = vpack.c.b16 %v7441, %v7440
    %v7853 = vpack.c.b16 %v7443, %v7442
    %v7854 = vpack.c.b16 %v7445, %v7444
    %v7855 = vpack.c.b16 %v7447, %v7446
    %v7856 = vpack.c.b16 %v7449, %v7448
    %v7857 = vpack.c.b16 %v7451, %v7450
    %v7858 = vpack.c.b16 %v7453, %v7452
    %v7859 = vpack.c.b16 %v7455, %v7454
    %v7860 = vpack.c.b16 %v7457, %v7456
    %v7861 = vpack.c.b16 %v7459, %v7458
    %v7862 = vpack.c.b16 %v7461, %v7460
    %v7863 = vpack.c.b16 %v7463, %v7462
    %v7864 = vpack.c.b16 %v7465, %v7464
    %v7865 = vpack.c.b16 %v7467, %v7466
    %v7866 = vpack.c.b16 %v7469, %v7468
    %v7867 = vpack.c.b16 %v7471, %v7470
    %v7868 = vpack.c.b16 %v7473, %v7472
    %v7869 = vpack.c.b16 %v7475, %v7474
    %v7870 = vpack.c.b16 %v7477, %v7476
    %v7871 = vpack.c.b16 %v7479, %v7478
    %v7872 = vpack.c.b16 %v7481, %v7480
    %v7873 = vpack.c.b16 %v7483, %v7482
    %v7874 = vpack.c.b16 %v7485, %v7484
    %v7875 = vpack.c.b16 %v7487, %v7486
    %v7876 = vpack.c.b16 %v7489, %v7488
    %v7877 = vpack.c.b16 %v7491, %v7490
    %v7878 = vpack.c.b16 %v7493, %v7492
    %v7879 = vpack.c.b16 %v7495, %v7494
    %v7880 = vpack.c.b16 %v7497, %v7496
    %v7881 = vpack.c.b16 %v7499, %v7498
    %v7882 = vpack.c.b16 %v7501, %v7500
    %v7883 = vpack.c.b16 %v7503, %v7502
    %v7884 = vpack.c.b16 %v7505, %v7504
    %v7885 = vpack.c.b16 %v7507, %v7506
    %v7886 = vpack.c.b16 %v7509, %v7508
    %v7887 = vpack.c.b16 %v7511, %v7510
    %v7888 = vpack.c.b16 %v7513, %v7512
    %v7889 = vpack.c.b16 %v7515, %v7514
    %v7890 = vpack.c.b16 %v7517, %v7516
    %v7891 = vpack.c.b16 %v7519, %v7518
    %v7892 = vpack.c.b16 %v7521, %v7520
    %v7893 = vpack.c.b16 %v7523, %v7522
    %v7894 = vpack.c.b16 %v7525, %v7524
    %v7895 = vpack.c.b16 %v7527, %v7526
    %v7896 = vpack.c.b16 %v7529, %v7528
    %v7897 = vpack.c.b16 %v7531, %v7530
    %v7898 = vpack.c.b16 %v7533, %v7532
    %v7899 = vpack.c.b16 %v7535, %v7534
    %v7900 = vpack.c.b16 %v7537, %v7536
    %v7901 = vpack.c.b16 %v7539, %v7538
    %v7902 = vpack.c.b16 %v7541, %v7540
    %v7903 = vpack.c.b16 %v7543, %v7542
    %v7904 = vpack.c.b16 %v7545, %v7544
    %v7905 = vpack.c.b16 %v7547, %v7546
    %v7906 = vpack.c.b16 %v7549, %v7548
    %v7907 = vpack.c.b16 %v7551, %v7550
    %v7908 = vpack.c.b16 %v7553, %v7552
    %v7909 = vpack.c.b16 %v7555, %v7554
    %v7910 = vpack.c.b16 %v7557, %v7556
    %v7911 = vpack.c.b16 %v7559, %v7558
    %v7912 = vpack.c.b16 %v7561, %v7560
    %v7913 = vpack.c.b16 %v7563, %v7562
    %v7914 = vpack.c.b16 %v7565, %v7564
    %v7915 = vpack.c.b16 %v7567, %v7566
    %v7916 = vpack.c.b16 %v7569, %v7568
    %v7917 = vpack.c.b16 %v7571, %v7570
    %v7918 = vpack.c.b16 %v7573, %v7572
    %v7919 = vpack.c.b16 %v7575, %v7574
    %v7920 = vpack.c.b16 %v7577, %v7576
    %v7921 = vpack.c.b16 %v7579, %v7578
    %v7922 = vpack.c.b16 %v7581, %v7580
    %v7923 = vpack.c.b16 %v7583, %v7582
    %v7924 = vpack.c.b16 %v7585, %v7584
    %v7925 = vpack.c.b16 %v7587, %v7586
    %v7926 = vpack.c.b16 %v7589, %v7588
    %v7927 = vpack.c.b16 %v7591, %v7590
    %v7928 = vpack.c.b16 %v7593, %v7592
    %v7929 = vpack.c.b16 %v7595, %v7594
    %v7930 = vpack.c.b16 %v7597, %v7596
    %v7931 = vpack.c.b16 %v7599, %v7598
    %v7932 = vpack.c.b16 %v7601, %v7600
    %v7933 = vpack.c.b16 %v7603, %v7602
    %v7934 = vpack.c.b16 %v7605, %v7604
    %v7935 = vpack.c.b16 %v7607, %v7606
    %v7936 = vpack.c.b16 %v7609, %v7608
    %v7937 = vpack.c.b16 %v7611, %v7610
    %v7938 = vpack.c.b16 %v7613, %v7612
    %v7939 = vpack.c.b16 %v7615, %v7614
    %v7940 = vpack.c.b16 %v7617, %v7616
    %v7941 = vpack.c.b16 %v7619, %v7618
    %v7942 = vpack.c.b16 %v7621, %v7620
    %v7943 = vpack.c.b16 %v7623, %v7622
    %v7944 = vpack.c.b16 %v7625, %v7624
    %v7945 = vpack.c.b16 %v7627, %v7626
    %v7946 = vpack.c.b16 %v7629, %v7628
    %v7947 = vpack.c.b16 %v7631, %v7630
    %v7948 = vpack.c.b16 %v7633, %v7632
    %v7949 = vpack.c.b16 %v7635, %v7634
    %v7950 = vpack.c.b16 %v7637, %v7636
    %v7951 = vpack.c.b16 %v7639, %v7638
    %v7952 = vpack.c.b16 %v7641, %v7640
    %v7953 = vpack.c.b16 %v7643, %v7642
    %v7954 = vpack.c.b16 %v7645, %v7644
    %v7955 = vpack.c.b16 %v7647, %v7646
    %v7956 = vpack.c.b16 %v7649, %v7648
    %v7957 = vpack.c.b16 %v7651, %v7650
    %v7958 = vpack.c.b16 %v7653, %v7652
    %v7959 = vpack.c.b16 %v7655, %v7654
    %v7960 = vpack.c.b16 %v7657, %v7656
    %v7961 = vpack.c.b16 %v7659, %v7658
    %v7962 = vpack.c.b16 %v7661, %v7660
    %v7963 = vpack.c.b16 %v7663, %v7662
    %v7964 = vpack.c.b16 %v7665, %v7664
    %v7965 = vpack.c.b16 %v7667, %v7666
    %v7966 = vpack.c.b16 %v7669, %v7668
    %v7967 = vpack.c.b16 %v7671, %v7670
    %v7968 = vpack.c.b16 %v7673, %v7672
    %v7969 = vpack.c.b16 %v7675, %v7674
    %v7970 = vpack.c.b16 %v7677, %v7676
    %v7971 = vpack.c.b16 %v7679, %v7678
    %v7972 = vpack.c.b16 %v7681, %v7680
    %v7973 = vpack.c.b16 %v7683, %v7682
    %v7974 = vpack.c.b16 %v7685, %v7684
    %v7975 = vpack.c.b16 %v7687, %v7686
    %8264 = vmatprep.subr.bf16.mxu0 0
    %8265 = vmatpush1.bf16.msra.mxu0 %v7695
    %8266 = vmatprep.subr.bf16.mxu0 0
    %8267 = vmatpush1.bf16.msra.mxu0 %v7694
    %8268 = vmatprep.subr.bf16.mxu0 0
    %8269 = vmatpush1.bf16.msra.mxu0 %v7693
    %8270 = vmatprep.subr.bf16.mxu0 0
    %8271 = vmatpush1.bf16.msra.mxu0 %v7692
    %8272 = vmatprep.subr.bf16.mxu0 0
    %8273 = vmatpush1.bf16.msra.mxu0 %v7691
    %8274 = vmatprep.subr.bf16.mxu0 0
    %8275 = vmatpush1.bf16.msra.mxu0 %v7690
    %8276 = vmatprep.subr.bf16.mxu0 0
    %8277 = vmatpush1.bf16.msra.mxu0 %v7689
    %8278 = vmatprep.subr.bf16.mxu0 0
    %8279 = vmatpush1.bf16.msra.mxu0 %v7688
    %8280 = vmatprep.subr.bf16.mxu0 0
    %8281 = vmatpush2.bf16.msra.mxu0 %v7703
    %8282 = vmatprep.subr.bf16.mxu0 0
    %8283 = vmatpush2.bf16.msra.mxu0 %v7702
    %8284 = vmatprep.subr.bf16.mxu0 0
    %8285 = vmatpush2.bf16.msra.mxu0 %v7701
    %8286 = vmatprep.subr.bf16.mxu0 0
    %8287 = vmatpush2.bf16.msra.mxu0 %v7700
    %8288 = vmatprep.subr.bf16.mxu0 0
    %8289 = vmatpush2.bf16.msra.mxu0 %v7699
    %8290 = vmatprep.subr.bf16.mxu0 0
    %8291 = vmatpush2.bf16.msra.mxu0 %v7698
    %8292 = vmatprep.subr.bf16.mxu0 0
    %8293 = vmatpush2.bf16.msra.mxu0 %v7697
    %8294 = vmatprep.subr.bf16.mxu0 0
    %8295 = vmatpush2.bf16.msra.mxu0 %v7696
    %8296 = vmatprep.mubr.bf16.mxu0 %v5918
    %8297 = vmatmul.mubr.bf16.gmra.mxu0 %v5917
    %v8298 = vpop.f32.mrf.mxu0
    %v8299 = vadd.f32 %v6534, %v8298
    %v8300 = vpop.f32.mrf.mxu0
    %v8301 = vpop.f32.mrf.mxu0
    %v8302 = vpop.f32.mrf.mxu0
    %8303 = vdwg.mxu0
    %8304 = vmatprep.subr.bf16.mxu0 0
    %8305 = vmatpush1.bf16.msra.mxu0 %v7711
    %8306 = vmatprep.subr.bf16.mxu0 0
    %8307 = vmatpush1.bf16.msra.mxu0 %v7710
    %8308 = vmatprep.subr.bf16.mxu0 0
    %8309 = vmatpush1.bf16.msra.mxu0 %v7709
    %8310 = vmatprep.subr.bf16.mxu0 0
    %8311 = vmatpush1.bf16.msra.mxu0 %v7708
    %8312 = vmatprep.subr.bf16.mxu0 0
    %8313 = vmatpush1.bf16.msra.mxu0 %v7707
    %8314 = vmatprep.subr.bf16.mxu0 0
    %8315 = vmatpush1.bf16.msra.mxu0 %v7706
    %8316 = vmatprep.subr.bf16.mxu0 0
    %8317 = vmatpush1.bf16.msra.mxu0 %v7705
    %8318 = vmatprep.subr.bf16.mxu0 0
    %8319 = vmatpush1.bf16.msra.mxu0 %v7704
    %8320 = vmatprep.subr.bf16.mxu0 0
    %8321 = vmatpush2.bf16.msra.mxu0 %v7719
    %8322 = vmatprep.subr.bf16.mxu0 0
    %8323 = vmatpush2.bf16.msra.mxu0 %v7718
    %8324 = vmatprep.subr.bf16.mxu0 0
    %8325 = vmatpush2.bf16.msra.mxu0 %v7717
    %8326 = vmatprep.subr.bf16.mxu0 0
    %8327 = vmatpush2.bf16.msra.mxu0 %v7716
    %8328 = vmatprep.subr.bf16.mxu0 0
    %8329 = vmatpush2.bf16.msra.mxu0 %v7715
    %8330 = vmatprep.subr.bf16.mxu0 0
    %8331 = vmatpush2.bf16.msra.mxu0 %v7714
    %8332 = vmatprep.subr.bf16.mxu0 0
    %8333 = vmatpush2.bf16.msra.mxu0 %v7713
    %8334 = vmatprep.subr.bf16.mxu0 0
    %8335 = vmatpush2.bf16.msra.mxu0 %v7712
    %8336 = vmatprep.mubr.bf16.mxu0 %v5920
    %8337 = vmatmul.mubr.bf16.gmra.mxu0 %v5919
    %v8338 = vpop.f32.mrf.mxu0
    %v8339 = vadd.f32 %v8299, %v8338
    %v8340 = vpop.f32.mrf.mxu0
    %v8341 = vpop.f32.mrf.mxu0
    %v8342 = vpop.f32.mrf.mxu0
    %8343 = vdwg.mxu0
    %8344 = vmatprep.subr.bf16.mxu0 0
    %8345 = vmatpush1.bf16.msra.mxu0 %v7727
    %8346 = vmatprep.subr.bf16.mxu0 0
    %8347 = vmatpush1.bf16.msra.mxu0 %v7726
    %8348 = vmatprep.subr.bf16.mxu0 0
    %8349 = vmatpush1.bf16.msra.mxu0 %v7725
    %8350 = vmatprep.subr.bf16.mxu0 0
    %8351 = vmatpush1.bf16.msra.mxu0 %v7724
    %8352 = vmatprep.subr.bf16.mxu0 0
    %8353 = vmatpush1.bf16.msra.mxu0 %v7723
    %8354 = vmatprep.subr.bf16.mxu0 0
    %8355 = vmatpush1.bf16.msra.mxu0 %v7722
    %8356 = vmatprep.subr.bf16.mxu0 0
    %8357 = vmatpush1.bf16.msra.mxu0 %v7721
    %8358 = vmatprep.subr.bf16.mxu0 0
    %8359 = vmatpush1.bf16.msra.mxu0 %v7720
    %8360 = vmatprep.subr.bf16.mxu0 0
    %8361 = vmatpush2.bf16.msra.mxu0 %v7735
    %8362 = vmatprep.subr.bf16.mxu0 0
    %8363 = vmatpush2.bf16.msra.mxu0 %v7734
    %8364 = vmatprep.subr.bf16.mxu0 0
    %8365 = vmatpush2.bf16.msra.mxu0 %v7733
    %8366 = vmatprep.subr.bf16.mxu0 0
    %8367 = vmatpush2.bf16.msra.mxu0 %v7732
    %8368 = vmatprep.subr.bf16.mxu0 0
    %8369 = vmatpush2.bf16.msra.mxu0 %v7731
    %8370 = vmatprep.subr.bf16.mxu0 0
    %8371 = vmatpush2.bf16.msra.mxu0 %v7730
    %8372 = vmatprep.subr.bf16.mxu0 0
    %8373 = vmatpush2.bf16.msra.mxu0 %v7729
    %8374 = vmatprep.subr.bf16.mxu0 0
    %8375 = vmatpush2.bf16.msra.mxu0 %v7728
    %8376 = vmatprep.mubr.bf16.mxu0 %v5922
    %8377 = vmatmul.mubr.bf16.gmra.mxu0 %v5921
    %v8378 = vpop.f32.mrf.mxu0
    %v8379 = vadd.f32 %v8339, %v8378
    %v8380 = vpop.f32.mrf.mxu0
    %v8381 = vpop.f32.mrf.mxu0
    %v8382 = vpop.f32.mrf.mxu0
    %8383 = vdwg.mxu0
    %8384 = vmatprep.subr.bf16.mxu0 0
    %8385 = vmatpush1.bf16.msra.mxu0 %v7743
    %8386 = vmatprep.subr.bf16.mxu0 0
    %8387 = vmatpush1.bf16.msra.mxu0 %v7742
    %8388 = vmatprep.subr.bf16.mxu0 0
    %8389 = vmatpush1.bf16.msra.mxu0 %v7741
    %8390 = vmatprep.subr.bf16.mxu0 0
    %8391 = vmatpush1.bf16.msra.mxu0 %v7740
    %8392 = vmatprep.subr.bf16.mxu0 0
    %8393 = vmatpush1.bf16.msra.mxu0 %v7739
    %8394 = vmatprep.subr.bf16.mxu0 0
    %8395 = vmatpush1.bf16.msra.mxu0 %v7738
    %8396 = vmatprep.subr.bf16.mxu0 0
    %8397 = vmatpush1.bf16.msra.mxu0 %v7737
    %8398 = vmatprep.subr.bf16.mxu0 0
    %8399 = vmatpush1.bf16.msra.mxu0 %v7736
    %8400 = vmatprep.subr.bf16.mxu0 0
    %8401 = vmatpush2.bf16.msra.mxu0 %v7751
    %8402 = vmatprep.subr.bf16.mxu0 0
    %8403 = vmatpush2.bf16.msra.mxu0 %v7750
    %8404 = vmatprep.subr.bf16.mxu0 0
    %8405 = vmatpush2.bf16.msra.mxu0 %v7749
    %8406 = vmatprep.subr.bf16.mxu0 0
    %8407 = vmatpush2.bf16.msra.mxu0 %v7748
    %8408 = vmatprep.subr.bf16.mxu0 0
    %8409 = vmatpush2.bf16.msra.mxu0 %v7747
    %8410 = vmatprep.subr.bf16.mxu0 0
    %8411 = vmatpush2.bf16.msra.mxu0 %v7746
    %8412 = vmatprep.subr.bf16.mxu0 0
    %8413 = vmatpush2.bf16.msra.mxu0 %v7745
    %8414 = vmatprep.subr.bf16.mxu0 0
    %8415 = vmatpush2.bf16.msra.mxu0 %v7744
    %8416 = vmatprep.mubr.bf16.mxu0 %v5924
    %8417 = vmatmul.mubr.bf16.gmra.mxu0 %v5923
    %v8418 = vpop.f32.mrf.mxu0
    %v8419 = vadd.f32 %v8379, %v8418
    %v8420 = vpop.f32.mrf.mxu0
    %v8421 = vpop.f32.mrf.mxu0
    %v8422 = vpop.f32.mrf.mxu0
    %8423 = vdwg.mxu0
    %8424 = vmatprep.subr.bf16.mxu0 0
    %8425 = vmatpush1.bf16.msra.mxu0 %v7759
    %8426 = vmatprep.subr.bf16.mxu0 0
    %8427 = vmatpush1.bf16.msra.mxu0 %v7758
    %8428 = vmatprep.subr.bf16.mxu0 0
    %8429 = vmatpush1.bf16.msra.mxu0 %v7757
    %8430 = vmatprep.subr.bf16.mxu0 0
    %8431 = vmatpush1.bf16.msra.mxu0 %v7756
    %8432 = vmatprep.subr.bf16.mxu0 0
    %8433 = vmatpush1.bf16.msra.mxu0 %v7755
    %8434 = vmatprep.subr.bf16.mxu0 0
    %8435 = vmatpush1.bf16.msra.mxu0 %v7754
    %8436 = vmatprep.subr.bf16.mxu0 0
    %8437 = vmatpush1.bf16.msra.mxu0 %v7753
    %8438 = vmatprep.subr.bf16.mxu0 0
    %8439 = vmatpush1.bf16.msra.mxu0 %v7752
    %8440 = vmatprep.subr.bf16.mxu0 0
    %8441 = vmatpush2.bf16.msra.mxu0 %v7767
    %8442 = vmatprep.subr.bf16.mxu0 0
    %8443 = vmatpush2.bf16.msra.mxu0 %v7766
    %8444 = vmatprep.subr.bf16.mxu0 0
    %8445 = vmatpush2.bf16.msra.mxu0 %v7765
    %8446 = vmatprep.subr.bf16.mxu0 0
    %8447 = vmatpush2.bf16.msra.mxu0 %v7764
    %8448 = vmatprep.subr.bf16.mxu0 0
    %8449 = vmatpush2.bf16.msra.mxu0 %v7763
    %8450 = vmatprep.subr.bf16.mxu0 0
    %8451 = vmatpush2.bf16.msra.mxu0 %v7762
    %8452 = vmatprep.subr.bf16.mxu0 0
    %8453 = vmatpush2.bf16.msra.mxu0 %v7761
    %8454 = vmatprep.subr.bf16.mxu0 0
    %8455 = vmatpush2.bf16.msra.mxu0 %v7760
    %8456 = vmatprep.mubr.bf16.mxu0 %v5926
    %8457 = vmatmul.mubr.bf16.gmra.mxu0 %v5925
    %v8458 = vpop.f32.mrf.mxu0
    %v8459 = vadd.f32 %v8419, %v8458
    %v8460 = vpop.f32.mrf.mxu0
    %v8461 = vpop.f32.mrf.mxu0
    %v8462 = vpop.f32.mrf.mxu0
    %8463 = vdwg.mxu0
    %8464 = vmatprep.subr.bf16.mxu0 0
    %8465 = vmatpush1.bf16.msra.mxu0 %v7775
    %8466 = vmatprep.subr.bf16.mxu0 0
    %8467 = vmatpush1.bf16.msra.mxu0 %v7774
    %8468 = vmatprep.subr.bf16.mxu0 0
    %8469 = vmatpush1.bf16.msra.mxu0 %v7773
    %8470 = vmatprep.subr.bf16.mxu0 0
    %8471 = vmatpush1.bf16.msra.mxu0 %v7772
    %8472 = vmatprep.subr.bf16.mxu0 0
    %8473 = vmatpush1.bf16.msra.mxu0 %v7771
    %8474 = vmatprep.subr.bf16.mxu0 0
    %8475 = vmatpush1.bf16.msra.mxu0 %v7770
    %8476 = vmatprep.subr.bf16.mxu0 0
    %8477 = vmatpush1.bf16.msra.mxu0 %v7769
    %8478 = vmatprep.subr.bf16.mxu0 0
    %8479 = vmatpush1.bf16.msra.mxu0 %v7768
    %8480 = vmatprep.subr.bf16.mxu0 0
    %8481 = vmatpush2.bf16.msra.mxu0 %v7783
    %8482 = vmatprep.subr.bf16.mxu0 0
    %8483 = vmatpush2.bf16.msra.mxu0 %v7782
    %8484 = vmatprep.subr.bf16.mxu0 0
    %8485 = vmatpush2.bf16.msra.mxu0 %v7781
    %8486 = vmatprep.subr.bf16.mxu0 0
    %8487 = vmatpush2.bf16.msra.mxu0 %v7780
    %8488 = vmatprep.subr.bf16.mxu0 0
    %8489 = vmatpush2.bf16.msra.mxu0 %v7779
    %8490 = vmatprep.subr.bf16.mxu0 0
    %8491 = vmatpush2.bf16.msra.mxu0 %v7778
    %8492 = vmatprep.subr.bf16.mxu0 0
    %8493 = vmatpush2.bf16.msra.mxu0 %v7777
    %8494 = vmatprep.subr.bf16.mxu0 0
    %8495 = vmatpush2.bf16.msra.mxu0 %v7776
    %8496 = vmatprep.mubr.bf16.mxu0 %v5928
    %8497 = vmatmul.mubr.bf16.gmra.mxu0 %v5927
    %v8498 = vpop.f32.mrf.mxu0
    %v8499 = vadd.f32 %v8459, %v8498
    %v8500 = vpop.f32.mrf.mxu0
    %v8501 = vpop.f32.mrf.mxu0
    %v8502 = vpop.f32.mrf.mxu0
    %8503 = vdwg.mxu0
    %8504 = vmatprep.subr.bf16.mxu0 0
    %8505 = vmatpush1.bf16.msra.mxu0 %v7791
    %8506 = vmatprep.subr.bf16.mxu0 0
    %8507 = vmatpush1.bf16.msra.mxu0 %v7790
    %8508 = vmatprep.subr.bf16.mxu0 0
    %8509 = vmatpush1.bf16.msra.mxu0 %v7789
    %8510 = vmatprep.subr.bf16.mxu0 0
    %8511 = vmatpush1.bf16.msra.mxu0 %v7788
    %8512 = vmatprep.subr.bf16.mxu0 0
    %8513 = vmatpush1.bf16.msra.mxu0 %v7787
    %8514 = vmatprep.subr.bf16.mxu0 0
    %8515 = vmatpush1.bf16.msra.mxu0 %v7786
    %8516 = vmatprep.subr.bf16.mxu0 0
    %8517 = vmatpush1.bf16.msra.mxu0 %v7785
    %8518 = vmatprep.subr.bf16.mxu0 0
    %8519 = vmatpush1.bf16.msra.mxu0 %v7784
    %8520 = vmatprep.subr.bf16.mxu0 0
    %8521 = vmatpush2.bf16.msra.mxu0 %v7799
    %8522 = vmatprep.subr.bf16.mxu0 0
    %8523 = vmatpush2.bf16.msra.mxu0 %v7798
    %8524 = vmatprep.subr.bf16.mxu0 0
    %8525 = vmatpush2.bf16.msra.mxu0 %v7797
    %8526 = vmatprep.subr.bf16.mxu0 0
    %8527 = vmatpush2.bf16.msra.mxu0 %v7796
    %8528 = vmatprep.subr.bf16.mxu0 0
    %8529 = vmatpush2.bf16.msra.mxu0 %v7795
    %8530 = vmatprep.subr.bf16.mxu0 0
    %8531 = vmatpush2.bf16.msra.mxu0 %v7794
    %8532 = vmatprep.subr.bf16.mxu0 0
    %8533 = vmatpush2.bf16.msra.mxu0 %v7793
    %8534 = vmatprep.subr.bf16.mxu0 0
    %8535 = vmatpush2.bf16.msra.mxu0 %v7792
    %8536 = vmatprep.mubr.bf16.mxu0 %v5930
    %8537 = vmatmul.mubr.bf16.gmra.mxu0 %v5929
    %v8538 = vpop.f32.mrf.mxu0
    %v8539 = vadd.f32 %v8499, %v8538
    %v8540 = vpop.f32.mrf.mxu0
    %v8541 = vpop.f32.mrf.mxu0
    %v8542 = vpop.f32.mrf.mxu0
    %8543 = vdwg.mxu0
    %8544 = vmatprep.subr.bf16.mxu0 0
    %8545 = vmatpush1.bf16.msra.mxu0 %v7807
    %8546 = vmatprep.subr.bf16.mxu0 0
    %8547 = vmatpush1.bf16.msra.mxu0 %v7806
    %8548 = vmatprep.subr.bf16.mxu0 0
    %8549 = vmatpush1.bf16.msra.mxu0 %v7805
    %8550 = vmatprep.subr.bf16.mxu0 0
    %8551 = vmatpush1.bf16.msra.mxu0 %v7804
    %8552 = vmatprep.subr.bf16.mxu0 0
    %8553 = vmatpush1.bf16.msra.mxu0 %v7803
    %8554 = vmatprep.subr.bf16.mxu0 0
    %8555 = vmatpush1.bf16.msra.mxu0 %v7802
    %8556 = vmatprep.subr.bf16.mxu0 0
    %8557 = vmatpush1.bf16.msra.mxu0 %v7801
    %8558 = vmatprep.subr.bf16.mxu0 0
    %8559 = vmatpush1.bf16.msra.mxu0 %v7800
    %8560 = vmatprep.subr.bf16.mxu0 0
    %8561 = vmatpush2.bf16.msra.mxu0 %v7815
    %8562 = vmatprep.subr.bf16.mxu0 0
    %8563 = vmatpush2.bf16.msra.mxu0 %v7814
    %8564 = vmatprep.subr.bf16.mxu0 0
    %8565 = vmatpush2.bf16.msra.mxu0 %v7813
    %8566 = vmatprep.subr.bf16.mxu0 0
    %8567 = vmatpush2.bf16.msra.mxu0 %v7812
    %8568 = vmatprep.subr.bf16.mxu0 0
    %8569 = vmatpush2.bf16.msra.mxu0 %v7811
    %8570 = vmatprep.subr.bf16.mxu0 0
    %8571 = vmatpush2.bf16.msra.mxu0 %v7810
    %8572 = vmatprep.subr.bf16.mxu0 0
    %8573 = vmatpush2.bf16.msra.mxu0 %v7809
    %8574 = vmatprep.subr.bf16.mxu0 0
    %8575 = vmatpush2.bf16.msra.mxu0 %v7808
    %8576 = vmatprep.mubr.bf16.mxu0 %v5932
    %8577 = vmatmul.mubr.bf16.gmra.mxu0 %v5931
    %v8578 = vpop.f32.mrf.mxu0
    %v8579 = vadd.f32 %v8539, %v8578
    %v8580 = vpop.f32.mrf.mxu0
    %v8581 = vpop.f32.mrf.mxu0
    %v8582 = vpop.f32.mrf.mxu0
    %8583 = vdwg.mxu0
    %8584 = vmatprep.subr.bf16.mxu0 0
    %8585 = vmatpush1.bf16.msra.mxu0 %v7823
    %8586 = vmatprep.subr.bf16.mxu0 0
    %8587 = vmatpush1.bf16.msra.mxu0 %v7822
    %8588 = vmatprep.subr.bf16.mxu0 0
    %8589 = vmatpush1.bf16.msra.mxu0 %v7821
    %8590 = vmatprep.subr.bf16.mxu0 0
    %8591 = vmatpush1.bf16.msra.mxu0 %v7820
    %8592 = vmatprep.subr.bf16.mxu0 0
    %8593 = vmatpush1.bf16.msra.mxu0 %v7819
    %8594 = vmatprep.subr.bf16.mxu0 0
    %8595 = vmatpush1.bf16.msra.mxu0 %v7818
    %8596 = vmatprep.subr.bf16.mxu0 0
    %8597 = vmatpush1.bf16.msra.mxu0 %v7817
    %8598 = vmatprep.subr.bf16.mxu0 0
    %8599 = vmatpush1.bf16.msra.mxu0 %v7816
    %8600 = vmatprep.subr.bf16.mxu0 0
    %8601 = vmatpush2.bf16.msra.mxu0 %v7831
    %8602 = vmatprep.subr.bf16.mxu0 0
    %8603 = vmatpush2.bf16.msra.mxu0 %v7830
    %8604 = vmatprep.subr.bf16.mxu0 0
    %8605 = vmatpush2.bf16.msra.mxu0 %v7829
    %8606 = vmatprep.subr.bf16.mxu0 0
    %8607 = vmatpush2.bf16.msra.mxu0 %v7828
    %8608 = vmatprep.subr.bf16.mxu0 0
    %8609 = vmatpush2.bf16.msra.mxu0 %v7827
    %8610 = vmatprep.subr.bf16.mxu0 0
    %8611 = vmatpush2.bf16.msra.mxu0 %v7826
    %8612 = vmatprep.subr.bf16.mxu0 0
    %8613 = vmatpush2.bf16.msra.mxu0 %v7825
    %8614 = vmatprep.subr.bf16.mxu0 0
    %8615 = vmatpush2.bf16.msra.mxu0 %v7824
    %8616 = vmatprep.mubr.bf16.mxu0 %v5934
    %8617 = vmatmul.mubr.bf16.gmra.mxu0 %v5933
    %v8618 = vpop.f32.mrf.mxu0
    %v8619 = vadd.f32 %v8579, %v8618
    %v8620 = vpop.f32.mrf.mxu0
    %v8621 = vpop.f32.mrf.mxu0
    %v8622 = vpop.f32.mrf.mxu0
    %8623 = vdwg.mxu0
    %8624 = vmatprep.subr.bf16.mxu0 0
    %8625 = vmatpush1.bf16.msra.mxu0 %v7839
    %8626 = vmatprep.subr.bf16.mxu0 0
    %8627 = vmatpush1.bf16.msra.mxu0 %v7838
    %8628 = vmatprep.subr.bf16.mxu0 0
    %8629 = vmatpush1.bf16.msra.mxu0 %v7837
    %8630 = vmatprep.subr.bf16.mxu0 0
    %8631 = vmatpush1.bf16.msra.mxu0 %v7836
    %8632 = vmatprep.subr.bf16.mxu0 0
    %8633 = vmatpush1.bf16.msra.mxu0 %v7835
    %8634 = vmatprep.subr.bf16.mxu0 0
    %8635 = vmatpush1.bf16.msra.mxu0 %v7834
    %8636 = vmatprep.subr.bf16.mxu0 0
    %8637 = vmatpush1.bf16.msra.mxu0 %v7833
    %8638 = vmatprep.subr.bf16.mxu0 0
    %8639 = vmatpush1.bf16.msra.mxu0 %v7832
    %8640 = vmatprep.subr.bf16.mxu0 0
    %8641 = vmatpush2.bf16.msra.mxu0 %v7847
    %8642 = vmatprep.subr.bf16.mxu0 0
    %8643 = vmatpush2.bf16.msra.mxu0 %v7846
    %8644 = vmatprep.subr.bf16.mxu0 0
    %8645 = vmatpush2.bf16.msra.mxu0 %v7845
    %8646 = vmatprep.subr.bf16.mxu0 0
    %8647 = vmatpush2.bf16.msra.mxu0 %v7844
    %8648 = vmatprep.subr.bf16.mxu0 0
    %8649 = vmatpush2.bf16.msra.mxu0 %v7843
    %8650 = vmatprep.subr.bf16.mxu0 0
    %8651 = vmatpush2.bf16.msra.mxu0 %v7842
    %8652 = vmatprep.subr.bf16.mxu0 0
    %8653 = vmatpush2.bf16.msra.mxu0 %v7841
    %8654 = vmatprep.subr.bf16.mxu0 0
    %8655 = vmatpush2.bf16.msra.mxu0 %v7840
    %8656 = vmatprep.mubr.bf16.mxu0 %v5936
    %8657 = vmatmul.mubr.bf16.gmra.mxu0 %v5935
    %v8658 = vpop.f32.mrf.mxu0
    %v8659 = vadd.f32 %v8619, %v8658
    %v8660 = vpop.f32.mrf.mxu0
    %v8661 = vpop.f32.mrf.mxu0
    %v8662 = vpop.f32.mrf.mxu0
    %8663 = vdwg.mxu0
    %8664 = vmatprep.subr.bf16.mxu0 0
    %8665 = vmatpush1.bf16.msra.mxu0 %v7855
    %8666 = vmatprep.subr.bf16.mxu0 0
    %8667 = vmatpush1.bf16.msra.mxu0 %v7854
    %8668 = vmatprep.subr.bf16.mxu0 0
    %8669 = vmatpush1.bf16.msra.mxu0 %v7853
    %8670 = vmatprep.subr.bf16.mxu0 0
    %8671 = vmatpush1.bf16.msra.mxu0 %v7852
    %8672 = vmatprep.subr.bf16.mxu0 0
    %8673 = vmatpush1.bf16.msra.mxu0 %v7851
    %8674 = vmatprep.subr.bf16.mxu0 0
    %8675 = vmatpush1.bf16.msra.mxu0 %v7850
    %8676 = vmatprep.subr.bf16.mxu0 0
    %8677 = vmatpush1.bf16.msra.mxu0 %v7849
    %8678 = vmatprep.subr.bf16.mxu0 0
    %8679 = vmatpush1.bf16.msra.mxu0 %v7848
    %8680 = vmatprep.subr.bf16.mxu0 0
    %8681 = vmatpush2.bf16.msra.mxu0 %v7863
    %8682 = vmatprep.subr.bf16.mxu0 0
    %8683 = vmatpush2.bf16.msra.mxu0 %v7862
    %8684 = vmatprep.subr.bf16.mxu0 0
    %8685 = vmatpush2.bf16.msra.mxu0 %v7861
    %8686 = vmatprep.subr.bf16.mxu0 0
    %8687 = vmatpush2.bf16.msra.mxu0 %v7860
    %8688 = vmatprep.subr.bf16.mxu0 0
    %8689 = vmatpush2.bf16.msra.mxu0 %v7859
    %8690 = vmatprep.subr.bf16.mxu0 0
    %8691 = vmatpush2.bf16.msra.mxu0 %v7858
    %8692 = vmatprep.subr.bf16.mxu0 0
    %8693 = vmatpush2.bf16.msra.mxu0 %v7857
    %8694 = vmatprep.subr.bf16.mxu0 0
    %8695 = vmatpush2.bf16.msra.mxu0 %v7856
    %8696 = vmatprep.mubr.bf16.mxu0 %v5938
    %8697 = vmatmul.mubr.bf16.gmra.mxu0 %v5937
    %v8698 = vpop.f32.mrf.mxu0
    %v8699 = vadd.f32 %v8659, %v8698
    %v8700 = vpop.f32.mrf.mxu0
    %v8701 = vpop.f32.mrf.mxu0
    %v8702 = vpop.f32.mrf.mxu0
    %8703 = vdwg.mxu0
    %8704 = vmatprep.subr.bf16.mxu0 0
    %8705 = vmatpush1.bf16.msra.mxu0 %v7871
    %8706 = vmatprep.subr.bf16.mxu0 0
    %8707 = vmatpush1.bf16.msra.mxu0 %v7870
    %8708 = vmatprep.subr.bf16.mxu0 0
    %8709 = vmatpush1.bf16.msra.mxu0 %v7869
    %8710 = vmatprep.subr.bf16.mxu0 0
    %8711 = vmatpush1.bf16.msra.mxu0 %v7868
    %8712 = vmatprep.subr.bf16.mxu0 0
    %8713 = vmatpush1.bf16.msra.mxu0 %v7867
    %8714 = vmatprep.subr.bf16.mxu0 0
    %8715 = vmatpush1.bf16.msra.mxu0 %v7866
    %8716 = vmatprep.subr.bf16.mxu0 0
    %8717 = vmatpush1.bf16.msra.mxu0 %v7865
    %8718 = vmatprep.subr.bf16.mxu0 0
    %8719 = vmatpush1.bf16.msra.mxu0 %v7864
    %8720 = vmatprep.subr.bf16.mxu0 0
    %8721 = vmatpush2.bf16.msra.mxu0 %v7879
    %8722 = vmatprep.subr.bf16.mxu0 0
    %8723 = vmatpush2.bf16.msra.mxu0 %v7878
    %8724 = vmatprep.subr.bf16.mxu0 0
    %8725 = vmatpush2.bf16.msra.mxu0 %v7877
    %8726 = vmatprep.subr.bf16.mxu0 0
    %8727 = vmatpush2.bf16.msra.mxu0 %v7876
    %8728 = vmatprep.subr.bf16.mxu0 0
    %8729 = vmatpush2.bf16.msra.mxu0 %v7875
    %8730 = vmatprep.subr.bf16.mxu0 0
    %8731 = vmatpush2.bf16.msra.mxu0 %v7874
    %8732 = vmatprep.subr.bf16.mxu0 0
    %8733 = vmatpush2.bf16.msra.mxu0 %v7873
    %8734 = vmatprep.subr.bf16.mxu0 0
    %8735 = vmatpush2.bf16.msra.mxu0 %v7872
    %8736 = vmatprep.mubr.bf16.mxu0 %v5940
    %8737 = vmatmul.mubr.bf16.gmra.mxu0 %v5939
    %v8738 = vpop.f32.mrf.mxu0
    %v8739 = vadd.f32 %v8699, %v8738
    %v8740 = vpop.f32.mrf.mxu0
    %v8741 = vpop.f32.mrf.mxu0
    %v8742 = vpop.f32.mrf.mxu0
    %8743 = vdwg.mxu0
    %8744 = vmatprep.subr.bf16.mxu0 0
    %8745 = vmatpush1.bf16.msra.mxu0 %v7887
    %8746 = vmatprep.subr.bf16.mxu0 0
    %8747 = vmatpush1.bf16.msra.mxu0 %v7886
    %8748 = vmatprep.subr.bf16.mxu0 0
    %8749 = vmatpush1.bf16.msra.mxu0 %v7885
    %8750 = vmatprep.subr.bf16.mxu0 0
    %8751 = vmatpush1.bf16.msra.mxu0 %v7884
    %8752 = vmatprep.subr.bf16.mxu0 0
    %8753 = vmatpush1.bf16.msra.mxu0 %v7883
    %8754 = vmatprep.subr.bf16.mxu0 0
    %8755 = vmatpush1.bf16.msra.mxu0 %v7882
    %8756 = vmatprep.subr.bf16.mxu0 0
    %8757 = vmatpush1.bf16.msra.mxu0 %v7881
    %8758 = vmatprep.subr.bf16.mxu0 0
    %8759 = vmatpush1.bf16.msra.mxu0 %v7880
    %8760 = vmatprep.subr.bf16.mxu0 0
    %8761 = vmatpush2.bf16.msra.mxu0 %v7895
    %8762 = vmatprep.subr.bf16.mxu0 0
    %8763 = vmatpush2.bf16.msra.mxu0 %v7894
    %8764 = vmatprep.subr.bf16.mxu0 0
    %8765 = vmatpush2.bf16.msra.mxu0 %v7893
    %8766 = vmatprep.subr.bf16.mxu0 0
    %8767 = vmatpush2.bf16.msra.mxu0 %v7892
    %8768 = vmatprep.subr.bf16.mxu0 0
    %8769 = vmatpush2.bf16.msra.mxu0 %v7891
    %8770 = vmatprep.subr.bf16.mxu0 0
    %8771 = vmatpush2.bf16.msra.mxu0 %v7890
    %8772 = vmatprep.subr.bf16.mxu0 0
    %8773 = vmatpush2.bf16.msra.mxu0 %v7889
    %8774 = vmatprep.subr.bf16.mxu0 0
    %8775 = vmatpush2.bf16.msra.mxu0 %v7888
    %8776 = vmatprep.mubr.bf16.mxu0 %v5942
    %8777 = vmatmul.mubr.bf16.gmra.mxu0 %v5941
    %v8778 = vpop.f32.mrf.mxu0
    %v8779 = vadd.f32 %v8739, %v8778
    %v8780 = vpop.f32.mrf.mxu0
    %v8781 = vpop.f32.mrf.mxu0
    %v8782 = vpop.f32.mrf.mxu0
    %8783 = vdwg.mxu0
    %8784 = vmatprep.subr.bf16.mxu0 0
    %8785 = vmatpush1.bf16.msra.mxu0 %v7903
    %8786 = vmatprep.subr.bf16.mxu0 0
    %8787 = vmatpush1.bf16.msra.mxu0 %v7902
    %8788 = vmatprep.subr.bf16.mxu0 0
    %8789 = vmatpush1.bf16.msra.mxu0 %v7901
    %8790 = vmatprep.subr.bf16.mxu0 0
    %8791 = vmatpush1.bf16.msra.mxu0 %v7900
    %8792 = vmatprep.subr.bf16.mxu0 0
    %8793 = vmatpush1.bf16.msra.mxu0 %v7899
    %8794 = vmatprep.subr.bf16.mxu0 0
    %8795 = vmatpush1.bf16.msra.mxu0 %v7898
    %8796 = vmatprep.subr.bf16.mxu0 0
    %8797 = vmatpush1.bf16.msra.mxu0 %v7897
    %8798 = vmatprep.subr.bf16.mxu0 0
    %8799 = vmatpush1.bf16.msra.mxu0 %v7896
    %8800 = vmatprep.subr.bf16.mxu0 0
    %8801 = vmatpush2.bf16.msra.mxu0 %v7911
    %8802 = vmatprep.subr.bf16.mxu0 0
    %8803 = vmatpush2.bf16.msra.mxu0 %v7910
    %8804 = vmatprep.subr.bf16.mxu0 0
    %8805 = vmatpush2.bf16.msra.mxu0 %v7909
    %8806 = vmatprep.subr.bf16.mxu0 0
    %8807 = vmatpush2.bf16.msra.mxu0 %v7908
    %8808 = vmatprep.subr.bf16.mxu0 0
    %8809 = vmatpush2.bf16.msra.mxu0 %v7907
    %8810 = vmatprep.subr.bf16.mxu0 0
    %8811 = vmatpush2.bf16.msra.mxu0 %v7906
    %8812 = vmatprep.subr.bf16.mxu0 0
    %8813 = vmatpush2.bf16.msra.mxu0 %v7905
    %8814 = vmatprep.subr.bf16.mxu0 0
    %8815 = vmatpush2.bf16.msra.mxu0 %v7904
    %8816 = vmatprep.mubr.bf16.mxu0 %v5944
    %8817 = vmatmul.mubr.bf16.gmra.mxu0 %v5943
    %v8818 = vpop.f32.mrf.mxu0
    %v8819 = vadd.f32 %v8779, %v8818
    %v8820 = vpop.f32.mrf.mxu0
    %v8821 = vpop.f32.mrf.mxu0
    %v8822 = vpop.f32.mrf.mxu0
    %8823 = vdwg.mxu0
    %8824 = vmatprep.subr.bf16.mxu0 0
    %8825 = vmatpush1.bf16.msra.mxu0 %v7919
    %8826 = vmatprep.subr.bf16.mxu0 0
    %8827 = vmatpush1.bf16.msra.mxu0 %v7918
    %8828 = vmatprep.subr.bf16.mxu0 0
    %8829 = vmatpush1.bf16.msra.mxu0 %v7917
    %8830 = vmatprep.subr.bf16.mxu0 0
    %8831 = vmatpush1.bf16.msra.mxu0 %v7916
    %8832 = vmatprep.subr.bf16.mxu0 0
    %8833 = vmatpush1.bf16.msra.mxu0 %v7915
    %8834 = vmatprep.subr.bf16.mxu0 0
    %8835 = vmatpush1.bf16.msra.mxu0 %v7914
    %8836 = vmatprep.subr.bf16.mxu0 0
    %8837 = vmatpush1.bf16.msra.mxu0 %v7913
    %8838 = vmatprep.subr.bf16.mxu0 0
    %8839 = vmatpush1.bf16.msra.mxu0 %v7912
    %8840 = vmatprep.subr.bf16.mxu0 0
    %8841 = vmatpush2.bf16.msra.mxu0 %v7927
    %8842 = vmatprep.subr.bf16.mxu0 0
    %8843 = vmatpush2.bf16.msra.mxu0 %v7926
    %8844 = vmatprep.subr.bf16.mxu0 0
    %8845 = vmatpush2.bf16.msra.mxu0 %v7925
    %8846 = vmatprep.subr.bf16.mxu0 0
    %8847 = vmatpush2.bf16.msra.mxu0 %v7924
    %8848 = vmatprep.subr.bf16.mxu0 0
    %8849 = vmatpush2.bf16.msra.mxu0 %v7923
    %8850 = vmatprep.subr.bf16.mxu0 0
    %8851 = vmatpush2.bf16.msra.mxu0 %v7922
    %8852 = vmatprep.subr.bf16.mxu0 0
    %8853 = vmatpush2.bf16.msra.mxu0 %v7921
    %8854 = vmatprep.subr.bf16.mxu0 0
    %8855 = vmatpush2.bf16.msra.mxu0 %v7920
    %8856 = vmatprep.mubr.bf16.mxu0 %v5946
    %8857 = vmatmul.mubr.bf16.gmra.mxu0 %v5945
    %v8858 = vpop.f32.mrf.mxu0
    %v8859 = vadd.f32 %v8819, %v8858
    %v8860 = vpop.f32.mrf.mxu0
    %v8861 = vpop.f32.mrf.mxu0
    %v8862 = vpop.f32.mrf.mxu0
    %8863 = vdwg.mxu0
    %8864 = vmatprep.subr.bf16.mxu0 0
    %8865 = vmatpush1.bf16.msra.mxu0 %v7935
    %8866 = vmatprep.subr.bf16.mxu0 0
    %8867 = vmatpush1.bf16.msra.mxu0 %v7934
    %8868 = vmatprep.subr.bf16.mxu0 0
    %8869 = vmatpush1.bf16.msra.mxu0 %v7933
    %8870 = vmatprep.subr.bf16.mxu0 0
    %8871 = vmatpush1.bf16.msra.mxu0 %v7932
    %8872 = vmatprep.subr.bf16.mxu0 0
    %8873 = vmatpush1.bf16.msra.mxu0 %v7931
    %8874 = vmatprep.subr.bf16.mxu0 0
    %8875 = vmatpush1.bf16.msra.mxu0 %v7930
    %8876 = vmatprep.subr.bf16.mxu0 0
    %8877 = vmatpush1.bf16.msra.mxu0 %v7929
    %8878 = vmatprep.subr.bf16.mxu0 0
    %8879 = vmatpush1.bf16.msra.mxu0 %v7928
    %8880 = vmatprep.subr.bf16.mxu0 0
    %8881 = vmatpush2.bf16.msra.mxu0 %v7943
    %8882 = vmatprep.subr.bf16.mxu0 0
    %8883 = vmatpush2.bf16.msra.mxu0 %v7942
    %8884 = vmatprep.subr.bf16.mxu0 0
    %8885 = vmatpush2.bf16.msra.mxu0 %v7941
    %8886 = vmatprep.subr.bf16.mxu0 0
    %8887 = vmatpush2.bf16.msra.mxu0 %v7940
    %8888 = vmatprep.subr.bf16.mxu0 0
    %8889 = vmatpush2.bf16.msra.mxu0 %v7939
    %8890 = vmatprep.subr.bf16.mxu0 0
    %8891 = vmatpush2.bf16.msra.mxu0 %v7938
    %8892 = vmatprep.subr.bf16.mxu0 0
    %8893 = vmatpush2.bf16.msra.mxu0 %v7937
    %8894 = vmatprep.subr.bf16.mxu0 0
    %8895 = vmatpush2.bf16.msra.mxu0 %v7936
    %8896 = vmatprep.mubr.bf16.mxu0 %v5948
    %8897 = vmatmul.mubr.bf16.gmra.mxu0 %v5947
    %v8898 = vpop.f32.mrf.mxu0
    %v8899 = vadd.f32 %v8859, %v8898
    %v8900 = vpop.f32.mrf.mxu0
    %v8901 = vpop.f32.mrf.mxu0
    %v8902 = vpop.f32.mrf.mxu0
    %8903 = vdwg.mxu0
    %8904 = vmatprep.subr.bf16.mxu0 0
    %8905 = vmatpush1.bf16.msra.mxu0 %v7951
    %8906 = vmatprep.subr.bf16.mxu0 0
    %8907 = vmatpush1.bf16.msra.mxu0 %v7950
    %8908 = vmatprep.subr.bf16.mxu0 0
    %8909 = vmatpush1.bf16.msra.mxu0 %v7949
    %8910 = vmatprep.subr.bf16.mxu0 0
    %8911 = vmatpush1.bf16.msra.mxu0 %v7948
    %8912 = vmatprep.subr.bf16.mxu0 0
    %8913 = vmatpush1.bf16.msra.mxu0 %v7947
    %8914 = vmatprep.subr.bf16.mxu0 0
    %8915 = vmatpush1.bf16.msra.mxu0 %v7946
    %8916 = vmatprep.subr.bf16.mxu0 0
    %8917 = vmatpush1.bf16.msra.mxu0 %v7945
    %8918 = vmatprep.subr.bf16.mxu0 0
    %8919 = vmatpush1.bf16.msra.mxu0 %v7944
    %8920 = vmatprep.subr.bf16.mxu0 0
    %8921 = vmatpush2.bf16.msra.mxu0 %v7959
    %8922 = vmatprep.subr.bf16.mxu0 0
    %8923 = vmatpush2.bf16.msra.mxu0 %v7958
    %8924 = vmatprep.subr.bf16.mxu0 0
    %8925 = vmatpush2.bf16.msra.mxu0 %v7957
    %8926 = vmatprep.subr.bf16.mxu0 0
    %8927 = vmatpush2.bf16.msra.mxu0 %v7956
    %8928 = vmatprep.subr.bf16.mxu0 0
    %8929 = vmatpush2.bf16.msra.mxu0 %v7955
    %8930 = vmatprep.subr.bf16.mxu0 0
    %8931 = vmatpush2.bf16.msra.mxu0 %v7954
    %8932 = vmatprep.subr.bf16.mxu0 0
    %8933 = vmatpush2.bf16.msra.mxu0 %v7953
    %8934 = vmatprep.subr.bf16.mxu0 0
    %8935 = vmatpush2.bf16.msra.mxu0 %v7952
    %8936 = vmatprep.mubr.bf16.mxu0 %v5950
    %8937 = vmatmul.mubr.bf16.gmra.mxu0 %v5949
    %v8938 = vpop.f32.mrf.mxu0
    %v8939 = vadd.f32 %v8899, %v8938
    %v8940 = vpop.f32.mrf.mxu0
    %v8941 = vpop.f32.mrf.mxu0
    %v8942 = vpop.f32.mrf.mxu0
    %8943 = vdwg.mxu0
    %8944 = vmatprep.subr.bf16.mxu0 0
    %8945 = vmatpush1.bf16.msra.mxu0 %v7967
    %8946 = vmatprep.subr.bf16.mxu0 0
    %8947 = vmatpush1.bf16.msra.mxu0 %v7966
    %8948 = vmatprep.subr.bf16.mxu0 0
    %8949 = vmatpush1.bf16.msra.mxu0 %v7965
    %8950 = vmatprep.subr.bf16.mxu0 0
    %8951 = vmatpush1.bf16.msra.mxu0 %v7964
    %8952 = vmatprep.subr.bf16.mxu0 0
    %8953 = vmatpush1.bf16.msra.mxu0 %v7963
    %8954 = vmatprep.subr.bf16.mxu0 0
    %8955 = vmatpush1.bf16.msra.mxu0 %v7962
    %8956 = vmatprep.subr.bf16.mxu0 0
    %8957 = vmatpush1.bf16.msra.mxu0 %v7961
    %8958 = vmatprep.subr.bf16.mxu0 0
    %8959 = vmatpush1.bf16.msra.mxu0 %v7960
    %8960 = vmatprep.subr.bf16.mxu0 0
    %8961 = vmatpush2.bf16.msra.mxu0 %v7975
    %8962 = vmatprep.subr.bf16.mxu0 0
    %8963 = vmatpush2.bf16.msra.mxu0 %v7974
    %8964 = vmatprep.subr.bf16.mxu0 0
    %8965 = vmatpush2.bf16.msra.mxu0 %v7973
    %8966 = vmatprep.subr.bf16.mxu0 0
    %8967 = vmatpush2.bf16.msra.mxu0 %v7972
    %8968 = vmatprep.subr.bf16.mxu0 0
    %8969 = vmatpush2.bf16.msra.mxu0 %v7971
    %8970 = vmatprep.subr.bf16.mxu0 0
    %8971 = vmatpush2.bf16.msra.mxu0 %v7970
    %8972 = vmatprep.subr.bf16.mxu0 0
    %8973 = vmatpush2.bf16.msra.mxu0 %v7969
    %8974 = vmatprep.subr.bf16.mxu0 0
    %8975 = vmatpush2.bf16.msra.mxu0 %v7968
    %8976 = vmatprep.mubr.bf16.mxu0 %v5952
    %8977 = vmatmul.mubr.bf16.gmra.mxu0 %v5951
    %v8978 = vpop.f32.mrf.mxu0
    %v8979 = vadd.f32 %v8939, %v8978
    %v8980 = vpop.f32.mrf.mxu0
    %v8981 = vpop.f32.mrf.mxu0
    %v8982 = vpop.f32.mrf.mxu0
    %8983 = vdwg.mxu0
    %v8984 = vmax.f32 %v8979, 0.0
    %v8985 = vpack.c.bf16 %v8984, %v8984
    %v8986 = vld [vmem:[%s7] sm:$0xf]
    %v8987 = vld [vmem:[%s7 + $0x4] sm:$0xf]
    %v8988 = vld [vmem:[%s7 + $0x8] sm:$0xf]
    %v8989 = vld [vmem:[%s7 + $0xc] sm:$0xf]
    %v8990 = vld [vmem:[%s7 + $0x10] sm:$0xf]
    %v8991 = vld [vmem:[%s7 + $0x14] sm:$0xf]
    %v8992 = vld [vmem:[%s7 + $0x18] sm:$0xf]
    %v8993 = vld [vmem:[%s7 + $0x1c] sm:$0xf]
    %v8994 = vld [vmem:[#allocation10] sm:$0x1]
    %v8996 = vlaneseq
    %v8997 = vshrl.u32 %v8996, 7
    %v8998 = vsub.s32 0, %v8997
    %v8999 = vrot.slane %v8994, %v8998
    %v9009 = vunpack.c.l.b16 %v8986
    %v9010 = vunpack.c.l.b16 %v8987
    %v9011 = vunpack.c.l.b16 %v8988
    %v9012 = vunpack.c.l.b16 %v8989
    %v9013 = vunpack.c.l.b16 %v8990
    %v9014 = vunpack.c.l.b16 %v8991
    %v9015 = vunpack.c.l.b16 %v8992
    %v9016 = vunpack.c.l.b16 %v8993
    %v9017 = vpack.c.b16 %v9010, %v9009
    %v9018 = vpack.c.b16 %v9012, %v9011
    %v9019 = vpack.c.b16 %v9014, %v9013
    %v9020 = vpack.c.b16 %v9016, %v9015
    %v9026 = vsel %vm981, %v8985, 0
    %9028 = vmatprep.subr.bf16.mxu0 0
    %9029 = vmatpush1.bf16.msra.mxu0 0
    %9030 = vmatprep.subr.bf16.mxu0 0
    %9031 = vmatpush1.bf16.msra.mxu0 0
    %9032 = vmatprep.subr.bf16.mxu0 0
    %9033 = vmatpush1.bf16.msra.mxu0 0
    %9034 = vmatprep.subr.bf16.mxu0 0
    %9035 = vmatpush1.bf16.msra.mxu0 0
    %9036 = vmatprep.subr.bf16.mxu0 0
    %9037 = vmatpush1.bf16.msra.mxu0 %v9020
    %9038 = vmatprep.subr.bf16.mxu0 0
    %9039 = vmatpush1.bf16.msra.mxu0 %v9019
    %9040 = vmatprep.subr.bf16.mxu0 0
    %9041 = vmatpush1.bf16.msra.mxu0 %v9018
    %9042 = vmatprep.subr.bf16.mxu0 0
    %9043 = vmatpush1.bf16.msra.mxu0 %v9017
    %9044 = vmatprep.subr.bf16.mxu0 0
    %9045 = vmatpush2.bf16.msra.mxu0 0
    %9046 = vmatprep.subr.bf16.mxu0 0
    %9047 = vmatpush2.bf16.msra.mxu0 0
    %9048 = vmatprep.subr.bf16.mxu0 0
    %9049 = vmatpush2.bf16.msra.mxu0 0
    %9050 = vmatprep.subr.bf16.mxu0 0
    %9051 = vmatpush2.bf16.msra.mxu0 0
    %9052 = vmatprep.subr.bf16.mxu0 0
    %9053 = vmatpush2.bf16.msra.mxu0 0
    %9054 = vmatprep.subr.bf16.mxu0 0
    %9055 = vmatpush2.bf16.msra.mxu0 0
    %9056 = vmatprep.subr.bf16.mxu0 0
    %9057 = vmatpush2.bf16.msra.mxu0 0
    %9058 = vmatprep.subr.bf16.mxu0 0
    %9059 = vmatpush2.bf16.msra.mxu0 0
    %9060 = vmatprep.mubr.bf16.mxu0 0
    %9061 = vmatmul.mubr.bf16.gmra.mxu0 %v9026
    %v9062 = vpop.f32.mrf.mxu0
    %v9063 = vadd.f32 %v8999, %v9062
    %v9064 = vpop.f32.mrf.mxu0
    %v9065 = vpop.f32.mrf.mxu0
    %v9066 = vpop.f32.mrf.mxu0
    %9067 = vdwg.mxu0
    %vm9068 = vcmask 74752
    %v9069 = vsel %vm9068, %v9063, -inf
    %9070 = vmax.xlane.f32.xlu0 %v9069
    %v9071 = vpop.xlane.xlu0 %9070
    %v9072 = vsub.f32 %v9063, %v9071
    %v9073 = vmul.f32 %v9072, 1.442695
    %v9074 = vpow.pop %v9073
    %v9075 = vsel %vm9068, %v9074, 0.0
    %9076 = vadd.xlane.f32.xlu0 %v9075
    %v9077 = vpop.xlane.xlu0 %9076
    %v9078 = vlog2.pop %v9077
    %v9079 = vmul.f32 %v9078, 0.6931472
    %v9080 = vsub.f32 %v9072, %v9079
    %9081 = vst.msk [vmem:[#allocation11] sm:$0x3] %vm9068, %v9080
    // Predicated region
    $region58: #{net_forward.1} parent=1 // pred_check
      _
    $region59: #{net_forward.1} parent=1 // pred_check_branch
      %9083 = sbr.rel (0) target = $region61
    $region60: #{net_forward.1} parent=1 // pred_region
      %s9085 = ssub.s32 32, 32
      %9086 = vsyncadd [#allocation4], %s9085
      %s9088 = sshll.u32 [#allocation11], 4
      %s9089 = int_to_ptr.vmem [resolvable:$true] %s9088
      %9091 = dma.vmem_to_hbm [thread:$0]  %s9089, 32, %s9, [#allocation4]
    $region61: #{net_forward.1} parent=1 // pred_fallthru
      _
    // Predicated region
    $region62: #{net_forward.1} parent=1 // pred_check
      _
    $region63: #{net_forward.1} parent=1 // pred_check_branch
      %9093 = sbr.rel (0) target = $region65
    $region64: #{net_forward.1} parent=1 // pred_region
      %9094 = dma.done [#allocation4], 32
    $region65: #{net_forward.1} parent=1 // pred_fallthru
      _
    %9095 = vsyncpa [#allocation3], 1
    %9096 = vsyncpa [#allocation6], 1
    %9097 = vsyncpa [#allocation9], 1
    %9098 = vsyncpa [#allocation4], 1

</llo_original>
